<compile_context>
chip_gen: v7x
topology: tpu7x:2x2x1
jax: 0.10.0
libtpu: 0.0.40
codegen_flags: <defaults>
</compile_context>

<pallas_src>
import jax
import jax.numpy as jnp
import numpy as np
from jax.experimental import pallas as pl
from jax.experimental.pallas import tpu as pltpu


def _make_stnkd_kernel(ch):
    """Build the fused kernel with a static conv3 column-chunk width `ch`."""

    def stnkd_kernel(x_ref,
                     w1, t1, w2, t2, w3, t3,
                     w4, t4, w5, t5, w6, b6,
                     out_ref):
        """Fused conv1/2/3 + point-max + fc1/2/3 for a tile of TB batch elements.

        x_ref   : (TB, k, N) float32, PyTorch Conv1d NCW layout (transposed in-kernel).
        w*      : (Cin, Cout) bfloat16, BN scale folded into the columns.
        t*      : (1, Cout) float32 = layer_bias * bn_scale + bn_shift.
        w6, b6  : final linear; b6 already includes the flattened identity.
        out_ref : (TB, k*k) float32.
        """
        TB, k, N = x_ref.shape

        # ---- conv1 (k -> 64): one batched XLU transpose + layout-preserving reshape so
        # the MXU sees a single (TB*N, k) @ (k, 64) matmul for the whole batch tile.
        xt = jnp.swapaxes(x_ref[...], 1, 2).reshape(TB * N, k)        # (TB*N, k) f32
        h = jnp.dot(xt.astype(jnp.bfloat16), w1[...],
                    preferred_element_type=jnp.float32)
        h = jnp.maximum(h + t1[...], 0.0).astype(jnp.bfloat16)        # (TB*N, 64)

        # ---- conv2 (64 -> 128)
        h = jnp.dot(h, w2[...], preferred_element_type=jnp.float32)
        h = jnp.maximum(h + t2[...], 0.0).astype(jnp.bfloat16)        # (TB*N, 128)

        # ---- conv3 (128 -> 1024), column-chunked; per-chunk max over the N points via a
        # free sublane split (b*N boundaries are 128-row aligned). Bias/ReLU after the
        # max is exact (the BN scale is already inside w3).
        C3 = w3.shape[1]
        n_ch = C3 // ch
        if n_ch == 1:
            z = jnp.dot(h, w3[...], preferred_element_type=jnp.float32)
            g = jnp.max(z.reshape(TB, N, C3), axis=1)                 # (TB, 1024)
        else:
            parts = []
            for c in range(n_ch):
                z = jnp.dot(h, w3[:, c * ch:(c + 1) * ch],
                            preferred_element_type=jnp.float32)       # (TB*N, ch) f32
                parts.append(jnp.max(z.reshape(TB, N, ch), axis=1))   # (TB, ch)
            g = jnp.concatenate(parts, axis=1)                        # (TB, 1024)
        g = jnp.maximum(g + t3[...], 0.0).astype(jnp.bfloat16)

        # ---- fc1 / fc2 / fc3 (fused; tiny vs. the conv stages)
        h = jnp.dot(g, w4[...], preferred_element_type=jnp.float32)
        h = jnp.maximum(h + t4[...], 0.0).astype(jnp.bfloat16)        # (TB, 512)
        h = jnp.dot(h, w5[...], preferred_element_type=jnp.float32)
        h = jnp.maximum(h + t5[...], 0.0).astype(jnp.bfloat16)        # (TB, 256)
        y = jnp.dot(h, w6[...], preferred_element_type=jnp.float32) + b6[...]
        out_ref[...] = y                                              # (TB, k*k)

    return stnkd_kernel


# ---------------------------- tiling heuristics ----------------------------

def _num_tensorcores():
    """Best-effort TensorCore count (1 on v5e/v6e, 2 on v7x); safe fallback = 1."""
    try:
        return max(1, int(getattr(jax.devices()[0], "num_cores", 1)))
    except Exception:
        return 1


def _pick_tb(B, num_cores=1, max_tb=8):
    """Largest sublane-aligned batch tile (multiple of 8, or == B) dividing B.

    Prefers >= num_cores grid steps only when achievable with an aligned tile; on
    single-TC chips this simply takes the biggest tile (grid of 1 serial step).
    """
    hi = min(B, max_tb)
    aligned = [tb for tb in range(1, hi + 1)
               if B % tb == 0 and (tb % 8 == 0 or tb == B)]
    cands = aligned if aligned else [tb for tb in range(1, hi + 1) if B % tb == 0]
    multi = [tb for tb in cands if B // tb >= num_cores]
    return max(multi) if multi else max(cands)


def _vmem_estimate_bytes(TB, N, k, ch):
    """Rough VMEM footprint: double-buffered I/O blocks, resident weights, activations."""
    io = 2 * 4 * (TB * k * N + TB * k * k)
    w_elems = k * 64 + 64 * 128 + 128 * 1024 + 1024 * 512 + 512 * 256 + 256 * k * k
    b_elems = 64 + 128 + 1024 + 512 + 256 + k * k
    wts = 2 * (2 * w_elems + 4 * b_elems)                 # bf16 weights (x2 buf) + f32 biases
    act = TB * N * (6 * k + 6 * 64 + 6 * 128)             # xt/h1/h2 in f32 + bf16
    act += 2 * 4 * TB * N * ch                            # one f32 conv3 chunk (+headroom)
    act += 4 * TB * 2048                                  # pooled feature + fc intermediates
    return io + wts + act


def _pick_conv3_chunk(TB, N, k, budget_bytes=40 << 20):
    """Largest conv3 column chunk (multiple of 128) fitting a v7x-safe VMEM budget."""
    for ch in (1024, 512, 256, 128):
        if _vmem_estimate_bytes(TB, N, k, ch) <= budget_bytes:
            return ch
    return 128


# -------------------------------- wrapper ----------------------------------

def stnkd_forward(x_bcn, folded_params, k, max_tb=8):
    """x_bcn: (B, k, N) float32 in PyTorch Conv1d NCW layout."""
    B, cin, N = x_bcn.shape
    assert cin == k
    (w1, t1, w2, t2, w3, t3, w4, t4, w5, t5, w6, b6) = folded_params

    TB = _pick_tb(B, _num_tensorcores(), max_tb)
    ch = _pick_conv3_chunk(TB, N, k)
    est = _vmem_estimate_bytes(TB, N, k, ch)
    vmem_limit = int(min(max(1.5 * est, 32 << 20), 48 << 20))

    weights = (w1, t1, w2, t2, w3, t3, w4, t4, w5, t5, w6, b6)
    # Constant-index blocks: fetched once, resident in VMEM across all grid steps.
    # (pl.Buffered(1) on these would shave a little more VMEM on v7x; omitted for safety.)
    full = lambda a: pl.BlockSpec(a.shape, lambda b: (0, 0))

    out = pl.pallas_call(
        _make_stnkd_kernel(ch),
        out_shape=jax.ShapeDtypeStruct((B, k * k), jnp.float32),
        grid=(B // TB,),
        in_specs=[pl.BlockSpec((TB, k, N), lambda b: (b, 0, 0))]
                 + [full(a) for a in weights],
        out_specs=pl.BlockSpec((TB, k * k), lambda b: (b, 0)),
        compiler_params=pltpu.CompilerParams(
            dimension_semantics=("parallel",),
            vmem_limit_bytes=vmem_limit),
    )(x_bcn, *weights)
    return out.reshape(B, k, k)


# ------------------------- parameter construction -------------------------

def make_raw_params(key, k):
    """Random PyTorch-equivalent parameters; weights stored (Cin, Cout)."""
    dims = [(k, 64), (64, 128), (128, 1024), (1024, 512), (512, 256), (256, k * k)]
    keys = jax.random.split(key, len(dims))
    layers = []
    for kk, (cin, cout) in zip(keys, dims):
        kw, kb, kg, kbe, km, kv = jax.random.split(kk, 6)
        w = jax.random.normal(kw, (cin, cout), jnp.float32) / float(np.sqrt(cin))
        b = 0.05 * jax.random.normal(kb, (1, cout), jnp.float32)
        gamma = 1.0 + 0.1 * jax.random.normal(kg, (1, cout), jnp.float32)
        beta = 0.1 * jax.random.normal(kbe, (1, cout), jnp.float32)
        mean = 0.1 * jax.random.normal(km, (1, cout), jnp.float32)
        var = jax.random.uniform(kv, (1, cout), jnp.float32, 0.5, 1.5)
        layers.append((w, b, gamma, beta, mean, var))
    return layers


def fold_params(raw, k, eps=1e-5):
    """Fold eval-mode BN into weights (bf16) and a single f32 shift per layer."""
    folded = []
    for (w, b, gamma, beta, mean, var) in raw[:-1]:
        scale = gamma / jnp.sqrt(var + eps)
        shift = beta - mean * scale
        folded.append((w * scale).astype(jnp.bfloat16))        # w' = w * bn_scale
        folded.append((b * scale + shift).astype(jnp.float32))  # t' = b*scale + shift
    w6, b6 = raw[-1][0], raw[-1][1]
    iden = jnp.eye(k, dtype=jnp.float32).reshape(1, k * k)
    folded.append(w6.astype(jnp.bfloat16))
    folded.append((b6 + iden).astype(jnp.float32))             # identity pre-added
    return tuple(folded)


# ------------------------------ reference ---------------------------------

def ref_forward(x_bcn, folded, k):
    """Plain-JAX reference using the same folded bf16 params, module op order."""
    (w1, t1, w2, t2, w3, t3, w4, t4, w5, t5, w6, b6) = folded
    B = x_bcn.shape[0]
    x = jnp.transpose(x_bcn, (0, 2, 1))                         # (B, N, k)

    def dense(h, w, t, relu=True):
        y = jax.lax.dot_general(h.astype(jnp.bfloat16), w,
                                (((h.ndim - 1,), (0,)), ((), ())),
                                preferred_element_type=jnp.float32)
        y = y + t
        return jnp.maximum(y, 0.0) if relu else y

    h = dense(x, w1, t1)                                        # (B, N, 64)
    h = dense(h, w2, t2)                                        # (B, N, 128)
    h = dense(h, w3, t3)                                        # (B, N, 1024)
    g = jnp.max(h, axis=1)                                      # (B, 1024) torch.max over points
    h = dense(g, w4, t4)                                        # (B, 512)
    h = dense(h, w5, t5)                                        # (B, 256)
    y = dense(h, w6, b6, relu=False)                            # (B, k*k), iden in b6
    return y.reshape(B, k, k)


if __name__ == "__main__":
    B, K, N = 8, 16, 128                         # small STNkd(k=16), 128 points
    key = jax.random.PRNGKey(0)
    kx, kp = jax.random.split(key)
    x = jax.random.normal(kx, (B, K, N), jnp.float32)   # PyTorch NCW layout
    raw = make_raw_params(kp, K)
    folded = fold_params(raw, K)

    out = jax.block_until_ready(stnkd_forward(x, folded, K))
    ref = jax.block_until_ready(ref_forward(x, folded, K))

    assert out.shape == (B, K, K)
    np.testing.assert_allclose(np.asarray(out), np.asarray(ref), rtol=1e-2, atol=1e-2)

    print("KERNEL_OK")
</pallas_src>

<mosaic_0001>
module attributes {stable_mosaic.version = 11 : i64} {
  func.func @stnkd_kernel(%arg0: i32, %arg1: memref<8x16x128xf32, #tpu.memory_space<vmem>>, %arg2: memref<16x64xbf16, #tpu.memory_space<vmem>>, %arg3: memref<1x64xf32, #tpu.memory_space<vmem>>, %arg4: memref<64x128xbf16, #tpu.memory_space<vmem>>, %arg5: memref<1x128xf32, #tpu.memory_space<vmem>>, %arg6: memref<128x1024xbf16, #tpu.memory_space<vmem>>, %arg7: memref<1x1024xf32, #tpu.memory_space<vmem>>, %arg8: memref<1024x512xbf16, #tpu.memory_space<vmem>>, %arg9: memref<1x512xf32, #tpu.memory_space<vmem>>, %arg10: memref<512x256xbf16, #tpu.memory_space<vmem>>, %arg11: memref<1x256xf32, #tpu.memory_space<vmem>>, %arg12: memref<256x256xbf16, #tpu.memory_space<vmem>>, %arg13: memref<1x256xf32, #tpu.memory_space<vmem>>, %arg14: memref<8x256xf32, #tpu.memory_space<vmem>>) attributes {dimension_semantics = [#tpu.dimension_semantics<parallel>], iteration_bounds = array<i64: 1>, scalar_prefetch = 0 : i64, scratch_operands = 0 : i64, tpu.core_type = #tpu.core_type<tc>, window_params = [{transform_indices = @transform_0, window_bounds = array<i64: 8, 16, 128>}, {pipeline_mode = #tpu.pipeline_mode<synchronous>, transform_indices = @transform_1, window_bounds = array<i64: 16, 64>}, {pipeline_mode = #tpu.pipeline_mode<synchronous>, transform_indices = @transform_2, window_bounds = array<i64: 1, 64>}, {pipeline_mode = #tpu.pipeline_mode<synchronous>, transform_indices = @transform_3, window_bounds = array<i64: 64, 128>}, {pipeline_mode = #tpu.pipeline_mode<synchronous>, transform_indices = @transform_4, window_bounds = array<i64: 1, 128>}, {pipeline_mode = #tpu.pipeline_mode<synchronous>, transform_indices = @transform_5, window_bounds = array<i64: 128, 1024>}, {pipeline_mode = #tpu.pipeline_mode<synchronous>, transform_indices = @transform_6, window_bounds = array<i64: 1, 1024>}, {pipeline_mode = #tpu.pipeline_mode<synchronous>, transform_indices = @transform_7, window_bounds = array<i64: 1024, 512>}, {pipeline_mode = #tpu.pipeline_mode<synchronous>, transform_indices = @transform_8, window_bounds = array<i64: 1, 512>}, {pipeline_mode = #tpu.pipeline_mode<synchronous>, transform_indices = @transform_9, window_bounds = array<i64: 512, 256>}, {pipeline_mode = #tpu.pipeline_mode<synchronous>, transform_indices = @transform_10, window_bounds = array<i64: 1, 256>}, {pipeline_mode = #tpu.pipeline_mode<synchronous>, transform_indices = @transform_11, window_bounds = array<i64: 256, 256>}, {pipeline_mode = #tpu.pipeline_mode<synchronous>, transform_indices = @transform_12, window_bounds = array<i64: 1, 256>}, {transform_indices = @transform_13, window_bounds = array<i64: 8, 256>}]} {
    %c0 = arith.constant 0 : index
    %c0_0 = arith.constant 0 : index
    %c0_1 = arith.constant 0 : index
    %0 = vector.load %arg1[%c0, %c0_0, %c0_1] : memref<8x16x128xf32, #tpu.memory_space<vmem>>, vector<8x16x128xf32>
    %1 = tpu.transpose %0, [0, 2, 1] : vector<8x16x128xf32> -> vector<8x128x16xf32>
    %2 = vector.shape_cast %1 : vector<8x128x16xf32> to vector<1024x16xf32>
    %3 = arith.truncf %2 : vector<1024x16xf32> to vector<1024x16xbf16>
    %c0_2 = arith.constant 0 : index
    %c0_3 = arith.constant 0 : index
    %4 = vector.load %arg2[%c0_2, %c0_3] : memref<16x64xbf16, #tpu.memory_space<vmem>>, vector<16x64xbf16>
    %cst = arith.constant dense<0.000000e+00> : vector<1024x64xf32>
    %5 = tpu.matmul %3, %4, %cst {dimension_numbers = #tpu.dot_dimension_numbers<[1], [0], [0], [1], [0, 0, 1, 1], [], []>} : vector<1024x16xbf16>, vector<16x64xbf16>, vector<1024x64xf32> -> vector<1024x64xf32>
    %c0_4 = arith.constant 0 : index
    %c0_5 = arith.constant 0 : index
    %6 = vector.load %arg3[%c0_4, %c0_5] : memref<1x64xf32, #tpu.memory_space<vmem>>, vector<1x64xf32>
    %7 = vector.broadcast %6 : vector<1x64xf32> to vector<1024x64xf32>
    %8 = arith.addf %5, %7 : vector<1024x64xf32>
    %cst_6 = arith.constant 0.000000e+00 : f32
    %9 = vector.broadcast %cst_6 : f32 to vector<1024x64xf32>
    %10 = arith.maximumf %8, %9 : vector<1024x64xf32>
    %11 = arith.truncf %10 : vector<1024x64xf32> to vector<1024x64xbf16>
    %c0_7 = arith.constant 0 : index
    %c0_8 = arith.constant 0 : index
    %12 = vector.load %arg4[%c0_7, %c0_8] : memref<64x128xbf16, #tpu.memory_space<vmem>>, vector<64x128xbf16>
    %cst_9 = arith.constant dense<0.000000e+00> : vector<1024x128xf32>
    %13 = tpu.matmul %11, %12, %cst_9 {dimension_numbers = #tpu.dot_dimension_numbers<[1], [0], [0], [1], [0, 0, 1, 1], [], []>} : vector<1024x64xbf16>, vector<64x128xbf16>, vector<1024x128xf32> -> vector<1024x128xf32>
    %c0_10 = arith.constant 0 : index
    %c0_11 = arith.constant 0 : index
    %14 = vector.load %arg5[%c0_10, %c0_11] : memref<1x128xf32, #tpu.memory_space<vmem>>, vector<1x128xf32>
    %15 = vector.broadcast %14 : vector<1x128xf32> to vector<1024x128xf32>
    %16 = arith.addf %13, %15 : vector<1024x128xf32>
    %cst_12 = arith.constant 0.000000e+00 : f32
    %17 = vector.broadcast %cst_12 : f32 to vector<1024x128xf32>
    %18 = arith.maximumf %16, %17 : vector<1024x128xf32>
    %19 = arith.truncf %18 : vector<1024x128xf32> to vector<1024x128xbf16>
    %c0_13 = arith.constant 0 : index
    %c0_14 = arith.constant 0 : index
    %20 = vector.load %arg6[%c0_13, %c0_14] : memref<128x1024xbf16, #tpu.memory_space<vmem>>, vector<128x1024xbf16>
    %cst_15 = arith.constant dense<0.000000e+00> : vector<1024x1024xf32>
    %21 = tpu.matmul %19, %20, %cst_15 {dimension_numbers = #tpu.dot_dimension_numbers<[1], [0], [0], [1], [0, 0, 1, 1], [], []>} : vector<1024x128xbf16>, vector<128x1024xbf16>, vector<1024x1024xf32> -> vector<1024x1024xf32>
    %22 = vector.shape_cast %21 : vector<1024x1024xf32> to vector<8x128x1024xf32>
    %cst_16 = arith.constant dense<0xFF800000> : vector<8x1024xf32>
    %23 = vector.multi_reduction <maximumf>, %22, %cst_16 [1] : vector<8x128x1024xf32> to vector<8x1024xf32>
    %c0_17 = arith.constant 0 : index
    %c0_18 = arith.constant 0 : index
    %24 = vector.load %arg7[%c0_17, %c0_18] : memref<1x1024xf32, #tpu.memory_space<vmem>>, vector<1x1024xf32>
    %25 = vector.broadcast %24 : vector<1x1024xf32> to vector<8x1024xf32>
    %26 = arith.addf %23, %25 : vector<8x1024xf32>
    %cst_19 = arith.constant 0.000000e+00 : f32
    %27 = vector.broadcast %cst_19 : f32 to vector<8x1024xf32>
    %28 = arith.maximumf %26, %27 : vector<8x1024xf32>
    %29 = arith.truncf %28 : vector<8x1024xf32> to vector<8x1024xbf16>
    %c0_20 = arith.constant 0 : index
    %c0_21 = arith.constant 0 : index
    %30 = vector.load %arg8[%c0_20, %c0_21] : memref<1024x512xbf16, #tpu.memory_space<vmem>>, vector<1024x512xbf16>
    %cst_22 = arith.constant dense<0.000000e+00> : vector<8x512xf32>
    %31 = tpu.matmul %29, %30, %cst_22 {dimension_numbers = #tpu.dot_dimension_numbers<[1], [0], [0], [1], [0, 0, 1, 1], [], []>} : vector<8x1024xbf16>, vector<1024x512xbf16>, vector<8x512xf32> -> vector<8x512xf32>
    %c0_23 = arith.constant 0 : index
    %c0_24 = arith.constant 0 : index
    %32 = vector.load %arg9[%c0_23, %c0_24] : memref<1x512xf32, #tpu.memory_space<vmem>>, vector<1x512xf32>
    %33 = vector.broadcast %32 : vector<1x512xf32> to vector<8x512xf32>
    %34 = arith.addf %31, %33 : vector<8x512xf32>
    %cst_25 = arith.constant 0.000000e+00 : f32
    %35 = vector.broadcast %cst_25 : f32 to vector<8x512xf32>
    %36 = arith.maximumf %34, %35 : vector<8x512xf32>
    %37 = arith.truncf %36 : vector<8x512xf32> to vector<8x512xbf16>
    %c0_26 = arith.constant 0 : index
    %c0_27 = arith.constant 0 : index
    %38 = vector.load %arg10[%c0_26, %c0_27] : memref<512x256xbf16, #tpu.memory_space<vmem>>, vector<512x256xbf16>
    %cst_28 = arith.constant dense<0.000000e+00> : vector<8x256xf32>
    %39 = tpu.matmul %37, %38, %cst_28 {dimension_numbers = #tpu.dot_dimension_numbers<[1], [0], [0], [1], [0, 0, 1, 1], [], []>} : vector<8x512xbf16>, vector<512x256xbf16>, vector<8x256xf32> -> vector<8x256xf32>
    %c0_29 = arith.constant 0 : index
    %c0_30 = arith.constant 0 : index
    %40 = vector.load %arg11[%c0_29, %c0_30] : memref<1x256xf32, #tpu.memory_space<vmem>>, vector<1x256xf32>
    %41 = vector.broadcast %40 : vector<1x256xf32> to vector<8x256xf32>
    %42 = arith.addf %39, %41 : vector<8x256xf32>
    %cst_31 = arith.constant 0.000000e+00 : f32
    %43 = vector.broadcast %cst_31 : f32 to vector<8x256xf32>
    %44 = arith.maximumf %42, %43 : vector<8x256xf32>
    %45 = arith.truncf %44 : vector<8x256xf32> to vector<8x256xbf16>
    %c0_32 = arith.constant 0 : index
    %c0_33 = arith.constant 0 : index
    %46 = vector.load %arg12[%c0_32, %c0_33] : memref<256x256xbf16, #tpu.memory_space<vmem>>, vector<256x256xbf16>
    %cst_34 = arith.constant dense<0.000000e+00> : vector<8x256xf32>
    %47 = tpu.matmul %45, %46, %cst_34 {dimension_numbers = #tpu.dot_dimension_numbers<[1], [0], [0], [1], [0, 0, 1, 1], [], []>} : vector<8x256xbf16>, vector<256x256xbf16>, vector<8x256xf32> -> vector<8x256xf32>
    %c0_35 = arith.constant 0 : index
    %c0_36 = arith.constant 0 : index
    %48 = vector.load %arg13[%c0_35, %c0_36] : memref<1x256xf32, #tpu.memory_space<vmem>>, vector<1x256xf32>
    %49 = vector.broadcast %48 : vector<1x256xf32> to vector<8x256xf32>
    %50 = arith.addf %47, %49 : vector<8x256xf32>
    %c0_37 = arith.constant 0 : index
    %c0_38 = arith.constant 0 : index
    %51 = vector.load %arg14[%c0_37, %c0_38] : memref<8x256xf32, #tpu.memory_space<vmem>>, vector<8x256xf32>
    tpu.vector_store %arg14[%c0_37, %c0_38], %50 {strides = array<i32>} : memref<8x256xf32, #tpu.memory_space<vmem>>, vector<8x256xf32>,
    return
  }
  func.func @transform_0(%arg0: i32) -> (i32, i32, i32) {
    %c0_i32 = arith.constant 0 : i32
    %c0_i32_0 = arith.constant 0 : i32
    %c0_i32_1 = arith.constant 0 : i32
    return %arg0, %c0_i32, %c0_i32_0 : i32, i32, i32
  }
  func.func @transform_1(%arg0: i32) -> (i32, i32) {
    %c0_i32 = arith.constant 0 : i32
    %c0_i32_0 = arith.constant 0 : i32
    %c0_i32_1 = arith.constant 0 : i32
    return %c0_i32, %c0_i32_0 : i32, i32
  }
  func.func @transform_2(%arg0: i32) -> (i32, i32) {
    %c0_i32 = arith.constant 0 : i32
    %c0_i32_0 = arith.constant 0 : i32
    %c0_i32_1 = arith.constant 0 : i32
    return %c0_i32, %c0_i32_0 : i32, i32
  }
  func.func @transform_3(%arg0: i32) -> (i32, i32) {
    %c0_i32 = arith.constant 0 : i32
    %c0_i32_0 = arith.constant 0 : i32
    %c0_i32_1 = arith.constant 0 : i32
    return %c0_i32, %c0_i32_0 : i32, i32
  }
  func.func @transform_4(%arg0: i32) -> (i32, i32) {
    %c0_i32 = arith.constant 0 : i32
    %c0_i32_0 = arith.constant 0 : i32
    %c0_i32_1 = arith.constant 0 : i32
    return %c0_i32, %c0_i32_0 : i32, i32
  }
  func.func @transform_5(%arg0: i32) -> (i32, i32) {
    %c0_i32 = arith.constant 0 : i32
    %c0_i32_0 = arith.constant 0 : i32
    %c0_i32_1 = arith.constant 0 : i32
    return %c0_i32, %c0_i32_0 : i32, i32
  }
  func.func @transform_6(%arg0: i32) -> (i32, i32) {
    %c0_i32 = arith.constant 0 : i32
    %c0_i32_0 = arith.constant 0 : i32
    %c0_i32_1 = arith.constant 0 : i32
    return %c0_i32, %c0_i32_0 : i32, i32
  }
  func.func @transform_7(%arg0: i32) -> (i32, i32) {
    %c0_i32 = arith.constant 0 : i32
    %c0_i32_0 = arith.constant 0 : i32
    %c0_i32_1 = arith.constant 0 : i32
    return %c0_i32, %c0_i32_0 : i32, i32
  }
  func.func @transform_8(%arg0: i32) -> (i32, i32) {
    %c0_i32 = arith.constant 0 : i32
    %c0_i32_0 = arith.constant 0 : i32
    %c0_i32_1 = arith.constant 0 : i32
    return %c0_i32, %c0_i32_0 : i32, i32
  }
  func.func @transform_9(%arg0: i32) -> (i32, i32) {
    %c0_i32 = arith.constant 0 : i32
    %c0_i32_0 = arith.constant 0 : i32
    %c0_i32_1 = arith.constant 0 : i32
    return %c0_i32, %c0_i32_0 : i32, i32
  }
  func.func @transform_10(%arg0: i32) -> (i32, i32) {
    %c0_i32 = arith.constant 0 : i32
    %c0_i32_0 = arith.constant 0 : i32
    %c0_i32_1 = arith.constant 0 : i32
    return %c0_i32, %c0_i32_0 : i32, i32
  }
  func.func @transform_11(%arg0: i32) -> (i32, i32) {
    %c0_i32 = arith.constant 0 : i32
    %c0_i32_0 = arith.constant 0 : i32
    %c0_i32_1 = arith.constant 0 : i32
    return %c0_i32, %c0_i32_0 : i32, i32
  }
  func.func @transform_12(%arg0: i32) -> (i32, i32) {
    %c0_i32 = arith.constant 0 : i32
    %c0_i32_0 = arith.constant 0 : i32
    %c0_i32_1 = arith.constant 0 : i32
    return %c0_i32, %c0_i32_0 : i32, i32
  }
  func.func @transform_13(%arg0: i32) -> (i32, i32) {
    %c0_i32 = arith.constant 0 : i32
    %c0_i32_0 = arith.constant 0 : i32
    return %arg0, %c0_i32 : i32, i32
  }
}

</mosaic_0001>

<llo_original>
// kernel: tpu_custom_call.1
$region0: #{tpu_custom_call.1}
  #allocation0 [shape = 'u32[]', space=smem, size = 0x4, offset = 0x4, fixed_abs, tag = 'smem constant byte address 0x4 - core index']
  #allocation1 [shape = 'u32[144,128]{1,0:T(1,128)}', space=vmem, size = 0x12000, scoped, tag = 'internal scratch']
  %s0 = inlined_call_operand.hbm [shape: f32[8,16,128], index: 0, kind: input, shape index: {}]
  %s1 = inlined_call_operand.hbm [shape: bf16[16,64], index: 1, kind: input, shape index: {}]
  %s2 = inlined_call_operand.vmem [shape: f32[1,64], index: 2, kind: input, shape index: {}]
  %s3 = inlined_call_operand.hbm [shape: bf16[64,128], index: 3, kind: input, shape index: {}]
  %s4 = inlined_call_operand.hbm [shape: f32[1,128], index: 4, kind: input, shape index: {}]
  %s5 = inlined_call_operand.hbm [shape: bf16[128,1024], index: 5, kind: input, shape index: {}]
  %s6 = inlined_call_operand.vmem [shape: f32[1,1024], index: 6, kind: input, shape index: {}]
  %s7 = inlined_call_operand.hbm [shape: bf16[1024,512], index: 7, kind: input, shape index: {}]
  %s8 = inlined_call_operand.vmem [shape: f32[1,512], index: 8, kind: input, shape index: {}]
  %s9 = inlined_call_operand.hbm [shape: bf16[512,256], index: 9, kind: input, shape index: {}]
  %s10 = inlined_call_operand.vmem [shape: f32[1,256], index: 10, kind: input, shape index: {}]
  %s11 = inlined_call_operand.hbm [shape: bf16[256,256], index: 11, kind: input, shape index: {}]
  %s12 = inlined_call_operand.vmem [shape: f32[1,256], index: 12, kind: input, shape index: {}]
  %s13 = inlined_call_operand.hbm [shape: f32[8,256], index: 13, kind: output, shape index: {}]
  %s14 = sld [smem:[#allocation0]]
  $region94: #{tpu_custom_call.1} parent=0
    _
  %s16 = ssub.s32 1, %s14
  %s17 = scalar_select 0, %s16, %s14
  $region1: #{tpu_custom_call.1} parent=0
    #allocation2 [shape = 'u8[65536]{0}', space=vmem, size = 0x10000, scoped, tag = 'input window, operand 0, single buffered']
    #allocation3 [shape = 's32[1]{0}', space=sflag, size = 0x4, scoped, tag = 'scoped memory for tpu_custom_call.1']
    #allocation4 [shape = 's32[1]{0}', space=sflag, size = 0x4, scoped, tag = 'scoped memory for tpu_custom_call.1']
    #allocation5 [shape = 'u8[4096]{0}', space=vmem, size = 0x1000, scoped, tag = 'input window, operand 1, single buffered']
    #allocation6 [shape = 's32[1]{0}', space=sflag, size = 0x4, scoped, tag = 'scoped memory for tpu_custom_call.1']
    #allocation7 [shape = 'u8[16384]{0}', space=vmem, size = 0x4000, scoped, tag = 'input window, operand 3, single buffered']
    #allocation8 [shape = 'u8[512]{0}', space=vmem, size = 0x400, scoped, tag = 'input window, operand 4, single buffered']
    #allocation9 [shape = 's32[1]{0}', space=sflag, size = 0x4, scoped, tag = 'scoped memory for tpu_custom_call.1']
    #allocation10 [shape = 'u8[262144]{0}', space=vmem, size = 0x40000, scoped, tag = 'input window, operand 5, single buffered']
    #allocation11 [shape = 'u8[1048576]{0}', space=vmem, size = 0x100000, scoped, tag = 'input window, operand 7, single buffered']
    #allocation12 [shape = 's32[1]{0}', space=sflag, size = 0x4, scoped, tag = 'scoped memory for tpu_custom_call.1']
    #allocation13 [shape = 'u8[262144]{0}', space=vmem, size = 0x40000, scoped, tag = 'input window, operand 9, single buffered']
    #allocation14 [shape = 'u8[131072]{0}', space=vmem, size = 0x20000, scoped, tag = 'input window, operand 11, single buffered']
    #allocation15 [shape = 's32[1]{0}', space=sflag, size = 0x4, scoped, tag = 'scoped memory for tpu_custom_call.1']
    #allocation16 [shape = 'u8[8192]{0}', space=vmem, size = 0x2000, scoped, tag = 'output window, operand 0, single buffered']
    %18 = vsyncpa [#allocation3], 0
    %19 = vsyncpa [#allocation6], 0
    %20 = vsyncpa [#allocation9], 0
    %21 = vsyncpa [#allocation12], 0
    %22 = vsyncpa [#allocation15], 0
    %23 = vsyncpa [#allocation4], 0
    // Predicated region
    $region2: #{tpu_custom_call.1} parent=1 // pred_check
      _
    $region3: #{tpu_custom_call.1} parent=1 // pred_check_branch
      %25 = sbr.rel (0) target = $region5
    $region4: #{tpu_custom_call.1} parent=1 // pred_region
      %s27 = ssub.s32 2048, 2048
      %28 = vsyncadd [#allocation3], %s27
      %s29 = sshll.u32 [#allocation2], 4
      %s30 = int_to_ptr.vmem [resolvable:$true] %s29
      %35 = dma.hbm_to_vmem [thread:$0]  %s0, 2048, %s30, [#allocation3], 128, 128, 8
    $region5: #{tpu_custom_call.1} parent=1 // pred_fallthru
      _
    // Predicated region
    $region6: #{tpu_custom_call.1} parent=1 // pred_check
      _
    $region7: #{tpu_custom_call.1} parent=1 // pred_check_branch
      %37 = sbr.rel (0) target = $region9
    $region8: #{tpu_custom_call.1} parent=1 // pred_region
      %s39 = ssub.s32 128, 128
      %40 = vsyncadd [#allocation6], %s39
      %s41 = sshll.u32 [#allocation5], 4
      %s42 = int_to_ptr.vmem [resolvable:$true] %s41
      %47 = dma.hbm_to_vmem [thread:$0]  %s1, 128, %s42, [#allocation6], 64, 64, 4
    $region9: #{tpu_custom_call.1} parent=1 // pred_fallthru
      _
    // Predicated region
    $region10: #{tpu_custom_call.1} parent=1 // pred_check
      _
    $region11: #{tpu_custom_call.1} parent=1 // pred_check_branch
      %49 = sbr.rel (0) target = $region13
    $region12: #{tpu_custom_call.1} parent=1 // pred_region
      _
    $region13: #{tpu_custom_call.1} parent=1 // pred_fallthru
      _
    // Predicated region
    $region14: #{tpu_custom_call.1} parent=1 // pred_check
      _
    $region15: #{tpu_custom_call.1} parent=1 // pred_check_branch
      %51 = sbr.rel (0) target = $region17
    $region16: #{tpu_custom_call.1} parent=1 // pred_region
      %s53 = ssub.s32 512, 512
      %54 = vsyncadd [#allocation6], %s53
      %s55 = sshll.u32 [#allocation7], 4
      %s56 = int_to_ptr.vmem [resolvable:$true] %s55
      %61 = dma.hbm_to_vmem [thread:$0]  %s3, 512, %s56, [#allocation6], 64, 64, 4
    $region17: #{tpu_custom_call.1} parent=1 // pred_fallthru
      _
    // Predicated region
    $region18: #{tpu_custom_call.1} parent=1 // pred_check
      _
    $region19: #{tpu_custom_call.1} parent=1 // pred_check_branch
      %63 = sbr.rel (0) target = $region21
    $region20: #{tpu_custom_call.1} parent=1 // pred_region
      %s65 = ssub.s32 16, 16
      %66 = vsyncadd [#allocation9], %s65
      %s68 = sshll.u32 [#allocation8], 4
      %s69 = int_to_ptr.vmem [resolvable:$true] %s68
      %71 = dma.hbm_to_vmem [thread:$0]  %s4, 16, %s69, [#allocation9]
    $region21: #{tpu_custom_call.1} parent=1 // pred_fallthru
      _
    // Predicated region
    $region22: #{tpu_custom_call.1} parent=1 // pred_check
      _
    $region23: #{tpu_custom_call.1} parent=1 // pred_check_branch
      %73 = sbr.rel (0) target = $region25
    $region24: #{tpu_custom_call.1} parent=1 // pred_region
      %s75 = ssub.s32 8192, 8192
      %76 = vsyncadd [#allocation9], %s75
      %s77 = sshll.u32 [#allocation10], 4
      %s78 = int_to_ptr.vmem [resolvable:$true] %s77
      %83 = dma.hbm_to_vmem [thread:$0]  %s5, 8192, %s78, [#allocation9], 512, 512, 32
    $region25: #{tpu_custom_call.1} parent=1 // pred_fallthru
      _
    // Predicated region
    $region26: #{tpu_custom_call.1} parent=1 // pred_check
      _
    $region27: #{tpu_custom_call.1} parent=1 // pred_check_branch
      %85 = sbr.rel (0) target = $region29
    $region28: #{tpu_custom_call.1} parent=1 // pred_region
      _
    $region29: #{tpu_custom_call.1} parent=1 // pred_fallthru
      _
    // Predicated region
    $region30: #{tpu_custom_call.1} parent=1 // pred_check
      _
    $region31: #{tpu_custom_call.1} parent=1 // pred_check_branch
      %87 = sbr.rel (0) target = $region33
    $region32: #{tpu_custom_call.1} parent=1 // pred_region
      %s89 = ssub.s32 32768, 32768
      %90 = vsyncadd [#allocation12], %s89
      %s91 = sshll.u32 [#allocation11], 4
      %s92 = int_to_ptr.vmem [resolvable:$true] %s91
      %97 = dma.hbm_to_vmem [thread:$0]  %s7, 32768, %s92, [#allocation12], 256, 256, 16
    $region33: #{tpu_custom_call.1} parent=1 // pred_fallthru
      _
    // Predicated region
    $region34: #{tpu_custom_call.1} parent=1 // pred_check
      _
    $region35: #{tpu_custom_call.1} parent=1 // pred_check_branch
      %99 = sbr.rel (0) target = $region37
    $region36: #{tpu_custom_call.1} parent=1 // pred_region
      _
    $region37: #{tpu_custom_call.1} parent=1 // pred_fallthru
      _
    // Predicated region
    $region38: #{tpu_custom_call.1} parent=1 // pred_check
      _
    $region39: #{tpu_custom_call.1} parent=1 // pred_check_branch
      %101 = sbr.rel (0) target = $region41
    $region40: #{tpu_custom_call.1} parent=1 // pred_region
      %s103 = ssub.s32 8192, 8192
      %104 = vsyncadd [#allocation12], %s103
      %s105 = sshll.u32 [#allocation13], 4
      %s106 = int_to_ptr.vmem [resolvable:$true] %s105
      %111 = dma.hbm_to_vmem [thread:$0]  %s9, 8192, %s106, [#allocation12], 128, 128, 8
    $region41: #{tpu_custom_call.1} parent=1 // pred_fallthru
      _
    // Predicated region
    $region42: #{tpu_custom_call.1} parent=1 // pred_check
      _
    $region43: #{tpu_custom_call.1} parent=1 // pred_check_branch
      %113 = sbr.rel (0) target = $region45
    $region44: #{tpu_custom_call.1} parent=1 // pred_region
      _
    $region45: #{tpu_custom_call.1} parent=1 // pred_fallthru
      _
    // Predicated region
    $region46: #{tpu_custom_call.1} parent=1 // pred_check
      _
    $region47: #{tpu_custom_call.1} parent=1 // pred_check_branch
      %115 = sbr.rel (0) target = $region49
    $region48: #{tpu_custom_call.1} parent=1 // pred_region
      %s117 = ssub.s32 4096, 4096
      %118 = vsyncadd [#allocation15], %s117
      %s119 = sshll.u32 [#allocation14], 4
      %s120 = int_to_ptr.vmem [resolvable:$true] %s119
      %125 = dma.hbm_to_vmem [thread:$0]  %s11, 4096, %s120, [#allocation15], 128, 128, 8
    $region49: #{tpu_custom_call.1} parent=1 // pred_fallthru
      _
    // Predicated region
    $region50: #{tpu_custom_call.1} parent=1 // pred_check
      _
    $region51: #{tpu_custom_call.1} parent=1 // pred_check_branch
      %127 = sbr.rel (0) target = $region53
    $region52: #{tpu_custom_call.1} parent=1 // pred_region
      _
    $region53: #{tpu_custom_call.1} parent=1 // pred_fallthru
      _
    // Predicated region
    $region54: #{tpu_custom_call.1} parent=1 // pred_check
      _
    $region55: #{tpu_custom_call.1} parent=1 // pred_check_branch
      %129 = sbr.rel (0) target = $region57
    $region56: #{tpu_custom_call.1} parent=1 // pred_region
      %130 = dma.done [#allocation3], 2048
    $region57: #{tpu_custom_call.1} parent=1 // pred_fallthru
      _
    // Predicated region
    $region58: #{tpu_custom_call.1} parent=1 // pred_check
      _
    $region59: #{tpu_custom_call.1} parent=1 // pred_check_branch
      %132 = sbr.rel (0) target = $region61
    $region60: #{tpu_custom_call.1} parent=1 // pred_region
      %133 = dma.done [#allocation6], 128
    $region61: #{tpu_custom_call.1} parent=1 // pred_fallthru
      _
    // Predicated region
    $region62: #{tpu_custom_call.1} parent=1 // pred_check
      _
    $region63: #{tpu_custom_call.1} parent=1 // pred_check_branch
      %135 = sbr.rel (0) target = $region65
    $region64: #{tpu_custom_call.1} parent=1 // pred_region
      %136 = dma.done [#allocation6], 512
    $region65: #{tpu_custom_call.1} parent=1 // pred_fallthru
      _
    // Predicated region
    $region66: #{tpu_custom_call.1} parent=1 // pred_check
      _
    $region67: #{tpu_custom_call.1} parent=1 // pred_check_branch
      %138 = sbr.rel (0) target = $region69
    $region68: #{tpu_custom_call.1} parent=1 // pred_region
      %139 = dma.done [#allocation9], 16
    $region69: #{tpu_custom_call.1} parent=1 // pred_fallthru
      _
    // Predicated region
    $region70: #{tpu_custom_call.1} parent=1 // pred_check
      _
    $region71: #{tpu_custom_call.1} parent=1 // pred_check_branch
      %141 = sbr.rel (0) target = $region73
    $region72: #{tpu_custom_call.1} parent=1 // pred_region
      %142 = dma.done [#allocation9], 8192
    $region73: #{tpu_custom_call.1} parent=1 // pred_fallthru
      _
    // Predicated region
    $region74: #{tpu_custom_call.1} parent=1 // pred_check
      _
    $region75: #{tpu_custom_call.1} parent=1 // pred_check_branch
      %144 = sbr.rel (0) target = $region77
    $region76: #{tpu_custom_call.1} parent=1 // pred_region
      %145 = dma.done [#allocation12], 32768
    $region77: #{tpu_custom_call.1} parent=1 // pred_fallthru
      _
    // Predicated region
    $region78: #{tpu_custom_call.1} parent=1 // pred_check
      _
    $region79: #{tpu_custom_call.1} parent=1 // pred_check_branch
      %147 = sbr.rel (0) target = $region81
    $region80: #{tpu_custom_call.1} parent=1 // pred_region
      %148 = dma.done [#allocation12], 8192
    $region81: #{tpu_custom_call.1} parent=1 // pred_fallthru
      _
    // Predicated region
    $region82: #{tpu_custom_call.1} parent=1 // pred_check
      _
    $region83: #{tpu_custom_call.1} parent=1 // pred_check_branch
      %150 = sbr.rel (0) target = $region85
    $region84: #{tpu_custom_call.1} parent=1 // pred_region
      %151 = dma.done [#allocation15], 4096
    $region85: #{tpu_custom_call.1} parent=1 // pred_fallthru
      _
    %v153 = vld [vmem:[#allocation2] sm:$0xff]
    %v154 = vld [vmem:[#allocation2 + $0x8] sm:$0xff]
    %v155 = vld [vmem:[#allocation2 + $0x10] sm:$0xff]
    %v156 = vld [vmem:[#allocation2 + $0x18] sm:$0xff]
    %v157 = vld [vmem:[#allocation2 + $0x20] sm:$0xff]
    %v158 = vld [vmem:[#allocation2 + $0x28] sm:$0xff]
    %v159 = vld [vmem:[#allocation2 + $0x30] sm:$0xff]
    %v160 = vld [vmem:[#allocation2 + $0x38] sm:$0xff]
    %v161 = vld [vmem:[#allocation2 + $0x40] sm:$0xff]
    %v162 = vld [vmem:[#allocation2 + $0x48] sm:$0xff]
    %v163 = vld [vmem:[#allocation2 + $0x50] sm:$0xff]
    %v164 = vld [vmem:[#allocation2 + $0x58] sm:$0xff]
    %v165 = vld [vmem:[#allocation2 + $0x60] sm:$0xff]
    %v166 = vld [vmem:[#allocation2 + $0x68] sm:$0xff]
    %v167 = vld [vmem:[#allocation2 + $0x70] sm:$0xff]
    %v168 = vld [vmem:[#allocation2 + $0x78] sm:$0xff]
    %169 = vxpose.xlu0.b32.start [1/16] %v153, 128
    %170 = vxpose.xlu0.b32.cont [2/16] %v154, 128
    %171 = vxpose.xlu0.b32.cont [3/16] 0.0, 128
    %172 = vxpose.xlu0.b32.cont [4/16] 0.0, 128
    %173 = vxpose.xlu0.b32.cont [5/16] 0.0, 128
    %174 = vxpose.xlu0.b32.cont [6/16] 0.0, 128
    %175 = vxpose.xlu0.b32.cont [7/16] 0.0, 128
    %176 = vxpose.xlu0.b32.cont [8/16] 0.0, 128
    %177 = vxpose.xlu0.b32.cont [9/16] 0.0, 128
    %178 = vxpose.xlu0.b32.cont [10/16] 0.0, 128
    %179 = vxpose.xlu0.b32.cont [11/16] 0.0, 128
    %180 = vxpose.xlu0.b32.cont [12/16] 0.0, 128
    %181 = vxpose.xlu0.b32.cont [13/16] 0.0, 128
    %182 = vxpose.xlu0.b32.cont [14/16] 0.0, 128
    %183 = vxpose.xlu0.b32.cont [15/16] 0.0, 128
    %184 = vxpose.xlu0.b32.end [16/16] 0.0, 128
    %v185 = vpop.trf.xlu0
    %v186 = vpop.trf.xlu0
    %v187 = vpop.trf.xlu0
    %v188 = vpop.trf.xlu0
    %v189 = vpop.trf.xlu0
    %v190 = vpop.trf.xlu0
    %v191 = vpop.trf.xlu0
    %v192 = vpop.trf.xlu0
    %v193 = vpop.trf.xlu0
    %v194 = vpop.trf.xlu0
    %v195 = vpop.trf.xlu0
    %v196 = vpop.trf.xlu0
    %v197 = vpop.trf.xlu0
    %v198 = vpop.trf.xlu0
    %v199 = vpop.trf.xlu0
    %v200 = vpop.trf.xlu0
    %201 = vxpose.xlu0.b32.start [1/16] %v155, 128
    %202 = vxpose.xlu0.b32.cont [2/16] %v156, 128
    %203 = vxpose.xlu0.b32.cont [3/16] 0.0, 128
    %204 = vxpose.xlu0.b32.cont [4/16] 0.0, 128
    %205 = vxpose.xlu0.b32.cont [5/16] 0.0, 128
    %206 = vxpose.xlu0.b32.cont [6/16] 0.0, 128
    %207 = vxpose.xlu0.b32.cont [7/16] 0.0, 128
    %208 = vxpose.xlu0.b32.cont [8/16] 0.0, 128
    %209 = vxpose.xlu0.b32.cont [9/16] 0.0, 128
    %210 = vxpose.xlu0.b32.cont [10/16] 0.0, 128
    %211 = vxpose.xlu0.b32.cont [11/16] 0.0, 128
    %212 = vxpose.xlu0.b32.cont [12/16] 0.0, 128
    %213 = vxpose.xlu0.b32.cont [13/16] 0.0, 128
    %214 = vxpose.xlu0.b32.cont [14/16] 0.0, 128
    %215 = vxpose.xlu0.b32.cont [15/16] 0.0, 128
    %216 = vxpose.xlu0.b32.end [16/16] 0.0, 128
    %v217 = vpop.trf.xlu0
    %v218 = vpop.trf.xlu0
    %v219 = vpop.trf.xlu0
    %v220 = vpop.trf.xlu0
    %v221 = vpop.trf.xlu0
    %v222 = vpop.trf.xlu0
    %v223 = vpop.trf.xlu0
    %v224 = vpop.trf.xlu0
    %v225 = vpop.trf.xlu0
    %v226 = vpop.trf.xlu0
    %v227 = vpop.trf.xlu0
    %v228 = vpop.trf.xlu0
    %v229 = vpop.trf.xlu0
    %v230 = vpop.trf.xlu0
    %v231 = vpop.trf.xlu0
    %v232 = vpop.trf.xlu0
    %233 = vxpose.xlu0.b32.start [1/16] %v157, 128
    %234 = vxpose.xlu0.b32.cont [2/16] %v158, 128
    %235 = vxpose.xlu0.b32.cont [3/16] 0.0, 128
    %236 = vxpose.xlu0.b32.cont [4/16] 0.0, 128
    %237 = vxpose.xlu0.b32.cont [5/16] 0.0, 128
    %238 = vxpose.xlu0.b32.cont [6/16] 0.0, 128
    %239 = vxpose.xlu0.b32.cont [7/16] 0.0, 128
    %240 = vxpose.xlu0.b32.cont [8/16] 0.0, 128
    %241 = vxpose.xlu0.b32.cont [9/16] 0.0, 128
    %242 = vxpose.xlu0.b32.cont [10/16] 0.0, 128
    %243 = vxpose.xlu0.b32.cont [11/16] 0.0, 128
    %244 = vxpose.xlu0.b32.cont [12/16] 0.0, 128
    %245 = vxpose.xlu0.b32.cont [13/16] 0.0, 128
    %246 = vxpose.xlu0.b32.cont [14/16] 0.0, 128
    %247 = vxpose.xlu0.b32.cont [15/16] 0.0, 128
    %248 = vxpose.xlu0.b32.end [16/16] 0.0, 128
    %v249 = vpop.trf.xlu0
    %v250 = vpop.trf.xlu0
    %v251 = vpop.trf.xlu0
    %v252 = vpop.trf.xlu0
    %v253 = vpop.trf.xlu0
    %v254 = vpop.trf.xlu0
    %v255 = vpop.trf.xlu0
    %v256 = vpop.trf.xlu0
    %v257 = vpop.trf.xlu0
    %v258 = vpop.trf.xlu0
    %v259 = vpop.trf.xlu0
    %v260 = vpop.trf.xlu0
    %v261 = vpop.trf.xlu0
    %v262 = vpop.trf.xlu0
    %v263 = vpop.trf.xlu0
    %v264 = vpop.trf.xlu0
    %265 = vxpose.xlu0.b32.start [1/16] %v159, 128
    %266 = vxpose.xlu0.b32.cont [2/16] %v160, 128
    %267 = vxpose.xlu0.b32.cont [3/16] 0.0, 128
    %268 = vxpose.xlu0.b32.cont [4/16] 0.0, 128
    %269 = vxpose.xlu0.b32.cont [5/16] 0.0, 128
    %270 = vxpose.xlu0.b32.cont [6/16] 0.0, 128
    %271 = vxpose.xlu0.b32.cont [7/16] 0.0, 128
    %272 = vxpose.xlu0.b32.cont [8/16] 0.0, 128
    %273 = vxpose.xlu0.b32.cont [9/16] 0.0, 128
    %274 = vxpose.xlu0.b32.cont [10/16] 0.0, 128
    %275 = vxpose.xlu0.b32.cont [11/16] 0.0, 128
    %276 = vxpose.xlu0.b32.cont [12/16] 0.0, 128
    %277 = vxpose.xlu0.b32.cont [13/16] 0.0, 128
    %278 = vxpose.xlu0.b32.cont [14/16] 0.0, 128
    %279 = vxpose.xlu0.b32.cont [15/16] 0.0, 128
    %280 = vxpose.xlu0.b32.end [16/16] 0.0, 128
    %v281 = vpop.trf.xlu0
    %v282 = vpop.trf.xlu0
    %v283 = vpop.trf.xlu0
    %v284 = vpop.trf.xlu0
    %v285 = vpop.trf.xlu0
    %v286 = vpop.trf.xlu0
    %v287 = vpop.trf.xlu0
    %v288 = vpop.trf.xlu0
    %v289 = vpop.trf.xlu0
    %v290 = vpop.trf.xlu0
    %v291 = vpop.trf.xlu0
    %v292 = vpop.trf.xlu0
    %v293 = vpop.trf.xlu0
    %v294 = vpop.trf.xlu0
    %v295 = vpop.trf.xlu0
    %v296 = vpop.trf.xlu0
    %297 = vxpose.xlu0.b32.start [1/16] %v161, 128
    %298 = vxpose.xlu0.b32.cont [2/16] %v162, 128
    %299 = vxpose.xlu0.b32.cont [3/16] 0.0, 128
    %300 = vxpose.xlu0.b32.cont [4/16] 0.0, 128
    %301 = vxpose.xlu0.b32.cont [5/16] 0.0, 128
    %302 = vxpose.xlu0.b32.cont [6/16] 0.0, 128
    %303 = vxpose.xlu0.b32.cont [7/16] 0.0, 128
    %304 = vxpose.xlu0.b32.cont [8/16] 0.0, 128
    %305 = vxpose.xlu0.b32.cont [9/16] 0.0, 128
    %306 = vxpose.xlu0.b32.cont [10/16] 0.0, 128
    %307 = vxpose.xlu0.b32.cont [11/16] 0.0, 128
    %308 = vxpose.xlu0.b32.cont [12/16] 0.0, 128
    %309 = vxpose.xlu0.b32.cont [13/16] 0.0, 128
    %310 = vxpose.xlu0.b32.cont [14/16] 0.0, 128
    %311 = vxpose.xlu0.b32.cont [15/16] 0.0, 128
    %312 = vxpose.xlu0.b32.end [16/16] 0.0, 128
    %v313 = vpop.trf.xlu0
    %v314 = vpop.trf.xlu0
    %v315 = vpop.trf.xlu0
    %v316 = vpop.trf.xlu0
    %v317 = vpop.trf.xlu0
    %v318 = vpop.trf.xlu0
    %v319 = vpop.trf.xlu0
    %v320 = vpop.trf.xlu0
    %v321 = vpop.trf.xlu0
    %v322 = vpop.trf.xlu0
    %v323 = vpop.trf.xlu0
    %v324 = vpop.trf.xlu0
    %v325 = vpop.trf.xlu0
    %v326 = vpop.trf.xlu0
    %v327 = vpop.trf.xlu0
    %v328 = vpop.trf.xlu0
    %329 = vxpose.xlu0.b32.start [1/16] %v163, 128
    %330 = vxpose.xlu0.b32.cont [2/16] %v164, 128
    %331 = vxpose.xlu0.b32.cont [3/16] 0.0, 128
    %332 = vxpose.xlu0.b32.cont [4/16] 0.0, 128
    %333 = vxpose.xlu0.b32.cont [5/16] 0.0, 128
    %334 = vxpose.xlu0.b32.cont [6/16] 0.0, 128
    %335 = vxpose.xlu0.b32.cont [7/16] 0.0, 128
    %336 = vxpose.xlu0.b32.cont [8/16] 0.0, 128
    %337 = vxpose.xlu0.b32.cont [9/16] 0.0, 128
    %338 = vxpose.xlu0.b32.cont [10/16] 0.0, 128
    %339 = vxpose.xlu0.b32.cont [11/16] 0.0, 128
    %340 = vxpose.xlu0.b32.cont [12/16] 0.0, 128
    %341 = vxpose.xlu0.b32.cont [13/16] 0.0, 128
    %342 = vxpose.xlu0.b32.cont [14/16] 0.0, 128
    %343 = vxpose.xlu0.b32.cont [15/16] 0.0, 128
    %344 = vxpose.xlu0.b32.end [16/16] 0.0, 128
    %v345 = vpop.trf.xlu0
    %v346 = vpop.trf.xlu0
    %v347 = vpop.trf.xlu0
    %v348 = vpop.trf.xlu0
    %v349 = vpop.trf.xlu0
    %v350 = vpop.trf.xlu0
    %v351 = vpop.trf.xlu0
    %v352 = vpop.trf.xlu0
    %v353 = vpop.trf.xlu0
    %v354 = vpop.trf.xlu0
    %v355 = vpop.trf.xlu0
    %v356 = vpop.trf.xlu0
    %v357 = vpop.trf.xlu0
    %v358 = vpop.trf.xlu0
    %v359 = vpop.trf.xlu0
    %v360 = vpop.trf.xlu0
    %361 = vxpose.xlu0.b32.start [1/16] %v165, 128
    %362 = vxpose.xlu0.b32.cont [2/16] %v166, 128
    %363 = vxpose.xlu0.b32.cont [3/16] 0.0, 128
    %364 = vxpose.xlu0.b32.cont [4/16] 0.0, 128
    %365 = vxpose.xlu0.b32.cont [5/16] 0.0, 128
    %366 = vxpose.xlu0.b32.cont [6/16] 0.0, 128
    %367 = vxpose.xlu0.b32.cont [7/16] 0.0, 128
    %368 = vxpose.xlu0.b32.cont [8/16] 0.0, 128
    %369 = vxpose.xlu0.b32.cont [9/16] 0.0, 128
    %370 = vxpose.xlu0.b32.cont [10/16] 0.0, 128
    %371 = vxpose.xlu0.b32.cont [11/16] 0.0, 128
    %372 = vxpose.xlu0.b32.cont [12/16] 0.0, 128
    %373 = vxpose.xlu0.b32.cont [13/16] 0.0, 128
    %374 = vxpose.xlu0.b32.cont [14/16] 0.0, 128
    %375 = vxpose.xlu0.b32.cont [15/16] 0.0, 128
    %376 = vxpose.xlu0.b32.end [16/16] 0.0, 128
    %v377 = vpop.trf.xlu0
    %v378 = vpop.trf.xlu0
    %v379 = vpop.trf.xlu0
    %v380 = vpop.trf.xlu0
    %v381 = vpop.trf.xlu0
    %v382 = vpop.trf.xlu0
    %v383 = vpop.trf.xlu0
    %v384 = vpop.trf.xlu0
    %v385 = vpop.trf.xlu0
    %v386 = vpop.trf.xlu0
    %v387 = vpop.trf.xlu0
    %v388 = vpop.trf.xlu0
    %v389 = vpop.trf.xlu0
    %v390 = vpop.trf.xlu0
    %v391 = vpop.trf.xlu0
    %v392 = vpop.trf.xlu0
    %393 = vxpose.xlu0.b32.start [1/16] %v167, 128
    %394 = vxpose.xlu0.b32.cont [2/16] %v168, 128
    %395 = vxpose.xlu0.b32.cont [3/16] 0.0, 128
    %396 = vxpose.xlu0.b32.cont [4/16] 0.0, 128
    %397 = vxpose.xlu0.b32.cont [5/16] 0.0, 128
    %398 = vxpose.xlu0.b32.cont [6/16] 0.0, 128
    %399 = vxpose.xlu0.b32.cont [7/16] 0.0, 128
    %400 = vxpose.xlu0.b32.cont [8/16] 0.0, 128
    %401 = vxpose.xlu0.b32.cont [9/16] 0.0, 128
    %402 = vxpose.xlu0.b32.cont [10/16] 0.0, 128
    %403 = vxpose.xlu0.b32.cont [11/16] 0.0, 128
    %404 = vxpose.xlu0.b32.cont [12/16] 0.0, 128
    %405 = vxpose.xlu0.b32.cont [13/16] 0.0, 128
    %406 = vxpose.xlu0.b32.cont [14/16] 0.0, 128
    %407 = vxpose.xlu0.b32.cont [15/16] 0.0, 128
    %408 = vxpose.xlu0.b32.end [16/16] 0.0, 128
    %v409 = vpop.trf.xlu0
    %v410 = vpop.trf.xlu0
    %v411 = vpop.trf.xlu0
    %v412 = vpop.trf.xlu0
    %v413 = vpop.trf.xlu0
    %v414 = vpop.trf.xlu0
    %v415 = vpop.trf.xlu0
    %v416 = vpop.trf.xlu0
    %v417 = vpop.trf.xlu0
    %v418 = vpop.trf.xlu0
    %v419 = vpop.trf.xlu0
    %v420 = vpop.trf.xlu0
    %v421 = vpop.trf.xlu0
    %v422 = vpop.trf.xlu0
    %v423 = vpop.trf.xlu0
    %v424 = vpop.trf.xlu0
    %v425 = vpack.c.bf16 %v186, %v185
    %v426 = vpack.c.bf16 %v188, %v187
    %v427 = vpack.c.bf16 %v190, %v189
    %v428 = vpack.c.bf16 %v192, %v191
    %v429 = vpack.c.bf16 %v194, %v193
    %v430 = vpack.c.bf16 %v196, %v195
    %v431 = vpack.c.bf16 %v198, %v197
    %v432 = vpack.c.bf16 %v200, %v199
    %v433 = vpack.c.bf16 %v218, %v217
    %v434 = vpack.c.bf16 %v220, %v219
    %v435 = vpack.c.bf16 %v222, %v221
    %v436 = vpack.c.bf16 %v224, %v223
    %v437 = vpack.c.bf16 %v226, %v225
    %v438 = vpack.c.bf16 %v228, %v227
    %v439 = vpack.c.bf16 %v230, %v229
    %v440 = vpack.c.bf16 %v232, %v231
    %v441 = vpack.c.bf16 %v250, %v249
    %v442 = vpack.c.bf16 %v252, %v251
    %v443 = vpack.c.bf16 %v254, %v253
    %v444 = vpack.c.bf16 %v256, %v255
    %v445 = vpack.c.bf16 %v258, %v257
    %v446 = vpack.c.bf16 %v260, %v259
    %v447 = vpack.c.bf16 %v262, %v261
    %v448 = vpack.c.bf16 %v264, %v263
    %v449 = vpack.c.bf16 %v282, %v281
    %v450 = vpack.c.bf16 %v284, %v283
    %v451 = vpack.c.bf16 %v286, %v285
    %v452 = vpack.c.bf16 %v288, %v287
    %v453 = vpack.c.bf16 %v290, %v289
    %v454 = vpack.c.bf16 %v292, %v291
    %v455 = vpack.c.bf16 %v294, %v293
    %v456 = vpack.c.bf16 %v296, %v295
    %v457 = vpack.c.bf16 %v314, %v313
    %v458 = vpack.c.bf16 %v316, %v315
    %v459 = vpack.c.bf16 %v318, %v317
    %v460 = vpack.c.bf16 %v320, %v319
    %v461 = vpack.c.bf16 %v322, %v321
    %v462 = vpack.c.bf16 %v324, %v323
    %v463 = vpack.c.bf16 %v326, %v325
    %v464 = vpack.c.bf16 %v328, %v327
    %v465 = vpack.c.bf16 %v346, %v345
    %v466 = vpack.c.bf16 %v348, %v347
    %v467 = vpack.c.bf16 %v350, %v349
    %v468 = vpack.c.bf16 %v352, %v351
    %v469 = vpack.c.bf16 %v354, %v353
    %v470 = vpack.c.bf16 %v356, %v355
    %v471 = vpack.c.bf16 %v358, %v357
    %v472 = vpack.c.bf16 %v360, %v359
    %v473 = vpack.c.bf16 %v378, %v377
    %v474 = vpack.c.bf16 %v380, %v379
    %v475 = vpack.c.bf16 %v382, %v381
    %v476 = vpack.c.bf16 %v384, %v383
    %v477 = vpack.c.bf16 %v386, %v385
    %v478 = vpack.c.bf16 %v388, %v387
    %v479 = vpack.c.bf16 %v390, %v389
    %v480 = vpack.c.bf16 %v392, %v391
    %v481 = vpack.c.bf16 %v410, %v409
    %v482 = vpack.c.bf16 %v412, %v411
    %v483 = vpack.c.bf16 %v414, %v413
    %v484 = vpack.c.bf16 %v416, %v415
    %v485 = vpack.c.bf16 %v418, %v417
    %v486 = vpack.c.bf16 %v420, %v419
    %v487 = vpack.c.bf16 %v422, %v421
    %v488 = vpack.c.bf16 %v424, %v423
    %v489 = vld [vmem:[#allocation5] sm:$0xf]
    %v490 = vld [vmem:[#allocation5 + $0x4] sm:$0xf]
    %v491 = vld [vmem:[%s2] sm:$0x1]
    %v493 = vlaneseq
    %v494 = vshrl.u32 %v493, 7
    %v495 = vsub.s32 0, %v494
    %v496 = vrot.slane %v491, %v495
    %v500 = vunpack.c.l.b16 %v489
    %v501 = vunpack.c.l.b16 %v490
    %v502 = vpack.c.b16 %v501, %v500
    %vm504 = vcmask 130048
    %v506 = vsel %vm504, %v425, 0
    %v509 = vsel %vm504, %v426, 0
    %v512 = vsel %vm504, %v427, 0
    %v515 = vsel %vm504, %v428, 0
    %v518 = vsel %vm504, %v429, 0
    %v521 = vsel %vm504, %v430, 0
    %v524 = vsel %vm504, %v431, 0
    %v527 = vsel %vm504, %v432, 0
    %v530 = vsel %vm504, %v433, 0
    %v533 = vsel %vm504, %v434, 0
    %v536 = vsel %vm504, %v435, 0
    %v539 = vsel %vm504, %v436, 0
    %v542 = vsel %vm504, %v437, 0
    %v545 = vsel %vm504, %v438, 0
    %v548 = vsel %vm504, %v439, 0
    %v551 = vsel %vm504, %v440, 0
    %v554 = vsel %vm504, %v441, 0
    %v557 = vsel %vm504, %v442, 0
    %v560 = vsel %vm504, %v443, 0
    %v563 = vsel %vm504, %v444, 0
    %v566 = vsel %vm504, %v445, 0
    %v569 = vsel %vm504, %v446, 0
    %v572 = vsel %vm504, %v447, 0
    %v575 = vsel %vm504, %v448, 0
    %v578 = vsel %vm504, %v449, 0
    %v581 = vsel %vm504, %v450, 0
    %v584 = vsel %vm504, %v451, 0
    %v587 = vsel %vm504, %v452, 0
    %v590 = vsel %vm504, %v453, 0
    %v593 = vsel %vm504, %v454, 0
    %v596 = vsel %vm504, %v455, 0
    %v599 = vsel %vm504, %v456, 0
    %v602 = vsel %vm504, %v457, 0
    %v605 = vsel %vm504, %v458, 0
    %v608 = vsel %vm504, %v459, 0
    %v611 = vsel %vm504, %v460, 0
    %v614 = vsel %vm504, %v461, 0
    %v617 = vsel %vm504, %v462, 0
    %v620 = vsel %vm504, %v463, 0
    %v623 = vsel %vm504, %v464, 0
    %v626 = vsel %vm504, %v465, 0
    %v629 = vsel %vm504, %v466, 0
    %v632 = vsel %vm504, %v467, 0
    %v635 = vsel %vm504, %v468, 0
    %v638 = vsel %vm504, %v469, 0
    %v641 = vsel %vm504, %v470, 0
    %v644 = vsel %vm504, %v471, 0
    %v647 = vsel %vm504, %v472, 0
    %v650 = vsel %vm504, %v473, 0
    %v653 = vsel %vm504, %v474, 0
    %v656 = vsel %vm504, %v475, 0
    %v659 = vsel %vm504, %v476, 0
    %v662 = vsel %vm504, %v477, 0
    %v665 = vsel %vm504, %v478, 0
    %v668 = vsel %vm504, %v479, 0
    %v671 = vsel %vm504, %v480, 0
    %v674 = vsel %vm504, %v481, 0
    %v677 = vsel %vm504, %v482, 0
    %v680 = vsel %vm504, %v483, 0
    %v683 = vsel %vm504, %v484, 0
    %v686 = vsel %vm504, %v485, 0
    %v689 = vsel %vm504, %v486, 0
    %v692 = vsel %vm504, %v487, 0
    %v695 = vsel %vm504, %v488, 0
    %697 = vmatprep.subr.bf16.mxu0 0
    %698 = vmatpush1.bf16.msra.mxu0 %v502
    %699 = vmatprep.subr.bf16.mxu0 0
    %700 = vmatpush1.bf16.msra.mxu0 0
    %701 = vmatprep.subr.bf16.mxu0 0
    %702 = vmatpush1.bf16.msra.mxu0 0
    %703 = vmatprep.subr.bf16.mxu0 0
    %704 = vmatpush1.bf16.msra.mxu0 0
    %705 = vmatprep.subr.bf16.mxu0 0
    %706 = vmatpush1.bf16.msra.mxu0 0
    %707 = vmatprep.subr.bf16.mxu0 0
    %708 = vmatpush1.bf16.msra.mxu0 0
    %709 = vmatprep.subr.bf16.mxu0 0
    %710 = vmatpush1.bf16.msra.mxu0 0
    %711 = vmatprep.subr.bf16.mxu0 0
    %712 = vmatpush1.bf16.msra.mxu0 0
    %713 = vmatprep.subr.bf16.mxu0 0
    %714 = vmatpush1.bf16.msra.mxu0 0
    %715 = vmatprep.subr.bf16.mxu0 0
    %716 = vmatpush1.bf16.msra.mxu0 0
    %717 = vmatprep.subr.bf16.mxu0 0
    %718 = vmatpush1.bf16.msra.mxu0 0
    %719 = vmatprep.subr.bf16.mxu0 0
    %720 = vmatpush1.bf16.msra.mxu0 0
    %721 = vmatprep.subr.bf16.mxu0 0
    %722 = vmatpush1.bf16.msra.mxu0 0
    %723 = vmatprep.subr.bf16.mxu0 0
    %724 = vmatpush1.bf16.msra.mxu0 0
    %725 = vmatprep.subr.bf16.mxu0 0
    %726 = vmatpush1.bf16.msra.mxu0 0
    %727 = vmatprep.subr.bf16.mxu0 0
    %728 = vmatpush1.bf16.msra.mxu0 0
    %729 = vmatprep.mubr.bf16.mxu0 0
    %730 = vmatmul.mubr.bf16.gmra.mrb[0].mxu0 %v506
    %v731 = vpop.f32.mrb[0].mxu0
    %v732 = vadd.f32 %v496, %v731
    %v733 = vpop.f32.mrb[0].mxu0
    %v734 = vpop.f32.mrb[0].mxu0
    %v735 = vadd.f32 %v496, %v734
    %v736 = vpop.f32.mrb[0].mxu0
    %737 = vmatprep.mubr.bf16.mxu0 0
    %738 = vmatmul.mubr.bf16.gmra.mrb[0].mxu0 %v509
    %v739 = vpop.f32.mrb[0].mxu0
    %v740 = vadd.f32 %v496, %v739
    %v741 = vpop.f32.mrb[0].mxu0
    %v742 = vpop.f32.mrb[0].mxu0
    %v743 = vadd.f32 %v496, %v742
    %v744 = vpop.f32.mrb[0].mxu0
    %745 = vmatprep.mubr.bf16.mxu0 0
    %746 = vmatmul.mubr.bf16.gmra.mrb[0].mxu0 %v512
    %v747 = vpop.f32.mrb[0].mxu0
    %v748 = vadd.f32 %v496, %v747
    %v749 = vpop.f32.mrb[0].mxu0
    %v750 = vpop.f32.mrb[0].mxu0
    %v751 = vadd.f32 %v496, %v750
    %v752 = vpop.f32.mrb[0].mxu0
    %753 = vmatprep.mubr.bf16.mxu0 0
    %754 = vmatmul.mubr.bf16.gmra.mrb[0].mxu0 %v515
    %v755 = vpop.f32.mrb[0].mxu0
    %v756 = vadd.f32 %v496, %v755
    %v757 = vpop.f32.mrb[0].mxu0
    %v758 = vpop.f32.mrb[0].mxu0
    %v759 = vadd.f32 %v496, %v758
    %v760 = vpop.f32.mrb[0].mxu0
    %761 = vmatprep.mubr.bf16.mxu0 0
    %762 = vmatmul.mubr.bf16.gmra.mrb[0].mxu0 %v518
    %v763 = vpop.f32.mrb[0].mxu0
    %v764 = vadd.f32 %v496, %v763
    %v765 = vpop.f32.mrb[0].mxu0
    %v766 = vpop.f32.mrb[0].mxu0
    %v767 = vadd.f32 %v496, %v766
    %v768 = vpop.f32.mrb[0].mxu0
    %769 = vmatprep.mubr.bf16.mxu0 0
    %770 = vmatmul.mubr.bf16.gmra.mrb[0].mxu0 %v521
    %v771 = vpop.f32.mrb[0].mxu0
    %v772 = vadd.f32 %v496, %v771
    %v773 = vpop.f32.mrb[0].mxu0
    %v774 = vpop.f32.mrb[0].mxu0
    %v775 = vadd.f32 %v496, %v774
    %v776 = vpop.f32.mrb[0].mxu0
    %777 = vmatprep.mubr.bf16.mxu0 0
    %778 = vmatmul.mubr.bf16.gmra.mrb[0].mxu0 %v524
    %v779 = vpop.f32.mrb[0].mxu0
    %v780 = vadd.f32 %v496, %v779
    %v781 = vpop.f32.mrb[0].mxu0
    %v782 = vpop.f32.mrb[0].mxu0
    %v783 = vadd.f32 %v496, %v782
    %v784 = vpop.f32.mrb[0].mxu0
    %785 = vmatprep.mubr.bf16.mxu0 0
    %786 = vmatmul.mubr.bf16.gmra.mrb[0].mxu0 %v527
    %v787 = vpop.f32.mrb[0].mxu0
    %v788 = vadd.f32 %v496, %v787
    %v789 = vpop.f32.mrb[0].mxu0
    %v790 = vpop.f32.mrb[0].mxu0
    %v791 = vadd.f32 %v496, %v790
    %v792 = vpop.f32.mrb[0].mxu0
    %793 = vmatprep.mubr.bf16.mxu0 0
    %794 = vmatmul.mubr.bf16.gmra.mrb[0].mxu0 %v530
    %v795 = vpop.f32.mrb[0].mxu0
    %v796 = vadd.f32 %v496, %v795
    %v797 = vpop.f32.mrb[0].mxu0
    %v798 = vpop.f32.mrb[0].mxu0
    %v799 = vadd.f32 %v496, %v798
    %v800 = vpop.f32.mrb[0].mxu0
    %801 = vmatprep.mubr.bf16.mxu0 0
    %802 = vmatmul.mubr.bf16.gmra.mrb[0].mxu0 %v533
    %v803 = vpop.f32.mrb[0].mxu0
    %v804 = vadd.f32 %v496, %v803
    %v805 = vpop.f32.mrb[0].mxu0
    %v806 = vpop.f32.mrb[0].mxu0
    %v807 = vadd.f32 %v496, %v806
    %v808 = vpop.f32.mrb[0].mxu0
    %809 = vmatprep.mubr.bf16.mxu0 0
    %810 = vmatmul.mubr.bf16.gmra.mrb[0].mxu0 %v536
    %v811 = vpop.f32.mrb[0].mxu0
    %v812 = vadd.f32 %v496, %v811
    %v813 = vpop.f32.mrb[0].mxu0
    %v814 = vpop.f32.mrb[0].mxu0
    %v815 = vadd.f32 %v496, %v814
    %v816 = vpop.f32.mrb[0].mxu0
    %817 = vmatprep.mubr.bf16.mxu0 0
    %818 = vmatmul.mubr.bf16.gmra.mrb[0].mxu0 %v539
    %v819 = vpop.f32.mrb[0].mxu0
    %v820 = vadd.f32 %v496, %v819
    %v821 = vpop.f32.mrb[0].mxu0
    %v822 = vpop.f32.mrb[0].mxu0
    %v823 = vadd.f32 %v496, %v822
    %v824 = vpop.f32.mrb[0].mxu0
    %825 = vmatprep.mubr.bf16.mxu0 0
    %826 = vmatmul.mubr.bf16.gmra.mrb[0].mxu0 %v542
    %v827 = vpop.f32.mrb[0].mxu0
    %v828 = vadd.f32 %v496, %v827
    %v829 = vpop.f32.mrb[0].mxu0
    %v830 = vpop.f32.mrb[0].mxu0
    %v831 = vadd.f32 %v496, %v830
    %v832 = vpop.f32.mrb[0].mxu0
    %833 = vmatprep.mubr.bf16.mxu0 0
    %834 = vmatmul.mubr.bf16.gmra.mrb[0].mxu0 %v545
    %v835 = vpop.f32.mrb[0].mxu0
    %v836 = vadd.f32 %v496, %v835
    %v837 = vpop.f32.mrb[0].mxu0
    %v838 = vpop.f32.mrb[0].mxu0
    %v839 = vadd.f32 %v496, %v838
    %v840 = vpop.f32.mrb[0].mxu0
    %841 = vmatprep.mubr.bf16.mxu0 0
    %842 = vmatmul.mubr.bf16.gmra.mrb[0].mxu0 %v548
    %v843 = vpop.f32.mrb[0].mxu0
    %v844 = vadd.f32 %v496, %v843
    %v845 = vpop.f32.mrb[0].mxu0
    %v846 = vpop.f32.mrb[0].mxu0
    %v847 = vadd.f32 %v496, %v846
    %v848 = vpop.f32.mrb[0].mxu0
    %849 = vmatprep.mubr.bf16.mxu0 0
    %850 = vmatmul.mubr.bf16.gmra.mrb[0].mxu0 %v551
    %v851 = vpop.f32.mrb[0].mxu0
    %v852 = vadd.f32 %v496, %v851
    %v853 = vpop.f32.mrb[0].mxu0
    %v854 = vpop.f32.mrb[0].mxu0
    %v855 = vadd.f32 %v496, %v854
    %v856 = vpop.f32.mrb[0].mxu0
    %857 = vmatprep.mubr.bf16.mxu0 0
    %858 = vmatmul.mubr.bf16.gmra.mrb[0].mxu0 %v554
    %v859 = vpop.f32.mrb[0].mxu0
    %v860 = vadd.f32 %v496, %v859
    %v861 = vpop.f32.mrb[0].mxu0
    %v862 = vpop.f32.mrb[0].mxu0
    %v863 = vadd.f32 %v496, %v862
    %v864 = vpop.f32.mrb[0].mxu0
    %865 = vmatprep.mubr.bf16.mxu0 0
    %866 = vmatmul.mubr.bf16.gmra.mrb[0].mxu0 %v557
    %v867 = vpop.f32.mrb[0].mxu0
    %v868 = vadd.f32 %v496, %v867
    %v869 = vpop.f32.mrb[0].mxu0
    %v870 = vpop.f32.mrb[0].mxu0
    %v871 = vadd.f32 %v496, %v870
    %v872 = vpop.f32.mrb[0].mxu0
    %873 = vmatprep.mubr.bf16.mxu0 0
    %874 = vmatmul.mubr.bf16.gmra.mrb[0].mxu0 %v560
    %v875 = vpop.f32.mrb[0].mxu0
    %v876 = vadd.f32 %v496, %v875
    %v877 = vpop.f32.mrb[0].mxu0
    %v878 = vpop.f32.mrb[0].mxu0
    %v879 = vadd.f32 %v496, %v878
    %v880 = vpop.f32.mrb[0].mxu0
    %881 = vmatprep.mubr.bf16.mxu0 0
    %882 = vmatmul.mubr.bf16.gmra.mrb[0].mxu0 %v563
    %v883 = vpop.f32.mrb[0].mxu0
    %v884 = vadd.f32 %v496, %v883
    %v885 = vpop.f32.mrb[0].mxu0
    %v886 = vpop.f32.mrb[0].mxu0
    %v887 = vadd.f32 %v496, %v886
    %v888 = vpop.f32.mrb[0].mxu0
    %889 = vmatprep.mubr.bf16.mxu0 0
    %890 = vmatmul.mubr.bf16.gmra.mrb[0].mxu0 %v566
    %v891 = vpop.f32.mrb[0].mxu0
    %v892 = vadd.f32 %v496, %v891
    %v893 = vpop.f32.mrb[0].mxu0
    %v894 = vpop.f32.mrb[0].mxu0
    %v895 = vadd.f32 %v496, %v894
    %v896 = vpop.f32.mrb[0].mxu0
    %897 = vmatprep.mubr.bf16.mxu0 0
    %898 = vmatmul.mubr.bf16.gmra.mrb[0].mxu0 %v569
    %v899 = vpop.f32.mrb[0].mxu0
    %v900 = vadd.f32 %v496, %v899
    %v901 = vpop.f32.mrb[0].mxu0
    %v902 = vpop.f32.mrb[0].mxu0
    %v903 = vadd.f32 %v496, %v902
    %v904 = vpop.f32.mrb[0].mxu0
    %905 = vmatprep.mubr.bf16.mxu0 0
    %906 = vmatmul.mubr.bf16.gmra.mrb[0].mxu0 %v572
    %v907 = vpop.f32.mrb[0].mxu0
    %v908 = vadd.f32 %v496, %v907
    %v909 = vpop.f32.mrb[0].mxu0
    %v910 = vpop.f32.mrb[0].mxu0
    %v911 = vadd.f32 %v496, %v910
    %v912 = vpop.f32.mrb[0].mxu0
    %913 = vmatprep.mubr.bf16.mxu0 0
    %914 = vmatmul.mubr.bf16.gmra.mrb[0].mxu0 %v575
    %v915 = vpop.f32.mrb[0].mxu0
    %v916 = vadd.f32 %v496, %v915
    %v917 = vpop.f32.mrb[0].mxu0
    %v918 = vpop.f32.mrb[0].mxu0
    %v919 = vadd.f32 %v496, %v918
    %v920 = vpop.f32.mrb[0].mxu0
    %921 = vmatprep.mubr.bf16.mxu0 0
    %922 = vmatmul.mubr.bf16.gmra.mrb[0].mxu0 %v578
    %v923 = vpop.f32.mrb[0].mxu0
    %v924 = vadd.f32 %v496, %v923
    %v925 = vpop.f32.mrb[0].mxu0
    %v926 = vpop.f32.mrb[0].mxu0
    %v927 = vadd.f32 %v496, %v926
    %v928 = vpop.f32.mrb[0].mxu0
    %929 = vmatprep.mubr.bf16.mxu0 0
    %930 = vmatmul.mubr.bf16.gmra.mrb[0].mxu0 %v581
    %v931 = vpop.f32.mrb[0].mxu0
    %v932 = vadd.f32 %v496, %v931
    %v933 = vpop.f32.mrb[0].mxu0
    %v934 = vpop.f32.mrb[0].mxu0
    %v935 = vadd.f32 %v496, %v934
    %v936 = vpop.f32.mrb[0].mxu0
    %937 = vmatprep.mubr.bf16.mxu0 0
    %938 = vmatmul.mubr.bf16.gmra.mrb[0].mxu0 %v584
    %v939 = vpop.f32.mrb[0].mxu0
    %v940 = vadd.f32 %v496, %v939
    %v941 = vpop.f32.mrb[0].mxu0
    %v942 = vpop.f32.mrb[0].mxu0
    %v943 = vadd.f32 %v496, %v942
    %v944 = vpop.f32.mrb[0].mxu0
    %945 = vmatprep.mubr.bf16.mxu0 0
    %946 = vmatmul.mubr.bf16.gmra.mrb[0].mxu0 %v587
    %v947 = vpop.f32.mrb[0].mxu0
    %v948 = vadd.f32 %v496, %v947
    %v949 = vpop.f32.mrb[0].mxu0
    %v950 = vpop.f32.mrb[0].mxu0
    %v951 = vadd.f32 %v496, %v950
    %v952 = vpop.f32.mrb[0].mxu0
    %953 = vmatprep.mubr.bf16.mxu0 0
    %954 = vmatmul.mubr.bf16.gmra.mrb[0].mxu0 %v590
    %v955 = vpop.f32.mrb[0].mxu0
    %v956 = vadd.f32 %v496, %v955
    %v957 = vpop.f32.mrb[0].mxu0
    %v958 = vpop.f32.mrb[0].mxu0
    %v959 = vadd.f32 %v496, %v958
    %v960 = vpop.f32.mrb[0].mxu0
    %961 = vmatprep.mubr.bf16.mxu0 0
    %962 = vmatmul.mubr.bf16.gmra.mrb[0].mxu0 %v593
    %v963 = vpop.f32.mrb[0].mxu0
    %v964 = vadd.f32 %v496, %v963
    %v965 = vpop.f32.mrb[0].mxu0
    %v966 = vpop.f32.mrb[0].mxu0
    %v967 = vadd.f32 %v496, %v966
    %v968 = vpop.f32.mrb[0].mxu0
    %969 = vmatprep.mubr.bf16.mxu0 0
    %970 = vmatmul.mubr.bf16.gmra.mrb[0].mxu0 %v596
    %v971 = vpop.f32.mrb[0].mxu0
    %v972 = vadd.f32 %v496, %v971
    %v973 = vpop.f32.mrb[0].mxu0
    %v974 = vpop.f32.mrb[0].mxu0
    %v975 = vadd.f32 %v496, %v974
    %v976 = vpop.f32.mrb[0].mxu0
    %977 = vmatprep.mubr.bf16.mxu0 0
    %978 = vmatmul.mubr.bf16.gmra.mrb[0].mxu0 %v599
    %v979 = vpop.f32.mrb[0].mxu0
    %v980 = vadd.f32 %v496, %v979
    %v981 = vpop.f32.mrb[0].mxu0
    %v982 = vpop.f32.mrb[0].mxu0
    %v983 = vadd.f32 %v496, %v982
    %v984 = vpop.f32.mrb[0].mxu0
    %985 = vmatprep.mubr.bf16.mxu0 0
    %986 = vmatmul.mubr.bf16.gmra.mrb[0].mxu0 %v602
    %v987 = vpop.f32.mrb[0].mxu0
    %v988 = vadd.f32 %v496, %v987
    %v989 = vpop.f32.mrb[0].mxu0
    %v990 = vpop.f32.mrb[0].mxu0
    %v991 = vadd.f32 %v496, %v990
    %v992 = vpop.f32.mrb[0].mxu0
    %993 = vmatprep.mubr.bf16.mxu0 0
    %994 = vmatmul.mubr.bf16.gmra.mrb[0].mxu0 %v605
    %v995 = vpop.f32.mrb[0].mxu0
    %v996 = vadd.f32 %v496, %v995
    %v997 = vpop.f32.mrb[0].mxu0
    %v998 = vpop.f32.mrb[0].mxu0
    %v999 = vadd.f32 %v496, %v998
    %v1000 = vpop.f32.mrb[0].mxu0
    %1001 = vmatprep.mubr.bf16.mxu0 0
    %1002 = vmatmul.mubr.bf16.gmra.mrb[0].mxu0 %v608
    %v1003 = vpop.f32.mrb[0].mxu0
    %v1004 = vadd.f32 %v496, %v1003
    %v1005 = vpop.f32.mrb[0].mxu0
    %v1006 = vpop.f32.mrb[0].mxu0
    %v1007 = vadd.f32 %v496, %v1006
    %v1008 = vpop.f32.mrb[0].mxu0
    %1009 = vmatprep.mubr.bf16.mxu0 0
    %1010 = vmatmul.mubr.bf16.gmra.mrb[0].mxu0 %v611
    %v1011 = vpop.f32.mrb[0].mxu0
    %v1012 = vadd.f32 %v496, %v1011
    %v1013 = vpop.f32.mrb[0].mxu0
    %v1014 = vpop.f32.mrb[0].mxu0
    %v1015 = vadd.f32 %v496, %v1014
    %v1016 = vpop.f32.mrb[0].mxu0
    %1017 = vmatprep.mubr.bf16.mxu0 0
    %1018 = vmatmul.mubr.bf16.gmra.mrb[0].mxu0 %v614
    %v1019 = vpop.f32.mrb[0].mxu0
    %v1020 = vadd.f32 %v496, %v1019
    %v1021 = vpop.f32.mrb[0].mxu0
    %v1022 = vpop.f32.mrb[0].mxu0
    %v1023 = vadd.f32 %v496, %v1022
    %v1024 = vpop.f32.mrb[0].mxu0
    %1025 = vmatprep.mubr.bf16.mxu0 0
    %1026 = vmatmul.mubr.bf16.gmra.mrb[0].mxu0 %v617
    %v1027 = vpop.f32.mrb[0].mxu0
    %v1028 = vadd.f32 %v496, %v1027
    %v1029 = vpop.f32.mrb[0].mxu0
    %v1030 = vpop.f32.mrb[0].mxu0
    %v1031 = vadd.f32 %v496, %v1030
    %v1032 = vpop.f32.mrb[0].mxu0
    %1033 = vmatprep.mubr.bf16.mxu0 0
    %1034 = vmatmul.mubr.bf16.gmra.mrb[0].mxu0 %v620
    %v1035 = vpop.f32.mrb[0].mxu0
    %v1036 = vadd.f32 %v496, %v1035
    %v1037 = vpop.f32.mrb[0].mxu0
    %v1038 = vpop.f32.mrb[0].mxu0
    %v1039 = vadd.f32 %v496, %v1038
    %v1040 = vpop.f32.mrb[0].mxu0
    %1041 = vmatprep.mubr.bf16.mxu0 0
    %1042 = vmatmul.mubr.bf16.gmra.mrb[0].mxu0 %v623
    %v1043 = vpop.f32.mrb[0].mxu0
    %v1044 = vadd.f32 %v496, %v1043
    %v1045 = vpop.f32.mrb[0].mxu0
    %v1046 = vpop.f32.mrb[0].mxu0
    %v1047 = vadd.f32 %v496, %v1046
    %v1048 = vpop.f32.mrb[0].mxu0
    %1049 = vmatprep.mubr.bf16.mxu0 0
    %1050 = vmatmul.mubr.bf16.gmra.mrb[0].mxu0 %v626
    %v1051 = vpop.f32.mrb[0].mxu0
    %v1052 = vadd.f32 %v496, %v1051
    %v1053 = vpop.f32.mrb[0].mxu0
    %v1054 = vpop.f32.mrb[0].mxu0
    %v1055 = vadd.f32 %v496, %v1054
    %v1056 = vpop.f32.mrb[0].mxu0
    %1057 = vmatprep.mubr.bf16.mxu0 0
    %1058 = vmatmul.mubr.bf16.gmra.mrb[0].mxu0 %v629
    %v1059 = vpop.f32.mrb[0].mxu0
    %v1060 = vadd.f32 %v496, %v1059
    %v1061 = vpop.f32.mrb[0].mxu0
    %v1062 = vpop.f32.mrb[0].mxu0
    %v1063 = vadd.f32 %v496, %v1062
    %v1064 = vpop.f32.mrb[0].mxu0
    %1065 = vmatprep.mubr.bf16.mxu0 0
    %1066 = vmatmul.mubr.bf16.gmra.mrb[0].mxu0 %v632
    %v1067 = vpop.f32.mrb[0].mxu0
    %v1068 = vadd.f32 %v496, %v1067
    %v1069 = vpop.f32.mrb[0].mxu0
    %v1070 = vpop.f32.mrb[0].mxu0
    %v1071 = vadd.f32 %v496, %v1070
    %v1072 = vpop.f32.mrb[0].mxu0
    %1073 = vmatprep.mubr.bf16.mxu0 0
    %1074 = vmatmul.mubr.bf16.gmra.mrb[0].mxu0 %v635
    %v1075 = vpop.f32.mrb[0].mxu0
    %v1076 = vadd.f32 %v496, %v1075
    %v1077 = vpop.f32.mrb[0].mxu0
    %v1078 = vpop.f32.mrb[0].mxu0
    %v1079 = vadd.f32 %v496, %v1078
    %v1080 = vpop.f32.mrb[0].mxu0
    %1081 = vmatprep.mubr.bf16.mxu0 0
    %1082 = vmatmul.mubr.bf16.gmra.mrb[0].mxu0 %v638
    %v1083 = vpop.f32.mrb[0].mxu0
    %v1084 = vadd.f32 %v496, %v1083
    %v1085 = vpop.f32.mrb[0].mxu0
    %v1086 = vpop.f32.mrb[0].mxu0
    %v1087 = vadd.f32 %v496, %v1086
    %v1088 = vpop.f32.mrb[0].mxu0
    %1089 = vmatprep.mubr.bf16.mxu0 0
    %1090 = vmatmul.mubr.bf16.gmra.mrb[0].mxu0 %v641
    %v1091 = vpop.f32.mrb[0].mxu0
    %v1092 = vadd.f32 %v496, %v1091
    %v1093 = vpop.f32.mrb[0].mxu0
    %v1094 = vpop.f32.mrb[0].mxu0
    %v1095 = vadd.f32 %v496, %v1094
    %v1096 = vpop.f32.mrb[0].mxu0
    %1097 = vmatprep.mubr.bf16.mxu0 0
    %1098 = vmatmul.mubr.bf16.gmra.mrb[0].mxu0 %v644
    %v1099 = vpop.f32.mrb[0].mxu0
    %v1100 = vadd.f32 %v496, %v1099
    %v1101 = vpop.f32.mrb[0].mxu0
    %v1102 = vpop.f32.mrb[0].mxu0
    %v1103 = vadd.f32 %v496, %v1102
    %v1104 = vpop.f32.mrb[0].mxu0
    %1105 = vmatprep.mubr.bf16.mxu0 0
    %1106 = vmatmul.mubr.bf16.gmra.mrb[0].mxu0 %v647
    %v1107 = vpop.f32.mrb[0].mxu0
    %v1108 = vadd.f32 %v496, %v1107
    %v1109 = vpop.f32.mrb[0].mxu0
    %v1110 = vpop.f32.mrb[0].mxu0
    %v1111 = vadd.f32 %v496, %v1110
    %v1112 = vpop.f32.mrb[0].mxu0
    %1113 = vmatprep.mubr.bf16.mxu0 0
    %1114 = vmatmul.mubr.bf16.gmra.mrb[0].mxu0 %v650
    %v1115 = vpop.f32.mrb[0].mxu0
    %v1116 = vadd.f32 %v496, %v1115
    %v1117 = vpop.f32.mrb[0].mxu0
    %v1118 = vpop.f32.mrb[0].mxu0
    %v1119 = vadd.f32 %v496, %v1118
    %v1120 = vpop.f32.mrb[0].mxu0
    %1121 = vmatprep.mubr.bf16.mxu0 0
    %1122 = vmatmul.mubr.bf16.gmra.mrb[0].mxu0 %v653
    %v1123 = vpop.f32.mrb[0].mxu0
    %v1124 = vadd.f32 %v496, %v1123
    %v1125 = vpop.f32.mrb[0].mxu0
    %v1126 = vpop.f32.mrb[0].mxu0
    %v1127 = vadd.f32 %v496, %v1126
    %v1128 = vpop.f32.mrb[0].mxu0
    %1129 = vmatprep.mubr.bf16.mxu0 0
    %1130 = vmatmul.mubr.bf16.gmra.mrb[0].mxu0 %v656
    %v1131 = vpop.f32.mrb[0].mxu0
    %v1132 = vadd.f32 %v496, %v1131
    %v1133 = vpop.f32.mrb[0].mxu0
    %v1134 = vpop.f32.mrb[0].mxu0
    %v1135 = vadd.f32 %v496, %v1134
    %v1136 = vpop.f32.mrb[0].mxu0
    %1137 = vmatprep.mubr.bf16.mxu0 0
    %1138 = vmatmul.mubr.bf16.gmra.mrb[0].mxu0 %v659
    %v1139 = vpop.f32.mrb[0].mxu0
    %v1140 = vadd.f32 %v496, %v1139
    %v1141 = vpop.f32.mrb[0].mxu0
    %v1142 = vpop.f32.mrb[0].mxu0
    %v1143 = vadd.f32 %v496, %v1142
    %v1144 = vpop.f32.mrb[0].mxu0
    %1145 = vmatprep.mubr.bf16.mxu0 0
    %1146 = vmatmul.mubr.bf16.gmra.mrb[0].mxu0 %v662
    %v1147 = vpop.f32.mrb[0].mxu0
    %v1148 = vadd.f32 %v496, %v1147
    %v1149 = vpop.f32.mrb[0].mxu0
    %v1150 = vpop.f32.mrb[0].mxu0
    %v1151 = vadd.f32 %v496, %v1150
    %v1152 = vpop.f32.mrb[0].mxu0
    %1153 = vmatprep.mubr.bf16.mxu0 0
    %1154 = vmatmul.mubr.bf16.gmra.mrb[0].mxu0 %v665
    %v1155 = vpop.f32.mrb[0].mxu0
    %v1156 = vadd.f32 %v496, %v1155
    %v1157 = vpop.f32.mrb[0].mxu0
    %v1158 = vpop.f32.mrb[0].mxu0
    %v1159 = vadd.f32 %v496, %v1158
    %v1160 = vpop.f32.mrb[0].mxu0
    %1161 = vmatprep.mubr.bf16.mxu0 0
    %1162 = vmatmul.mubr.bf16.gmra.mrb[0].mxu0 %v668
    %v1163 = vpop.f32.mrb[0].mxu0
    %v1164 = vadd.f32 %v496, %v1163
    %v1165 = vpop.f32.mrb[0].mxu0
    %v1166 = vpop.f32.mrb[0].mxu0
    %v1167 = vadd.f32 %v496, %v1166
    %v1168 = vpop.f32.mrb[0].mxu0
    %1169 = vmatprep.mubr.bf16.mxu0 0
    %1170 = vmatmul.mubr.bf16.gmra.mrb[0].mxu0 %v671
    %v1171 = vpop.f32.mrb[0].mxu0
    %v1172 = vadd.f32 %v496, %v1171
    %v1173 = vpop.f32.mrb[0].mxu0
    %v1174 = vpop.f32.mrb[0].mxu0
    %v1175 = vadd.f32 %v496, %v1174
    %v1176 = vpop.f32.mrb[0].mxu0
    %1177 = vmatprep.mubr.bf16.mxu0 0
    %1178 = vmatmul.mubr.bf16.gmra.mrb[0].mxu0 %v674
    %v1179 = vpop.f32.mrb[0].mxu0
    %v1180 = vadd.f32 %v496, %v1179
    %v1181 = vpop.f32.mrb[0].mxu0
    %v1182 = vpop.f32.mrb[0].mxu0
    %v1183 = vadd.f32 %v496, %v1182
    %v1184 = vpop.f32.mrb[0].mxu0
    %1185 = vmatprep.mubr.bf16.mxu0 0
    %1186 = vmatmul.mubr.bf16.gmra.mrb[0].mxu0 %v677
    %v1187 = vpop.f32.mrb[0].mxu0
    %v1188 = vadd.f32 %v496, %v1187
    %v1189 = vpop.f32.mrb[0].mxu0
    %v1190 = vpop.f32.mrb[0].mxu0
    %v1191 = vadd.f32 %v496, %v1190
    %v1192 = vpop.f32.mrb[0].mxu0
    %1193 = vmatprep.mubr.bf16.mxu0 0
    %1194 = vmatmul.mubr.bf16.gmra.mrb[0].mxu0 %v680
    %v1195 = vpop.f32.mrb[0].mxu0
    %v1196 = vadd.f32 %v496, %v1195
    %v1197 = vpop.f32.mrb[0].mxu0
    %v1198 = vpop.f32.mrb[0].mxu0
    %v1199 = vadd.f32 %v496, %v1198
    %v1200 = vpop.f32.mrb[0].mxu0
    %1201 = vmatprep.mubr.bf16.mxu0 0
    %1202 = vmatmul.mubr.bf16.gmra.mrb[0].mxu0 %v683
    %v1203 = vpop.f32.mrb[0].mxu0
    %v1204 = vadd.f32 %v496, %v1203
    %v1205 = vpop.f32.mrb[0].mxu0
    %v1206 = vpop.f32.mrb[0].mxu0
    %v1207 = vadd.f32 %v496, %v1206
    %v1208 = vpop.f32.mrb[0].mxu0
    %1209 = vmatprep.mubr.bf16.mxu0 0
    %1210 = vmatmul.mubr.bf16.gmra.mrb[0].mxu0 %v686
    %v1211 = vpop.f32.mrb[0].mxu0
    %v1212 = vadd.f32 %v496, %v1211
    %v1213 = vpop.f32.mrb[0].mxu0
    %v1214 = vpop.f32.mrb[0].mxu0
    %v1215 = vadd.f32 %v496, %v1214
    %v1216 = vpop.f32.mrb[0].mxu0
    %1217 = vmatprep.mubr.bf16.mxu0 0
    %1218 = vmatmul.mubr.bf16.gmra.mrb[0].mxu0 %v689
    %v1219 = vpop.f32.mrb[0].mxu0
    %v1220 = vadd.f32 %v496, %v1219
    %v1221 = vpop.f32.mrb[0].mxu0
    %v1222 = vpop.f32.mrb[0].mxu0
    %v1223 = vadd.f32 %v496, %v1222
    %v1224 = vpop.f32.mrb[0].mxu0
    %1225 = vmatprep.mubr.bf16.mxu0 0
    %1226 = vmatmul.mubr.bf16.gmra.mrb[0].mxu0 %v692
    %v1227 = vpop.f32.mrb[0].mxu0
    %v1228 = vadd.f32 %v496, %v1227
    %v1229 = vpop.f32.mrb[0].mxu0
    %v1230 = vpop.f32.mrb[0].mxu0
    %v1231 = vadd.f32 %v496, %v1230
    %v1232 = vpop.f32.mrb[0].mxu0
    %1233 = vmatprep.mubr.bf16.mxu0 0
    %1234 = vmatmul.mubr.bf16.gmra.mrb[0].mxu0 %v695
    %v1235 = vpop.f32.mrb[0].mxu0
    %v1236 = vadd.f32 %v496, %v1235
    %v1237 = vpop.f32.mrb[0].mxu0
    %v1238 = vpop.f32.mrb[0].mxu0
    %v1239 = vadd.f32 %v496, %v1238
    %v1240 = vpop.f32.mrb[0].mxu0
    %1241 = vdwg.mxu0
    %v1242 = vmax.f32 %v732, 0.0
    %v1243 = vmax.f32 %v735, 0.0
    %v1244 = vmax.f32 %v740, 0.0
    %v1245 = vmax.f32 %v743, 0.0
    %v1246 = vmax.f32 %v748, 0.0
    %v1247 = vmax.f32 %v751, 0.0
    %v1248 = vmax.f32 %v756, 0.0
    %v1249 = vmax.f32 %v759, 0.0
    %v1250 = vmax.f32 %v764, 0.0
    %v1251 = vmax.f32 %v767, 0.0
    %v1252 = vmax.f32 %v772, 0.0
    %v1253 = vmax.f32 %v775, 0.0
    %v1254 = vmax.f32 %v780, 0.0
    %v1255 = vmax.f32 %v783, 0.0
    %v1256 = vmax.f32 %v788, 0.0
    %v1257 = vmax.f32 %v791, 0.0
    %v1258 = vmax.f32 %v796, 0.0
    %v1259 = vmax.f32 %v799, 0.0
    %v1260 = vmax.f32 %v804, 0.0
    %v1261 = vmax.f32 %v807, 0.0
    %v1262 = vmax.f32 %v812, 0.0
    %v1263 = vmax.f32 %v815, 0.0
    %v1264 = vmax.f32 %v820, 0.0
    %v1265 = vmax.f32 %v823, 0.0
    %v1266 = vmax.f32 %v828, 0.0
    %v1267 = vmax.f32 %v831, 0.0
    %v1268 = vmax.f32 %v836, 0.0
    %v1269 = vmax.f32 %v839, 0.0
    %v1270 = vmax.f32 %v844, 0.0
    %v1271 = vmax.f32 %v847, 0.0
    %v1272 = vmax.f32 %v852, 0.0
    %v1273 = vmax.f32 %v855, 0.0
    %v1274 = vmax.f32 %v860, 0.0
    %v1275 = vmax.f32 %v863, 0.0
    %v1276 = vmax.f32 %v868, 0.0
    %v1277 = vmax.f32 %v871, 0.0
    %v1278 = vmax.f32 %v876, 0.0
    %v1279 = vmax.f32 %v879, 0.0
    %v1280 = vmax.f32 %v884, 0.0
    %v1281 = vmax.f32 %v887, 0.0
    %v1282 = vmax.f32 %v892, 0.0
    %v1283 = vmax.f32 %v895, 0.0
    %v1284 = vmax.f32 %v900, 0.0
    %v1285 = vmax.f32 %v903, 0.0
    %v1286 = vmax.f32 %v908, 0.0
    %v1287 = vmax.f32 %v911, 0.0
    %v1288 = vmax.f32 %v916, 0.0
    %v1289 = vmax.f32 %v919, 0.0
    %v1290 = vmax.f32 %v924, 0.0
    %v1291 = vmax.f32 %v927, 0.0
    %v1292 = vmax.f32 %v932, 0.0
    %v1293 = vmax.f32 %v935, 0.0
    %v1294 = vmax.f32 %v940, 0.0
    %v1295 = vmax.f32 %v943, 0.0
    %v1296 = vmax.f32 %v948, 0.0
    %v1297 = vmax.f32 %v951, 0.0
    %v1298 = vmax.f32 %v956, 0.0
    %v1299 = vmax.f32 %v959, 0.0
    %v1300 = vmax.f32 %v964, 0.0
    %v1301 = vmax.f32 %v967, 0.0
    %v1302 = vmax.f32 %v972, 0.0
    %v1303 = vmax.f32 %v975, 0.0
    %v1304 = vmax.f32 %v980, 0.0
    %v1305 = vmax.f32 %v983, 0.0
    %v1306 = vmax.f32 %v988, 0.0
    %v1307 = vmax.f32 %v991, 0.0
    %v1308 = vmax.f32 %v996, 0.0
    %v1309 = vmax.f32 %v999, 0.0
    %v1310 = vmax.f32 %v1004, 0.0
    %v1311 = vmax.f32 %v1007, 0.0
    %v1312 = vmax.f32 %v1012, 0.0
    %v1313 = vmax.f32 %v1015, 0.0
    %v1314 = vmax.f32 %v1020, 0.0
    %v1315 = vmax.f32 %v1023, 0.0
    %v1316 = vmax.f32 %v1028, 0.0
    %v1317 = vmax.f32 %v1031, 0.0
    %v1318 = vmax.f32 %v1036, 0.0
    %v1319 = vmax.f32 %v1039, 0.0
    %v1320 = vmax.f32 %v1044, 0.0
    %v1321 = vmax.f32 %v1047, 0.0
    %v1322 = vmax.f32 %v1052, 0.0
    %v1323 = vmax.f32 %v1055, 0.0
    %v1324 = vmax.f32 %v1060, 0.0
    %v1325 = vmax.f32 %v1063, 0.0
    %v1326 = vmax.f32 %v1068, 0.0
    %v1327 = vmax.f32 %v1071, 0.0
    %v1328 = vmax.f32 %v1076, 0.0
    %v1329 = vmax.f32 %v1079, 0.0
    %v1330 = vmax.f32 %v1084, 0.0
    %v1331 = vmax.f32 %v1087, 0.0
    %v1332 = vmax.f32 %v1092, 0.0
    %v1333 = vmax.f32 %v1095, 0.0
    %v1334 = vmax.f32 %v1100, 0.0
    %v1335 = vmax.f32 %v1103, 0.0
    %v1336 = vmax.f32 %v1108, 0.0
    %v1337 = vmax.f32 %v1111, 0.0
    %v1338 = vmax.f32 %v1116, 0.0
    %v1339 = vmax.f32 %v1119, 0.0
    %v1340 = vmax.f32 %v1124, 0.0
    %v1341 = vmax.f32 %v1127, 0.0
    %v1342 = vmax.f32 %v1132, 0.0
    %v1343 = vmax.f32 %v1135, 0.0
    %v1344 = vmax.f32 %v1140, 0.0
    %v1345 = vmax.f32 %v1143, 0.0
    %v1346 = vmax.f32 %v1148, 0.0
    %v1347 = vmax.f32 %v1151, 0.0
    %v1348 = vmax.f32 %v1156, 0.0
    %v1349 = vmax.f32 %v1159, 0.0
    %v1350 = vmax.f32 %v1164, 0.0
    %v1351 = vmax.f32 %v1167, 0.0
    %v1352 = vmax.f32 %v1172, 0.0
    %v1353 = vmax.f32 %v1175, 0.0
    %v1354 = vmax.f32 %v1180, 0.0
    %v1355 = vmax.f32 %v1183, 0.0
    %v1356 = vmax.f32 %v1188, 0.0
    %v1357 = vmax.f32 %v1191, 0.0
    %v1358 = vmax.f32 %v1196, 0.0
    %v1359 = vmax.f32 %v1199, 0.0
    %v1360 = vmax.f32 %v1204, 0.0
    %v1361 = vmax.f32 %v1207, 0.0
    %v1362 = vmax.f32 %v1212, 0.0
    %v1363 = vmax.f32 %v1215, 0.0
    %v1364 = vmax.f32 %v1220, 0.0
    %v1365 = vmax.f32 %v1223, 0.0
    %v1366 = vmax.f32 %v1228, 0.0
    %v1367 = vmax.f32 %v1231, 0.0
    %v1368 = vmax.f32 %v1236, 0.0
    %v1369 = vmax.f32 %v1239, 0.0
    %v1370 = vpack.c.bf16 %v1243, %v1242
    %v1371 = vpack.c.bf16 %v1245, %v1244
    %v1372 = vpack.c.bf16 %v1247, %v1246
    %v1373 = vpack.c.bf16 %v1249, %v1248
    %v1374 = vpack.c.bf16 %v1251, %v1250
    %v1375 = vpack.c.bf16 %v1253, %v1252
    %v1376 = vpack.c.bf16 %v1255, %v1254
    %v1377 = vpack.c.bf16 %v1257, %v1256
    %v1378 = vpack.c.bf16 %v1259, %v1258
    %v1379 = vpack.c.bf16 %v1261, %v1260
    %v1380 = vpack.c.bf16 %v1263, %v1262
    %v1381 = vpack.c.bf16 %v1265, %v1264
    %v1382 = vpack.c.bf16 %v1267, %v1266
    %v1383 = vpack.c.bf16 %v1269, %v1268
    %v1384 = vpack.c.bf16 %v1271, %v1270
    %v1385 = vpack.c.bf16 %v1273, %v1272
    %v1386 = vpack.c.bf16 %v1275, %v1274
    %v1387 = vpack.c.bf16 %v1277, %v1276
    %v1388 = vpack.c.bf16 %v1279, %v1278
    %v1389 = vpack.c.bf16 %v1281, %v1280
    %v1390 = vpack.c.bf16 %v1283, %v1282
    %v1391 = vpack.c.bf16 %v1285, %v1284
    %v1392 = vpack.c.bf16 %v1287, %v1286
    %v1393 = vpack.c.bf16 %v1289, %v1288
    %v1394 = vpack.c.bf16 %v1291, %v1290
    %v1395 = vpack.c.bf16 %v1293, %v1292
    %v1396 = vpack.c.bf16 %v1295, %v1294
    %v1397 = vpack.c.bf16 %v1297, %v1296
    %v1398 = vpack.c.bf16 %v1299, %v1298
    %v1399 = vpack.c.bf16 %v1301, %v1300
    %v1400 = vpack.c.bf16 %v1303, %v1302
    %v1401 = vpack.c.bf16 %v1305, %v1304
    %v1402 = vpack.c.bf16 %v1307, %v1306
    %v1403 = vpack.c.bf16 %v1309, %v1308
    %v1404 = vpack.c.bf16 %v1311, %v1310
    %v1405 = vpack.c.bf16 %v1313, %v1312
    %v1406 = vpack.c.bf16 %v1315, %v1314
    %v1407 = vpack.c.bf16 %v1317, %v1316
    %v1408 = vpack.c.bf16 %v1319, %v1318
    %v1409 = vpack.c.bf16 %v1321, %v1320
    %v1410 = vpack.c.bf16 %v1323, %v1322
    %v1411 = vpack.c.bf16 %v1325, %v1324
    %v1412 = vpack.c.bf16 %v1327, %v1326
    %v1413 = vpack.c.bf16 %v1329, %v1328
    %v1414 = vpack.c.bf16 %v1331, %v1330
    %v1415 = vpack.c.bf16 %v1333, %v1332
    %v1416 = vpack.c.bf16 %v1335, %v1334
    %v1417 = vpack.c.bf16 %v1337, %v1336
    %v1418 = vpack.c.bf16 %v1339, %v1338
    %v1419 = vpack.c.bf16 %v1341, %v1340
    %v1420 = vpack.c.bf16 %v1343, %v1342
    %v1421 = vpack.c.bf16 %v1345, %v1344
    %v1422 = vpack.c.bf16 %v1347, %v1346
    %v1423 = vpack.c.bf16 %v1349, %v1348
    %v1424 = vpack.c.bf16 %v1351, %v1350
    %v1425 = vpack.c.bf16 %v1353, %v1352
    %v1426 = vpack.c.bf16 %v1355, %v1354
    %v1427 = vpack.c.bf16 %v1357, %v1356
    %v1428 = vpack.c.bf16 %v1359, %v1358
    %v1429 = vpack.c.bf16 %v1361, %v1360
    %v1430 = vpack.c.bf16 %v1363, %v1362
    %v1431 = vpack.c.bf16 %v1365, %v1364
    %v1432 = vpack.c.bf16 %v1367, %v1366
    %v1433 = vpack.c.bf16 %v1369, %v1368
    %v1434 = vld [vmem:[#allocation7] sm:$0xf]
    %v1435 = vld [vmem:[#allocation7 + $0x4] sm:$0xf]
    %v1436 = vld [vmem:[#allocation7 + $0x8] sm:$0xf]
    %v1437 = vld [vmem:[#allocation7 + $0xc] sm:$0xf]
    %v1438 = vld [vmem:[#allocation7 + $0x10] sm:$0xf]
    %v1439 = vld [vmem:[#allocation7 + $0x14] sm:$0xf]
    %v1440 = vld [vmem:[#allocation7 + $0x18] sm:$0xf]
    %v1441 = vld [vmem:[#allocation7 + $0x1c] sm:$0xf]
    %v1442 = vld [vmem:[#allocation8] sm:$0x1]
    %v1444 = vlaneseq
    %v1445 = vshrl.u32 %v1444, 7
    %v1446 = vsub.s32 0, %v1445
    %v1447 = vrot.slane %v1442, %v1446
    %v1457 = vunpack.c.l.b16 %v1434
    %v1458 = vunpack.c.l.b16 %v1435
    %v1459 = vunpack.c.l.b16 %v1436
    %v1460 = vunpack.c.l.b16 %v1437
    %v1461 = vunpack.c.l.b16 %v1438
    %v1462 = vunpack.c.l.b16 %v1439
    %v1463 = vunpack.c.l.b16 %v1440
    %v1464 = vunpack.c.l.b16 %v1441
    %v1465 = vpack.c.b16 %v1458, %v1457
    %v1466 = vpack.c.b16 %v1460, %v1459
    %v1467 = vpack.c.b16 %v1462, %v1461
    %v1468 = vpack.c.b16 %v1464, %v1463
    %vm1473 = vcmask 523264
    %v1475 = vsel %vm1473, %v1370, 0
    %v1478 = vsel %vm1473, %v1371, 0
    %v1481 = vsel %vm1473, %v1372, 0
    %v1484 = vsel %vm1473, %v1373, 0
    %v1487 = vsel %vm1473, %v1374, 0
    %v1490 = vsel %vm1473, %v1375, 0
    %v1493 = vsel %vm1473, %v1376, 0
    %v1496 = vsel %vm1473, %v1377, 0
    %v1499 = vsel %vm1473, %v1378, 0
    %v1502 = vsel %vm1473, %v1379, 0
    %v1505 = vsel %vm1473, %v1380, 0
    %v1508 = vsel %vm1473, %v1381, 0
    %v1511 = vsel %vm1473, %v1382, 0
    %v1514 = vsel %vm1473, %v1383, 0
    %v1517 = vsel %vm1473, %v1384, 0
    %v1520 = vsel %vm1473, %v1385, 0
    %v1523 = vsel %vm1473, %v1386, 0
    %v1526 = vsel %vm1473, %v1387, 0
    %v1529 = vsel %vm1473, %v1388, 0
    %v1532 = vsel %vm1473, %v1389, 0
    %v1535 = vsel %vm1473, %v1390, 0
    %v1538 = vsel %vm1473, %v1391, 0
    %v1541 = vsel %vm1473, %v1392, 0
    %v1544 = vsel %vm1473, %v1393, 0
    %v1547 = vsel %vm1473, %v1394, 0
    %v1550 = vsel %vm1473, %v1395, 0
    %v1553 = vsel %vm1473, %v1396, 0
    %v1556 = vsel %vm1473, %v1397, 0
    %v1559 = vsel %vm1473, %v1398, 0
    %v1562 = vsel %vm1473, %v1399, 0
    %v1565 = vsel %vm1473, %v1400, 0
    %v1568 = vsel %vm1473, %v1401, 0
    %v1571 = vsel %vm1473, %v1402, 0
    %v1574 = vsel %vm1473, %v1403, 0
    %v1577 = vsel %vm1473, %v1404, 0
    %v1580 = vsel %vm1473, %v1405, 0
    %v1583 = vsel %vm1473, %v1406, 0
    %v1586 = vsel %vm1473, %v1407, 0
    %v1589 = vsel %vm1473, %v1408, 0
    %v1592 = vsel %vm1473, %v1409, 0
    %v1595 = vsel %vm1473, %v1410, 0
    %v1598 = vsel %vm1473, %v1411, 0
    %v1601 = vsel %vm1473, %v1412, 0
    %v1604 = vsel %vm1473, %v1413, 0
    %v1607 = vsel %vm1473, %v1414, 0
    %v1610 = vsel %vm1473, %v1415, 0
    %v1613 = vsel %vm1473, %v1416, 0
    %v1616 = vsel %vm1473, %v1417, 0
    %v1619 = vsel %vm1473, %v1418, 0
    %v1622 = vsel %vm1473, %v1419, 0
    %v1625 = vsel %vm1473, %v1420, 0
    %v1628 = vsel %vm1473, %v1421, 0
    %v1631 = vsel %vm1473, %v1422, 0
    %v1634 = vsel %vm1473, %v1423, 0
    %v1637 = vsel %vm1473, %v1424, 0
    %v1640 = vsel %vm1473, %v1425, 0
    %v1643 = vsel %vm1473, %v1426, 0
    %v1646 = vsel %vm1473, %v1427, 0
    %v1649 = vsel %vm1473, %v1428, 0
    %v1652 = vsel %vm1473, %v1429, 0
    %v1655 = vsel %vm1473, %v1430, 0
    %v1658 = vsel %vm1473, %v1431, 0
    %v1661 = vsel %vm1473, %v1432, 0
    %v1664 = vsel %vm1473, %v1433, 0
    %1666 = vmatprep.subr.bf16.mxu0 0
    %1667 = vmatpush1.bf16.msra.mxu0 %v1465
    %1668 = vmatprep.subr.bf16.mxu0 0
    %1669 = vmatpush1.bf16.msra.mxu0 %v1466
    %1670 = vmatprep.subr.bf16.mxu0 0
    %1671 = vmatpush1.bf16.msra.mxu0 %v1467
    %1672 = vmatprep.subr.bf16.mxu0 0
    %1673 = vmatpush1.bf16.msra.mxu0 %v1468
    %1674 = vmatprep.subr.bf16.mxu0 0
    %1675 = vmatpush1.bf16.msra.mxu0 0
    %1676 = vmatprep.subr.bf16.mxu0 0
    %1677 = vmatpush1.bf16.msra.mxu0 0
    %1678 = vmatprep.subr.bf16.mxu0 0
    %1679 = vmatpush1.bf16.msra.mxu0 0
    %1680 = vmatprep.subr.bf16.mxu0 0
    %1681 = vmatpush1.bf16.msra.mxu0 0
    %1682 = vmatprep.subr.bf16.mxu0 0
    %1683 = vmatpush1.bf16.msra.mxu0 0
    %1684 = vmatprep.subr.bf16.mxu0 0
    %1685 = vmatpush1.bf16.msra.mxu0 0
    %1686 = vmatprep.subr.bf16.mxu0 0
    %1687 = vmatpush1.bf16.msra.mxu0 0
    %1688 = vmatprep.subr.bf16.mxu0 0
    %1689 = vmatpush1.bf16.msra.mxu0 0
    %1690 = vmatprep.subr.bf16.mxu0 0
    %1691 = vmatpush1.bf16.msra.mxu0 0
    %1692 = vmatprep.subr.bf16.mxu0 0
    %1693 = vmatpush1.bf16.msra.mxu0 0
    %1694 = vmatprep.subr.bf16.mxu0 0
    %1695 = vmatpush1.bf16.msra.mxu0 0
    %1696 = vmatprep.subr.bf16.mxu0 0
    %1697 = vmatpush1.bf16.msra.mxu0 0
    %1698 = vmatprep.mubr.bf16.mxu0 0
    %1699 = vmatmul.mubr.bf16.gmra.mrb[0].mxu0 %v1475
    %v1700 = vpop.f32.mrb[0].mxu0
    %v1701 = vadd.f32 %v1447, %v1700
    %v1702 = vpop.f32.mrb[0].mxu0
    %v1703 = vpop.f32.mrb[0].mxu0
    %v1704 = vadd.f32 %v1447, %v1703
    %v1705 = vpop.f32.mrb[0].mxu0
    %1706 = vmatprep.mubr.bf16.mxu0 0
    %1707 = vmatmul.mubr.bf16.gmra.mrb[0].mxu0 %v1478
    %v1708 = vpop.f32.mrb[0].mxu0
    %v1709 = vadd.f32 %v1447, %v1708
    %v1710 = vpop.f32.mrb[0].mxu0
    %v1711 = vpop.f32.mrb[0].mxu0
    %v1712 = vadd.f32 %v1447, %v1711
    %v1713 = vpop.f32.mrb[0].mxu0
    %1714 = vmatprep.mubr.bf16.mxu0 0
    %1715 = vmatmul.mubr.bf16.gmra.mrb[0].mxu0 %v1481
    %v1716 = vpop.f32.mrb[0].mxu0
    %v1717 = vadd.f32 %v1447, %v1716
    %v1718 = vpop.f32.mrb[0].mxu0
    %v1719 = vpop.f32.mrb[0].mxu0
    %v1720 = vadd.f32 %v1447, %v1719
    %v1721 = vpop.f32.mrb[0].mxu0
    %1722 = vmatprep.mubr.bf16.mxu0 0
    %1723 = vmatmul.mubr.bf16.gmra.mrb[0].mxu0 %v1484
    %v1724 = vpop.f32.mrb[0].mxu0
    %v1725 = vadd.f32 %v1447, %v1724
    %v1726 = vpop.f32.mrb[0].mxu0
    %v1727 = vpop.f32.mrb[0].mxu0
    %v1728 = vadd.f32 %v1447, %v1727
    %v1729 = vpop.f32.mrb[0].mxu0
    %1730 = vmatprep.mubr.bf16.mxu0 0
    %1731 = vmatmul.mubr.bf16.gmra.mrb[0].mxu0 %v1487
    %v1732 = vpop.f32.mrb[0].mxu0
    %v1733 = vadd.f32 %v1447, %v1732
    %v1734 = vpop.f32.mrb[0].mxu0
    %v1735 = vpop.f32.mrb[0].mxu0
    %v1736 = vadd.f32 %v1447, %v1735
    %v1737 = vpop.f32.mrb[0].mxu0
    %1738 = vmatprep.mubr.bf16.mxu0 0
    %1739 = vmatmul.mubr.bf16.gmra.mrb[0].mxu0 %v1490
    %v1740 = vpop.f32.mrb[0].mxu0
    %v1741 = vadd.f32 %v1447, %v1740
    %v1742 = vpop.f32.mrb[0].mxu0
    %v1743 = vpop.f32.mrb[0].mxu0
    %v1744 = vadd.f32 %v1447, %v1743
    %v1745 = vpop.f32.mrb[0].mxu0
    %1746 = vmatprep.mubr.bf16.mxu0 0
    %1747 = vmatmul.mubr.bf16.gmra.mrb[0].mxu0 %v1493
    %v1748 = vpop.f32.mrb[0].mxu0
    %v1749 = vadd.f32 %v1447, %v1748
    %v1750 = vpop.f32.mrb[0].mxu0
    %v1751 = vpop.f32.mrb[0].mxu0
    %v1752 = vadd.f32 %v1447, %v1751
    %v1753 = vpop.f32.mrb[0].mxu0
    %1754 = vmatprep.mubr.bf16.mxu0 0
    %1755 = vmatmul.mubr.bf16.gmra.mrb[0].mxu0 %v1496
    %v1756 = vpop.f32.mrb[0].mxu0
    %v1757 = vadd.f32 %v1447, %v1756
    %v1758 = vpop.f32.mrb[0].mxu0
    %v1759 = vpop.f32.mrb[0].mxu0
    %v1760 = vadd.f32 %v1447, %v1759
    %v1761 = vpop.f32.mrb[0].mxu0
    %1762 = vmatprep.mubr.bf16.mxu0 0
    %1763 = vmatmul.mubr.bf16.gmra.mrb[0].mxu0 %v1499
    %v1764 = vpop.f32.mrb[0].mxu0
    %v1765 = vadd.f32 %v1447, %v1764
    %v1766 = vpop.f32.mrb[0].mxu0
    %v1767 = vpop.f32.mrb[0].mxu0
    %v1768 = vadd.f32 %v1447, %v1767
    %v1769 = vpop.f32.mrb[0].mxu0
    %1770 = vmatprep.mubr.bf16.mxu0 0
    %1771 = vmatmul.mubr.bf16.gmra.mrb[0].mxu0 %v1502
    %v1772 = vpop.f32.mrb[0].mxu0
    %v1773 = vadd.f32 %v1447, %v1772
    %v1774 = vpop.f32.mrb[0].mxu0
    %v1775 = vpop.f32.mrb[0].mxu0
    %v1776 = vadd.f32 %v1447, %v1775
    %v1777 = vpop.f32.mrb[0].mxu0
    %1778 = vmatprep.mubr.bf16.mxu0 0
    %1779 = vmatmul.mubr.bf16.gmra.mrb[0].mxu0 %v1505
    %v1780 = vpop.f32.mrb[0].mxu0
    %v1781 = vadd.f32 %v1447, %v1780
    %v1782 = vpop.f32.mrb[0].mxu0
    %v1783 = vpop.f32.mrb[0].mxu0
    %v1784 = vadd.f32 %v1447, %v1783
    %v1785 = vpop.f32.mrb[0].mxu0
    %1786 = vmatprep.mubr.bf16.mxu0 0
    %1787 = vmatmul.mubr.bf16.gmra.mrb[0].mxu0 %v1508
    %v1788 = vpop.f32.mrb[0].mxu0
    %v1789 = vadd.f32 %v1447, %v1788
    %v1790 = vpop.f32.mrb[0].mxu0
    %v1791 = vpop.f32.mrb[0].mxu0
    %v1792 = vadd.f32 %v1447, %v1791
    %v1793 = vpop.f32.mrb[0].mxu0
    %1794 = vmatprep.mubr.bf16.mxu0 0
    %1795 = vmatmul.mubr.bf16.gmra.mrb[0].mxu0 %v1511
    %v1796 = vpop.f32.mrb[0].mxu0
    %v1797 = vadd.f32 %v1447, %v1796
    %v1798 = vpop.f32.mrb[0].mxu0
    %v1799 = vpop.f32.mrb[0].mxu0
    %v1800 = vadd.f32 %v1447, %v1799
    %v1801 = vpop.f32.mrb[0].mxu0
    %1802 = vmatprep.mubr.bf16.mxu0 0
    %1803 = vmatmul.mubr.bf16.gmra.mrb[0].mxu0 %v1514
    %v1804 = vpop.f32.mrb[0].mxu0
    %v1805 = vadd.f32 %v1447, %v1804
    %v1806 = vpop.f32.mrb[0].mxu0
    %v1807 = vpop.f32.mrb[0].mxu0
    %v1808 = vadd.f32 %v1447, %v1807
    %v1809 = vpop.f32.mrb[0].mxu0
    %1810 = vmatprep.mubr.bf16.mxu0 0
    %1811 = vmatmul.mubr.bf16.gmra.mrb[0].mxu0 %v1517
    %v1812 = vpop.f32.mrb[0].mxu0
    %v1813 = vadd.f32 %v1447, %v1812
    %v1814 = vpop.f32.mrb[0].mxu0
    %v1815 = vpop.f32.mrb[0].mxu0
    %v1816 = vadd.f32 %v1447, %v1815
    %v1817 = vpop.f32.mrb[0].mxu0
    %1818 = vmatprep.mubr.bf16.mxu0 0
    %1819 = vmatmul.mubr.bf16.gmra.mrb[0].mxu0 %v1520
    %v1820 = vpop.f32.mrb[0].mxu0
    %v1821 = vadd.f32 %v1447, %v1820
    %v1822 = vpop.f32.mrb[0].mxu0
    %v1823 = vpop.f32.mrb[0].mxu0
    %v1824 = vadd.f32 %v1447, %v1823
    %v1825 = vpop.f32.mrb[0].mxu0
    %1826 = vmatprep.mubr.bf16.mxu0 0
    %1827 = vmatmul.mubr.bf16.gmra.mrb[0].mxu0 %v1523
    %v1828 = vpop.f32.mrb[0].mxu0
    %v1829 = vadd.f32 %v1447, %v1828
    %v1830 = vpop.f32.mrb[0].mxu0
    %v1831 = vpop.f32.mrb[0].mxu0
    %v1832 = vadd.f32 %v1447, %v1831
    %v1833 = vpop.f32.mrb[0].mxu0
    %1834 = vmatprep.mubr.bf16.mxu0 0
    %1835 = vmatmul.mubr.bf16.gmra.mrb[0].mxu0 %v1526
    %v1836 = vpop.f32.mrb[0].mxu0
    %v1837 = vadd.f32 %v1447, %v1836
    %v1838 = vpop.f32.mrb[0].mxu0
    %v1839 = vpop.f32.mrb[0].mxu0
    %v1840 = vadd.f32 %v1447, %v1839
    %v1841 = vpop.f32.mrb[0].mxu0
    %1842 = vmatprep.mubr.bf16.mxu0 0
    %1843 = vmatmul.mubr.bf16.gmra.mrb[0].mxu0 %v1529
    %v1844 = vpop.f32.mrb[0].mxu0
    %v1845 = vadd.f32 %v1447, %v1844
    %v1846 = vpop.f32.mrb[0].mxu0
    %v1847 = vpop.f32.mrb[0].mxu0
    %v1848 = vadd.f32 %v1447, %v1847
    %v1849 = vpop.f32.mrb[0].mxu0
    %1850 = vmatprep.mubr.bf16.mxu0 0
    %1851 = vmatmul.mubr.bf16.gmra.mrb[0].mxu0 %v1532
    %v1852 = vpop.f32.mrb[0].mxu0
    %v1853 = vadd.f32 %v1447, %v1852
    %v1854 = vpop.f32.mrb[0].mxu0
    %v1855 = vpop.f32.mrb[0].mxu0
    %v1856 = vadd.f32 %v1447, %v1855
    %v1857 = vpop.f32.mrb[0].mxu0
    %1858 = vmatprep.mubr.bf16.mxu0 0
    %1859 = vmatmul.mubr.bf16.gmra.mrb[0].mxu0 %v1535
    %v1860 = vpop.f32.mrb[0].mxu0
    %v1861 = vadd.f32 %v1447, %v1860
    %v1862 = vpop.f32.mrb[0].mxu0
    %v1863 = vpop.f32.mrb[0].mxu0
    %v1864 = vadd.f32 %v1447, %v1863
    %v1865 = vpop.f32.mrb[0].mxu0
    %1866 = vmatprep.mubr.bf16.mxu0 0
    %1867 = vmatmul.mubr.bf16.gmra.mrb[0].mxu0 %v1538
    %v1868 = vpop.f32.mrb[0].mxu0
    %v1869 = vadd.f32 %v1447, %v1868
    %v1870 = vpop.f32.mrb[0].mxu0
    %v1871 = vpop.f32.mrb[0].mxu0
    %v1872 = vadd.f32 %v1447, %v1871
    %v1873 = vpop.f32.mrb[0].mxu0
    %1874 = vmatprep.mubr.bf16.mxu0 0
    %1875 = vmatmul.mubr.bf16.gmra.mrb[0].mxu0 %v1541
    %v1876 = vpop.f32.mrb[0].mxu0
    %v1877 = vadd.f32 %v1447, %v1876
    %v1878 = vpop.f32.mrb[0].mxu0
    %v1879 = vpop.f32.mrb[0].mxu0
    %v1880 = vadd.f32 %v1447, %v1879
    %v1881 = vpop.f32.mrb[0].mxu0
    %1882 = vmatprep.mubr.bf16.mxu0 0
    %1883 = vmatmul.mubr.bf16.gmra.mrb[0].mxu0 %v1544
    %v1884 = vpop.f32.mrb[0].mxu0
    %v1885 = vadd.f32 %v1447, %v1884
    %v1886 = vpop.f32.mrb[0].mxu0
    %v1887 = vpop.f32.mrb[0].mxu0
    %v1888 = vadd.f32 %v1447, %v1887
    %v1889 = vpop.f32.mrb[0].mxu0
    %1890 = vmatprep.mubr.bf16.mxu0 0
    %1891 = vmatmul.mubr.bf16.gmra.mrb[0].mxu0 %v1547
    %v1892 = vpop.f32.mrb[0].mxu0
    %v1893 = vadd.f32 %v1447, %v1892
    %v1894 = vpop.f32.mrb[0].mxu0
    %v1895 = vpop.f32.mrb[0].mxu0
    %v1896 = vadd.f32 %v1447, %v1895
    %v1897 = vpop.f32.mrb[0].mxu0
    %1898 = vmatprep.mubr.bf16.mxu0 0
    %1899 = vmatmul.mubr.bf16.gmra.mrb[0].mxu0 %v1550
    %v1900 = vpop.f32.mrb[0].mxu0
    %v1901 = vadd.f32 %v1447, %v1900
    %v1902 = vpop.f32.mrb[0].mxu0
    %v1903 = vpop.f32.mrb[0].mxu0
    %v1904 = vadd.f32 %v1447, %v1903
    %v1905 = vpop.f32.mrb[0].mxu0
    %1906 = vmatprep.mubr.bf16.mxu0 0
    %1907 = vmatmul.mubr.bf16.gmra.mrb[0].mxu0 %v1553
    %v1908 = vpop.f32.mrb[0].mxu0
    %v1909 = vadd.f32 %v1447, %v1908
    %v1910 = vpop.f32.mrb[0].mxu0
    %v1911 = vpop.f32.mrb[0].mxu0
    %v1912 = vadd.f32 %v1447, %v1911
    %v1913 = vpop.f32.mrb[0].mxu0
    %1914 = vmatprep.mubr.bf16.mxu0 0
    %1915 = vmatmul.mubr.bf16.gmra.mrb[0].mxu0 %v1556
    %v1916 = vpop.f32.mrb[0].mxu0
    %v1917 = vadd.f32 %v1447, %v1916
    %v1918 = vpop.f32.mrb[0].mxu0
    %v1919 = vpop.f32.mrb[0].mxu0
    %v1920 = vadd.f32 %v1447, %v1919
    %v1921 = vpop.f32.mrb[0].mxu0
    %1922 = vmatprep.mubr.bf16.mxu0 0
    %1923 = vmatmul.mubr.bf16.gmra.mrb[0].mxu0 %v1559
    %v1924 = vpop.f32.mrb[0].mxu0
    %v1925 = vadd.f32 %v1447, %v1924
    %v1926 = vpop.f32.mrb[0].mxu0
    %v1927 = vpop.f32.mrb[0].mxu0
    %v1928 = vadd.f32 %v1447, %v1927
    %v1929 = vpop.f32.mrb[0].mxu0
    %1930 = vmatprep.mubr.bf16.mxu0 0
    %1931 = vmatmul.mubr.bf16.gmra.mrb[0].mxu0 %v1562
    %v1932 = vpop.f32.mrb[0].mxu0
    %v1933 = vadd.f32 %v1447, %v1932
    %v1934 = vpop.f32.mrb[0].mxu0
    %v1935 = vpop.f32.mrb[0].mxu0
    %v1936 = vadd.f32 %v1447, %v1935
    %v1937 = vpop.f32.mrb[0].mxu0
    %1938 = vmatprep.mubr.bf16.mxu0 0
    %1939 = vmatmul.mubr.bf16.gmra.mrb[0].mxu0 %v1565
    %v1940 = vpop.f32.mrb[0].mxu0
    %v1941 = vadd.f32 %v1447, %v1940
    %v1942 = vpop.f32.mrb[0].mxu0
    %v1943 = vpop.f32.mrb[0].mxu0
    %v1944 = vadd.f32 %v1447, %v1943
    %v1945 = vpop.f32.mrb[0].mxu0
    %1946 = vmatprep.mubr.bf16.mxu0 0
    %1947 = vmatmul.mubr.bf16.gmra.mrb[0].mxu0 %v1568
    %v1948 = vpop.f32.mrb[0].mxu0
    %v1949 = vadd.f32 %v1447, %v1948
    %v1950 = vpop.f32.mrb[0].mxu0
    %v1951 = vpop.f32.mrb[0].mxu0
    %v1952 = vadd.f32 %v1447, %v1951
    %v1953 = vpop.f32.mrb[0].mxu0
    %1954 = vmatprep.mubr.bf16.mxu0 0
    %1955 = vmatmul.mubr.bf16.gmra.mrb[0].mxu0 %v1571
    %v1956 = vpop.f32.mrb[0].mxu0
    %v1957 = vadd.f32 %v1447, %v1956
    %v1958 = vpop.f32.mrb[0].mxu0
    %v1959 = vpop.f32.mrb[0].mxu0
    %v1960 = vadd.f32 %v1447, %v1959
    %v1961 = vpop.f32.mrb[0].mxu0
    %1962 = vmatprep.mubr.bf16.mxu0 0
    %1963 = vmatmul.mubr.bf16.gmra.mrb[0].mxu0 %v1574
    %v1964 = vpop.f32.mrb[0].mxu0
    %v1965 = vadd.f32 %v1447, %v1964
    %v1966 = vpop.f32.mrb[0].mxu0
    %v1967 = vpop.f32.mrb[0].mxu0
    %v1968 = vadd.f32 %v1447, %v1967
    %v1969 = vpop.f32.mrb[0].mxu0
    %1970 = vmatprep.mubr.bf16.mxu0 0
    %1971 = vmatmul.mubr.bf16.gmra.mrb[0].mxu0 %v1577
    %v1972 = vpop.f32.mrb[0].mxu0
    %v1973 = vadd.f32 %v1447, %v1972
    %v1974 = vpop.f32.mrb[0].mxu0
    %v1975 = vpop.f32.mrb[0].mxu0
    %v1976 = vadd.f32 %v1447, %v1975
    %v1977 = vpop.f32.mrb[0].mxu0
    %1978 = vmatprep.mubr.bf16.mxu0 0
    %1979 = vmatmul.mubr.bf16.gmra.mrb[0].mxu0 %v1580
    %v1980 = vpop.f32.mrb[0].mxu0
    %v1981 = vadd.f32 %v1447, %v1980
    %v1982 = vpop.f32.mrb[0].mxu0
    %v1983 = vpop.f32.mrb[0].mxu0
    %v1984 = vadd.f32 %v1447, %v1983
    %v1985 = vpop.f32.mrb[0].mxu0
    %1986 = vmatprep.mubr.bf16.mxu0 0
    %1987 = vmatmul.mubr.bf16.gmra.mrb[0].mxu0 %v1583
    %v1988 = vpop.f32.mrb[0].mxu0
    %v1989 = vadd.f32 %v1447, %v1988
    %v1990 = vpop.f32.mrb[0].mxu0
    %v1991 = vpop.f32.mrb[0].mxu0
    %v1992 = vadd.f32 %v1447, %v1991
    %v1993 = vpop.f32.mrb[0].mxu0
    %1994 = vmatprep.mubr.bf16.mxu0 0
    %1995 = vmatmul.mubr.bf16.gmra.mrb[0].mxu0 %v1586
    %v1996 = vpop.f32.mrb[0].mxu0
    %v1997 = vadd.f32 %v1447, %v1996
    %v1998 = vpop.f32.mrb[0].mxu0
    %v1999 = vpop.f32.mrb[0].mxu0
    %v2000 = vadd.f32 %v1447, %v1999
    %v2001 = vpop.f32.mrb[0].mxu0
    %2002 = vmatprep.mubr.bf16.mxu0 0
    %2003 = vmatmul.mubr.bf16.gmra.mrb[0].mxu0 %v1589
    %v2004 = vpop.f32.mrb[0].mxu0
    %v2005 = vadd.f32 %v1447, %v2004
    %v2006 = vpop.f32.mrb[0].mxu0
    %v2007 = vpop.f32.mrb[0].mxu0
    %v2008 = vadd.f32 %v1447, %v2007
    %v2009 = vpop.f32.mrb[0].mxu0
    %2010 = vmatprep.mubr.bf16.mxu0 0
    %2011 = vmatmul.mubr.bf16.gmra.mrb[0].mxu0 %v1592
    %v2012 = vpop.f32.mrb[0].mxu0
    %v2013 = vadd.f32 %v1447, %v2012
    %v2014 = vpop.f32.mrb[0].mxu0
    %v2015 = vpop.f32.mrb[0].mxu0
    %v2016 = vadd.f32 %v1447, %v2015
    %v2017 = vpop.f32.mrb[0].mxu0
    %2018 = vmatprep.mubr.bf16.mxu0 0
    %2019 = vmatmul.mubr.bf16.gmra.mrb[0].mxu0 %v1595
    %v2020 = vpop.f32.mrb[0].mxu0
    %v2021 = vadd.f32 %v1447, %v2020
    %v2022 = vpop.f32.mrb[0].mxu0
    %v2023 = vpop.f32.mrb[0].mxu0
    %v2024 = vadd.f32 %v1447, %v2023
    %v2025 = vpop.f32.mrb[0].mxu0
    %2026 = vmatprep.mubr.bf16.mxu0 0
    %2027 = vmatmul.mubr.bf16.gmra.mrb[0].mxu0 %v1598
    %v2028 = vpop.f32.mrb[0].mxu0
    %v2029 = vadd.f32 %v1447, %v2028
    %v2030 = vpop.f32.mrb[0].mxu0
    %v2031 = vpop.f32.mrb[0].mxu0
    %v2032 = vadd.f32 %v1447, %v2031
    %v2033 = vpop.f32.mrb[0].mxu0
    %2034 = vmatprep.mubr.bf16.mxu0 0
    %2035 = vmatmul.mubr.bf16.gmra.mrb[0].mxu0 %v1601
    %v2036 = vpop.f32.mrb[0].mxu0
    %v2037 = vadd.f32 %v1447, %v2036
    %v2038 = vpop.f32.mrb[0].mxu0
    %v2039 = vpop.f32.mrb[0].mxu0
    %v2040 = vadd.f32 %v1447, %v2039
    %v2041 = vpop.f32.mrb[0].mxu0
    %2042 = vmatprep.mubr.bf16.mxu0 0
    %2043 = vmatmul.mubr.bf16.gmra.mrb[0].mxu0 %v1604
    %v2044 = vpop.f32.mrb[0].mxu0
    %v2045 = vadd.f32 %v1447, %v2044
    %v2046 = vpop.f32.mrb[0].mxu0
    %v2047 = vpop.f32.mrb[0].mxu0
    %v2048 = vadd.f32 %v1447, %v2047
    %v2049 = vpop.f32.mrb[0].mxu0
    %2050 = vmatprep.mubr.bf16.mxu0 0
    %2051 = vmatmul.mubr.bf16.gmra.mrb[0].mxu0 %v1607
    %v2052 = vpop.f32.mrb[0].mxu0
    %v2053 = vadd.f32 %v1447, %v2052
    %v2054 = vpop.f32.mrb[0].mxu0
    %v2055 = vpop.f32.mrb[0].mxu0
    %v2056 = vadd.f32 %v1447, %v2055
    %v2057 = vpop.f32.mrb[0].mxu0
    %2058 = vmatprep.mubr.bf16.mxu0 0
    %2059 = vmatmul.mubr.bf16.gmra.mrb[0].mxu0 %v1610
    %v2060 = vpop.f32.mrb[0].mxu0
    %v2061 = vadd.f32 %v1447, %v2060
    %v2062 = vpop.f32.mrb[0].mxu0
    %v2063 = vpop.f32.mrb[0].mxu0
    %v2064 = vadd.f32 %v1447, %v2063
    %v2065 = vpop.f32.mrb[0].mxu0
    %2066 = vmatprep.mubr.bf16.mxu0 0
    %2067 = vmatmul.mubr.bf16.gmra.mrb[0].mxu0 %v1613
    %v2068 = vpop.f32.mrb[0].mxu0
    %v2069 = vadd.f32 %v1447, %v2068
    %v2070 = vpop.f32.mrb[0].mxu0
    %v2071 = vpop.f32.mrb[0].mxu0
    %v2072 = vadd.f32 %v1447, %v2071
    %v2073 = vpop.f32.mrb[0].mxu0
    %2074 = vmatprep.mubr.bf16.mxu0 0
    %2075 = vmatmul.mubr.bf16.gmra.mrb[0].mxu0 %v1616
    %v2076 = vpop.f32.mrb[0].mxu0
    %v2077 = vadd.f32 %v1447, %v2076
    %v2078 = vpop.f32.mrb[0].mxu0
    %v2079 = vpop.f32.mrb[0].mxu0
    %v2080 = vadd.f32 %v1447, %v2079
    %v2081 = vpop.f32.mrb[0].mxu0
    %2082 = vmatprep.mubr.bf16.mxu0 0
    %2083 = vmatmul.mubr.bf16.gmra.mrb[0].mxu0 %v1619
    %v2084 = vpop.f32.mrb[0].mxu0
    %v2085 = vadd.f32 %v1447, %v2084
    %v2086 = vpop.f32.mrb[0].mxu0
    %v2087 = vpop.f32.mrb[0].mxu0
    %v2088 = vadd.f32 %v1447, %v2087
    %v2089 = vpop.f32.mrb[0].mxu0
    %2090 = vmatprep.mubr.bf16.mxu0 0
    %2091 = vmatmul.mubr.bf16.gmra.mrb[0].mxu0 %v1622
    %v2092 = vpop.f32.mrb[0].mxu0
    %v2093 = vadd.f32 %v1447, %v2092
    %v2094 = vpop.f32.mrb[0].mxu0
    %v2095 = vpop.f32.mrb[0].mxu0
    %v2096 = vadd.f32 %v1447, %v2095
    %v2097 = vpop.f32.mrb[0].mxu0
    %2098 = vmatprep.mubr.bf16.mxu0 0
    %2099 = vmatmul.mubr.bf16.gmra.mrb[0].mxu0 %v1625
    %v2100 = vpop.f32.mrb[0].mxu0
    %v2101 = vadd.f32 %v1447, %v2100
    %v2102 = vpop.f32.mrb[0].mxu0
    %v2103 = vpop.f32.mrb[0].mxu0
    %v2104 = vadd.f32 %v1447, %v2103
    %v2105 = vpop.f32.mrb[0].mxu0
    %2106 = vmatprep.mubr.bf16.mxu0 0
    %2107 = vmatmul.mubr.bf16.gmra.mrb[0].mxu0 %v1628
    %v2108 = vpop.f32.mrb[0].mxu0
    %v2109 = vadd.f32 %v1447, %v2108
    %v2110 = vpop.f32.mrb[0].mxu0
    %v2111 = vpop.f32.mrb[0].mxu0
    %v2112 = vadd.f32 %v1447, %v2111
    %v2113 = vpop.f32.mrb[0].mxu0
    %2114 = vmatprep.mubr.bf16.mxu0 0
    %2115 = vmatmul.mubr.bf16.gmra.mrb[0].mxu0 %v1631
    %v2116 = vpop.f32.mrb[0].mxu0
    %v2117 = vadd.f32 %v1447, %v2116
    %v2118 = vpop.f32.mrb[0].mxu0
    %v2119 = vpop.f32.mrb[0].mxu0
    %v2120 = vadd.f32 %v1447, %v2119
    %v2121 = vpop.f32.mrb[0].mxu0
    %2122 = vmatprep.mubr.bf16.mxu0 0
    %2123 = vmatmul.mubr.bf16.gmra.mrb[0].mxu0 %v1634
    %v2124 = vpop.f32.mrb[0].mxu0
    %v2125 = vadd.f32 %v1447, %v2124
    %v2126 = vpop.f32.mrb[0].mxu0
    %v2127 = vpop.f32.mrb[0].mxu0
    %v2128 = vadd.f32 %v1447, %v2127
    %v2129 = vpop.f32.mrb[0].mxu0
    %2130 = vmatprep.mubr.bf16.mxu0 0
    %2131 = vmatmul.mubr.bf16.gmra.mrb[0].mxu0 %v1637
    %v2132 = vpop.f32.mrb[0].mxu0
    %v2133 = vadd.f32 %v1447, %v2132
    %v2134 = vpop.f32.mrb[0].mxu0
    %v2135 = vpop.f32.mrb[0].mxu0
    %v2136 = vadd.f32 %v1447, %v2135
    %v2137 = vpop.f32.mrb[0].mxu0
    %2138 = vmatprep.mubr.bf16.mxu0 0
    %2139 = vmatmul.mubr.bf16.gmra.mrb[0].mxu0 %v1640
    %v2140 = vpop.f32.mrb[0].mxu0
    %v2141 = vadd.f32 %v1447, %v2140
    %v2142 = vpop.f32.mrb[0].mxu0
    %v2143 = vpop.f32.mrb[0].mxu0
    %v2144 = vadd.f32 %v1447, %v2143
    %v2145 = vpop.f32.mrb[0].mxu0
    %2146 = vmatprep.mubr.bf16.mxu0 0
    %2147 = vmatmul.mubr.bf16.gmra.mrb[0].mxu0 %v1643
    %v2148 = vpop.f32.mrb[0].mxu0
    %v2149 = vadd.f32 %v1447, %v2148
    %v2150 = vpop.f32.mrb[0].mxu0
    %v2151 = vpop.f32.mrb[0].mxu0
    %v2152 = vadd.f32 %v1447, %v2151
    %v2153 = vpop.f32.mrb[0].mxu0
    %2154 = vmatprep.mubr.bf16.mxu0 0
    %2155 = vmatmul.mubr.bf16.gmra.mrb[0].mxu0 %v1646
    %v2156 = vpop.f32.mrb[0].mxu0
    %v2157 = vadd.f32 %v1447, %v2156
    %v2158 = vpop.f32.mrb[0].mxu0
    %v2159 = vpop.f32.mrb[0].mxu0
    %v2160 = vadd.f32 %v1447, %v2159
    %v2161 = vpop.f32.mrb[0].mxu0
    %2162 = vmatprep.mubr.bf16.mxu0 0
    %2163 = vmatmul.mubr.bf16.gmra.mrb[0].mxu0 %v1649
    %v2164 = vpop.f32.mrb[0].mxu0
    %v2165 = vadd.f32 %v1447, %v2164
    %v2166 = vpop.f32.mrb[0].mxu0
    %v2167 = vpop.f32.mrb[0].mxu0
    %v2168 = vadd.f32 %v1447, %v2167
    %v2169 = vpop.f32.mrb[0].mxu0
    %2170 = vmatprep.mubr.bf16.mxu0 0
    %2171 = vmatmul.mubr.bf16.gmra.mrb[0].mxu0 %v1652
    %v2172 = vpop.f32.mrb[0].mxu0
    %v2173 = vadd.f32 %v1447, %v2172
    %v2174 = vpop.f32.mrb[0].mxu0
    %v2175 = vpop.f32.mrb[0].mxu0
    %v2176 = vadd.f32 %v1447, %v2175
    %v2177 = vpop.f32.mrb[0].mxu0
    %2178 = vmatprep.mubr.bf16.mxu0 0
    %2179 = vmatmul.mubr.bf16.gmra.mrb[0].mxu0 %v1655
    %v2180 = vpop.f32.mrb[0].mxu0
    %v2181 = vadd.f32 %v1447, %v2180
    %v2182 = vpop.f32.mrb[0].mxu0
    %v2183 = vpop.f32.mrb[0].mxu0
    %v2184 = vadd.f32 %v1447, %v2183
    %v2185 = vpop.f32.mrb[0].mxu0
    %2186 = vmatprep.mubr.bf16.mxu0 0
    %2187 = vmatmul.mubr.bf16.gmra.mrb[0].mxu0 %v1658
    %v2188 = vpop.f32.mrb[0].mxu0
    %v2189 = vadd.f32 %v1447, %v2188
    %v2190 = vpop.f32.mrb[0].mxu0
    %v2191 = vpop.f32.mrb[0].mxu0
    %v2192 = vadd.f32 %v1447, %v2191
    %v2193 = vpop.f32.mrb[0].mxu0
    %2194 = vmatprep.mubr.bf16.mxu0 0
    %2195 = vmatmul.mubr.bf16.gmra.mrb[0].mxu0 %v1661
    %v2196 = vpop.f32.mrb[0].mxu0
    %v2197 = vadd.f32 %v1447, %v2196
    %v2198 = vpop.f32.mrb[0].mxu0
    %v2199 = vpop.f32.mrb[0].mxu0
    %v2200 = vadd.f32 %v1447, %v2199
    %v2201 = vpop.f32.mrb[0].mxu0
    %2202 = vmatprep.mubr.bf16.mxu0 0
    %2203 = vmatmul.mubr.bf16.gmra.mrb[0].mxu0 %v1664
    %v2204 = vpop.f32.mrb[0].mxu0
    %v2205 = vadd.f32 %v1447, %v2204
    %v2206 = vpop.f32.mrb[0].mxu0
    %v2207 = vpop.f32.mrb[0].mxu0
    %v2208 = vadd.f32 %v1447, %v2207
    %v2209 = vpop.f32.mrb[0].mxu0
    %2210 = vdwg.mxu0
    %v2211 = vmax.f32 %v1701, 0.0
    %v2212 = vmax.f32 %v1704, 0.0
    %v2213 = vmax.f32 %v1709, 0.0
    %v2214 = vmax.f32 %v1712, 0.0
    %v2215 = vmax.f32 %v1717, 0.0
    %v2216 = vmax.f32 %v1720, 0.0
    %v2217 = vmax.f32 %v1725, 0.0
    %v2218 = vmax.f32 %v1728, 0.0
    %v2219 = vmax.f32 %v1733, 0.0
    %v2220 = vmax.f32 %v1736, 0.0
    %v2221 = vmax.f32 %v1741, 0.0
    %v2222 = vmax.f32 %v1744, 0.0
    %v2223 = vmax.f32 %v1749, 0.0
    %v2224 = vmax.f32 %v1752, 0.0
    %v2225 = vmax.f32 %v1757, 0.0
    %v2226 = vmax.f32 %v1760, 0.0
    %v2227 = vmax.f32 %v1765, 0.0
    %v2228 = vmax.f32 %v1768, 0.0
    %v2229 = vmax.f32 %v1773, 0.0
    %v2230 = vmax.f32 %v1776, 0.0
    %v2231 = vmax.f32 %v1781, 0.0
    %v2232 = vmax.f32 %v1784, 0.0
    %v2233 = vmax.f32 %v1789, 0.0
    %v2234 = vmax.f32 %v1792, 0.0
    %v2235 = vmax.f32 %v1797, 0.0
    %v2236 = vmax.f32 %v1800, 0.0
    %v2237 = vmax.f32 %v1805, 0.0
    %v2238 = vmax.f32 %v1808, 0.0
    %v2239 = vmax.f32 %v1813, 0.0
    %v2240 = vmax.f32 %v1816, 0.0
    %v2241 = vmax.f32 %v1821, 0.0
    %v2242 = vmax.f32 %v1824, 0.0
    %v2243 = vmax.f32 %v1829, 0.0
    %v2244 = vmax.f32 %v1832, 0.0
    %v2245 = vmax.f32 %v1837, 0.0
    %v2246 = vmax.f32 %v1840, 0.0
    %v2247 = vmax.f32 %v1845, 0.0
    %v2248 = vmax.f32 %v1848, 0.0
    %v2249 = vmax.f32 %v1853, 0.0
    %v2250 = vmax.f32 %v1856, 0.0
    %v2251 = vmax.f32 %v1861, 0.0
    %v2252 = vmax.f32 %v1864, 0.0
    %v2253 = vmax.f32 %v1869, 0.0
    %v2254 = vmax.f32 %v1872, 0.0
    %v2255 = vmax.f32 %v1877, 0.0
    %v2256 = vmax.f32 %v1880, 0.0
    %v2257 = vmax.f32 %v1885, 0.0
    %v2258 = vmax.f32 %v1888, 0.0
    %v2259 = vmax.f32 %v1893, 0.0
    %v2260 = vmax.f32 %v1896, 0.0
    %v2261 = vmax.f32 %v1901, 0.0
    %v2262 = vmax.f32 %v1904, 0.0
    %v2263 = vmax.f32 %v1909, 0.0
    %v2264 = vmax.f32 %v1912, 0.0
    %v2265 = vmax.f32 %v1917, 0.0
    %v2266 = vmax.f32 %v1920, 0.0
    %v2267 = vmax.f32 %v1925, 0.0
    %v2268 = vmax.f32 %v1928, 0.0
    %v2269 = vmax.f32 %v1933, 0.0
    %v2270 = vmax.f32 %v1936, 0.0
    %v2271 = vmax.f32 %v1941, 0.0
    %v2272 = vmax.f32 %v1944, 0.0
    %v2273 = vmax.f32 %v1949, 0.0
    %v2274 = vmax.f32 %v1952, 0.0
    %v2275 = vmax.f32 %v1957, 0.0
    %v2276 = vmax.f32 %v1960, 0.0
    %v2277 = vmax.f32 %v1965, 0.0
    %v2278 = vmax.f32 %v1968, 0.0
    %v2279 = vmax.f32 %v1973, 0.0
    %v2280 = vmax.f32 %v1976, 0.0
    %v2281 = vmax.f32 %v1981, 0.0
    %v2282 = vmax.f32 %v1984, 0.0
    %v2283 = vmax.f32 %v1989, 0.0
    %v2284 = vmax.f32 %v1992, 0.0
    %v2285 = vmax.f32 %v1997, 0.0
    %v2286 = vmax.f32 %v2000, 0.0
    %v2287 = vmax.f32 %v2005, 0.0
    %v2288 = vmax.f32 %v2008, 0.0
    %v2289 = vmax.f32 %v2013, 0.0
    %v2290 = vmax.f32 %v2016, 0.0
    %v2291 = vmax.f32 %v2021, 0.0
    %v2292 = vmax.f32 %v2024, 0.0
    %v2293 = vmax.f32 %v2029, 0.0
    %v2294 = vmax.f32 %v2032, 0.0
    %v2295 = vmax.f32 %v2037, 0.0
    %v2296 = vmax.f32 %v2040, 0.0
    %v2297 = vmax.f32 %v2045, 0.0
    %v2298 = vmax.f32 %v2048, 0.0
    %v2299 = vmax.f32 %v2053, 0.0
    %v2300 = vmax.f32 %v2056, 0.0
    %v2301 = vmax.f32 %v2061, 0.0
    %v2302 = vmax.f32 %v2064, 0.0
    %v2303 = vmax.f32 %v2069, 0.0
    %v2304 = vmax.f32 %v2072, 0.0
    %v2305 = vmax.f32 %v2077, 0.0
    %v2306 = vmax.f32 %v2080, 0.0
    %v2307 = vmax.f32 %v2085, 0.0
    %v2308 = vmax.f32 %v2088, 0.0
    %v2309 = vmax.f32 %v2093, 0.0
    %v2310 = vmax.f32 %v2096, 0.0
    %v2311 = vmax.f32 %v2101, 0.0
    %v2312 = vmax.f32 %v2104, 0.0
    %v2313 = vmax.f32 %v2109, 0.0
    %v2314 = vmax.f32 %v2112, 0.0
    %v2315 = vmax.f32 %v2117, 0.0
    %v2316 = vmax.f32 %v2120, 0.0
    %v2317 = vmax.f32 %v2125, 0.0
    %v2318 = vmax.f32 %v2128, 0.0
    %v2319 = vmax.f32 %v2133, 0.0
    %v2320 = vmax.f32 %v2136, 0.0
    %v2321 = vmax.f32 %v2141, 0.0
    %v2322 = vmax.f32 %v2144, 0.0
    %v2323 = vmax.f32 %v2149, 0.0
    %v2324 = vmax.f32 %v2152, 0.0
    %v2325 = vmax.f32 %v2157, 0.0
    %v2326 = vmax.f32 %v2160, 0.0
    %v2327 = vmax.f32 %v2165, 0.0
    %v2328 = vmax.f32 %v2168, 0.0
    %v2329 = vmax.f32 %v2173, 0.0
    %v2330 = vmax.f32 %v2176, 0.0
    %v2331 = vmax.f32 %v2181, 0.0
    %v2332 = vmax.f32 %v2184, 0.0
    %v2333 = vmax.f32 %v2189, 0.0
    %v2334 = vmax.f32 %v2192, 0.0
    %v2335 = vmax.f32 %v2197, 0.0
    %v2336 = vmax.f32 %v2200, 0.0
    %v2337 = vmax.f32 %v2205, 0.0
    %v2338 = vmax.f32 %v2208, 0.0
    %v2339 = vpack.c.bf16 %v2212, %v2211
    %v2340 = vpack.c.bf16 %v2214, %v2213
    %v2341 = vpack.c.bf16 %v2216, %v2215
    %v2342 = vpack.c.bf16 %v2218, %v2217
    %v2343 = vpack.c.bf16 %v2220, %v2219
    %v2344 = vpack.c.bf16 %v2222, %v2221
    %v2345 = vpack.c.bf16 %v2224, %v2223
    %v2346 = vpack.c.bf16 %v2226, %v2225
    %v2347 = vpack.c.bf16 %v2228, %v2227
    %v2348 = vpack.c.bf16 %v2230, %v2229
    %v2349 = vpack.c.bf16 %v2232, %v2231
    %v2350 = vpack.c.bf16 %v2234, %v2233
    %v2351 = vpack.c.bf16 %v2236, %v2235
    %v2352 = vpack.c.bf16 %v2238, %v2237
    %v2353 = vpack.c.bf16 %v2240, %v2239
    %v2354 = vpack.c.bf16 %v2242, %v2241
    %v2355 = vpack.c.bf16 %v2244, %v2243
    %v2356 = vpack.c.bf16 %v2246, %v2245
    %v2357 = vpack.c.bf16 %v2248, %v2247
    %v2358 = vpack.c.bf16 %v2250, %v2249
    %v2359 = vpack.c.bf16 %v2252, %v2251
    %v2360 = vpack.c.bf16 %v2254, %v2253
    %v2361 = vpack.c.bf16 %v2256, %v2255
    %v2362 = vpack.c.bf16 %v2258, %v2257
    %v2363 = vpack.c.bf16 %v2260, %v2259
    %v2364 = vpack.c.bf16 %v2262, %v2261
    %v2365 = vpack.c.bf16 %v2264, %v2263
    %v2366 = vpack.c.bf16 %v2266, %v2265
    %v2367 = vpack.c.bf16 %v2268, %v2267
    %v2368 = vpack.c.bf16 %v2270, %v2269
    %v2369 = vpack.c.bf16 %v2272, %v2271
    %v2370 = vpack.c.bf16 %v2274, %v2273
    %v2371 = vpack.c.bf16 %v2276, %v2275
    %v2372 = vpack.c.bf16 %v2278, %v2277
    %v2373 = vpack.c.bf16 %v2280, %v2279
    %v2374 = vpack.c.bf16 %v2282, %v2281
    %v2375 = vpack.c.bf16 %v2284, %v2283
    %v2376 = vpack.c.bf16 %v2286, %v2285
    %v2377 = vpack.c.bf16 %v2288, %v2287
    %v2378 = vpack.c.bf16 %v2290, %v2289
    %v2379 = vpack.c.bf16 %v2292, %v2291
    %v2380 = vpack.c.bf16 %v2294, %v2293
    %v2381 = vpack.c.bf16 %v2296, %v2295
    %v2382 = vpack.c.bf16 %v2298, %v2297
    %v2383 = vpack.c.bf16 %v2300, %v2299
    %v2384 = vpack.c.bf16 %v2302, %v2301
    %v2385 = vpack.c.bf16 %v2304, %v2303
    %v2386 = vpack.c.bf16 %v2306, %v2305
    %v2387 = vpack.c.bf16 %v2308, %v2307
    %v2388 = vpack.c.bf16 %v2310, %v2309
    %v2389 = vpack.c.bf16 %v2312, %v2311
    %v2390 = vpack.c.bf16 %v2314, %v2313
    %v2391 = vpack.c.bf16 %v2316, %v2315
    %v2392 = vpack.c.bf16 %v2318, %v2317
    %v2393 = vpack.c.bf16 %v2320, %v2319
    %v2394 = vpack.c.bf16 %v2322, %v2321
    %v2395 = vpack.c.bf16 %v2324, %v2323
    %v2396 = vpack.c.bf16 %v2326, %v2325
    %v2397 = vpack.c.bf16 %v2328, %v2327
    %v2398 = vpack.c.bf16 %v2330, %v2329
    %v2399 = vpack.c.bf16 %v2332, %v2331
    %v2400 = vpack.c.bf16 %v2334, %v2333
    %v2401 = vpack.c.bf16 %v2336, %v2335
    %v2402 = vpack.c.bf16 %v2338, %v2337
    %v2403 = vld [vmem:[#allocation10] sm:$0xff]
    %v2404 = vld [vmem:[#allocation10 + $0x8] sm:$0xff]
    %v2405 = vld [vmem:[#allocation10 + $0x10] sm:$0xff]
    %v2406 = vld [vmem:[#allocation10 + $0x18] sm:$0xff]
    %v2407 = vld [vmem:[#allocation10 + $0x20] sm:$0xff]
    %v2408 = vld [vmem:[#allocation10 + $0x28] sm:$0xff]
    %v2409 = vld [vmem:[#allocation10 + $0x30] sm:$0xff]
    %v2410 = vld [vmem:[#allocation10 + $0x38] sm:$0xff]
    %v2411 = vld [vmem:[#allocation10 + $0x40] sm:$0xff]
    %v2412 = vld [vmem:[#allocation10 + $0x48] sm:$0xff]
    %v2413 = vld [vmem:[#allocation10 + $0x50] sm:$0xff]
    %v2414 = vld [vmem:[#allocation10 + $0x58] sm:$0xff]
    %v2415 = vld [vmem:[#allocation10 + $0x60] sm:$0xff]
    %v2416 = vld [vmem:[#allocation10 + $0x68] sm:$0xff]
    %v2417 = vld [vmem:[#allocation10 + $0x70] sm:$0xff]
    %v2418 = vld [vmem:[#allocation10 + $0x78] sm:$0xff]
    %v2419 = vld [vmem:[#allocation10 + $0x80] sm:$0xff]
    %v2420 = vld [vmem:[#allocation10 + $0x88] sm:$0xff]
    %v2421 = vld [vmem:[#allocation10 + $0x90] sm:$0xff]
    %v2422 = vld [vmem:[#allocation10 + $0x98] sm:$0xff]
    %v2423 = vld [vmem:[#allocation10 + $0xa0] sm:$0xff]
    %v2424 = vld [vmem:[#allocation10 + $0xa8] sm:$0xff]
    %v2425 = vld [vmem:[#allocation10 + $0xb0] sm:$0xff]
    %v2426 = vld [vmem:[#allocation10 + $0xb8] sm:$0xff]
    %v2427 = vld [vmem:[#allocation10 + $0xc0] sm:$0xff]
    %v2428 = vld [vmem:[#allocation10 + $0xc8] sm:$0xff]
    %v2429 = vld [vmem:[#allocation10 + $0xd0] sm:$0xff]
    %v2430 = vld [vmem:[#allocation10 + $0xd8] sm:$0xff]
    %v2431 = vld [vmem:[#allocation10 + $0xe0] sm:$0xff]
    %v2432 = vld [vmem:[#allocation10 + $0xe8] sm:$0xff]
    %v2433 = vld [vmem:[#allocation10 + $0xf0] sm:$0xff]
    %v2434 = vld [vmem:[#allocation10 + $0xf8] sm:$0xff]
    %v2435 = vld [vmem:[#allocation10 + $0x100] sm:$0xff]
    %v2436 = vld [vmem:[#allocation10 + $0x108] sm:$0xff]
    %v2437 = vld [vmem:[#allocation10 + $0x110] sm:$0xff]
    %v2438 = vld [vmem:[#allocation10 + $0x118] sm:$0xff]
    %v2439 = vld [vmem:[#allocation10 + $0x120] sm:$0xff]
    %v2440 = vld [vmem:[#allocation10 + $0x128] sm:$0xff]
    %v2441 = vld [vmem:[#allocation10 + $0x130] sm:$0xff]
    %v2442 = vld [vmem:[#allocation10 + $0x138] sm:$0xff]
    %v2443 = vld [vmem:[#allocation10 + $0x140] sm:$0xff]
    %v2444 = vld [vmem:[#allocation10 + $0x148] sm:$0xff]
    %v2445 = vld [vmem:[#allocation10 + $0x150] sm:$0xff]
    %v2446 = vld [vmem:[#allocation10 + $0x158] sm:$0xff]
    %v2447 = vld [vmem:[#allocation10 + $0x160] sm:$0xff]
    %v2448 = vld [vmem:[#allocation10 + $0x168] sm:$0xff]
    %v2449 = vld [vmem:[#allocation10 + $0x170] sm:$0xff]
    %v2450 = vld [vmem:[#allocation10 + $0x178] sm:$0xff]
    %v2451 = vld [vmem:[#allocation10 + $0x180] sm:$0xff]
    %v2452 = vld [vmem:[#allocation10 + $0x188] sm:$0xff]
    %v2453 = vld [vmem:[#allocation10 + $0x190] sm:$0xff]
    %v2454 = vld [vmem:[#allocation10 + $0x198] sm:$0xff]
    %v2455 = vld [vmem:[#allocation10 + $0x1a0] sm:$0xff]
    %v2456 = vld [vmem:[#allocation10 + $0x1a8] sm:$0xff]
    %v2457 = vld [vmem:[#allocation10 + $0x1b0] sm:$0xff]
    %v2458 = vld [vmem:[#allocation10 + $0x1b8] sm:$0xff]
    %v2459 = vld [vmem:[#allocation10 + $0x1c0] sm:$0xff]
    %v2460 = vld [vmem:[#allocation10 + $0x1c8] sm:$0xff]
    %v2461 = vld [vmem:[#allocation10 + $0x1d0] sm:$0xff]
    %v2462 = vld [vmem:[#allocation10 + $0x1d8] sm:$0xff]
    %v2463 = vld [vmem:[#allocation10 + $0x1e0] sm:$0xff]
    %v2464 = vld [vmem:[#allocation10 + $0x1e8] sm:$0xff]
    %v2465 = vld [vmem:[#allocation10 + $0x1f0] sm:$0xff]
    %v2466 = vld [vmem:[#allocation10 + $0x1f8] sm:$0xff]
    %v2531 = vunpack.c.l.b16 %v2403
    %v2532 = vunpack.c.h.b16 %v2403
    %v2533 = vunpack.c.l.b16 %v2404
    %v2534 = vunpack.c.h.b16 %v2404
    %v2535 = vunpack.c.l.b16 %v2405
    %v2536 = vunpack.c.h.b16 %v2405
    %v2537 = vunpack.c.l.b16 %v2406
    %v2538 = vunpack.c.h.b16 %v2406
    %v2539 = vunpack.c.l.b16 %v2407
    %v2540 = vunpack.c.h.b16 %v2407
    %v2541 = vunpack.c.l.b16 %v2408
    %v2542 = vunpack.c.h.b16 %v2408
    %v2543 = vunpack.c.l.b16 %v2409
    %v2544 = vunpack.c.h.b16 %v2409
    %v2545 = vunpack.c.l.b16 %v2410
    %v2546 = vunpack.c.h.b16 %v2410
    %v2547 = vunpack.c.l.b16 %v2411
    %v2548 = vunpack.c.h.b16 %v2411
    %v2549 = vunpack.c.l.b16 %v2412
    %v2550 = vunpack.c.h.b16 %v2412
    %v2551 = vunpack.c.l.b16 %v2413
    %v2552 = vunpack.c.h.b16 %v2413
    %v2553 = vunpack.c.l.b16 %v2414
    %v2554 = vunpack.c.h.b16 %v2414
    %v2555 = vunpack.c.l.b16 %v2415
    %v2556 = vunpack.c.h.b16 %v2415
    %v2557 = vunpack.c.l.b16 %v2416
    %v2558 = vunpack.c.h.b16 %v2416
    %v2559 = vunpack.c.l.b16 %v2417
    %v2560 = vunpack.c.h.b16 %v2417
    %v2561 = vunpack.c.l.b16 %v2418
    %v2562 = vunpack.c.h.b16 %v2418
    %v2563 = vunpack.c.l.b16 %v2419
    %v2564 = vunpack.c.h.b16 %v2419
    %v2565 = vunpack.c.l.b16 %v2420
    %v2566 = vunpack.c.h.b16 %v2420
    %v2567 = vunpack.c.l.b16 %v2421
    %v2568 = vunpack.c.h.b16 %v2421
    %v2569 = vunpack.c.l.b16 %v2422
    %v2570 = vunpack.c.h.b16 %v2422
    %v2571 = vunpack.c.l.b16 %v2423
    %v2572 = vunpack.c.h.b16 %v2423
    %v2573 = vunpack.c.l.b16 %v2424
    %v2574 = vunpack.c.h.b16 %v2424
    %v2575 = vunpack.c.l.b16 %v2425
    %v2576 = vunpack.c.h.b16 %v2425
    %v2577 = vunpack.c.l.b16 %v2426
    %v2578 = vunpack.c.h.b16 %v2426
    %v2579 = vunpack.c.l.b16 %v2427
    %v2580 = vunpack.c.h.b16 %v2427
    %v2581 = vunpack.c.l.b16 %v2428
    %v2582 = vunpack.c.h.b16 %v2428
    %v2583 = vunpack.c.l.b16 %v2429
    %v2584 = vunpack.c.h.b16 %v2429
    %v2585 = vunpack.c.l.b16 %v2430
    %v2586 = vunpack.c.h.b16 %v2430
    %v2587 = vunpack.c.l.b16 %v2431
    %v2588 = vunpack.c.h.b16 %v2431
    %v2589 = vunpack.c.l.b16 %v2432
    %v2590 = vunpack.c.h.b16 %v2432
    %v2591 = vunpack.c.l.b16 %v2433
    %v2592 = vunpack.c.h.b16 %v2433
    %v2593 = vunpack.c.l.b16 %v2434
    %v2594 = vunpack.c.h.b16 %v2434
    %v2595 = vunpack.c.l.b16 %v2435
    %v2596 = vunpack.c.h.b16 %v2435
    %v2597 = vunpack.c.l.b16 %v2436
    %v2598 = vunpack.c.h.b16 %v2436
    %v2599 = vunpack.c.l.b16 %v2437
    %v2600 = vunpack.c.h.b16 %v2437
    %v2601 = vunpack.c.l.b16 %v2438
    %v2602 = vunpack.c.h.b16 %v2438
    %v2603 = vunpack.c.l.b16 %v2439
    %v2604 = vunpack.c.h.b16 %v2439
    %v2605 = vunpack.c.l.b16 %v2440
    %v2606 = vunpack.c.h.b16 %v2440
    %v2607 = vunpack.c.l.b16 %v2441
    %v2608 = vunpack.c.h.b16 %v2441
    %v2609 = vunpack.c.l.b16 %v2442
    %v2610 = vunpack.c.h.b16 %v2442
    %v2611 = vunpack.c.l.b16 %v2443
    %v2612 = vunpack.c.h.b16 %v2443
    %v2613 = vunpack.c.l.b16 %v2444
    %v2614 = vunpack.c.h.b16 %v2444
    %v2615 = vunpack.c.l.b16 %v2445
    %v2616 = vunpack.c.h.b16 %v2445
    %v2617 = vunpack.c.l.b16 %v2446
    %v2618 = vunpack.c.h.b16 %v2446
    %v2619 = vunpack.c.l.b16 %v2447
    %v2620 = vunpack.c.h.b16 %v2447
    %v2621 = vunpack.c.l.b16 %v2448
    %v2622 = vunpack.c.h.b16 %v2448
    %v2623 = vunpack.c.l.b16 %v2449
    %v2624 = vunpack.c.h.b16 %v2449
    %v2625 = vunpack.c.l.b16 %v2450
    %v2626 = vunpack.c.h.b16 %v2450
    %v2627 = vunpack.c.l.b16 %v2451
    %v2628 = vunpack.c.h.b16 %v2451
    %v2629 = vunpack.c.l.b16 %v2452
    %v2630 = vunpack.c.h.b16 %v2452
    %v2631 = vunpack.c.l.b16 %v2453
    %v2632 = vunpack.c.h.b16 %v2453
    %v2633 = vunpack.c.l.b16 %v2454
    %v2634 = vunpack.c.h.b16 %v2454
    %v2635 = vunpack.c.l.b16 %v2455
    %v2636 = vunpack.c.h.b16 %v2455
    %v2637 = vunpack.c.l.b16 %v2456
    %v2638 = vunpack.c.h.b16 %v2456
    %v2639 = vunpack.c.l.b16 %v2457
    %v2640 = vunpack.c.h.b16 %v2457
    %v2641 = vunpack.c.l.b16 %v2458
    %v2642 = vunpack.c.h.b16 %v2458
    %v2643 = vunpack.c.l.b16 %v2459
    %v2644 = vunpack.c.h.b16 %v2459
    %v2645 = vunpack.c.l.b16 %v2460
    %v2646 = vunpack.c.h.b16 %v2460
    %v2647 = vunpack.c.l.b16 %v2461
    %v2648 = vunpack.c.h.b16 %v2461
    %v2649 = vunpack.c.l.b16 %v2462
    %v2650 = vunpack.c.h.b16 %v2462
    %v2651 = vunpack.c.l.b16 %v2463
    %v2652 = vunpack.c.h.b16 %v2463
    %v2653 = vunpack.c.l.b16 %v2464
    %v2654 = vunpack.c.h.b16 %v2464
    %v2655 = vunpack.c.l.b16 %v2465
    %v2656 = vunpack.c.h.b16 %v2465
    %v2657 = vunpack.c.l.b16 %v2466
    %v2658 = vunpack.c.h.b16 %v2466
    %v2659 = vpack.c.b16 %v2539, %v2531
    %v2660 = vpack.c.b16 %v2540, %v2532
    %v2661 = vpack.c.b16 %v2541, %v2533
    %v2662 = vpack.c.b16 %v2542, %v2534
    %v2663 = vpack.c.b16 %v2543, %v2535
    %v2664 = vpack.c.b16 %v2544, %v2536
    %v2665 = vpack.c.b16 %v2545, %v2537
    %v2666 = vpack.c.b16 %v2546, %v2538
    %v2667 = vpack.c.b16 %v2555, %v2547
    %v2668 = vpack.c.b16 %v2556, %v2548
    %v2669 = vpack.c.b16 %v2557, %v2549
    %v2670 = vpack.c.b16 %v2558, %v2550
    %v2671 = vpack.c.b16 %v2559, %v2551
    %v2672 = vpack.c.b16 %v2560, %v2552
    %v2673 = vpack.c.b16 %v2561, %v2553
    %v2674 = vpack.c.b16 %v2562, %v2554
    %v2675 = vpack.c.b16 %v2571, %v2563
    %v2676 = vpack.c.b16 %v2572, %v2564
    %v2677 = vpack.c.b16 %v2573, %v2565
    %v2678 = vpack.c.b16 %v2574, %v2566
    %v2679 = vpack.c.b16 %v2575, %v2567
    %v2680 = vpack.c.b16 %v2576, %v2568
    %v2681 = vpack.c.b16 %v2577, %v2569
    %v2682 = vpack.c.b16 %v2578, %v2570
    %v2683 = vpack.c.b16 %v2587, %v2579
    %v2684 = vpack.c.b16 %v2588, %v2580
    %v2685 = vpack.c.b16 %v2589, %v2581
    %v2686 = vpack.c.b16 %v2590, %v2582
    %v2687 = vpack.c.b16 %v2591, %v2583
    %v2688 = vpack.c.b16 %v2592, %v2584
    %v2689 = vpack.c.b16 %v2593, %v2585
    %v2690 = vpack.c.b16 %v2594, %v2586
    %v2691 = vpack.c.b16 %v2603, %v2595
    %v2692 = vpack.c.b16 %v2604, %v2596
    %v2693 = vpack.c.b16 %v2605, %v2597
    %v2694 = vpack.c.b16 %v2606, %v2598
    %v2695 = vpack.c.b16 %v2607, %v2599
    %v2696 = vpack.c.b16 %v2608, %v2600
    %v2697 = vpack.c.b16 %v2609, %v2601
    %v2698 = vpack.c.b16 %v2610, %v2602
    %v2699 = vpack.c.b16 %v2619, %v2611
    %v2700 = vpack.c.b16 %v2620, %v2612
    %v2701 = vpack.c.b16 %v2621, %v2613
    %v2702 = vpack.c.b16 %v2622, %v2614
    %v2703 = vpack.c.b16 %v2623, %v2615
    %v2704 = vpack.c.b16 %v2624, %v2616
    %v2705 = vpack.c.b16 %v2625, %v2617
    %v2706 = vpack.c.b16 %v2626, %v2618
    %v2707 = vpack.c.b16 %v2635, %v2627
    %v2708 = vpack.c.b16 %v2636, %v2628
    %v2709 = vpack.c.b16 %v2637, %v2629
    %v2710 = vpack.c.b16 %v2638, %v2630
    %v2711 = vpack.c.b16 %v2639, %v2631
    %v2712 = vpack.c.b16 %v2640, %v2632
    %v2713 = vpack.c.b16 %v2641, %v2633
    %v2714 = vpack.c.b16 %v2642, %v2634
    %v2715 = vpack.c.b16 %v2651, %v2643
    %v2716 = vpack.c.b16 %v2652, %v2644
    %v2717 = vpack.c.b16 %v2653, %v2645
    %v2718 = vpack.c.b16 %v2654, %v2646
    %v2719 = vpack.c.b16 %v2655, %v2647
    %v2720 = vpack.c.b16 %v2656, %v2648
    %v2721 = vpack.c.b16 %v2657, %v2649
    %v2722 = vpack.c.b16 %v2658, %v2650
    %2787 = vmatprep.subr.bf16.mxu0 %v2660
    %2788 = vmatpush1.bf16.msra.mxu0 %v2659
    %2789 = vmatprep.subr.bf16.mxu0 %v2668
    %2790 = vmatpush1.bf16.msra.mxu0 %v2667
    %2791 = vmatprep.subr.bf16.mxu0 %v2676
    %2792 = vmatpush1.bf16.msra.mxu0 %v2675
    %2793 = vmatprep.subr.bf16.mxu0 %v2684
    %2794 = vmatpush1.bf16.msra.mxu0 %v2683
    %2795 = vmatprep.subr.bf16.mxu0 %v2692
    %2796 = vmatpush1.bf16.msra.mxu0 %v2691
    %2797 = vmatprep.subr.bf16.mxu0 %v2700
    %2798 = vmatpush1.bf16.msra.mxu0 %v2699
    %2799 = vmatprep.subr.bf16.mxu0 %v2708
    %2800 = vmatpush1.bf16.msra.mxu0 %v2707
    %2801 = vmatprep.subr.bf16.mxu0 %v2716
    %2802 = vmatpush1.bf16.msra.mxu0 %v2715
    %2803 = vmatprep.subr.bf16.mxu0 0
    %2804 = vmatpush1.bf16.msra.mxu0 0
    %2805 = vmatprep.subr.bf16.mxu0 0
    %2806 = vmatpush1.bf16.msra.mxu0 0
    %2807 = vmatprep.subr.bf16.mxu0 0
    %2808 = vmatpush1.bf16.msra.mxu0 0
    %2809 = vmatprep.subr.bf16.mxu0 0
    %2810 = vmatpush1.bf16.msra.mxu0 0
    %2811 = vmatprep.subr.bf16.mxu0 0
    %2812 = vmatpush1.bf16.msra.mxu0 0
    %2813 = vmatprep.subr.bf16.mxu0 0
    %2814 = vmatpush1.bf16.msra.mxu0 0
    %2815 = vmatprep.subr.bf16.mxu0 0
    %2816 = vmatpush1.bf16.msra.mxu0 0
    %2817 = vmatprep.subr.bf16.mxu0 0
    %2818 = vmatpush1.bf16.msra.mxu0 0
    %2819 = vmatprep.mubr.bf16.mxu0 0
    %2820 = vmatmul.mubr.bf16.gmra.mrb[0].mxu0 %v2339
    %v2821 = vpop.f32.mrb[0].mxu0
    %v2822 = vadd.f32 0.0, %v2821
    %v2823 = vpop.f32.mrb[0].mxu0
    %v2824 = vadd.f32 0.0, %v2823
    %v2825 = vpop.f32.mrb[0].mxu0
    %v2826 = vadd.f32 0.0, %v2825
    %v2827 = vpop.f32.mrb[0].mxu0
    %v2828 = vadd.f32 0.0, %v2827
    %2829 = vmatprep.mubr.bf16.mxu0 0
    %2830 = vmatmul.mubr.bf16.gmra.mrb[0].mxu0 %v2340
    %v2831 = vpop.f32.mrb[0].mxu0
    %v2832 = vadd.f32 0.0, %v2831
    %v2833 = vpop.f32.mrb[0].mxu0
    %v2834 = vadd.f32 0.0, %v2833
    %v2835 = vpop.f32.mrb[0].mxu0
    %v2836 = vadd.f32 0.0, %v2835
    %v2837 = vpop.f32.mrb[0].mxu0
    %v2838 = vadd.f32 0.0, %v2837
    %2839 = vmatprep.mubr.bf16.mxu0 0
    %2840 = vmatmul.mubr.bf16.gmra.mrb[0].mxu0 %v2341
    %v2841 = vpop.f32.mrb[0].mxu0
    %v2842 = vadd.f32 0.0, %v2841
    %v2843 = vpop.f32.mrb[0].mxu0
    %v2844 = vadd.f32 0.0, %v2843
    %v2845 = vpop.f32.mrb[0].mxu0
    %v2846 = vadd.f32 0.0, %v2845
    %v2847 = vpop.f32.mrb[0].mxu0
    %v2848 = vadd.f32 0.0, %v2847
    %2849 = vmatprep.mubr.bf16.mxu0 0
    %2850 = vmatmul.mubr.bf16.gmra.mrb[0].mxu0 %v2342
    %v2851 = vpop.f32.mrb[0].mxu0
    %v2852 = vadd.f32 0.0, %v2851
    %v2853 = vpop.f32.mrb[0].mxu0
    %v2854 = vadd.f32 0.0, %v2853
    %v2855 = vpop.f32.mrb[0].mxu0
    %v2856 = vadd.f32 0.0, %v2855
    %v2857 = vpop.f32.mrb[0].mxu0
    %v2858 = vadd.f32 0.0, %v2857
    %2859 = vmatprep.mubr.bf16.mxu0 0
    %2860 = vmatmul.mubr.bf16.gmra.mrb[0].mxu0 %v2343
    %v2861 = vpop.f32.mrb[0].mxu0
    %v2862 = vadd.f32 0.0, %v2861
    %v2863 = vpop.f32.mrb[0].mxu0
    %v2864 = vadd.f32 0.0, %v2863
    %v2865 = vpop.f32.mrb[0].mxu0
    %v2866 = vadd.f32 0.0, %v2865
    %v2867 = vpop.f32.mrb[0].mxu0
    %v2868 = vadd.f32 0.0, %v2867
    %2869 = vmatprep.mubr.bf16.mxu0 0
    %2870 = vmatmul.mubr.bf16.gmra.mrb[0].mxu0 %v2344
    %v2871 = vpop.f32.mrb[0].mxu0
    %v2872 = vadd.f32 0.0, %v2871
    %v2873 = vpop.f32.mrb[0].mxu0
    %v2874 = vadd.f32 0.0, %v2873
    %v2875 = vpop.f32.mrb[0].mxu0
    %v2876 = vadd.f32 0.0, %v2875
    %v2877 = vpop.f32.mrb[0].mxu0
    %v2878 = vadd.f32 0.0, %v2877
    %2879 = vmatprep.mubr.bf16.mxu0 0
    %2880 = vmatmul.mubr.bf16.gmra.mrb[0].mxu0 %v2345
    %v2881 = vpop.f32.mrb[0].mxu0
    %v2882 = vadd.f32 0.0, %v2881
    %v2883 = vpop.f32.mrb[0].mxu0
    %v2884 = vadd.f32 0.0, %v2883
    %v2885 = vpop.f32.mrb[0].mxu0
    %v2886 = vadd.f32 0.0, %v2885
    %v2887 = vpop.f32.mrb[0].mxu0
    %v2888 = vadd.f32 0.0, %v2887
    %2889 = vmatprep.mubr.bf16.mxu0 0
    %2890 = vmatmul.mubr.bf16.gmra.mrb[0].mxu0 %v2346
    %v2891 = vpop.f32.mrb[0].mxu0
    %v2892 = vadd.f32 0.0, %v2891
    %v2893 = vpop.f32.mrb[0].mxu0
    %v2894 = vadd.f32 0.0, %v2893
    %v2895 = vpop.f32.mrb[0].mxu0
    %v2896 = vadd.f32 0.0, %v2895
    %v2897 = vpop.f32.mrb[0].mxu0
    %v2898 = vadd.f32 0.0, %v2897
    %2899 = vmatprep.mubr.bf16.mxu0 0
    %2900 = vmatmul.mubr.bf16.gmra.mrb[0].mxu0 %v2347
    %v2901 = vpop.f32.mrb[0].mxu0
    %v2902 = vadd.f32 0.0, %v2901
    %v2903 = vpop.f32.mrb[0].mxu0
    %v2904 = vadd.f32 0.0, %v2903
    %v2905 = vpop.f32.mrb[0].mxu0
    %v2906 = vadd.f32 0.0, %v2905
    %v2907 = vpop.f32.mrb[0].mxu0
    %v2908 = vadd.f32 0.0, %v2907
    %2909 = vmatprep.mubr.bf16.mxu0 0
    %2910 = vmatmul.mubr.bf16.gmra.mrb[0].mxu0 %v2348
    %v2911 = vpop.f32.mrb[0].mxu0
    %v2912 = vadd.f32 0.0, %v2911
    %v2913 = vpop.f32.mrb[0].mxu0
    %v2914 = vadd.f32 0.0, %v2913
    %v2915 = vpop.f32.mrb[0].mxu0
    %v2916 = vadd.f32 0.0, %v2915
    %v2917 = vpop.f32.mrb[0].mxu0
    %v2918 = vadd.f32 0.0, %v2917
    %2919 = vmatprep.mubr.bf16.mxu0 0
    %2920 = vmatmul.mubr.bf16.gmra.mrb[0].mxu0 %v2349
    %v2921 = vpop.f32.mrb[0].mxu0
    %v2922 = vadd.f32 0.0, %v2921
    %v2923 = vpop.f32.mrb[0].mxu0
    %v2924 = vadd.f32 0.0, %v2923
    %v2925 = vpop.f32.mrb[0].mxu0
    %v2926 = vadd.f32 0.0, %v2925
    %v2927 = vpop.f32.mrb[0].mxu0
    %v2928 = vadd.f32 0.0, %v2927
    %2929 = vmatprep.mubr.bf16.mxu0 0
    %2930 = vmatmul.mubr.bf16.gmra.mrb[0].mxu0 %v2350
    %v2931 = vpop.f32.mrb[0].mxu0
    %v2932 = vadd.f32 0.0, %v2931
    %v2933 = vpop.f32.mrb[0].mxu0
    %v2934 = vadd.f32 0.0, %v2933
    %v2935 = vpop.f32.mrb[0].mxu0
    %v2936 = vadd.f32 0.0, %v2935
    %v2937 = vpop.f32.mrb[0].mxu0
    %v2938 = vadd.f32 0.0, %v2937
    %2939 = vmatprep.mubr.bf16.mxu0 0
    %2940 = vmatmul.mubr.bf16.gmra.mrb[0].mxu0 %v2351
    %v2941 = vpop.f32.mrb[0].mxu0
    %v2942 = vadd.f32 0.0, %v2941
    %v2943 = vpop.f32.mrb[0].mxu0
    %v2944 = vadd.f32 0.0, %v2943
    %v2945 = vpop.f32.mrb[0].mxu0
    %v2946 = vadd.f32 0.0, %v2945
    %v2947 = vpop.f32.mrb[0].mxu0
    %v2948 = vadd.f32 0.0, %v2947
    %2949 = vmatprep.mubr.bf16.mxu0 0
    %2950 = vmatmul.mubr.bf16.gmra.mrb[0].mxu0 %v2352
    %v2951 = vpop.f32.mrb[0].mxu0
    %v2952 = vadd.f32 0.0, %v2951
    %v2953 = vpop.f32.mrb[0].mxu0
    %v2954 = vadd.f32 0.0, %v2953
    %v2955 = vpop.f32.mrb[0].mxu0
    %v2956 = vadd.f32 0.0, %v2955
    %v2957 = vpop.f32.mrb[0].mxu0
    %v2958 = vadd.f32 0.0, %v2957
    %2959 = vmatprep.mubr.bf16.mxu0 0
    %2960 = vmatmul.mubr.bf16.gmra.mrb[0].mxu0 %v2353
    %v2961 = vpop.f32.mrb[0].mxu0
    %v2962 = vadd.f32 0.0, %v2961
    %v2963 = vpop.f32.mrb[0].mxu0
    %v2964 = vadd.f32 0.0, %v2963
    %v2965 = vpop.f32.mrb[0].mxu0
    %v2966 = vadd.f32 0.0, %v2965
    %v2967 = vpop.f32.mrb[0].mxu0
    %v2968 = vadd.f32 0.0, %v2967
    %2969 = vmatprep.mubr.bf16.mxu0 0
    %2970 = vmatmul.mubr.bf16.gmra.mrb[0].mxu0 %v2354
    %v2971 = vpop.f32.mrb[0].mxu0
    %v2972 = vadd.f32 0.0, %v2971
    %v2973 = vpop.f32.mrb[0].mxu0
    %v2974 = vadd.f32 0.0, %v2973
    %v2975 = vpop.f32.mrb[0].mxu0
    %v2976 = vadd.f32 0.0, %v2975
    %v2977 = vpop.f32.mrb[0].mxu0
    %v2978 = vadd.f32 0.0, %v2977
    %2979 = vmatprep.mubr.bf16.mxu0 0
    %2980 = vmatmul.mubr.bf16.gmra.mrb[0].mxu0 %v2355
    %v2981 = vpop.f32.mrb[0].mxu0
    %v2982 = vadd.f32 0.0, %v2981
    %v2983 = vpop.f32.mrb[0].mxu0
    %v2984 = vadd.f32 0.0, %v2983
    %v2985 = vpop.f32.mrb[0].mxu0
    %v2986 = vadd.f32 0.0, %v2985
    %v2987 = vpop.f32.mrb[0].mxu0
    %v2988 = vadd.f32 0.0, %v2987
    %2989 = vmatprep.mubr.bf16.mxu0 0
    %2990 = vmatmul.mubr.bf16.gmra.mrb[0].mxu0 %v2356
    %v2991 = vpop.f32.mrb[0].mxu0
    %v2992 = vadd.f32 0.0, %v2991
    %v2993 = vpop.f32.mrb[0].mxu0
    %v2994 = vadd.f32 0.0, %v2993
    %v2995 = vpop.f32.mrb[0].mxu0
    %v2996 = vadd.f32 0.0, %v2995
    %v2997 = vpop.f32.mrb[0].mxu0
    %v2998 = vadd.f32 0.0, %v2997
    %2999 = vmatprep.mubr.bf16.mxu0 0
    %3000 = vmatmul.mubr.bf16.gmra.mrb[0].mxu0 %v2357
    %v3001 = vpop.f32.mrb[0].mxu0
    %v3002 = vadd.f32 0.0, %v3001
    %v3003 = vpop.f32.mrb[0].mxu0
    %v3004 = vadd.f32 0.0, %v3003
    %v3005 = vpop.f32.mrb[0].mxu0
    %v3006 = vadd.f32 0.0, %v3005
    %v3007 = vpop.f32.mrb[0].mxu0
    %v3008 = vadd.f32 0.0, %v3007
    %3009 = vmatprep.mubr.bf16.mxu0 0
    %3010 = vmatmul.mubr.bf16.gmra.mrb[0].mxu0 %v2358
    %v3011 = vpop.f32.mrb[0].mxu0
    %v3012 = vadd.f32 0.0, %v3011
    %v3013 = vpop.f32.mrb[0].mxu0
    %v3014 = vadd.f32 0.0, %v3013
    %v3015 = vpop.f32.mrb[0].mxu0
    %v3016 = vadd.f32 0.0, %v3015
    %v3017 = vpop.f32.mrb[0].mxu0
    %v3018 = vadd.f32 0.0, %v3017
    %3019 = vmatprep.mubr.bf16.mxu0 0
    %3020 = vmatmul.mubr.bf16.gmra.mrb[0].mxu0 %v2359
    %v3021 = vpop.f32.mrb[0].mxu0
    %v3022 = vadd.f32 0.0, %v3021
    %v3023 = vpop.f32.mrb[0].mxu0
    %v3024 = vadd.f32 0.0, %v3023
    %v3025 = vpop.f32.mrb[0].mxu0
    %v3026 = vadd.f32 0.0, %v3025
    %v3027 = vpop.f32.mrb[0].mxu0
    %v3028 = vadd.f32 0.0, %v3027
    %3029 = vmatprep.mubr.bf16.mxu0 0
    %3030 = vmatmul.mubr.bf16.gmra.mrb[0].mxu0 %v2360
    %v3031 = vpop.f32.mrb[0].mxu0
    %v3032 = vadd.f32 0.0, %v3031
    %v3033 = vpop.f32.mrb[0].mxu0
    %v3034 = vadd.f32 0.0, %v3033
    %v3035 = vpop.f32.mrb[0].mxu0
    %v3036 = vadd.f32 0.0, %v3035
    %v3037 = vpop.f32.mrb[0].mxu0
    %v3038 = vadd.f32 0.0, %v3037
    %3039 = vmatprep.mubr.bf16.mxu0 0
    %3040 = vmatmul.mubr.bf16.gmra.mrb[0].mxu0 %v2361
    %v3041 = vpop.f32.mrb[0].mxu0
    %v3042 = vadd.f32 0.0, %v3041
    %v3043 = vpop.f32.mrb[0].mxu0
    %v3044 = vadd.f32 0.0, %v3043
    %v3045 = vpop.f32.mrb[0].mxu0
    %v3046 = vadd.f32 0.0, %v3045
    %v3047 = vpop.f32.mrb[0].mxu0
    %v3048 = vadd.f32 0.0, %v3047
    %3049 = vmatprep.mubr.bf16.mxu0 0
    %3050 = vmatmul.mubr.bf16.gmra.mrb[0].mxu0 %v2362
    %v3051 = vpop.f32.mrb[0].mxu0
    %v3052 = vadd.f32 0.0, %v3051
    %v3053 = vpop.f32.mrb[0].mxu0
    %v3054 = vadd.f32 0.0, %v3053
    %v3055 = vpop.f32.mrb[0].mxu0
    %v3056 = vadd.f32 0.0, %v3055
    %v3057 = vpop.f32.mrb[0].mxu0
    %v3058 = vadd.f32 0.0, %v3057
    %3059 = vmatprep.mubr.bf16.mxu0 0
    %3060 = vmatmul.mubr.bf16.gmra.mrb[0].mxu0 %v2363
    %v3061 = vpop.f32.mrb[0].mxu0
    %v3062 = vadd.f32 0.0, %v3061
    %v3063 = vpop.f32.mrb[0].mxu0
    %v3064 = vadd.f32 0.0, %v3063
    %v3065 = vpop.f32.mrb[0].mxu0
    %v3066 = vadd.f32 0.0, %v3065
    %v3067 = vpop.f32.mrb[0].mxu0
    %v3068 = vadd.f32 0.0, %v3067
    %3069 = vmatprep.mubr.bf16.mxu0 0
    %3070 = vmatmul.mubr.bf16.gmra.mrb[0].mxu0 %v2364
    %v3071 = vpop.f32.mrb[0].mxu0
    %v3072 = vadd.f32 0.0, %v3071
    %v3073 = vpop.f32.mrb[0].mxu0
    %v3074 = vadd.f32 0.0, %v3073
    %v3075 = vpop.f32.mrb[0].mxu0
    %v3076 = vadd.f32 0.0, %v3075
    %v3077 = vpop.f32.mrb[0].mxu0
    %v3078 = vadd.f32 0.0, %v3077
    %3079 = vmatprep.mubr.bf16.mxu0 0
    %3080 = vmatmul.mubr.bf16.gmra.mrb[0].mxu0 %v2365
    %v3081 = vpop.f32.mrb[0].mxu0
    %v3082 = vadd.f32 0.0, %v3081
    %v3083 = vpop.f32.mrb[0].mxu0
    %v3084 = vadd.f32 0.0, %v3083
    %v3085 = vpop.f32.mrb[0].mxu0
    %v3086 = vadd.f32 0.0, %v3085
    %v3087 = vpop.f32.mrb[0].mxu0
    %v3088 = vadd.f32 0.0, %v3087
    %3089 = vmatprep.mubr.bf16.mxu0 0
    %3090 = vmatmul.mubr.bf16.gmra.mrb[0].mxu0 %v2366
    %v3091 = vpop.f32.mrb[0].mxu0
    %v3092 = vadd.f32 0.0, %v3091
    %v3093 = vpop.f32.mrb[0].mxu0
    %v3094 = vadd.f32 0.0, %v3093
    %v3095 = vpop.f32.mrb[0].mxu0
    %v3096 = vadd.f32 0.0, %v3095
    %v3097 = vpop.f32.mrb[0].mxu0
    %v3098 = vadd.f32 0.0, %v3097
    %3099 = vmatprep.mubr.bf16.mxu0 0
    %3100 = vmatmul.mubr.bf16.gmra.mrb[0].mxu0 %v2367
    %v3101 = vpop.f32.mrb[0].mxu0
    %v3102 = vadd.f32 0.0, %v3101
    %v3103 = vpop.f32.mrb[0].mxu0
    %v3104 = vadd.f32 0.0, %v3103
    %v3105 = vpop.f32.mrb[0].mxu0
    %v3106 = vadd.f32 0.0, %v3105
    %v3107 = vpop.f32.mrb[0].mxu0
    %v3108 = vadd.f32 0.0, %v3107
    %3109 = vmatprep.mubr.bf16.mxu0 0
    %3110 = vmatmul.mubr.bf16.gmra.mrb[0].mxu0 %v2368
    %v3111 = vpop.f32.mrb[0].mxu0
    %v3112 = vadd.f32 0.0, %v3111
    %v3113 = vpop.f32.mrb[0].mxu0
    %v3114 = vadd.f32 0.0, %v3113
    %v3115 = vpop.f32.mrb[0].mxu0
    %v3116 = vadd.f32 0.0, %v3115
    %v3117 = vpop.f32.mrb[0].mxu0
    %v3118 = vadd.f32 0.0, %v3117
    %3119 = vmatprep.mubr.bf16.mxu0 0
    %3120 = vmatmul.mubr.bf16.gmra.mrb[0].mxu0 %v2369
    %v3121 = vpop.f32.mrb[0].mxu0
    %v3122 = vadd.f32 0.0, %v3121
    %v3123 = vpop.f32.mrb[0].mxu0
    %v3124 = vadd.f32 0.0, %v3123
    %v3125 = vpop.f32.mrb[0].mxu0
    %v3126 = vadd.f32 0.0, %v3125
    %v3127 = vpop.f32.mrb[0].mxu0
    %v3128 = vadd.f32 0.0, %v3127
    %3129 = vmatprep.mubr.bf16.mxu0 0
    %3130 = vmatmul.mubr.bf16.gmra.mrb[0].mxu0 %v2370
    %v3131 = vpop.f32.mrb[0].mxu0
    %v3132 = vadd.f32 0.0, %v3131
    %v3133 = vpop.f32.mrb[0].mxu0
    %v3134 = vadd.f32 0.0, %v3133
    %v3135 = vpop.f32.mrb[0].mxu0
    %v3136 = vadd.f32 0.0, %v3135
    %v3137 = vpop.f32.mrb[0].mxu0
    %v3138 = vadd.f32 0.0, %v3137
    %3139 = vmatprep.mubr.bf16.mxu0 0
    %3140 = vmatmul.mubr.bf16.gmra.mrb[0].mxu0 %v2371
    %v3141 = vpop.f32.mrb[0].mxu0
    %v3142 = vadd.f32 0.0, %v3141
    %v3143 = vpop.f32.mrb[0].mxu0
    %v3144 = vadd.f32 0.0, %v3143
    %v3145 = vpop.f32.mrb[0].mxu0
    %v3146 = vadd.f32 0.0, %v3145
    %v3147 = vpop.f32.mrb[0].mxu0
    %v3148 = vadd.f32 0.0, %v3147
    %3149 = vmatprep.mubr.bf16.mxu0 0
    %3150 = vmatmul.mubr.bf16.gmra.mrb[0].mxu0 %v2372
    %v3151 = vpop.f32.mrb[0].mxu0
    %v3152 = vadd.f32 0.0, %v3151
    %v3153 = vpop.f32.mrb[0].mxu0
    %v3154 = vadd.f32 0.0, %v3153
    %v3155 = vpop.f32.mrb[0].mxu0
    %v3156 = vadd.f32 0.0, %v3155
    %v3157 = vpop.f32.mrb[0].mxu0
    %v3158 = vadd.f32 0.0, %v3157
    %3159 = vmatprep.mubr.bf16.mxu0 0
    %3160 = vmatmul.mubr.bf16.gmra.mrb[0].mxu0 %v2373
    %v3161 = vpop.f32.mrb[0].mxu0
    %v3162 = vadd.f32 0.0, %v3161
    %v3163 = vpop.f32.mrb[0].mxu0
    %v3164 = vadd.f32 0.0, %v3163
    %v3165 = vpop.f32.mrb[0].mxu0
    %v3166 = vadd.f32 0.0, %v3165
    %v3167 = vpop.f32.mrb[0].mxu0
    %v3168 = vadd.f32 0.0, %v3167
    %3169 = vmatprep.mubr.bf16.mxu0 0
    %3170 = vmatmul.mubr.bf16.gmra.mrb[0].mxu0 %v2374
    %v3171 = vpop.f32.mrb[0].mxu0
    %v3172 = vadd.f32 0.0, %v3171
    %v3173 = vpop.f32.mrb[0].mxu0
    %v3174 = vadd.f32 0.0, %v3173
    %v3175 = vpop.f32.mrb[0].mxu0
    %v3176 = vadd.f32 0.0, %v3175
    %v3177 = vpop.f32.mrb[0].mxu0
    %v3178 = vadd.f32 0.0, %v3177
    %3179 = vmatprep.mubr.bf16.mxu0 0
    %3180 = vmatmul.mubr.bf16.gmra.mrb[0].mxu0 %v2375
    %v3181 = vpop.f32.mrb[0].mxu0
    %v3182 = vadd.f32 0.0, %v3181
    %v3183 = vpop.f32.mrb[0].mxu0
    %v3184 = vadd.f32 0.0, %v3183
    %v3185 = vpop.f32.mrb[0].mxu0
    %v3186 = vadd.f32 0.0, %v3185
    %v3187 = vpop.f32.mrb[0].mxu0
    %v3188 = vadd.f32 0.0, %v3187
    %3189 = vmatprep.mubr.bf16.mxu0 0
    %3190 = vmatmul.mubr.bf16.gmra.mrb[0].mxu0 %v2376
    %v3191 = vpop.f32.mrb[0].mxu0
    %v3192 = vadd.f32 0.0, %v3191
    %v3193 = vpop.f32.mrb[0].mxu0
    %v3194 = vadd.f32 0.0, %v3193
    %v3195 = vpop.f32.mrb[0].mxu0
    %v3196 = vadd.f32 0.0, %v3195
    %v3197 = vpop.f32.mrb[0].mxu0
    %v3198 = vadd.f32 0.0, %v3197
    %3199 = vmatprep.mubr.bf16.mxu0 0
    %3200 = vmatmul.mubr.bf16.gmra.mrb[0].mxu0 %v2377
    %v3201 = vpop.f32.mrb[0].mxu0
    %v3202 = vadd.f32 0.0, %v3201
    %v3203 = vpop.f32.mrb[0].mxu0
    %v3204 = vadd.f32 0.0, %v3203
    %v3205 = vpop.f32.mrb[0].mxu0
    %v3206 = vadd.f32 0.0, %v3205
    %v3207 = vpop.f32.mrb[0].mxu0
    %v3208 = vadd.f32 0.0, %v3207
    %3209 = vmatprep.mubr.bf16.mxu0 0
    %3210 = vmatmul.mubr.bf16.gmra.mrb[0].mxu0 %v2378
    %v3211 = vpop.f32.mrb[0].mxu0
    %v3212 = vadd.f32 0.0, %v3211
    %v3213 = vpop.f32.mrb[0].mxu0
    %v3214 = vadd.f32 0.0, %v3213
    %v3215 = vpop.f32.mrb[0].mxu0
    %v3216 = vadd.f32 0.0, %v3215
    %v3217 = vpop.f32.mrb[0].mxu0
    %v3218 = vadd.f32 0.0, %v3217
    %3219 = vmatprep.mubr.bf16.mxu0 0
    %3220 = vmatmul.mubr.bf16.gmra.mrb[0].mxu0 %v2379
    %v3221 = vpop.f32.mrb[0].mxu0
    %v3222 = vadd.f32 0.0, %v3221
    %v3223 = vpop.f32.mrb[0].mxu0
    %v3224 = vadd.f32 0.0, %v3223
    %v3225 = vpop.f32.mrb[0].mxu0
    %v3226 = vadd.f32 0.0, %v3225
    %v3227 = vpop.f32.mrb[0].mxu0
    %v3228 = vadd.f32 0.0, %v3227
    %3229 = vmatprep.mubr.bf16.mxu0 0
    %3230 = vmatmul.mubr.bf16.gmra.mrb[0].mxu0 %v2380
    %v3231 = vpop.f32.mrb[0].mxu0
    %v3232 = vadd.f32 0.0, %v3231
    %v3233 = vpop.f32.mrb[0].mxu0
    %v3234 = vadd.f32 0.0, %v3233
    %v3235 = vpop.f32.mrb[0].mxu0
    %v3236 = vadd.f32 0.0, %v3235
    %v3237 = vpop.f32.mrb[0].mxu0
    %v3238 = vadd.f32 0.0, %v3237
    %3239 = vmatprep.mubr.bf16.mxu0 0
    %3240 = vmatmul.mubr.bf16.gmra.mrb[0].mxu0 %v2381
    %v3241 = vpop.f32.mrb[0].mxu0
    %v3242 = vadd.f32 0.0, %v3241
    %v3243 = vpop.f32.mrb[0].mxu0
    %v3244 = vadd.f32 0.0, %v3243
    %v3245 = vpop.f32.mrb[0].mxu0
    %v3246 = vadd.f32 0.0, %v3245
    %v3247 = vpop.f32.mrb[0].mxu0
    %v3248 = vadd.f32 0.0, %v3247
    %3249 = vmatprep.mubr.bf16.mxu0 0
    %3250 = vmatmul.mubr.bf16.gmra.mrb[0].mxu0 %v2382
    %v3251 = vpop.f32.mrb[0].mxu0
    %v3252 = vadd.f32 0.0, %v3251
    %v3253 = vpop.f32.mrb[0].mxu0
    %v3254 = vadd.f32 0.0, %v3253
    %v3255 = vpop.f32.mrb[0].mxu0
    %v3256 = vadd.f32 0.0, %v3255
    %v3257 = vpop.f32.mrb[0].mxu0
    %v3258 = vadd.f32 0.0, %v3257
    %3259 = vmatprep.mubr.bf16.mxu0 0
    %3260 = vmatmul.mubr.bf16.gmra.mrb[0].mxu0 %v2383
    %v3261 = vpop.f32.mrb[0].mxu0
    %v3262 = vadd.f32 0.0, %v3261
    %v3263 = vpop.f32.mrb[0].mxu0
    %v3264 = vadd.f32 0.0, %v3263
    %v3265 = vpop.f32.mrb[0].mxu0
    %v3266 = vadd.f32 0.0, %v3265
    %v3267 = vpop.f32.mrb[0].mxu0
    %v3268 = vadd.f32 0.0, %v3267
    %3269 = vmatprep.mubr.bf16.mxu0 0
    %3270 = vmatmul.mubr.bf16.gmra.mrb[0].mxu0 %v2384
    %v3271 = vpop.f32.mrb[0].mxu0
    %v3272 = vadd.f32 0.0, %v3271
    %v3273 = vpop.f32.mrb[0].mxu0
    %v3274 = vadd.f32 0.0, %v3273
    %v3275 = vpop.f32.mrb[0].mxu0
    %v3276 = vadd.f32 0.0, %v3275
    %v3277 = vpop.f32.mrb[0].mxu0
    %v3278 = vadd.f32 0.0, %v3277
    %3279 = vmatprep.mubr.bf16.mxu0 0
    %3280 = vmatmul.mubr.bf16.gmra.mrb[0].mxu0 %v2385
    %v3281 = vpop.f32.mrb[0].mxu0
    %v3282 = vadd.f32 0.0, %v3281
    %v3283 = vpop.f32.mrb[0].mxu0
    %v3284 = vadd.f32 0.0, %v3283
    %v3285 = vpop.f32.mrb[0].mxu0
    %v3286 = vadd.f32 0.0, %v3285
    %v3287 = vpop.f32.mrb[0].mxu0
    %v3288 = vadd.f32 0.0, %v3287
    %3289 = vmatprep.mubr.bf16.mxu0 0
    %3290 = vmatmul.mubr.bf16.gmra.mrb[0].mxu0 %v2386
    %v3291 = vpop.f32.mrb[0].mxu0
    %v3292 = vadd.f32 0.0, %v3291
    %v3293 = vpop.f32.mrb[0].mxu0
    %v3294 = vadd.f32 0.0, %v3293
    %v3295 = vpop.f32.mrb[0].mxu0
    %v3296 = vadd.f32 0.0, %v3295
    %v3297 = vpop.f32.mrb[0].mxu0
    %v3298 = vadd.f32 0.0, %v3297
    %3299 = vmatprep.mubr.bf16.mxu0 0
    %3300 = vmatmul.mubr.bf16.gmra.mrb[0].mxu0 %v2387
    %v3301 = vpop.f32.mrb[0].mxu0
    %v3302 = vadd.f32 0.0, %v3301
    %v3303 = vpop.f32.mrb[0].mxu0
    %v3304 = vadd.f32 0.0, %v3303
    %v3305 = vpop.f32.mrb[0].mxu0
    %v3306 = vadd.f32 0.0, %v3305
    %v3307 = vpop.f32.mrb[0].mxu0
    %v3308 = vadd.f32 0.0, %v3307
    %3309 = vmatprep.mubr.bf16.mxu0 0
    %3310 = vmatmul.mubr.bf16.gmra.mrb[0].mxu0 %v2388
    %v3311 = vpop.f32.mrb[0].mxu0
    %v3312 = vadd.f32 0.0, %v3311
    %v3313 = vpop.f32.mrb[0].mxu0
    %v3314 = vadd.f32 0.0, %v3313
    %v3315 = vpop.f32.mrb[0].mxu0
    %v3316 = vadd.f32 0.0, %v3315
    %v3317 = vpop.f32.mrb[0].mxu0
    %v3318 = vadd.f32 0.0, %v3317
    %3319 = vmatprep.mubr.bf16.mxu0 0
    %3320 = vmatmul.mubr.bf16.gmra.mrb[0].mxu0 %v2389
    %v3321 = vpop.f32.mrb[0].mxu0
    %v3322 = vadd.f32 0.0, %v3321
    %v3323 = vpop.f32.mrb[0].mxu0
    %v3324 = vadd.f32 0.0, %v3323
    %v3325 = vpop.f32.mrb[0].mxu0
    %v3326 = vadd.f32 0.0, %v3325
    %v3327 = vpop.f32.mrb[0].mxu0
    %v3328 = vadd.f32 0.0, %v3327
    %3329 = vmatprep.mubr.bf16.mxu0 0
    %3330 = vmatmul.mubr.bf16.gmra.mrb[0].mxu0 %v2390
    %v3331 = vpop.f32.mrb[0].mxu0
    %v3332 = vadd.f32 0.0, %v3331
    %v3333 = vpop.f32.mrb[0].mxu0
    %v3334 = vadd.f32 0.0, %v3333
    %v3335 = vpop.f32.mrb[0].mxu0
    %v3336 = vadd.f32 0.0, %v3335
    %v3337 = vpop.f32.mrb[0].mxu0
    %v3338 = vadd.f32 0.0, %v3337
    %3339 = vmatprep.mubr.bf16.mxu0 0
    %3340 = vmatmul.mubr.bf16.gmra.mrb[0].mxu0 %v2391
    %v3341 = vpop.f32.mrb[0].mxu0
    %v3342 = vadd.f32 0.0, %v3341
    %v3343 = vpop.f32.mrb[0].mxu0
    %v3344 = vadd.f32 0.0, %v3343
    %v3345 = vpop.f32.mrb[0].mxu0
    %v3346 = vadd.f32 0.0, %v3345
    %v3347 = vpop.f32.mrb[0].mxu0
    %v3348 = vadd.f32 0.0, %v3347
    %3349 = vmatprep.mubr.bf16.mxu0 0
    %3350 = vmatmul.mubr.bf16.gmra.mrb[0].mxu0 %v2392
    %v3351 = vpop.f32.mrb[0].mxu0
    %v3352 = vadd.f32 0.0, %v3351
    %v3353 = vpop.f32.mrb[0].mxu0
    %v3354 = vadd.f32 0.0, %v3353
    %v3355 = vpop.f32.mrb[0].mxu0
    %v3356 = vadd.f32 0.0, %v3355
    %v3357 = vpop.f32.mrb[0].mxu0
    %v3358 = vadd.f32 0.0, %v3357
    %3359 = vmatprep.mubr.bf16.mxu0 0
    %3360 = vmatmul.mubr.bf16.gmra.mrb[0].mxu0 %v2393
    %v3361 = vpop.f32.mrb[0].mxu0
    %v3362 = vadd.f32 0.0, %v3361
    %v3363 = vpop.f32.mrb[0].mxu0
    %v3364 = vadd.f32 0.0, %v3363
    %v3365 = vpop.f32.mrb[0].mxu0
    %v3366 = vadd.f32 0.0, %v3365
    %v3367 = vpop.f32.mrb[0].mxu0
    %v3368 = vadd.f32 0.0, %v3367
    %3369 = vmatprep.mubr.bf16.mxu0 0
    %3370 = vmatmul.mubr.bf16.gmra.mrb[0].mxu0 %v2394
    %v3371 = vpop.f32.mrb[0].mxu0
    %v3372 = vadd.f32 0.0, %v3371
    %v3373 = vpop.f32.mrb[0].mxu0
    %v3374 = vadd.f32 0.0, %v3373
    %v3375 = vpop.f32.mrb[0].mxu0
    %v3376 = vadd.f32 0.0, %v3375
    %v3377 = vpop.f32.mrb[0].mxu0
    %v3378 = vadd.f32 0.0, %v3377
    %3379 = vmatprep.mubr.bf16.mxu0 0
    %3380 = vmatmul.mubr.bf16.gmra.mrb[0].mxu0 %v2395
    %v3381 = vpop.f32.mrb[0].mxu0
    %v3382 = vadd.f32 0.0, %v3381
    %v3383 = vpop.f32.mrb[0].mxu0
    %v3384 = vadd.f32 0.0, %v3383
    %v3385 = vpop.f32.mrb[0].mxu0
    %v3386 = vadd.f32 0.0, %v3385
    %v3387 = vpop.f32.mrb[0].mxu0
    %v3388 = vadd.f32 0.0, %v3387
    %3389 = vmatprep.mubr.bf16.mxu0 0
    %3390 = vmatmul.mubr.bf16.gmra.mrb[0].mxu0 %v2396
    %v3391 = vpop.f32.mrb[0].mxu0
    %v3392 = vadd.f32 0.0, %v3391
    %v3393 = vpop.f32.mrb[0].mxu0
    %v3394 = vadd.f32 0.0, %v3393
    %v3395 = vpop.f32.mrb[0].mxu0
    %v3396 = vadd.f32 0.0, %v3395
    %v3397 = vpop.f32.mrb[0].mxu0
    %v3398 = vadd.f32 0.0, %v3397
    %3399 = vmatprep.mubr.bf16.mxu0 0
    %3400 = vmatmul.mubr.bf16.gmra.mrb[0].mxu0 %v2397
    %v3401 = vpop.f32.mrb[0].mxu0
    %v3402 = vadd.f32 0.0, %v3401
    %v3403 = vpop.f32.mrb[0].mxu0
    %v3404 = vadd.f32 0.0, %v3403
    %v3405 = vpop.f32.mrb[0].mxu0
    %v3406 = vadd.f32 0.0, %v3405
    %v3407 = vpop.f32.mrb[0].mxu0
    %v3408 = vadd.f32 0.0, %v3407
    %3409 = vmatprep.mubr.bf16.mxu0 0
    %3410 = vmatmul.mubr.bf16.gmra.mrb[0].mxu0 %v2398
    %v3411 = vpop.f32.mrb[0].mxu0
    %v3412 = vadd.f32 0.0, %v3411
    %v3413 = vpop.f32.mrb[0].mxu0
    %v3414 = vadd.f32 0.0, %v3413
    %v3415 = vpop.f32.mrb[0].mxu0
    %v3416 = vadd.f32 0.0, %v3415
    %v3417 = vpop.f32.mrb[0].mxu0
    %v3418 = vadd.f32 0.0, %v3417
    %3419 = vmatprep.mubr.bf16.mxu0 0
    %3420 = vmatmul.mubr.bf16.gmra.mrb[0].mxu0 %v2399
    %v3421 = vpop.f32.mrb[0].mxu0
    %v3422 = vadd.f32 0.0, %v3421
    %v3423 = vpop.f32.mrb[0].mxu0
    %v3424 = vadd.f32 0.0, %v3423
    %v3425 = vpop.f32.mrb[0].mxu0
    %v3426 = vadd.f32 0.0, %v3425
    %v3427 = vpop.f32.mrb[0].mxu0
    %v3428 = vadd.f32 0.0, %v3427
    %3429 = vmatprep.mubr.bf16.mxu0 0
    %3430 = vmatmul.mubr.bf16.gmra.mrb[0].mxu0 %v2400
    %v3431 = vpop.f32.mrb[0].mxu0
    %v3432 = vadd.f32 0.0, %v3431
    %v3433 = vpop.f32.mrb[0].mxu0
    %v3434 = vadd.f32 0.0, %v3433
    %v3435 = vpop.f32.mrb[0].mxu0
    %v3436 = vadd.f32 0.0, %v3435
    %v3437 = vpop.f32.mrb[0].mxu0
    %v3438 = vadd.f32 0.0, %v3437
    %3439 = vmatprep.mubr.bf16.mxu0 0
    %3440 = vmatmul.mubr.bf16.gmra.mrb[0].mxu0 %v2401
    %v3441 = vpop.f32.mrb[0].mxu0
    %v3442 = vadd.f32 0.0, %v3441
    %v3443 = vpop.f32.mrb[0].mxu0
    %v3444 = vadd.f32 0.0, %v3443
    %v3445 = vpop.f32.mrb[0].mxu0
    %v3446 = vadd.f32 0.0, %v3445
    %v3447 = vpop.f32.mrb[0].mxu0
    %v3448 = vadd.f32 0.0, %v3447
    %3449 = vmatprep.mubr.bf16.mxu0 0
    %3450 = vmatmul.mubr.bf16.gmra.mrb[0].mxu0 %v2402
    %v3451 = vpop.f32.mrb[0].mxu0
    %v3452 = vadd.f32 0.0, %v3451
    %v3453 = vpop.f32.mrb[0].mxu0
    %v3454 = vadd.f32 0.0, %v3453
    %v3455 = vpop.f32.mrb[0].mxu0
    %v3456 = vadd.f32 0.0, %v3455
    %v3457 = vpop.f32.mrb[0].mxu0
    %v3458 = vadd.f32 0.0, %v3457
    %3459 = vdwg.mxu0
    %3460 = vmatprep.subr.bf16.mxu0 %v2662
    %3461 = vmatpush1.bf16.msra.mxu0 %v2661
    %3462 = vmatprep.subr.bf16.mxu0 %v2670
    %3463 = vmatpush1.bf16.msra.mxu0 %v2669
    %3464 = vmatprep.subr.bf16.mxu0 %v2678
    %3465 = vmatpush1.bf16.msra.mxu0 %v2677
    %3466 = vmatprep.subr.bf16.mxu0 %v2686
    %3467 = vmatpush1.bf16.msra.mxu0 %v2685
    %3468 = vmatprep.subr.bf16.mxu0 %v2694
    %3469 = vmatpush1.bf16.msra.mxu0 %v2693
    %3470 = vmatprep.subr.bf16.mxu0 %v2702
    %3471 = vmatpush1.bf16.msra.mxu0 %v2701
    %3472 = vmatprep.subr.bf16.mxu0 %v2710
    %3473 = vmatpush1.bf16.msra.mxu0 %v2709
    %3474 = vmatprep.subr.bf16.mxu0 %v2718
    %3475 = vmatpush1.bf16.msra.mxu0 %v2717
    %3476 = vmatprep.subr.bf16.mxu0 0
    %3477 = vmatpush1.bf16.msra.mxu0 0
    %3478 = vmatprep.subr.bf16.mxu0 0
    %3479 = vmatpush1.bf16.msra.mxu0 0
    %3480 = vmatprep.subr.bf16.mxu0 0
    %3481 = vmatpush1.bf16.msra.mxu0 0
    %3482 = vmatprep.subr.bf16.mxu0 0
    %3483 = vmatpush1.bf16.msra.mxu0 0
    %3484 = vmatprep.subr.bf16.mxu0 0
    %3485 = vmatpush1.bf16.msra.mxu0 0
    %3486 = vmatprep.subr.bf16.mxu0 0
    %3487 = vmatpush1.bf16.msra.mxu0 0
    %3488 = vmatprep.subr.bf16.mxu0 0
    %3489 = vmatpush1.bf16.msra.mxu0 0
    %3490 = vmatprep.subr.bf16.mxu0 0
    %3491 = vmatpush1.bf16.msra.mxu0 0
    %3492 = vmatprep.mubr.bf16.mxu0 0
    %3493 = vmatmul.mubr.bf16.gmra.mrb[0].mxu0 %v2339
    %v3494 = vpop.f32.mrb[0].mxu0
    %v3495 = vadd.f32 0.0, %v3494
    %v3496 = vpop.f32.mrb[0].mxu0
    %v3497 = vadd.f32 0.0, %v3496
    %v3498 = vpop.f32.mrb[0].mxu0
    %v3499 = vadd.f32 0.0, %v3498
    %v3500 = vpop.f32.mrb[0].mxu0
    %v3501 = vadd.f32 0.0, %v3500
    %3502 = vmatprep.mubr.bf16.mxu0 0
    %3503 = vmatmul.mubr.bf16.gmra.mrb[0].mxu0 %v2340
    %v3504 = vpop.f32.mrb[0].mxu0
    %v3505 = vadd.f32 0.0, %v3504
    %v3506 = vpop.f32.mrb[0].mxu0
    %v3507 = vadd.f32 0.0, %v3506
    %v3508 = vpop.f32.mrb[0].mxu0
    %v3509 = vadd.f32 0.0, %v3508
    %v3510 = vpop.f32.mrb[0].mxu0
    %v3511 = vadd.f32 0.0, %v3510
    %3512 = vmatprep.mubr.bf16.mxu0 0
    %3513 = vmatmul.mubr.bf16.gmra.mrb[0].mxu0 %v2341
    %v3514 = vpop.f32.mrb[0].mxu0
    %v3515 = vadd.f32 0.0, %v3514
    %v3516 = vpop.f32.mrb[0].mxu0
    %v3517 = vadd.f32 0.0, %v3516
    %v3518 = vpop.f32.mrb[0].mxu0
    %v3519 = vadd.f32 0.0, %v3518
    %v3520 = vpop.f32.mrb[0].mxu0
    %v3521 = vadd.f32 0.0, %v3520
    %3522 = vmatprep.mubr.bf16.mxu0 0
    %3523 = vmatmul.mubr.bf16.gmra.mrb[0].mxu0 %v2342
    %v3524 = vpop.f32.mrb[0].mxu0
    %v3525 = vadd.f32 0.0, %v3524
    %v3526 = vpop.f32.mrb[0].mxu0
    %v3527 = vadd.f32 0.0, %v3526
    %v3528 = vpop.f32.mrb[0].mxu0
    %v3529 = vadd.f32 0.0, %v3528
    %v3530 = vpop.f32.mrb[0].mxu0
    %v3531 = vadd.f32 0.0, %v3530
    %3532 = vmatprep.mubr.bf16.mxu0 0
    %3533 = vmatmul.mubr.bf16.gmra.mrb[0].mxu0 %v2343
    %v3534 = vpop.f32.mrb[0].mxu0
    %v3535 = vadd.f32 0.0, %v3534
    %v3536 = vpop.f32.mrb[0].mxu0
    %v3537 = vadd.f32 0.0, %v3536
    %v3538 = vpop.f32.mrb[0].mxu0
    %v3539 = vadd.f32 0.0, %v3538
    %v3540 = vpop.f32.mrb[0].mxu0
    %v3541 = vadd.f32 0.0, %v3540
    %3542 = vmatprep.mubr.bf16.mxu0 0
    %3543 = vmatmul.mubr.bf16.gmra.mrb[0].mxu0 %v2344
    %v3544 = vpop.f32.mrb[0].mxu0
    %v3545 = vadd.f32 0.0, %v3544
    %v3546 = vpop.f32.mrb[0].mxu0
    %v3547 = vadd.f32 0.0, %v3546
    %v3548 = vpop.f32.mrb[0].mxu0
    %v3549 = vadd.f32 0.0, %v3548
    %v3550 = vpop.f32.mrb[0].mxu0
    %v3551 = vadd.f32 0.0, %v3550
    %3552 = vmatprep.mubr.bf16.mxu0 0
    %3553 = vmatmul.mubr.bf16.gmra.mrb[0].mxu0 %v2345
    %v3554 = vpop.f32.mrb[0].mxu0
    %v3555 = vadd.f32 0.0, %v3554
    %v3556 = vpop.f32.mrb[0].mxu0
    %v3557 = vadd.f32 0.0, %v3556
    %v3558 = vpop.f32.mrb[0].mxu0
    %v3559 = vadd.f32 0.0, %v3558
    %v3560 = vpop.f32.mrb[0].mxu0
    %v3561 = vadd.f32 0.0, %v3560
    %3562 = vmatprep.mubr.bf16.mxu0 0
    %3563 = vmatmul.mubr.bf16.gmra.mrb[0].mxu0 %v2346
    %v3564 = vpop.f32.mrb[0].mxu0
    %v3565 = vadd.f32 0.0, %v3564
    %v3566 = vpop.f32.mrb[0].mxu0
    %v3567 = vadd.f32 0.0, %v3566
    %v3568 = vpop.f32.mrb[0].mxu0
    %v3569 = vadd.f32 0.0, %v3568
    %v3570 = vpop.f32.mrb[0].mxu0
    %v3571 = vadd.f32 0.0, %v3570
    %3572 = vmatprep.mubr.bf16.mxu0 0
    %3573 = vmatmul.mubr.bf16.gmra.mrb[0].mxu0 %v2347
    %v3574 = vpop.f32.mrb[0].mxu0
    %v3575 = vadd.f32 0.0, %v3574
    %v3576 = vpop.f32.mrb[0].mxu0
    %v3577 = vadd.f32 0.0, %v3576
    %v3578 = vpop.f32.mrb[0].mxu0
    %v3579 = vadd.f32 0.0, %v3578
    %v3580 = vpop.f32.mrb[0].mxu0
    %v3581 = vadd.f32 0.0, %v3580
    %3582 = vmatprep.mubr.bf16.mxu0 0
    %3583 = vmatmul.mubr.bf16.gmra.mrb[0].mxu0 %v2348
    %v3584 = vpop.f32.mrb[0].mxu0
    %v3585 = vadd.f32 0.0, %v3584
    %v3586 = vpop.f32.mrb[0].mxu0
    %v3587 = vadd.f32 0.0, %v3586
    %v3588 = vpop.f32.mrb[0].mxu0
    %v3589 = vadd.f32 0.0, %v3588
    %v3590 = vpop.f32.mrb[0].mxu0
    %v3591 = vadd.f32 0.0, %v3590
    %3592 = vmatprep.mubr.bf16.mxu0 0
    %3593 = vmatmul.mubr.bf16.gmra.mrb[0].mxu0 %v2349
    %v3594 = vpop.f32.mrb[0].mxu0
    %v3595 = vadd.f32 0.0, %v3594
    %v3596 = vpop.f32.mrb[0].mxu0
    %v3597 = vadd.f32 0.0, %v3596
    %v3598 = vpop.f32.mrb[0].mxu0
    %v3599 = vadd.f32 0.0, %v3598
    %v3600 = vpop.f32.mrb[0].mxu0
    %v3601 = vadd.f32 0.0, %v3600
    %3602 = vmatprep.mubr.bf16.mxu0 0
    %3603 = vmatmul.mubr.bf16.gmra.mrb[0].mxu0 %v2350
    %v3604 = vpop.f32.mrb[0].mxu0
    %v3605 = vadd.f32 0.0, %v3604
    %v3606 = vpop.f32.mrb[0].mxu0
    %v3607 = vadd.f32 0.0, %v3606
    %v3608 = vpop.f32.mrb[0].mxu0
    %v3609 = vadd.f32 0.0, %v3608
    %v3610 = vpop.f32.mrb[0].mxu0
    %v3611 = vadd.f32 0.0, %v3610
    %3612 = vmatprep.mubr.bf16.mxu0 0
    %3613 = vmatmul.mubr.bf16.gmra.mrb[0].mxu0 %v2351
    %v3614 = vpop.f32.mrb[0].mxu0
    %v3615 = vadd.f32 0.0, %v3614
    %v3616 = vpop.f32.mrb[0].mxu0
    %v3617 = vadd.f32 0.0, %v3616
    %v3618 = vpop.f32.mrb[0].mxu0
    %v3619 = vadd.f32 0.0, %v3618
    %v3620 = vpop.f32.mrb[0].mxu0
    %v3621 = vadd.f32 0.0, %v3620
    %3622 = vmatprep.mubr.bf16.mxu0 0
    %3623 = vmatmul.mubr.bf16.gmra.mrb[0].mxu0 %v2352
    %v3624 = vpop.f32.mrb[0].mxu0
    %v3625 = vadd.f32 0.0, %v3624
    %v3626 = vpop.f32.mrb[0].mxu0
    %v3627 = vadd.f32 0.0, %v3626
    %v3628 = vpop.f32.mrb[0].mxu0
    %v3629 = vadd.f32 0.0, %v3628
    %v3630 = vpop.f32.mrb[0].mxu0
    %v3631 = vadd.f32 0.0, %v3630
    %3632 = vmatprep.mubr.bf16.mxu0 0
    %3633 = vmatmul.mubr.bf16.gmra.mrb[0].mxu0 %v2353
    %v3634 = vpop.f32.mrb[0].mxu0
    %v3635 = vadd.f32 0.0, %v3634
    %v3636 = vpop.f32.mrb[0].mxu0
    %v3637 = vadd.f32 0.0, %v3636
    %v3638 = vpop.f32.mrb[0].mxu0
    %v3639 = vadd.f32 0.0, %v3638
    %v3640 = vpop.f32.mrb[0].mxu0
    %v3641 = vadd.f32 0.0, %v3640
    %3642 = vmatprep.mubr.bf16.mxu0 0
    %3643 = vmatmul.mubr.bf16.gmra.mrb[0].mxu0 %v2354
    %v3644 = vpop.f32.mrb[0].mxu0
    %v3645 = vadd.f32 0.0, %v3644
    %v3646 = vpop.f32.mrb[0].mxu0
    %v3647 = vadd.f32 0.0, %v3646
    %v3648 = vpop.f32.mrb[0].mxu0
    %v3649 = vadd.f32 0.0, %v3648
    %v3650 = vpop.f32.mrb[0].mxu0
    %v3651 = vadd.f32 0.0, %v3650
    %3652 = vmatprep.mubr.bf16.mxu0 0
    %3653 = vmatmul.mubr.bf16.gmra.mrb[0].mxu0 %v2355
    %v3654 = vpop.f32.mrb[0].mxu0
    %v3655 = vadd.f32 0.0, %v3654
    %v3656 = vpop.f32.mrb[0].mxu0
    %v3657 = vadd.f32 0.0, %v3656
    %v3658 = vpop.f32.mrb[0].mxu0
    %v3659 = vadd.f32 0.0, %v3658
    %v3660 = vpop.f32.mrb[0].mxu0
    %v3661 = vadd.f32 0.0, %v3660
    %3662 = vmatprep.mubr.bf16.mxu0 0
    %3663 = vmatmul.mubr.bf16.gmra.mrb[0].mxu0 %v2356
    %v3664 = vpop.f32.mrb[0].mxu0
    %v3665 = vadd.f32 0.0, %v3664
    %v3666 = vpop.f32.mrb[0].mxu0
    %v3667 = vadd.f32 0.0, %v3666
    %v3668 = vpop.f32.mrb[0].mxu0
    %v3669 = vadd.f32 0.0, %v3668
    %v3670 = vpop.f32.mrb[0].mxu0
    %v3671 = vadd.f32 0.0, %v3670
    %3672 = vmatprep.mubr.bf16.mxu0 0
    %3673 = vmatmul.mubr.bf16.gmra.mrb[0].mxu0 %v2357
    %v3674 = vpop.f32.mrb[0].mxu0
    %v3675 = vadd.f32 0.0, %v3674
    %v3676 = vpop.f32.mrb[0].mxu0
    %v3677 = vadd.f32 0.0, %v3676
    %v3678 = vpop.f32.mrb[0].mxu0
    %v3679 = vadd.f32 0.0, %v3678
    %v3680 = vpop.f32.mrb[0].mxu0
    %v3681 = vadd.f32 0.0, %v3680
    %3682 = vmatprep.mubr.bf16.mxu0 0
    %3683 = vmatmul.mubr.bf16.gmra.mrb[0].mxu0 %v2358
    %v3684 = vpop.f32.mrb[0].mxu0
    %v3685 = vadd.f32 0.0, %v3684
    %v3686 = vpop.f32.mrb[0].mxu0
    %v3687 = vadd.f32 0.0, %v3686
    %v3688 = vpop.f32.mrb[0].mxu0
    %v3689 = vadd.f32 0.0, %v3688
    %v3690 = vpop.f32.mrb[0].mxu0
    %v3691 = vadd.f32 0.0, %v3690
    %3692 = vmatprep.mubr.bf16.mxu0 0
    %3693 = vmatmul.mubr.bf16.gmra.mrb[0].mxu0 %v2359
    %v3694 = vpop.f32.mrb[0].mxu0
    %v3695 = vadd.f32 0.0, %v3694
    %v3696 = vpop.f32.mrb[0].mxu0
    %v3697 = vadd.f32 0.0, %v3696
    %v3698 = vpop.f32.mrb[0].mxu0
    %v3699 = vadd.f32 0.0, %v3698
    %v3700 = vpop.f32.mrb[0].mxu0
    %v3701 = vadd.f32 0.0, %v3700
    %3702 = vmatprep.mubr.bf16.mxu0 0
    %3703 = vmatmul.mubr.bf16.gmra.mrb[0].mxu0 %v2360
    %v3704 = vpop.f32.mrb[0].mxu0
    %v3705 = vadd.f32 0.0, %v3704
    %v3706 = vpop.f32.mrb[0].mxu0
    %v3707 = vadd.f32 0.0, %v3706
    %v3708 = vpop.f32.mrb[0].mxu0
    %v3709 = vadd.f32 0.0, %v3708
    %v3710 = vpop.f32.mrb[0].mxu0
    %v3711 = vadd.f32 0.0, %v3710
    %3712 = vmatprep.mubr.bf16.mxu0 0
    %3713 = vmatmul.mubr.bf16.gmra.mrb[0].mxu0 %v2361
    %v3714 = vpop.f32.mrb[0].mxu0
    %v3715 = vadd.f32 0.0, %v3714
    %v3716 = vpop.f32.mrb[0].mxu0
    %v3717 = vadd.f32 0.0, %v3716
    %v3718 = vpop.f32.mrb[0].mxu0
    %v3719 = vadd.f32 0.0, %v3718
    %v3720 = vpop.f32.mrb[0].mxu0
    %v3721 = vadd.f32 0.0, %v3720
    %3722 = vmatprep.mubr.bf16.mxu0 0
    %3723 = vmatmul.mubr.bf16.gmra.mrb[0].mxu0 %v2362
    %v3724 = vpop.f32.mrb[0].mxu0
    %v3725 = vadd.f32 0.0, %v3724
    %v3726 = vpop.f32.mrb[0].mxu0
    %v3727 = vadd.f32 0.0, %v3726
    %v3728 = vpop.f32.mrb[0].mxu0
    %v3729 = vadd.f32 0.0, %v3728
    %v3730 = vpop.f32.mrb[0].mxu0
    %v3731 = vadd.f32 0.0, %v3730
    %3732 = vmatprep.mubr.bf16.mxu0 0
    %3733 = vmatmul.mubr.bf16.gmra.mrb[0].mxu0 %v2363
    %v3734 = vpop.f32.mrb[0].mxu0
    %v3735 = vadd.f32 0.0, %v3734
    %v3736 = vpop.f32.mrb[0].mxu0
    %v3737 = vadd.f32 0.0, %v3736
    %v3738 = vpop.f32.mrb[0].mxu0
    %v3739 = vadd.f32 0.0, %v3738
    %v3740 = vpop.f32.mrb[0].mxu0
    %v3741 = vadd.f32 0.0, %v3740
    %3742 = vmatprep.mubr.bf16.mxu0 0
    %3743 = vmatmul.mubr.bf16.gmra.mrb[0].mxu0 %v2364
    %v3744 = vpop.f32.mrb[0].mxu0
    %v3745 = vadd.f32 0.0, %v3744
    %v3746 = vpop.f32.mrb[0].mxu0
    %v3747 = vadd.f32 0.0, %v3746
    %v3748 = vpop.f32.mrb[0].mxu0
    %v3749 = vadd.f32 0.0, %v3748
    %v3750 = vpop.f32.mrb[0].mxu0
    %v3751 = vadd.f32 0.0, %v3750
    %3752 = vmatprep.mubr.bf16.mxu0 0
    %3753 = vmatmul.mubr.bf16.gmra.mrb[0].mxu0 %v2365
    %v3754 = vpop.f32.mrb[0].mxu0
    %v3755 = vadd.f32 0.0, %v3754
    %v3756 = vpop.f32.mrb[0].mxu0
    %v3757 = vadd.f32 0.0, %v3756
    %v3758 = vpop.f32.mrb[0].mxu0
    %v3759 = vadd.f32 0.0, %v3758
    %v3760 = vpop.f32.mrb[0].mxu0
    %v3761 = vadd.f32 0.0, %v3760
    %3762 = vmatprep.mubr.bf16.mxu0 0
    %3763 = vmatmul.mubr.bf16.gmra.mrb[0].mxu0 %v2366
    %v3764 = vpop.f32.mrb[0].mxu0
    %v3765 = vadd.f32 0.0, %v3764
    %v3766 = vpop.f32.mrb[0].mxu0
    %v3767 = vadd.f32 0.0, %v3766
    %v3768 = vpop.f32.mrb[0].mxu0
    %v3769 = vadd.f32 0.0, %v3768
    %v3770 = vpop.f32.mrb[0].mxu0
    %v3771 = vadd.f32 0.0, %v3770
    %3772 = vmatprep.mubr.bf16.mxu0 0
    %3773 = vmatmul.mubr.bf16.gmra.mrb[0].mxu0 %v2367
    %v3774 = vpop.f32.mrb[0].mxu0
    %v3775 = vadd.f32 0.0, %v3774
    %v3776 = vpop.f32.mrb[0].mxu0
    %v3777 = vadd.f32 0.0, %v3776
    %v3778 = vpop.f32.mrb[0].mxu0
    %v3779 = vadd.f32 0.0, %v3778
    %v3780 = vpop.f32.mrb[0].mxu0
    %v3781 = vadd.f32 0.0, %v3780
    %3782 = vmatprep.mubr.bf16.mxu0 0
    %3783 = vmatmul.mubr.bf16.gmra.mrb[0].mxu0 %v2368
    %v3784 = vpop.f32.mrb[0].mxu0
    %v3785 = vadd.f32 0.0, %v3784
    %v3786 = vpop.f32.mrb[0].mxu0
    %v3787 = vadd.f32 0.0, %v3786
    %v3788 = vpop.f32.mrb[0].mxu0
    %v3789 = vadd.f32 0.0, %v3788
    %v3790 = vpop.f32.mrb[0].mxu0
    %v3791 = vadd.f32 0.0, %v3790
    %3792 = vmatprep.mubr.bf16.mxu0 0
    %3793 = vmatmul.mubr.bf16.gmra.mrb[0].mxu0 %v2369
    %v3794 = vpop.f32.mrb[0].mxu0
    %v3795 = vadd.f32 0.0, %v3794
    %v3796 = vpop.f32.mrb[0].mxu0
    %v3797 = vadd.f32 0.0, %v3796
    %v3798 = vpop.f32.mrb[0].mxu0
    %v3799 = vadd.f32 0.0, %v3798
    %v3800 = vpop.f32.mrb[0].mxu0
    %v3801 = vadd.f32 0.0, %v3800
    %3802 = vmatprep.mubr.bf16.mxu0 0
    %3803 = vmatmul.mubr.bf16.gmra.mrb[0].mxu0 %v2370
    %v3804 = vpop.f32.mrb[0].mxu0
    %v3805 = vadd.f32 0.0, %v3804
    %v3806 = vpop.f32.mrb[0].mxu0
    %v3807 = vadd.f32 0.0, %v3806
    %v3808 = vpop.f32.mrb[0].mxu0
    %v3809 = vadd.f32 0.0, %v3808
    %v3810 = vpop.f32.mrb[0].mxu0
    %v3811 = vadd.f32 0.0, %v3810
    %3812 = vmatprep.mubr.bf16.mxu0 0
    %3813 = vmatmul.mubr.bf16.gmra.mrb[0].mxu0 %v2371
    %v3814 = vpop.f32.mrb[0].mxu0
    %v3815 = vadd.f32 0.0, %v3814
    %v3816 = vpop.f32.mrb[0].mxu0
    %v3817 = vadd.f32 0.0, %v3816
    %v3818 = vpop.f32.mrb[0].mxu0
    %v3819 = vadd.f32 0.0, %v3818
    %v3820 = vpop.f32.mrb[0].mxu0
    %v3821 = vadd.f32 0.0, %v3820
    %3822 = vmatprep.mubr.bf16.mxu0 0
    %3823 = vmatmul.mubr.bf16.gmra.mrb[0].mxu0 %v2372
    %v3824 = vpop.f32.mrb[0].mxu0
    %v3825 = vadd.f32 0.0, %v3824
    %v3826 = vpop.f32.mrb[0].mxu0
    %v3827 = vadd.f32 0.0, %v3826
    %v3828 = vpop.f32.mrb[0].mxu0
    %v3829 = vadd.f32 0.0, %v3828
    %v3830 = vpop.f32.mrb[0].mxu0
    %v3831 = vadd.f32 0.0, %v3830
    %3832 = vmatprep.mubr.bf16.mxu0 0
    %3833 = vmatmul.mubr.bf16.gmra.mrb[0].mxu0 %v2373
    %v3834 = vpop.f32.mrb[0].mxu0
    %v3835 = vadd.f32 0.0, %v3834
    %v3836 = vpop.f32.mrb[0].mxu0
    %v3837 = vadd.f32 0.0, %v3836
    %v3838 = vpop.f32.mrb[0].mxu0
    %v3839 = vadd.f32 0.0, %v3838
    %v3840 = vpop.f32.mrb[0].mxu0
    %v3841 = vadd.f32 0.0, %v3840
    %3842 = vmatprep.mubr.bf16.mxu0 0
    %3843 = vmatmul.mubr.bf16.gmra.mrb[0].mxu0 %v2374
    %v3844 = vpop.f32.mrb[0].mxu0
    %v3845 = vadd.f32 0.0, %v3844
    %v3846 = vpop.f32.mrb[0].mxu0
    %v3847 = vadd.f32 0.0, %v3846
    %v3848 = vpop.f32.mrb[0].mxu0
    %v3849 = vadd.f32 0.0, %v3848
    %v3850 = vpop.f32.mrb[0].mxu0
    %v3851 = vadd.f32 0.0, %v3850
    %3852 = vmatprep.mubr.bf16.mxu0 0
    %3853 = vmatmul.mubr.bf16.gmra.mrb[0].mxu0 %v2375
    %v3854 = vpop.f32.mrb[0].mxu0
    %v3855 = vadd.f32 0.0, %v3854
    %v3856 = vpop.f32.mrb[0].mxu0
    %v3857 = vadd.f32 0.0, %v3856
    %v3858 = vpop.f32.mrb[0].mxu0
    %v3859 = vadd.f32 0.0, %v3858
    %v3860 = vpop.f32.mrb[0].mxu0
    %v3861 = vadd.f32 0.0, %v3860
    %3862 = vmatprep.mubr.bf16.mxu0 0
    %3863 = vmatmul.mubr.bf16.gmra.mrb[0].mxu0 %v2376
    %v3864 = vpop.f32.mrb[0].mxu0
    %v3865 = vadd.f32 0.0, %v3864
    %v3866 = vpop.f32.mrb[0].mxu0
    %v3867 = vadd.f32 0.0, %v3866
    %v3868 = vpop.f32.mrb[0].mxu0
    %v3869 = vadd.f32 0.0, %v3868
    %v3870 = vpop.f32.mrb[0].mxu0
    %v3871 = vadd.f32 0.0, %v3870
    %3872 = vmatprep.mubr.bf16.mxu0 0
    %3873 = vmatmul.mubr.bf16.gmra.mrb[0].mxu0 %v2377
    %v3874 = vpop.f32.mrb[0].mxu0
    %v3875 = vadd.f32 0.0, %v3874
    %v3876 = vpop.f32.mrb[0].mxu0
    %v3877 = vadd.f32 0.0, %v3876
    %v3878 = vpop.f32.mrb[0].mxu0
    %v3879 = vadd.f32 0.0, %v3878
    %v3880 = vpop.f32.mrb[0].mxu0
    %v3881 = vadd.f32 0.0, %v3880
    %3882 = vmatprep.mubr.bf16.mxu0 0
    %3883 = vmatmul.mubr.bf16.gmra.mrb[0].mxu0 %v2378
    %v3884 = vpop.f32.mrb[0].mxu0
    %v3885 = vadd.f32 0.0, %v3884
    %v3886 = vpop.f32.mrb[0].mxu0
    %v3887 = vadd.f32 0.0, %v3886
    %v3888 = vpop.f32.mrb[0].mxu0
    %v3889 = vadd.f32 0.0, %v3888
    %v3890 = vpop.f32.mrb[0].mxu0
    %v3891 = vadd.f32 0.0, %v3890
    %3892 = vmatprep.mubr.bf16.mxu0 0
    %3893 = vmatmul.mubr.bf16.gmra.mrb[0].mxu0 %v2379
    %v3894 = vpop.f32.mrb[0].mxu0
    %v3895 = vadd.f32 0.0, %v3894
    %v3896 = vpop.f32.mrb[0].mxu0
    %v3897 = vadd.f32 0.0, %v3896
    %v3898 = vpop.f32.mrb[0].mxu0
    %v3899 = vadd.f32 0.0, %v3898
    %v3900 = vpop.f32.mrb[0].mxu0
    %v3901 = vadd.f32 0.0, %v3900
    %3902 = vmatprep.mubr.bf16.mxu0 0
    %3903 = vmatmul.mubr.bf16.gmra.mrb[0].mxu0 %v2380
    %v3904 = vpop.f32.mrb[0].mxu0
    %v3905 = vadd.f32 0.0, %v3904
    %v3906 = vpop.f32.mrb[0].mxu0
    %v3907 = vadd.f32 0.0, %v3906
    %v3908 = vpop.f32.mrb[0].mxu0
    %v3909 = vadd.f32 0.0, %v3908
    %v3910 = vpop.f32.mrb[0].mxu0
    %v3911 = vadd.f32 0.0, %v3910
    %3912 = vmatprep.mubr.bf16.mxu0 0
    %3913 = vmatmul.mubr.bf16.gmra.mrb[0].mxu0 %v2381
    %v3914 = vpop.f32.mrb[0].mxu0
    %v3915 = vadd.f32 0.0, %v3914
    %v3916 = vpop.f32.mrb[0].mxu0
    %v3917 = vadd.f32 0.0, %v3916
    %v3918 = vpop.f32.mrb[0].mxu0
    %v3919 = vadd.f32 0.0, %v3918
    %v3920 = vpop.f32.mrb[0].mxu0
    %v3921 = vadd.f32 0.0, %v3920
    %3922 = vmatprep.mubr.bf16.mxu0 0
    %3923 = vmatmul.mubr.bf16.gmra.mrb[0].mxu0 %v2382
    %v3924 = vpop.f32.mrb[0].mxu0
    %v3925 = vadd.f32 0.0, %v3924
    %v3926 = vpop.f32.mrb[0].mxu0
    %v3927 = vadd.f32 0.0, %v3926
    %v3928 = vpop.f32.mrb[0].mxu0
    %v3929 = vadd.f32 0.0, %v3928
    %v3930 = vpop.f32.mrb[0].mxu0
    %v3931 = vadd.f32 0.0, %v3930
    %3932 = vmatprep.mubr.bf16.mxu0 0
    %3933 = vmatmul.mubr.bf16.gmra.mrb[0].mxu0 %v2383
    %v3934 = vpop.f32.mrb[0].mxu0
    %v3935 = vadd.f32 0.0, %v3934
    %v3936 = vpop.f32.mrb[0].mxu0
    %v3937 = vadd.f32 0.0, %v3936
    %v3938 = vpop.f32.mrb[0].mxu0
    %v3939 = vadd.f32 0.0, %v3938
    %v3940 = vpop.f32.mrb[0].mxu0
    %v3941 = vadd.f32 0.0, %v3940
    %3942 = vmatprep.mubr.bf16.mxu0 0
    %3943 = vmatmul.mubr.bf16.gmra.mrb[0].mxu0 %v2384
    %v3944 = vpop.f32.mrb[0].mxu0
    %v3945 = vadd.f32 0.0, %v3944
    %v3946 = vpop.f32.mrb[0].mxu0
    %v3947 = vadd.f32 0.0, %v3946
    %v3948 = vpop.f32.mrb[0].mxu0
    %v3949 = vadd.f32 0.0, %v3948
    %v3950 = vpop.f32.mrb[0].mxu0
    %v3951 = vadd.f32 0.0, %v3950
    %3952 = vmatprep.mubr.bf16.mxu0 0
    %3953 = vmatmul.mubr.bf16.gmra.mrb[0].mxu0 %v2385
    %v3954 = vpop.f32.mrb[0].mxu0
    %v3955 = vadd.f32 0.0, %v3954
    %v3956 = vpop.f32.mrb[0].mxu0
    %v3957 = vadd.f32 0.0, %v3956
    %v3958 = vpop.f32.mrb[0].mxu0
    %v3959 = vadd.f32 0.0, %v3958
    %v3960 = vpop.f32.mrb[0].mxu0
    %v3961 = vadd.f32 0.0, %v3960
    %3962 = vmatprep.mubr.bf16.mxu0 0
    %3963 = vmatmul.mubr.bf16.gmra.mrb[0].mxu0 %v2386
    %v3964 = vpop.f32.mrb[0].mxu0
    %v3965 = vadd.f32 0.0, %v3964
    %v3966 = vpop.f32.mrb[0].mxu0
    %v3967 = vadd.f32 0.0, %v3966
    %v3968 = vpop.f32.mrb[0].mxu0
    %v3969 = vadd.f32 0.0, %v3968
    %v3970 = vpop.f32.mrb[0].mxu0
    %v3971 = vadd.f32 0.0, %v3970
    %3972 = vmatprep.mubr.bf16.mxu0 0
    %3973 = vmatmul.mubr.bf16.gmra.mrb[0].mxu0 %v2387
    %v3974 = vpop.f32.mrb[0].mxu0
    %v3975 = vadd.f32 0.0, %v3974
    %v3976 = vpop.f32.mrb[0].mxu0
    %v3977 = vadd.f32 0.0, %v3976
    %v3978 = vpop.f32.mrb[0].mxu0
    %v3979 = vadd.f32 0.0, %v3978
    %v3980 = vpop.f32.mrb[0].mxu0
    %v3981 = vadd.f32 0.0, %v3980
    %3982 = vmatprep.mubr.bf16.mxu0 0
    %3983 = vmatmul.mubr.bf16.gmra.mrb[0].mxu0 %v2388
    %v3984 = vpop.f32.mrb[0].mxu0
    %v3985 = vadd.f32 0.0, %v3984
    %v3986 = vpop.f32.mrb[0].mxu0
    %v3987 = vadd.f32 0.0, %v3986
    %v3988 = vpop.f32.mrb[0].mxu0
    %v3989 = vadd.f32 0.0, %v3988
    %v3990 = vpop.f32.mrb[0].mxu0
    %v3991 = vadd.f32 0.0, %v3990
    %3992 = vmatprep.mubr.bf16.mxu0 0
    %3993 = vmatmul.mubr.bf16.gmra.mrb[0].mxu0 %v2389
    %v3994 = vpop.f32.mrb[0].mxu0
    %v3995 = vadd.f32 0.0, %v3994
    %v3996 = vpop.f32.mrb[0].mxu0
    %v3997 = vadd.f32 0.0, %v3996
    %v3998 = vpop.f32.mrb[0].mxu0
    %v3999 = vadd.f32 0.0, %v3998
    %v4000 = vpop.f32.mrb[0].mxu0
    %v4001 = vadd.f32 0.0, %v4000
    %4002 = vmatprep.mubr.bf16.mxu0 0
    %4003 = vmatmul.mubr.bf16.gmra.mrb[0].mxu0 %v2390
    %v4004 = vpop.f32.mrb[0].mxu0
    %v4005 = vadd.f32 0.0, %v4004
    %v4006 = vpop.f32.mrb[0].mxu0
    %v4007 = vadd.f32 0.0, %v4006
    %v4008 = vpop.f32.mrb[0].mxu0
    %v4009 = vadd.f32 0.0, %v4008
    %v4010 = vpop.f32.mrb[0].mxu0
    %v4011 = vadd.f32 0.0, %v4010
    %4012 = vmatprep.mubr.bf16.mxu0 0
    %4013 = vmatmul.mubr.bf16.gmra.mrb[0].mxu0 %v2391
    %v4014 = vpop.f32.mrb[0].mxu0
    %v4015 = vadd.f32 0.0, %v4014
    %v4016 = vpop.f32.mrb[0].mxu0
    %v4017 = vadd.f32 0.0, %v4016
    %v4018 = vpop.f32.mrb[0].mxu0
    %v4019 = vadd.f32 0.0, %v4018
    %v4020 = vpop.f32.mrb[0].mxu0
    %v4021 = vadd.f32 0.0, %v4020
    %4022 = vmatprep.mubr.bf16.mxu0 0
    %4023 = vmatmul.mubr.bf16.gmra.mrb[0].mxu0 %v2392
    %v4024 = vpop.f32.mrb[0].mxu0
    %v4025 = vadd.f32 0.0, %v4024
    %v4026 = vpop.f32.mrb[0].mxu0
    %v4027 = vadd.f32 0.0, %v4026
    %v4028 = vpop.f32.mrb[0].mxu0
    %v4029 = vadd.f32 0.0, %v4028
    %v4030 = vpop.f32.mrb[0].mxu0
    %v4031 = vadd.f32 0.0, %v4030
    %4032 = vmatprep.mubr.bf16.mxu0 0
    %4033 = vmatmul.mubr.bf16.gmra.mrb[0].mxu0 %v2393
    %v4034 = vpop.f32.mrb[0].mxu0
    %v4035 = vadd.f32 0.0, %v4034
    %v4036 = vpop.f32.mrb[0].mxu0
    %v4037 = vadd.f32 0.0, %v4036
    %v4038 = vpop.f32.mrb[0].mxu0
    %v4039 = vadd.f32 0.0, %v4038
    %v4040 = vpop.f32.mrb[0].mxu0
    %v4041 = vadd.f32 0.0, %v4040
    %4042 = vmatprep.mubr.bf16.mxu0 0
    %4043 = vmatmul.mubr.bf16.gmra.mrb[0].mxu0 %v2394
    %v4044 = vpop.f32.mrb[0].mxu0
    %v4045 = vadd.f32 0.0, %v4044
    %v4046 = vpop.f32.mrb[0].mxu0
    %v4047 = vadd.f32 0.0, %v4046
    %v4048 = vpop.f32.mrb[0].mxu0
    %v4049 = vadd.f32 0.0, %v4048
    %v4050 = vpop.f32.mrb[0].mxu0
    %v4051 = vadd.f32 0.0, %v4050
    %4052 = vmatprep.mubr.bf16.mxu0 0
    %4053 = vmatmul.mubr.bf16.gmra.mrb[0].mxu0 %v2395
    %v4054 = vpop.f32.mrb[0].mxu0
    %v4055 = vadd.f32 0.0, %v4054
    %v4056 = vpop.f32.mrb[0].mxu0
    %v4057 = vadd.f32 0.0, %v4056
    %v4058 = vpop.f32.mrb[0].mxu0
    %v4059 = vadd.f32 0.0, %v4058
    %v4060 = vpop.f32.mrb[0].mxu0
    %v4061 = vadd.f32 0.0, %v4060
    %4062 = vmatprep.mubr.bf16.mxu0 0
    %4063 = vmatmul.mubr.bf16.gmra.mrb[0].mxu0 %v2396
    %v4064 = vpop.f32.mrb[0].mxu0
    %v4065 = vadd.f32 0.0, %v4064
    %v4066 = vpop.f32.mrb[0].mxu0
    %v4067 = vadd.f32 0.0, %v4066
    %v4068 = vpop.f32.mrb[0].mxu0
    %v4069 = vadd.f32 0.0, %v4068
    %v4070 = vpop.f32.mrb[0].mxu0
    %v4071 = vadd.f32 0.0, %v4070
    %4072 = vmatprep.mubr.bf16.mxu0 0
    %4073 = vmatmul.mubr.bf16.gmra.mrb[0].mxu0 %v2397
    %v4074 = vpop.f32.mrb[0].mxu0
    %v4075 = vadd.f32 0.0, %v4074
    %v4076 = vpop.f32.mrb[0].mxu0
    %v4077 = vadd.f32 0.0, %v4076
    %v4078 = vpop.f32.mrb[0].mxu0
    %v4079 = vadd.f32 0.0, %v4078
    %v4080 = vpop.f32.mrb[0].mxu0
    %v4081 = vadd.f32 0.0, %v4080
    %4082 = vmatprep.mubr.bf16.mxu0 0
    %4083 = vmatmul.mubr.bf16.gmra.mrb[0].mxu0 %v2398
    %v4084 = vpop.f32.mrb[0].mxu0
    %v4085 = vadd.f32 0.0, %v4084
    %v4086 = vpop.f32.mrb[0].mxu0
    %v4087 = vadd.f32 0.0, %v4086
    %v4088 = vpop.f32.mrb[0].mxu0
    %v4089 = vadd.f32 0.0, %v4088
    %v4090 = vpop.f32.mrb[0].mxu0
    %v4091 = vadd.f32 0.0, %v4090
    %4092 = vmatprep.mubr.bf16.mxu0 0
    %4093 = vmatmul.mubr.bf16.gmra.mrb[0].mxu0 %v2399
    %v4094 = vpop.f32.mrb[0].mxu0
    %v4095 = vadd.f32 0.0, %v4094
    %v4096 = vpop.f32.mrb[0].mxu0
    %v4097 = vadd.f32 0.0, %v4096
    %v4098 = vpop.f32.mrb[0].mxu0
    %v4099 = vadd.f32 0.0, %v4098
    %v4100 = vpop.f32.mrb[0].mxu0
    %v4101 = vadd.f32 0.0, %v4100
    %4102 = vmatprep.mubr.bf16.mxu0 0
    %4103 = vmatmul.mubr.bf16.gmra.mrb[0].mxu0 %v2400
    %v4104 = vpop.f32.mrb[0].mxu0
    %v4105 = vadd.f32 0.0, %v4104
    %v4106 = vpop.f32.mrb[0].mxu0
    %v4107 = vadd.f32 0.0, %v4106
    %v4108 = vpop.f32.mrb[0].mxu0
    %v4109 = vadd.f32 0.0, %v4108
    %v4110 = vpop.f32.mrb[0].mxu0
    %v4111 = vadd.f32 0.0, %v4110
    %4112 = vmatprep.mubr.bf16.mxu0 0
    %4113 = vmatmul.mubr.bf16.gmra.mrb[0].mxu0 %v2401
    %v4114 = vpop.f32.mrb[0].mxu0
    %v4115 = vadd.f32 0.0, %v4114
    %v4116 = vpop.f32.mrb[0].mxu0
    %v4117 = vadd.f32 0.0, %v4116
    %v4118 = vpop.f32.mrb[0].mxu0
    %v4119 = vadd.f32 0.0, %v4118
    %v4120 = vpop.f32.mrb[0].mxu0
    %v4121 = vadd.f32 0.0, %v4120
    %4122 = vmatprep.mubr.bf16.mxu0 0
    %4123 = vmatmul.mubr.bf16.gmra.mrb[0].mxu0 %v2402
    %v4124 = vpop.f32.mrb[0].mxu0
    %v4125 = vadd.f32 0.0, %v4124
    %v4126 = vpop.f32.mrb[0].mxu0
    %v4127 = vadd.f32 0.0, %v4126
    %v4128 = vpop.f32.mrb[0].mxu0
    %v4129 = vadd.f32 0.0, %v4128
    %v4130 = vpop.f32.mrb[0].mxu0
    %v4131 = vadd.f32 0.0, %v4130
    %4132 = vdwg.mxu0
    %4133 = vmatprep.subr.bf16.mxu0 %v2664
    %4134 = vmatpush1.bf16.msra.mxu0 %v2663
    %4135 = vmatprep.subr.bf16.mxu0 %v2672
    %4136 = vmatpush1.bf16.msra.mxu0 %v2671
    %4137 = vmatprep.subr.bf16.mxu0 %v2680
    %4138 = vmatpush1.bf16.msra.mxu0 %v2679
    %4139 = vmatprep.subr.bf16.mxu0 %v2688
    %4140 = vmatpush1.bf16.msra.mxu0 %v2687
    %4141 = vmatprep.subr.bf16.mxu0 %v2696
    %4142 = vmatpush1.bf16.msra.mxu0 %v2695
    %4143 = vmatprep.subr.bf16.mxu0 %v2704
    %4144 = vmatpush1.bf16.msra.mxu0 %v2703
    %4145 = vmatprep.subr.bf16.mxu0 %v2712
    %4146 = vmatpush1.bf16.msra.mxu0 %v2711
    %4147 = vmatprep.subr.bf16.mxu0 %v2720
    %4148 = vmatpush1.bf16.msra.mxu0 %v2719
    %4149 = vmatprep.subr.bf16.mxu0 0
    %4150 = vmatpush1.bf16.msra.mxu0 0
    %4151 = vmatprep.subr.bf16.mxu0 0
    %4152 = vmatpush1.bf16.msra.mxu0 0
    %4153 = vmatprep.subr.bf16.mxu0 0
    %4154 = vmatpush1.bf16.msra.mxu0 0
    %4155 = vmatprep.subr.bf16.mxu0 0
    %4156 = vmatpush1.bf16.msra.mxu0 0
    %4157 = vmatprep.subr.bf16.mxu0 0
    %4158 = vmatpush1.bf16.msra.mxu0 0
    %4159 = vmatprep.subr.bf16.mxu0 0
    %4160 = vmatpush1.bf16.msra.mxu0 0
    %4161 = vmatprep.subr.bf16.mxu0 0
    %4162 = vmatpush1.bf16.msra.mxu0 0
    %4163 = vmatprep.subr.bf16.mxu0 0
    %4164 = vmatpush1.bf16.msra.mxu0 0
    %4165 = vmatprep.mubr.bf16.mxu0 0
    %4166 = vmatmul.mubr.bf16.gmra.mrb[0].mxu0 %v2339
    %v4167 = vpop.f32.mrb[0].mxu0
    %v4168 = vadd.f32 0.0, %v4167
    %v4169 = vpop.f32.mrb[0].mxu0
    %v4170 = vadd.f32 0.0, %v4169
    %v4171 = vpop.f32.mrb[0].mxu0
    %v4172 = vadd.f32 0.0, %v4171
    %v4173 = vpop.f32.mrb[0].mxu0
    %v4174 = vadd.f32 0.0, %v4173
    %4175 = vmatprep.mubr.bf16.mxu0 0
    %4176 = vmatmul.mubr.bf16.gmra.mrb[0].mxu0 %v2340
    %v4177 = vpop.f32.mrb[0].mxu0
    %v4178 = vadd.f32 0.0, %v4177
    %v4179 = vpop.f32.mrb[0].mxu0
    %v4180 = vadd.f32 0.0, %v4179
    %v4181 = vpop.f32.mrb[0].mxu0
    %v4182 = vadd.f32 0.0, %v4181
    %v4183 = vpop.f32.mrb[0].mxu0
    %v4184 = vadd.f32 0.0, %v4183
    %4185 = vmatprep.mubr.bf16.mxu0 0
    %4186 = vmatmul.mubr.bf16.gmra.mrb[0].mxu0 %v2341
    %v4187 = vpop.f32.mrb[0].mxu0
    %v4188 = vadd.f32 0.0, %v4187
    %v4189 = vpop.f32.mrb[0].mxu0
    %v4190 = vadd.f32 0.0, %v4189
    %v4191 = vpop.f32.mrb[0].mxu0
    %v4192 = vadd.f32 0.0, %v4191
    %v4193 = vpop.f32.mrb[0].mxu0
    %v4194 = vadd.f32 0.0, %v4193
    %4195 = vmatprep.mubr.bf16.mxu0 0
    %4196 = vmatmul.mubr.bf16.gmra.mrb[0].mxu0 %v2342
    %v4197 = vpop.f32.mrb[0].mxu0
    %v4198 = vadd.f32 0.0, %v4197
    %v4199 = vpop.f32.mrb[0].mxu0
    %v4200 = vadd.f32 0.0, %v4199
    %v4201 = vpop.f32.mrb[0].mxu0
    %v4202 = vadd.f32 0.0, %v4201
    %v4203 = vpop.f32.mrb[0].mxu0
    %v4204 = vadd.f32 0.0, %v4203
    %4205 = vmatprep.mubr.bf16.mxu0 0
    %4206 = vmatmul.mubr.bf16.gmra.mrb[0].mxu0 %v2343
    %v4207 = vpop.f32.mrb[0].mxu0
    %v4208 = vadd.f32 0.0, %v4207
    %v4209 = vpop.f32.mrb[0].mxu0
    %v4210 = vadd.f32 0.0, %v4209
    %v4211 = vpop.f32.mrb[0].mxu0
    %v4212 = vadd.f32 0.0, %v4211
    %v4213 = vpop.f32.mrb[0].mxu0
    %v4214 = vadd.f32 0.0, %v4213
    %4215 = vmatprep.mubr.bf16.mxu0 0
    %4216 = vmatmul.mubr.bf16.gmra.mrb[0].mxu0 %v2344
    %v4217 = vpop.f32.mrb[0].mxu0
    %v4218 = vadd.f32 0.0, %v4217
    %v4219 = vpop.f32.mrb[0].mxu0
    %v4220 = vadd.f32 0.0, %v4219
    %v4221 = vpop.f32.mrb[0].mxu0
    %v4222 = vadd.f32 0.0, %v4221
    %v4223 = vpop.f32.mrb[0].mxu0
    %v4224 = vadd.f32 0.0, %v4223
    %4225 = vmatprep.mubr.bf16.mxu0 0
    %4226 = vmatmul.mubr.bf16.gmra.mrb[0].mxu0 %v2345
    %v4227 = vpop.f32.mrb[0].mxu0
    %v4228 = vadd.f32 0.0, %v4227
    %v4229 = vpop.f32.mrb[0].mxu0
    %v4230 = vadd.f32 0.0, %v4229
    %v4231 = vpop.f32.mrb[0].mxu0
    %v4232 = vadd.f32 0.0, %v4231
    %v4233 = vpop.f32.mrb[0].mxu0
    %v4234 = vadd.f32 0.0, %v4233
    %4235 = vmatprep.mubr.bf16.mxu0 0
    %4236 = vmatmul.mubr.bf16.gmra.mrb[0].mxu0 %v2346
    %v4237 = vpop.f32.mrb[0].mxu0
    %v4238 = vadd.f32 0.0, %v4237
    %v4239 = vpop.f32.mrb[0].mxu0
    %v4240 = vadd.f32 0.0, %v4239
    %v4241 = vpop.f32.mrb[0].mxu0
    %v4242 = vadd.f32 0.0, %v4241
    %v4243 = vpop.f32.mrb[0].mxu0
    %v4244 = vadd.f32 0.0, %v4243
    %4245 = vmatprep.mubr.bf16.mxu0 0
    %4246 = vmatmul.mubr.bf16.gmra.mrb[0].mxu0 %v2347
    %v4247 = vpop.f32.mrb[0].mxu0
    %v4248 = vadd.f32 0.0, %v4247
    %v4249 = vpop.f32.mrb[0].mxu0
    %v4250 = vadd.f32 0.0, %v4249
    %v4251 = vpop.f32.mrb[0].mxu0
    %v4252 = vadd.f32 0.0, %v4251
    %v4253 = vpop.f32.mrb[0].mxu0
    %v4254 = vadd.f32 0.0, %v4253
    %4255 = vmatprep.mubr.bf16.mxu0 0
    %4256 = vmatmul.mubr.bf16.gmra.mrb[0].mxu0 %v2348
    %v4257 = vpop.f32.mrb[0].mxu0
    %v4258 = vadd.f32 0.0, %v4257
    %v4259 = vpop.f32.mrb[0].mxu0
    %v4260 = vadd.f32 0.0, %v4259
    %v4261 = vpop.f32.mrb[0].mxu0
    %v4262 = vadd.f32 0.0, %v4261
    %v4263 = vpop.f32.mrb[0].mxu0
    %v4264 = vadd.f32 0.0, %v4263
    %4265 = vmatprep.mubr.bf16.mxu0 0
    %4266 = vmatmul.mubr.bf16.gmra.mrb[0].mxu0 %v2349
    %v4267 = vpop.f32.mrb[0].mxu0
    %v4268 = vadd.f32 0.0, %v4267
    %v4269 = vpop.f32.mrb[0].mxu0
    %v4270 = vadd.f32 0.0, %v4269
    %v4271 = vpop.f32.mrb[0].mxu0
    %v4272 = vadd.f32 0.0, %v4271
    %v4273 = vpop.f32.mrb[0].mxu0
    %v4274 = vadd.f32 0.0, %v4273
    %4275 = vmatprep.mubr.bf16.mxu0 0
    %4276 = vmatmul.mubr.bf16.gmra.mrb[0].mxu0 %v2350
    %v4277 = vpop.f32.mrb[0].mxu0
    %v4278 = vadd.f32 0.0, %v4277
    %v4279 = vpop.f32.mrb[0].mxu0
    %v4280 = vadd.f32 0.0, %v4279
    %v4281 = vpop.f32.mrb[0].mxu0
    %v4282 = vadd.f32 0.0, %v4281
    %v4283 = vpop.f32.mrb[0].mxu0
    %v4284 = vadd.f32 0.0, %v4283
    %4285 = vmatprep.mubr.bf16.mxu0 0
    %4286 = vmatmul.mubr.bf16.gmra.mrb[0].mxu0 %v2351
    %v4287 = vpop.f32.mrb[0].mxu0
    %v4288 = vadd.f32 0.0, %v4287
    %v4289 = vpop.f32.mrb[0].mxu0
    %v4290 = vadd.f32 0.0, %v4289
    %v4291 = vpop.f32.mrb[0].mxu0
    %v4292 = vadd.f32 0.0, %v4291
    %v4293 = vpop.f32.mrb[0].mxu0
    %v4294 = vadd.f32 0.0, %v4293
    %4295 = vmatprep.mubr.bf16.mxu0 0
    %4296 = vmatmul.mubr.bf16.gmra.mrb[0].mxu0 %v2352
    %v4297 = vpop.f32.mrb[0].mxu0
    %v4298 = vadd.f32 0.0, %v4297
    %v4299 = vpop.f32.mrb[0].mxu0
    %v4300 = vadd.f32 0.0, %v4299
    %v4301 = vpop.f32.mrb[0].mxu0
    %v4302 = vadd.f32 0.0, %v4301
    %v4303 = vpop.f32.mrb[0].mxu0
    %v4304 = vadd.f32 0.0, %v4303
    %4305 = vmatprep.mubr.bf16.mxu0 0
    %4306 = vmatmul.mubr.bf16.gmra.mrb[0].mxu0 %v2353
    %v4307 = vpop.f32.mrb[0].mxu0
    %v4308 = vadd.f32 0.0, %v4307
    %v4309 = vpop.f32.mrb[0].mxu0
    %v4310 = vadd.f32 0.0, %v4309
    %v4311 = vpop.f32.mrb[0].mxu0
    %v4312 = vadd.f32 0.0, %v4311
    %v4313 = vpop.f32.mrb[0].mxu0
    %v4314 = vadd.f32 0.0, %v4313
    %4315 = vmatprep.mubr.bf16.mxu0 0
    %4316 = vmatmul.mubr.bf16.gmra.mrb[0].mxu0 %v2354
    %v4317 = vpop.f32.mrb[0].mxu0
    %v4318 = vadd.f32 0.0, %v4317
    %v4319 = vpop.f32.mrb[0].mxu0
    %v4320 = vadd.f32 0.0, %v4319
    %v4321 = vpop.f32.mrb[0].mxu0
    %v4322 = vadd.f32 0.0, %v4321
    %v4323 = vpop.f32.mrb[0].mxu0
    %v4324 = vadd.f32 0.0, %v4323
    %4325 = vmatprep.mubr.bf16.mxu0 0
    %4326 = vmatmul.mubr.bf16.gmra.mrb[0].mxu0 %v2355
    %v4327 = vpop.f32.mrb[0].mxu0
    %v4328 = vadd.f32 0.0, %v4327
    %v4329 = vpop.f32.mrb[0].mxu0
    %v4330 = vadd.f32 0.0, %v4329
    %v4331 = vpop.f32.mrb[0].mxu0
    %v4332 = vadd.f32 0.0, %v4331
    %v4333 = vpop.f32.mrb[0].mxu0
    %v4334 = vadd.f32 0.0, %v4333
    %4335 = vmatprep.mubr.bf16.mxu0 0
    %4336 = vmatmul.mubr.bf16.gmra.mrb[0].mxu0 %v2356
    %v4337 = vpop.f32.mrb[0].mxu0
    %v4338 = vadd.f32 0.0, %v4337
    %v4339 = vpop.f32.mrb[0].mxu0
    %v4340 = vadd.f32 0.0, %v4339
    %v4341 = vpop.f32.mrb[0].mxu0
    %v4342 = vadd.f32 0.0, %v4341
    %v4343 = vpop.f32.mrb[0].mxu0
    %v4344 = vadd.f32 0.0, %v4343
    %4345 = vmatprep.mubr.bf16.mxu0 0
    %4346 = vmatmul.mubr.bf16.gmra.mrb[0].mxu0 %v2357
    %v4347 = vpop.f32.mrb[0].mxu0
    %v4348 = vadd.f32 0.0, %v4347
    %v4349 = vpop.f32.mrb[0].mxu0
    %v4350 = vadd.f32 0.0, %v4349
    %v4351 = vpop.f32.mrb[0].mxu0
    %v4352 = vadd.f32 0.0, %v4351
    %v4353 = vpop.f32.mrb[0].mxu0
    %v4354 = vadd.f32 0.0, %v4353
    %4355 = vmatprep.mubr.bf16.mxu0 0
    %4356 = vmatmul.mubr.bf16.gmra.mrb[0].mxu0 %v2358
    %v4357 = vpop.f32.mrb[0].mxu0
    %v4358 = vadd.f32 0.0, %v4357
    %v4359 = vpop.f32.mrb[0].mxu0
    %v4360 = vadd.f32 0.0, %v4359
    %v4361 = vpop.f32.mrb[0].mxu0
    %v4362 = vadd.f32 0.0, %v4361
    %v4363 = vpop.f32.mrb[0].mxu0
    %v4364 = vadd.f32 0.0, %v4363
    %4365 = vmatprep.mubr.bf16.mxu0 0
    %4366 = vmatmul.mubr.bf16.gmra.mrb[0].mxu0 %v2359
    %v4367 = vpop.f32.mrb[0].mxu0
    %v4368 = vadd.f32 0.0, %v4367
    %v4369 = vpop.f32.mrb[0].mxu0
    %v4370 = vadd.f32 0.0, %v4369
    %v4371 = vpop.f32.mrb[0].mxu0
    %v4372 = vadd.f32 0.0, %v4371
    %v4373 = vpop.f32.mrb[0].mxu0
    %v4374 = vadd.f32 0.0, %v4373
    %4375 = vmatprep.mubr.bf16.mxu0 0
    %4376 = vmatmul.mubr.bf16.gmra.mrb[0].mxu0 %v2360
    %v4377 = vpop.f32.mrb[0].mxu0
    %v4378 = vadd.f32 0.0, %v4377
    %v4379 = vpop.f32.mrb[0].mxu0
    %v4380 = vadd.f32 0.0, %v4379
    %v4381 = vpop.f32.mrb[0].mxu0
    %v4382 = vadd.f32 0.0, %v4381
    %v4383 = vpop.f32.mrb[0].mxu0
    %v4384 = vadd.f32 0.0, %v4383
    %4385 = vmatprep.mubr.bf16.mxu0 0
    %4386 = vmatmul.mubr.bf16.gmra.mrb[0].mxu0 %v2361
    %v4387 = vpop.f32.mrb[0].mxu0
    %v4388 = vadd.f32 0.0, %v4387
    %v4389 = vpop.f32.mrb[0].mxu0
    %v4390 = vadd.f32 0.0, %v4389
    %v4391 = vpop.f32.mrb[0].mxu0
    %v4392 = vadd.f32 0.0, %v4391
    %v4393 = vpop.f32.mrb[0].mxu0
    %v4394 = vadd.f32 0.0, %v4393
    %4395 = vmatprep.mubr.bf16.mxu0 0
    %4396 = vmatmul.mubr.bf16.gmra.mrb[0].mxu0 %v2362
    %v4397 = vpop.f32.mrb[0].mxu0
    %v4398 = vadd.f32 0.0, %v4397
    %v4399 = vpop.f32.mrb[0].mxu0
    %v4400 = vadd.f32 0.0, %v4399
    %v4401 = vpop.f32.mrb[0].mxu0
    %v4402 = vadd.f32 0.0, %v4401
    %v4403 = vpop.f32.mrb[0].mxu0
    %v4404 = vadd.f32 0.0, %v4403
    %4405 = vmatprep.mubr.bf16.mxu0 0
    %4406 = vmatmul.mubr.bf16.gmra.mrb[0].mxu0 %v2363
    %v4407 = vpop.f32.mrb[0].mxu0
    %v4408 = vadd.f32 0.0, %v4407
    %v4409 = vpop.f32.mrb[0].mxu0
    %v4410 = vadd.f32 0.0, %v4409
    %v4411 = vpop.f32.mrb[0].mxu0
    %v4412 = vadd.f32 0.0, %v4411
    %v4413 = vpop.f32.mrb[0].mxu0
    %v4414 = vadd.f32 0.0, %v4413
    %4415 = vmatprep.mubr.bf16.mxu0 0
    %4416 = vmatmul.mubr.bf16.gmra.mrb[0].mxu0 %v2364
    %v4417 = vpop.f32.mrb[0].mxu0
    %v4418 = vadd.f32 0.0, %v4417
    %v4419 = vpop.f32.mrb[0].mxu0
    %v4420 = vadd.f32 0.0, %v4419
    %v4421 = vpop.f32.mrb[0].mxu0
    %v4422 = vadd.f32 0.0, %v4421
    %v4423 = vpop.f32.mrb[0].mxu0
    %v4424 = vadd.f32 0.0, %v4423
    %4425 = vmatprep.mubr.bf16.mxu0 0
    %4426 = vmatmul.mubr.bf16.gmra.mrb[0].mxu0 %v2365
    %v4427 = vpop.f32.mrb[0].mxu0
    %v4428 = vadd.f32 0.0, %v4427
    %v4429 = vpop.f32.mrb[0].mxu0
    %v4430 = vadd.f32 0.0, %v4429
    %v4431 = vpop.f32.mrb[0].mxu0
    %v4432 = vadd.f32 0.0, %v4431
    %v4433 = vpop.f32.mrb[0].mxu0
    %v4434 = vadd.f32 0.0, %v4433
    %4435 = vmatprep.mubr.bf16.mxu0 0
    %4436 = vmatmul.mubr.bf16.gmra.mrb[0].mxu0 %v2366
    %v4437 = vpop.f32.mrb[0].mxu0
    %v4438 = vadd.f32 0.0, %v4437
    %v4439 = vpop.f32.mrb[0].mxu0
    %v4440 = vadd.f32 0.0, %v4439
    %v4441 = vpop.f32.mrb[0].mxu0
    %v4442 = vadd.f32 0.0, %v4441
    %v4443 = vpop.f32.mrb[0].mxu0
    %v4444 = vadd.f32 0.0, %v4443
    %4445 = vmatprep.mubr.bf16.mxu0 0
    %4446 = vmatmul.mubr.bf16.gmra.mrb[0].mxu0 %v2367
    %v4447 = vpop.f32.mrb[0].mxu0
    %v4448 = vadd.f32 0.0, %v4447
    %v4449 = vpop.f32.mrb[0].mxu0
    %v4450 = vadd.f32 0.0, %v4449
    %v4451 = vpop.f32.mrb[0].mxu0
    %v4452 = vadd.f32 0.0, %v4451
    %v4453 = vpop.f32.mrb[0].mxu0
    %v4454 = vadd.f32 0.0, %v4453
    %4455 = vmatprep.mubr.bf16.mxu0 0
    %4456 = vmatmul.mubr.bf16.gmra.mrb[0].mxu0 %v2368
    %v4457 = vpop.f32.mrb[0].mxu0
    %v4458 = vadd.f32 0.0, %v4457
    %v4459 = vpop.f32.mrb[0].mxu0
    %v4460 = vadd.f32 0.0, %v4459
    %v4461 = vpop.f32.mrb[0].mxu0
    %v4462 = vadd.f32 0.0, %v4461
    %v4463 = vpop.f32.mrb[0].mxu0
    %v4464 = vadd.f32 0.0, %v4463
    %4465 = vmatprep.mubr.bf16.mxu0 0
    %4466 = vmatmul.mubr.bf16.gmra.mrb[0].mxu0 %v2369
    %v4467 = vpop.f32.mrb[0].mxu0
    %v4468 = vadd.f32 0.0, %v4467
    %v4469 = vpop.f32.mrb[0].mxu0
    %v4470 = vadd.f32 0.0, %v4469
    %v4471 = vpop.f32.mrb[0].mxu0
    %v4472 = vadd.f32 0.0, %v4471
    %v4473 = vpop.f32.mrb[0].mxu0
    %v4474 = vadd.f32 0.0, %v4473
    %4475 = vmatprep.mubr.bf16.mxu0 0
    %4476 = vmatmul.mubr.bf16.gmra.mrb[0].mxu0 %v2370
    %v4477 = vpop.f32.mrb[0].mxu0
    %v4478 = vadd.f32 0.0, %v4477
    %v4479 = vpop.f32.mrb[0].mxu0
    %v4480 = vadd.f32 0.0, %v4479
    %v4481 = vpop.f32.mrb[0].mxu0
    %v4482 = vadd.f32 0.0, %v4481
    %v4483 = vpop.f32.mrb[0].mxu0
    %v4484 = vadd.f32 0.0, %v4483
    %4485 = vmatprep.mubr.bf16.mxu0 0
    %4486 = vmatmul.mubr.bf16.gmra.mrb[0].mxu0 %v2371
    %v4487 = vpop.f32.mrb[0].mxu0
    %v4488 = vadd.f32 0.0, %v4487
    %v4489 = vpop.f32.mrb[0].mxu0
    %v4490 = vadd.f32 0.0, %v4489
    %v4491 = vpop.f32.mrb[0].mxu0
    %v4492 = vadd.f32 0.0, %v4491
    %v4493 = vpop.f32.mrb[0].mxu0
    %v4494 = vadd.f32 0.0, %v4493
    %4495 = vmatprep.mubr.bf16.mxu0 0
    %4496 = vmatmul.mubr.bf16.gmra.mrb[0].mxu0 %v2372
    %v4497 = vpop.f32.mrb[0].mxu0
    %v4498 = vadd.f32 0.0, %v4497
    %v4499 = vpop.f32.mrb[0].mxu0
    %v4500 = vadd.f32 0.0, %v4499
    %v4501 = vpop.f32.mrb[0].mxu0
    %v4502 = vadd.f32 0.0, %v4501
    %v4503 = vpop.f32.mrb[0].mxu0
    %v4504 = vadd.f32 0.0, %v4503
    %4505 = vmatprep.mubr.bf16.mxu0 0
    %4506 = vmatmul.mubr.bf16.gmra.mrb[0].mxu0 %v2373
    %v4507 = vpop.f32.mrb[0].mxu0
    %v4508 = vadd.f32 0.0, %v4507
    %v4509 = vpop.f32.mrb[0].mxu0
    %v4510 = vadd.f32 0.0, %v4509
    %v4511 = vpop.f32.mrb[0].mxu0
    %v4512 = vadd.f32 0.0, %v4511
    %v4513 = vpop.f32.mrb[0].mxu0
    %v4514 = vadd.f32 0.0, %v4513
    %4515 = vmatprep.mubr.bf16.mxu0 0
    %4516 = vmatmul.mubr.bf16.gmra.mrb[0].mxu0 %v2374
    %v4517 = vpop.f32.mrb[0].mxu0
    %v4518 = vadd.f32 0.0, %v4517
    %v4519 = vpop.f32.mrb[0].mxu0
    %v4520 = vadd.f32 0.0, %v4519
    %v4521 = vpop.f32.mrb[0].mxu0
    %v4522 = vadd.f32 0.0, %v4521
    %v4523 = vpop.f32.mrb[0].mxu0
    %v4524 = vadd.f32 0.0, %v4523
    %4525 = vmatprep.mubr.bf16.mxu0 0
    %4526 = vmatmul.mubr.bf16.gmra.mrb[0].mxu0 %v2375
    %v4527 = vpop.f32.mrb[0].mxu0
    %v4528 = vadd.f32 0.0, %v4527
    %v4529 = vpop.f32.mrb[0].mxu0
    %v4530 = vadd.f32 0.0, %v4529
    %v4531 = vpop.f32.mrb[0].mxu0
    %v4532 = vadd.f32 0.0, %v4531
    %v4533 = vpop.f32.mrb[0].mxu0
    %v4534 = vadd.f32 0.0, %v4533
    %4535 = vmatprep.mubr.bf16.mxu0 0
    %4536 = vmatmul.mubr.bf16.gmra.mrb[0].mxu0 %v2376
    %v4537 = vpop.f32.mrb[0].mxu0
    %v4538 = vadd.f32 0.0, %v4537
    %v4539 = vpop.f32.mrb[0].mxu0
    %v4540 = vadd.f32 0.0, %v4539
    %v4541 = vpop.f32.mrb[0].mxu0
    %v4542 = vadd.f32 0.0, %v4541
    %v4543 = vpop.f32.mrb[0].mxu0
    %v4544 = vadd.f32 0.0, %v4543
    %4545 = vmatprep.mubr.bf16.mxu0 0
    %4546 = vmatmul.mubr.bf16.gmra.mrb[0].mxu0 %v2377
    %v4547 = vpop.f32.mrb[0].mxu0
    %v4548 = vadd.f32 0.0, %v4547
    %v4549 = vpop.f32.mrb[0].mxu0
    %v4550 = vadd.f32 0.0, %v4549
    %v4551 = vpop.f32.mrb[0].mxu0
    %v4552 = vadd.f32 0.0, %v4551
    %v4553 = vpop.f32.mrb[0].mxu0
    %v4554 = vadd.f32 0.0, %v4553
    %4555 = vmatprep.mubr.bf16.mxu0 0
    %4556 = vmatmul.mubr.bf16.gmra.mrb[0].mxu0 %v2378
    %v4557 = vpop.f32.mrb[0].mxu0
    %v4558 = vadd.f32 0.0, %v4557
    %v4559 = vpop.f32.mrb[0].mxu0
    %v4560 = vadd.f32 0.0, %v4559
    %v4561 = vpop.f32.mrb[0].mxu0
    %v4562 = vadd.f32 0.0, %v4561
    %v4563 = vpop.f32.mrb[0].mxu0
    %v4564 = vadd.f32 0.0, %v4563
    %4565 = vmatprep.mubr.bf16.mxu0 0
    %4566 = vmatmul.mubr.bf16.gmra.mrb[0].mxu0 %v2379
    %v4567 = vpop.f32.mrb[0].mxu0
    %v4568 = vadd.f32 0.0, %v4567
    %v4569 = vpop.f32.mrb[0].mxu0
    %v4570 = vadd.f32 0.0, %v4569
    %v4571 = vpop.f32.mrb[0].mxu0
    %v4572 = vadd.f32 0.0, %v4571
    %v4573 = vpop.f32.mrb[0].mxu0
    %v4574 = vadd.f32 0.0, %v4573
    %4575 = vmatprep.mubr.bf16.mxu0 0
    %4576 = vmatmul.mubr.bf16.gmra.mrb[0].mxu0 %v2380
    %v4577 = vpop.f32.mrb[0].mxu0
    %v4578 = vadd.f32 0.0, %v4577
    %v4579 = vpop.f32.mrb[0].mxu0
    %v4580 = vadd.f32 0.0, %v4579
    %v4581 = vpop.f32.mrb[0].mxu0
    %v4582 = vadd.f32 0.0, %v4581
    %v4583 = vpop.f32.mrb[0].mxu0
    %v4584 = vadd.f32 0.0, %v4583
    %4585 = vmatprep.mubr.bf16.mxu0 0
    %4586 = vmatmul.mubr.bf16.gmra.mrb[0].mxu0 %v2381
    %v4587 = vpop.f32.mrb[0].mxu0
    %v4588 = vadd.f32 0.0, %v4587
    %v4589 = vpop.f32.mrb[0].mxu0
    %v4590 = vadd.f32 0.0, %v4589
    %v4591 = vpop.f32.mrb[0].mxu0
    %v4592 = vadd.f32 0.0, %v4591
    %v4593 = vpop.f32.mrb[0].mxu0
    %v4594 = vadd.f32 0.0, %v4593
    %4595 = vmatprep.mubr.bf16.mxu0 0
    %4596 = vmatmul.mubr.bf16.gmra.mrb[0].mxu0 %v2382
    %v4597 = vpop.f32.mrb[0].mxu0
    %v4598 = vadd.f32 0.0, %v4597
    %v4599 = vpop.f32.mrb[0].mxu0
    %v4600 = vadd.f32 0.0, %v4599
    %v4601 = vpop.f32.mrb[0].mxu0
    %v4602 = vadd.f32 0.0, %v4601
    %v4603 = vpop.f32.mrb[0].mxu0
    %v4604 = vadd.f32 0.0, %v4603
    %4605 = vmatprep.mubr.bf16.mxu0 0
    %4606 = vmatmul.mubr.bf16.gmra.mrb[0].mxu0 %v2383
    %v4607 = vpop.f32.mrb[0].mxu0
    %v4608 = vadd.f32 0.0, %v4607
    %v4609 = vpop.f32.mrb[0].mxu0
    %v4610 = vadd.f32 0.0, %v4609
    %v4611 = vpop.f32.mrb[0].mxu0
    %v4612 = vadd.f32 0.0, %v4611
    %v4613 = vpop.f32.mrb[0].mxu0
    %v4614 = vadd.f32 0.0, %v4613
    %4615 = vmatprep.mubr.bf16.mxu0 0
    %4616 = vmatmul.mubr.bf16.gmra.mrb[0].mxu0 %v2384
    %v4617 = vpop.f32.mrb[0].mxu0
    %v4618 = vadd.f32 0.0, %v4617
    %v4619 = vpop.f32.mrb[0].mxu0
    %v4620 = vadd.f32 0.0, %v4619
    %v4621 = vpop.f32.mrb[0].mxu0
    %v4622 = vadd.f32 0.0, %v4621
    %v4623 = vpop.f32.mrb[0].mxu0
    %v4624 = vadd.f32 0.0, %v4623
    %4625 = vmatprep.mubr.bf16.mxu0 0
    %4626 = vmatmul.mubr.bf16.gmra.mrb[0].mxu0 %v2385
    %v4627 = vpop.f32.mrb[0].mxu0
    %v4628 = vadd.f32 0.0, %v4627
    %v4629 = vpop.f32.mrb[0].mxu0
    %v4630 = vadd.f32 0.0, %v4629
    %v4631 = vpop.f32.mrb[0].mxu0
    %v4632 = vadd.f32 0.0, %v4631
    %v4633 = vpop.f32.mrb[0].mxu0
    %v4634 = vadd.f32 0.0, %v4633
    %4635 = vmatprep.mubr.bf16.mxu0 0
    %4636 = vmatmul.mubr.bf16.gmra.mrb[0].mxu0 %v2386
    %v4637 = vpop.f32.mrb[0].mxu0
    %v4638 = vadd.f32 0.0, %v4637
    %v4639 = vpop.f32.mrb[0].mxu0
    %v4640 = vadd.f32 0.0, %v4639
    %v4641 = vpop.f32.mrb[0].mxu0
    %v4642 = vadd.f32 0.0, %v4641
    %v4643 = vpop.f32.mrb[0].mxu0
    %v4644 = vadd.f32 0.0, %v4643
    %4645 = vmatprep.mubr.bf16.mxu0 0
    %4646 = vmatmul.mubr.bf16.gmra.mrb[0].mxu0 %v2387
    %v4647 = vpop.f32.mrb[0].mxu0
    %v4648 = vadd.f32 0.0, %v4647
    %v4649 = vpop.f32.mrb[0].mxu0
    %v4650 = vadd.f32 0.0, %v4649
    %v4651 = vpop.f32.mrb[0].mxu0
    %v4652 = vadd.f32 0.0, %v4651
    %v4653 = vpop.f32.mrb[0].mxu0
    %v4654 = vadd.f32 0.0, %v4653
    %4655 = vmatprep.mubr.bf16.mxu0 0
    %4656 = vmatmul.mubr.bf16.gmra.mrb[0].mxu0 %v2388
    %v4657 = vpop.f32.mrb[0].mxu0
    %v4658 = vadd.f32 0.0, %v4657
    %v4659 = vpop.f32.mrb[0].mxu0
    %v4660 = vadd.f32 0.0, %v4659
    %v4661 = vpop.f32.mrb[0].mxu0
    %v4662 = vadd.f32 0.0, %v4661
    %v4663 = vpop.f32.mrb[0].mxu0
    %v4664 = vadd.f32 0.0, %v4663
    %4665 = vmatprep.mubr.bf16.mxu0 0
    %4666 = vmatmul.mubr.bf16.gmra.mrb[0].mxu0 %v2389
    %v4667 = vpop.f32.mrb[0].mxu0
    %v4668 = vadd.f32 0.0, %v4667
    %v4669 = vpop.f32.mrb[0].mxu0
    %v4670 = vadd.f32 0.0, %v4669
    %v4671 = vpop.f32.mrb[0].mxu0
    %v4672 = vadd.f32 0.0, %v4671
    %v4673 = vpop.f32.mrb[0].mxu0
    %v4674 = vadd.f32 0.0, %v4673
    %4675 = vmatprep.mubr.bf16.mxu0 0
    %4676 = vmatmul.mubr.bf16.gmra.mrb[0].mxu0 %v2390
    %v4677 = vpop.f32.mrb[0].mxu0
    %v4678 = vadd.f32 0.0, %v4677
    %v4679 = vpop.f32.mrb[0].mxu0
    %v4680 = vadd.f32 0.0, %v4679
    %v4681 = vpop.f32.mrb[0].mxu0
    %v4682 = vadd.f32 0.0, %v4681
    %v4683 = vpop.f32.mrb[0].mxu0
    %v4684 = vadd.f32 0.0, %v4683
    %4685 = vmatprep.mubr.bf16.mxu0 0
    %4686 = vmatmul.mubr.bf16.gmra.mrb[0].mxu0 %v2391
    %v4687 = vpop.f32.mrb[0].mxu0
    %v4688 = vadd.f32 0.0, %v4687
    %v4689 = vpop.f32.mrb[0].mxu0
    %v4690 = vadd.f32 0.0, %v4689
    %v4691 = vpop.f32.mrb[0].mxu0
    %v4692 = vadd.f32 0.0, %v4691
    %v4693 = vpop.f32.mrb[0].mxu0
    %v4694 = vadd.f32 0.0, %v4693
    %4695 = vmatprep.mubr.bf16.mxu0 0
    %4696 = vmatmul.mubr.bf16.gmra.mrb[0].mxu0 %v2392
    %v4697 = vpop.f32.mrb[0].mxu0
    %v4698 = vadd.f32 0.0, %v4697
    %v4699 = vpop.f32.mrb[0].mxu0
    %v4700 = vadd.f32 0.0, %v4699
    %v4701 = vpop.f32.mrb[0].mxu0
    %v4702 = vadd.f32 0.0, %v4701
    %v4703 = vpop.f32.mrb[0].mxu0
    %v4704 = vadd.f32 0.0, %v4703
    %4705 = vmatprep.mubr.bf16.mxu0 0
    %4706 = vmatmul.mubr.bf16.gmra.mrb[0].mxu0 %v2393
    %v4707 = vpop.f32.mrb[0].mxu0
    %v4708 = vadd.f32 0.0, %v4707
    %v4709 = vpop.f32.mrb[0].mxu0
    %v4710 = vadd.f32 0.0, %v4709
    %v4711 = vpop.f32.mrb[0].mxu0
    %v4712 = vadd.f32 0.0, %v4711
    %v4713 = vpop.f32.mrb[0].mxu0
    %v4714 = vadd.f32 0.0, %v4713
    %4715 = vmatprep.mubr.bf16.mxu0 0
    %4716 = vmatmul.mubr.bf16.gmra.mrb[0].mxu0 %v2394
    %v4717 = vpop.f32.mrb[0].mxu0
    %v4718 = vadd.f32 0.0, %v4717
    %v4719 = vpop.f32.mrb[0].mxu0
    %v4720 = vadd.f32 0.0, %v4719
    %v4721 = vpop.f32.mrb[0].mxu0
    %v4722 = vadd.f32 0.0, %v4721
    %v4723 = vpop.f32.mrb[0].mxu0
    %v4724 = vadd.f32 0.0, %v4723
    %4725 = vmatprep.mubr.bf16.mxu0 0
    %4726 = vmatmul.mubr.bf16.gmra.mrb[0].mxu0 %v2395
    %v4727 = vpop.f32.mrb[0].mxu0
    %v4728 = vadd.f32 0.0, %v4727
    %v4729 = vpop.f32.mrb[0].mxu0
    %v4730 = vadd.f32 0.0, %v4729
    %v4731 = vpop.f32.mrb[0].mxu0
    %v4732 = vadd.f32 0.0, %v4731
    %v4733 = vpop.f32.mrb[0].mxu0
    %v4734 = vadd.f32 0.0, %v4733
    %4735 = vmatprep.mubr.bf16.mxu0 0
    %4736 = vmatmul.mubr.bf16.gmra.mrb[0].mxu0 %v2396
    %v4737 = vpop.f32.mrb[0].mxu0
    %v4738 = vadd.f32 0.0, %v4737
    %v4739 = vpop.f32.mrb[0].mxu0
    %v4740 = vadd.f32 0.0, %v4739
    %v4741 = vpop.f32.mrb[0].mxu0
    %v4742 = vadd.f32 0.0, %v4741
    %v4743 = vpop.f32.mrb[0].mxu0
    %v4744 = vadd.f32 0.0, %v4743
    %4745 = vmatprep.mubr.bf16.mxu0 0
    %4746 = vmatmul.mubr.bf16.gmra.mrb[0].mxu0 %v2397
    %v4747 = vpop.f32.mrb[0].mxu0
    %v4748 = vadd.f32 0.0, %v4747
    %v4749 = vpop.f32.mrb[0].mxu0
    %v4750 = vadd.f32 0.0, %v4749
    %v4751 = vpop.f32.mrb[0].mxu0
    %v4752 = vadd.f32 0.0, %v4751
    %v4753 = vpop.f32.mrb[0].mxu0
    %v4754 = vadd.f32 0.0, %v4753
    %4755 = vmatprep.mubr.bf16.mxu0 0
    %4756 = vmatmul.mubr.bf16.gmra.mrb[0].mxu0 %v2398
    %v4757 = vpop.f32.mrb[0].mxu0
    %v4758 = vadd.f32 0.0, %v4757
    %v4759 = vpop.f32.mrb[0].mxu0
    %v4760 = vadd.f32 0.0, %v4759
    %v4761 = vpop.f32.mrb[0].mxu0
    %v4762 = vadd.f32 0.0, %v4761
    %v4763 = vpop.f32.mrb[0].mxu0
    %v4764 = vadd.f32 0.0, %v4763
    %4765 = vmatprep.mubr.bf16.mxu0 0
    %4766 = vmatmul.mubr.bf16.gmra.mrb[0].mxu0 %v2399
    %v4767 = vpop.f32.mrb[0].mxu0
    %v4768 = vadd.f32 0.0, %v4767
    %v4769 = vpop.f32.mrb[0].mxu0
    %v4770 = vadd.f32 0.0, %v4769
    %v4771 = vpop.f32.mrb[0].mxu0
    %v4772 = vadd.f32 0.0, %v4771
    %v4773 = vpop.f32.mrb[0].mxu0
    %v4774 = vadd.f32 0.0, %v4773
    %4775 = vmatprep.mubr.bf16.mxu0 0
    %4776 = vmatmul.mubr.bf16.gmra.mrb[0].mxu0 %v2400
    %v4777 = vpop.f32.mrb[0].mxu0
    %v4778 = vadd.f32 0.0, %v4777
    %v4779 = vpop.f32.mrb[0].mxu0
    %v4780 = vadd.f32 0.0, %v4779
    %v4781 = vpop.f32.mrb[0].mxu0
    %v4782 = vadd.f32 0.0, %v4781
    %v4783 = vpop.f32.mrb[0].mxu0
    %v4784 = vadd.f32 0.0, %v4783
    %4785 = vmatprep.mubr.bf16.mxu0 0
    %4786 = vmatmul.mubr.bf16.gmra.mrb[0].mxu0 %v2401
    %v4787 = vpop.f32.mrb[0].mxu0
    %v4788 = vadd.f32 0.0, %v4787
    %v4789 = vpop.f32.mrb[0].mxu0
    %v4790 = vadd.f32 0.0, %v4789
    %v4791 = vpop.f32.mrb[0].mxu0
    %v4792 = vadd.f32 0.0, %v4791
    %v4793 = vpop.f32.mrb[0].mxu0
    %v4794 = vadd.f32 0.0, %v4793
    %4795 = vmatprep.mubr.bf16.mxu0 0
    %4796 = vmatmul.mubr.bf16.gmra.mrb[0].mxu0 %v2402
    %v4797 = vpop.f32.mrb[0].mxu0
    %v4798 = vadd.f32 0.0, %v4797
    %v4799 = vpop.f32.mrb[0].mxu0
    %v4800 = vadd.f32 0.0, %v4799
    %v4801 = vpop.f32.mrb[0].mxu0
    %v4802 = vadd.f32 0.0, %v4801
    %v4803 = vpop.f32.mrb[0].mxu0
    %v4804 = vadd.f32 0.0, %v4803
    %4805 = vdwg.mxu0
    %4806 = vmatprep.subr.bf16.mxu0 %v2666
    %4807 = vmatpush1.bf16.msra.mxu0 %v2665
    %4808 = vmatprep.subr.bf16.mxu0 %v2674
    %4809 = vmatpush1.bf16.msra.mxu0 %v2673
    %4810 = vmatprep.subr.bf16.mxu0 %v2682
    %4811 = vmatpush1.bf16.msra.mxu0 %v2681
    %4812 = vmatprep.subr.bf16.mxu0 %v2690
    %4813 = vmatpush1.bf16.msra.mxu0 %v2689
    %4814 = vmatprep.subr.bf16.mxu0 %v2698
    %4815 = vmatpush1.bf16.msra.mxu0 %v2697
    %4816 = vmatprep.subr.bf16.mxu0 %v2706
    %4817 = vmatpush1.bf16.msra.mxu0 %v2705
    %4818 = vmatprep.subr.bf16.mxu0 %v2714
    %4819 = vmatpush1.bf16.msra.mxu0 %v2713
    %4820 = vmatprep.subr.bf16.mxu0 %v2722
    %4821 = vmatpush1.bf16.msra.mxu0 %v2721
    %4822 = vmatprep.subr.bf16.mxu0 0
    %4823 = vmatpush1.bf16.msra.mxu0 0
    %4824 = vmatprep.subr.bf16.mxu0 0
    %4825 = vmatpush1.bf16.msra.mxu0 0
    %4826 = vmatprep.subr.bf16.mxu0 0
    %4827 = vmatpush1.bf16.msra.mxu0 0
    %4828 = vmatprep.subr.bf16.mxu0 0
    %4829 = vmatpush1.bf16.msra.mxu0 0
    %4830 = vmatprep.subr.bf16.mxu0 0
    %4831 = vmatpush1.bf16.msra.mxu0 0
    %4832 = vmatprep.subr.bf16.mxu0 0
    %4833 = vmatpush1.bf16.msra.mxu0 0
    %4834 = vmatprep.subr.bf16.mxu0 0
    %4835 = vmatpush1.bf16.msra.mxu0 0
    %4836 = vmatprep.subr.bf16.mxu0 0
    %4837 = vmatpush1.bf16.msra.mxu0 0
    %4838 = vmatprep.mubr.bf16.mxu0 0
    %4839 = vmatmul.mubr.bf16.gmra.mrb[0].mxu0 %v2339
    %v4840 = vpop.f32.mrb[0].mxu0
    %v4841 = vadd.f32 0.0, %v4840
    %v4842 = vpop.f32.mrb[0].mxu0
    %v4843 = vadd.f32 0.0, %v4842
    %v4844 = vpop.f32.mrb[0].mxu0
    %v4845 = vadd.f32 0.0, %v4844
    %v4846 = vpop.f32.mrb[0].mxu0
    %v4847 = vadd.f32 0.0, %v4846
    %4848 = vmatprep.mubr.bf16.mxu0 0
    %4849 = vmatmul.mubr.bf16.gmra.mrb[0].mxu0 %v2340
    %v4850 = vpop.f32.mrb[0].mxu0
    %v4851 = vadd.f32 0.0, %v4850
    %v4852 = vpop.f32.mrb[0].mxu0
    %v4853 = vadd.f32 0.0, %v4852
    %v4854 = vpop.f32.mrb[0].mxu0
    %v4855 = vadd.f32 0.0, %v4854
    %v4856 = vpop.f32.mrb[0].mxu0
    %v4857 = vadd.f32 0.0, %v4856
    %4858 = vmatprep.mubr.bf16.mxu0 0
    %4859 = vmatmul.mubr.bf16.gmra.mrb[0].mxu0 %v2341
    %v4860 = vpop.f32.mrb[0].mxu0
    %v4861 = vadd.f32 0.0, %v4860
    %v4862 = vpop.f32.mrb[0].mxu0
    %v4863 = vadd.f32 0.0, %v4862
    %v4864 = vpop.f32.mrb[0].mxu0
    %v4865 = vadd.f32 0.0, %v4864
    %v4866 = vpop.f32.mrb[0].mxu0
    %v4867 = vadd.f32 0.0, %v4866
    %4868 = vmatprep.mubr.bf16.mxu0 0
    %4869 = vmatmul.mubr.bf16.gmra.mrb[0].mxu0 %v2342
    %v4870 = vpop.f32.mrb[0].mxu0
    %v4871 = vadd.f32 0.0, %v4870
    %v4872 = vpop.f32.mrb[0].mxu0
    %v4873 = vadd.f32 0.0, %v4872
    %v4874 = vpop.f32.mrb[0].mxu0
    %v4875 = vadd.f32 0.0, %v4874
    %v4876 = vpop.f32.mrb[0].mxu0
    %v4877 = vadd.f32 0.0, %v4876
    %4878 = vmatprep.mubr.bf16.mxu0 0
    %4879 = vmatmul.mubr.bf16.gmra.mrb[0].mxu0 %v2343
    %v4880 = vpop.f32.mrb[0].mxu0
    %v4881 = vadd.f32 0.0, %v4880
    %v4882 = vpop.f32.mrb[0].mxu0
    %v4883 = vadd.f32 0.0, %v4882
    %v4884 = vpop.f32.mrb[0].mxu0
    %v4885 = vadd.f32 0.0, %v4884
    %v4886 = vpop.f32.mrb[0].mxu0
    %v4887 = vadd.f32 0.0, %v4886
    %4888 = vmatprep.mubr.bf16.mxu0 0
    %4889 = vmatmul.mubr.bf16.gmra.mrb[0].mxu0 %v2344
    %v4890 = vpop.f32.mrb[0].mxu0
    %v4891 = vadd.f32 0.0, %v4890
    %v4892 = vpop.f32.mrb[0].mxu0
    %v4893 = vadd.f32 0.0, %v4892
    %v4894 = vpop.f32.mrb[0].mxu0
    %v4895 = vadd.f32 0.0, %v4894
    %v4896 = vpop.f32.mrb[0].mxu0
    %v4897 = vadd.f32 0.0, %v4896
    %4898 = vmatprep.mubr.bf16.mxu0 0
    %4899 = vmatmul.mubr.bf16.gmra.mrb[0].mxu0 %v2345
    %v4900 = vpop.f32.mrb[0].mxu0
    %v4901 = vadd.f32 0.0, %v4900
    %v4902 = vpop.f32.mrb[0].mxu0
    %v4903 = vadd.f32 0.0, %v4902
    %v4904 = vpop.f32.mrb[0].mxu0
    %v4905 = vadd.f32 0.0, %v4904
    %v4906 = vpop.f32.mrb[0].mxu0
    %v4907 = vadd.f32 0.0, %v4906
    %4908 = vmatprep.mubr.bf16.mxu0 0
    %4909 = vmatmul.mubr.bf16.gmra.mrb[0].mxu0 %v2346
    %v4910 = vpop.f32.mrb[0].mxu0
    %v4911 = vadd.f32 0.0, %v4910
    %v4912 = vpop.f32.mrb[0].mxu0
    %v4913 = vadd.f32 0.0, %v4912
    %v4914 = vpop.f32.mrb[0].mxu0
    %v4915 = vadd.f32 0.0, %v4914
    %v4916 = vpop.f32.mrb[0].mxu0
    %v4917 = vadd.f32 0.0, %v4916
    %4918 = vmatprep.mubr.bf16.mxu0 0
    %4919 = vmatmul.mubr.bf16.gmra.mrb[0].mxu0 %v2347
    %v4920 = vpop.f32.mrb[0].mxu0
    %v4921 = vadd.f32 0.0, %v4920
    %v4922 = vpop.f32.mrb[0].mxu0
    %v4923 = vadd.f32 0.0, %v4922
    %v4924 = vpop.f32.mrb[0].mxu0
    %v4925 = vadd.f32 0.0, %v4924
    %v4926 = vpop.f32.mrb[0].mxu0
    %v4927 = vadd.f32 0.0, %v4926
    %4928 = vmatprep.mubr.bf16.mxu0 0
    %4929 = vmatmul.mubr.bf16.gmra.mrb[0].mxu0 %v2348
    %v4930 = vpop.f32.mrb[0].mxu0
    %v4931 = vadd.f32 0.0, %v4930
    %v4932 = vpop.f32.mrb[0].mxu0
    %v4933 = vadd.f32 0.0, %v4932
    %v4934 = vpop.f32.mrb[0].mxu0
    %v4935 = vadd.f32 0.0, %v4934
    %v4936 = vpop.f32.mrb[0].mxu0
    %v4937 = vadd.f32 0.0, %v4936
    %4938 = vmatprep.mubr.bf16.mxu0 0
    %4939 = vmatmul.mubr.bf16.gmra.mrb[0].mxu0 %v2349
    %v4940 = vpop.f32.mrb[0].mxu0
    %v4941 = vadd.f32 0.0, %v4940
    %v4942 = vpop.f32.mrb[0].mxu0
    %v4943 = vadd.f32 0.0, %v4942
    %v4944 = vpop.f32.mrb[0].mxu0
    %v4945 = vadd.f32 0.0, %v4944
    %v4946 = vpop.f32.mrb[0].mxu0
    %v4947 = vadd.f32 0.0, %v4946
    %4948 = vmatprep.mubr.bf16.mxu0 0
    %4949 = vmatmul.mubr.bf16.gmra.mrb[0].mxu0 %v2350
    %v4950 = vpop.f32.mrb[0].mxu0
    %v4951 = vadd.f32 0.0, %v4950
    %v4952 = vpop.f32.mrb[0].mxu0
    %v4953 = vadd.f32 0.0, %v4952
    %v4954 = vpop.f32.mrb[0].mxu0
    %v4955 = vadd.f32 0.0, %v4954
    %v4956 = vpop.f32.mrb[0].mxu0
    %v4957 = vadd.f32 0.0, %v4956
    %4958 = vmatprep.mubr.bf16.mxu0 0
    %4959 = vmatmul.mubr.bf16.gmra.mrb[0].mxu0 %v2351
    %v4960 = vpop.f32.mrb[0].mxu0
    %v4961 = vadd.f32 0.0, %v4960
    %v4962 = vpop.f32.mrb[0].mxu0
    %v4963 = vadd.f32 0.0, %v4962
    %v4964 = vpop.f32.mrb[0].mxu0
    %v4965 = vadd.f32 0.0, %v4964
    %v4966 = vpop.f32.mrb[0].mxu0
    %v4967 = vadd.f32 0.0, %v4966
    %4968 = vmatprep.mubr.bf16.mxu0 0
    %4969 = vmatmul.mubr.bf16.gmra.mrb[0].mxu0 %v2352
    %v4970 = vpop.f32.mrb[0].mxu0
    %v4971 = vadd.f32 0.0, %v4970
    %v4972 = vpop.f32.mrb[0].mxu0
    %v4973 = vadd.f32 0.0, %v4972
    %v4974 = vpop.f32.mrb[0].mxu0
    %v4975 = vadd.f32 0.0, %v4974
    %v4976 = vpop.f32.mrb[0].mxu0
    %v4977 = vadd.f32 0.0, %v4976
    %4978 = vmatprep.mubr.bf16.mxu0 0
    %4979 = vmatmul.mubr.bf16.gmra.mrb[0].mxu0 %v2353
    %v4980 = vpop.f32.mrb[0].mxu0
    %v4981 = vadd.f32 0.0, %v4980
    %v4982 = vpop.f32.mrb[0].mxu0
    %v4983 = vadd.f32 0.0, %v4982
    %v4984 = vpop.f32.mrb[0].mxu0
    %v4985 = vadd.f32 0.0, %v4984
    %v4986 = vpop.f32.mrb[0].mxu0
    %v4987 = vadd.f32 0.0, %v4986
    %4988 = vmatprep.mubr.bf16.mxu0 0
    %4989 = vmatmul.mubr.bf16.gmra.mrb[0].mxu0 %v2354
    %v4990 = vpop.f32.mrb[0].mxu0
    %v4991 = vadd.f32 0.0, %v4990
    %v4992 = vpop.f32.mrb[0].mxu0
    %v4993 = vadd.f32 0.0, %v4992
    %v4994 = vpop.f32.mrb[0].mxu0
    %v4995 = vadd.f32 0.0, %v4994
    %v4996 = vpop.f32.mrb[0].mxu0
    %v4997 = vadd.f32 0.0, %v4996
    %4998 = vmatprep.mubr.bf16.mxu0 0
    %4999 = vmatmul.mubr.bf16.gmra.mrb[0].mxu0 %v2355
    %v5000 = vpop.f32.mrb[0].mxu0
    %v5001 = vadd.f32 0.0, %v5000
    %v5002 = vpop.f32.mrb[0].mxu0
    %v5003 = vadd.f32 0.0, %v5002
    %v5004 = vpop.f32.mrb[0].mxu0
    %v5005 = vadd.f32 0.0, %v5004
    %v5006 = vpop.f32.mrb[0].mxu0
    %v5007 = vadd.f32 0.0, %v5006
    %5008 = vmatprep.mubr.bf16.mxu0 0
    %5009 = vmatmul.mubr.bf16.gmra.mrb[0].mxu0 %v2356
    %v5010 = vpop.f32.mrb[0].mxu0
    %v5011 = vadd.f32 0.0, %v5010
    %v5012 = vpop.f32.mrb[0].mxu0
    %v5013 = vadd.f32 0.0, %v5012
    %v5014 = vpop.f32.mrb[0].mxu0
    %v5015 = vadd.f32 0.0, %v5014
    %v5016 = vpop.f32.mrb[0].mxu0
    %v5017 = vadd.f32 0.0, %v5016
    %5018 = vmatprep.mubr.bf16.mxu0 0
    %5019 = vmatmul.mubr.bf16.gmra.mrb[0].mxu0 %v2357
    %v5020 = vpop.f32.mrb[0].mxu0
    %v5021 = vadd.f32 0.0, %v5020
    %v5022 = vpop.f32.mrb[0].mxu0
    %v5023 = vadd.f32 0.0, %v5022
    %v5024 = vpop.f32.mrb[0].mxu0
    %v5025 = vadd.f32 0.0, %v5024
    %v5026 = vpop.f32.mrb[0].mxu0
    %v5027 = vadd.f32 0.0, %v5026
    %5028 = vmatprep.mubr.bf16.mxu0 0
    %5029 = vmatmul.mubr.bf16.gmra.mrb[0].mxu0 %v2358
    %v5030 = vpop.f32.mrb[0].mxu0
    %v5031 = vadd.f32 0.0, %v5030
    %v5032 = vpop.f32.mrb[0].mxu0
    %v5033 = vadd.f32 0.0, %v5032
    %v5034 = vpop.f32.mrb[0].mxu0
    %v5035 = vadd.f32 0.0, %v5034
    %v5036 = vpop.f32.mrb[0].mxu0
    %v5037 = vadd.f32 0.0, %v5036
    %5038 = vmatprep.mubr.bf16.mxu0 0
    %5039 = vmatmul.mubr.bf16.gmra.mrb[0].mxu0 %v2359
    %v5040 = vpop.f32.mrb[0].mxu0
    %v5041 = vadd.f32 0.0, %v5040
    %v5042 = vpop.f32.mrb[0].mxu0
    %v5043 = vadd.f32 0.0, %v5042
    %v5044 = vpop.f32.mrb[0].mxu0
    %v5045 = vadd.f32 0.0, %v5044
    %v5046 = vpop.f32.mrb[0].mxu0
    %v5047 = vadd.f32 0.0, %v5046
    %5048 = vmatprep.mubr.bf16.mxu0 0
    %5049 = vmatmul.mubr.bf16.gmra.mrb[0].mxu0 %v2360
    %v5050 = vpop.f32.mrb[0].mxu0
    %v5051 = vadd.f32 0.0, %v5050
    %v5052 = vpop.f32.mrb[0].mxu0
    %v5053 = vadd.f32 0.0, %v5052
    %v5054 = vpop.f32.mrb[0].mxu0
    %v5055 = vadd.f32 0.0, %v5054
    %v5056 = vpop.f32.mrb[0].mxu0
    %v5057 = vadd.f32 0.0, %v5056
    %5058 = vmatprep.mubr.bf16.mxu0 0
    %5059 = vmatmul.mubr.bf16.gmra.mrb[0].mxu0 %v2361
    %v5060 = vpop.f32.mrb[0].mxu0
    %v5061 = vadd.f32 0.0, %v5060
    %v5062 = vpop.f32.mrb[0].mxu0
    %v5063 = vadd.f32 0.0, %v5062
    %v5064 = vpop.f32.mrb[0].mxu0
    %v5065 = vadd.f32 0.0, %v5064
    %v5066 = vpop.f32.mrb[0].mxu0
    %v5067 = vadd.f32 0.0, %v5066
    %5068 = vmatprep.mubr.bf16.mxu0 0
    %5069 = vmatmul.mubr.bf16.gmra.mrb[0].mxu0 %v2362
    %v5070 = vpop.f32.mrb[0].mxu0
    %v5071 = vadd.f32 0.0, %v5070
    %v5072 = vpop.f32.mrb[0].mxu0
    %v5073 = vadd.f32 0.0, %v5072
    %v5074 = vpop.f32.mrb[0].mxu0
    %v5075 = vadd.f32 0.0, %v5074
    %v5076 = vpop.f32.mrb[0].mxu0
    %v5077 = vadd.f32 0.0, %v5076
    %5078 = vmatprep.mubr.bf16.mxu0 0
    %5079 = vmatmul.mubr.bf16.gmra.mrb[0].mxu0 %v2363
    %v5080 = vpop.f32.mrb[0].mxu0
    %v5081 = vadd.f32 0.0, %v5080
    %v5082 = vpop.f32.mrb[0].mxu0
    %v5083 = vadd.f32 0.0, %v5082
    %v5084 = vpop.f32.mrb[0].mxu0
    %v5085 = vadd.f32 0.0, %v5084
    %v5086 = vpop.f32.mrb[0].mxu0
    %v5087 = vadd.f32 0.0, %v5086
    %5088 = vmatprep.mubr.bf16.mxu0 0
    %5089 = vmatmul.mubr.bf16.gmra.mrb[0].mxu0 %v2364
    %v5090 = vpop.f32.mrb[0].mxu0
    %v5091 = vadd.f32 0.0, %v5090
    %v5092 = vpop.f32.mrb[0].mxu0
    %v5093 = vadd.f32 0.0, %v5092
    %v5094 = vpop.f32.mrb[0].mxu0
    %v5095 = vadd.f32 0.0, %v5094
    %v5096 = vpop.f32.mrb[0].mxu0
    %v5097 = vadd.f32 0.0, %v5096
    %5098 = vmatprep.mubr.bf16.mxu0 0
    %5099 = vmatmul.mubr.bf16.gmra.mrb[0].mxu0 %v2365
    %v5100 = vpop.f32.mrb[0].mxu0
    %v5101 = vadd.f32 0.0, %v5100
    %v5102 = vpop.f32.mrb[0].mxu0
    %v5103 = vadd.f32 0.0, %v5102
    %v5104 = vpop.f32.mrb[0].mxu0
    %v5105 = vadd.f32 0.0, %v5104
    %v5106 = vpop.f32.mrb[0].mxu0
    %v5107 = vadd.f32 0.0, %v5106
    %5108 = vmatprep.mubr.bf16.mxu0 0
    %5109 = vmatmul.mubr.bf16.gmra.mrb[0].mxu0 %v2366
    %v5110 = vpop.f32.mrb[0].mxu0
    %v5111 = vadd.f32 0.0, %v5110
    %v5112 = vpop.f32.mrb[0].mxu0
    %v5113 = vadd.f32 0.0, %v5112
    %v5114 = vpop.f32.mrb[0].mxu0
    %v5115 = vadd.f32 0.0, %v5114
    %v5116 = vpop.f32.mrb[0].mxu0
    %v5117 = vadd.f32 0.0, %v5116
    %5118 = vmatprep.mubr.bf16.mxu0 0
    %5119 = vmatmul.mubr.bf16.gmra.mrb[0].mxu0 %v2367
    %v5120 = vpop.f32.mrb[0].mxu0
    %v5121 = vadd.f32 0.0, %v5120
    %v5122 = vpop.f32.mrb[0].mxu0
    %v5123 = vadd.f32 0.0, %v5122
    %v5124 = vpop.f32.mrb[0].mxu0
    %v5125 = vadd.f32 0.0, %v5124
    %v5126 = vpop.f32.mrb[0].mxu0
    %v5127 = vadd.f32 0.0, %v5126
    %5128 = vmatprep.mubr.bf16.mxu0 0
    %5129 = vmatmul.mubr.bf16.gmra.mrb[0].mxu0 %v2368
    %v5130 = vpop.f32.mrb[0].mxu0
    %v5131 = vadd.f32 0.0, %v5130
    %v5132 = vpop.f32.mrb[0].mxu0
    %v5133 = vadd.f32 0.0, %v5132
    %v5134 = vpop.f32.mrb[0].mxu0
    %v5135 = vadd.f32 0.0, %v5134
    %v5136 = vpop.f32.mrb[0].mxu0
    %v5137 = vadd.f32 0.0, %v5136
    %5138 = vmatprep.mubr.bf16.mxu0 0
    %5139 = vmatmul.mubr.bf16.gmra.mrb[0].mxu0 %v2369
    %v5140 = vpop.f32.mrb[0].mxu0
    %v5141 = vadd.f32 0.0, %v5140
    %v5142 = vpop.f32.mrb[0].mxu0
    %v5143 = vadd.f32 0.0, %v5142
    %v5144 = vpop.f32.mrb[0].mxu0
    %v5145 = vadd.f32 0.0, %v5144
    %v5146 = vpop.f32.mrb[0].mxu0
    %v5147 = vadd.f32 0.0, %v5146
    %5148 = vmatprep.mubr.bf16.mxu0 0
    %5149 = vmatmul.mubr.bf16.gmra.mrb[0].mxu0 %v2370
    %v5150 = vpop.f32.mrb[0].mxu0
    %v5151 = vadd.f32 0.0, %v5150
    %v5152 = vpop.f32.mrb[0].mxu0
    %v5153 = vadd.f32 0.0, %v5152
    %v5154 = vpop.f32.mrb[0].mxu0
    %v5155 = vadd.f32 0.0, %v5154
    %v5156 = vpop.f32.mrb[0].mxu0
    %v5157 = vadd.f32 0.0, %v5156
    %5158 = vmatprep.mubr.bf16.mxu0 0
    %5159 = vmatmul.mubr.bf16.gmra.mrb[0].mxu0 %v2371
    %v5160 = vpop.f32.mrb[0].mxu0
    %v5161 = vadd.f32 0.0, %v5160
    %v5162 = vpop.f32.mrb[0].mxu0
    %v5163 = vadd.f32 0.0, %v5162
    %v5164 = vpop.f32.mrb[0].mxu0
    %v5165 = vadd.f32 0.0, %v5164
    %v5166 = vpop.f32.mrb[0].mxu0
    %v5167 = vadd.f32 0.0, %v5166
    %5168 = vmatprep.mubr.bf16.mxu0 0
    %5169 = vmatmul.mubr.bf16.gmra.mrb[0].mxu0 %v2372
    %v5170 = vpop.f32.mrb[0].mxu0
    %v5171 = vadd.f32 0.0, %v5170
    %v5172 = vpop.f32.mrb[0].mxu0
    %v5173 = vadd.f32 0.0, %v5172
    %v5174 = vpop.f32.mrb[0].mxu0
    %v5175 = vadd.f32 0.0, %v5174
    %v5176 = vpop.f32.mrb[0].mxu0
    %v5177 = vadd.f32 0.0, %v5176
    %5178 = vmatprep.mubr.bf16.mxu0 0
    %5179 = vmatmul.mubr.bf16.gmra.mrb[0].mxu0 %v2373
    %v5180 = vpop.f32.mrb[0].mxu0
    %v5181 = vadd.f32 0.0, %v5180
    %v5182 = vpop.f32.mrb[0].mxu0
    %v5183 = vadd.f32 0.0, %v5182
    %v5184 = vpop.f32.mrb[0].mxu0
    %v5185 = vadd.f32 0.0, %v5184
    %v5186 = vpop.f32.mrb[0].mxu0
    %v5187 = vadd.f32 0.0, %v5186
    %5188 = vmatprep.mubr.bf16.mxu0 0
    %5189 = vmatmul.mubr.bf16.gmra.mrb[0].mxu0 %v2374
    %v5190 = vpop.f32.mrb[0].mxu0
    %v5191 = vadd.f32 0.0, %v5190
    %v5192 = vpop.f32.mrb[0].mxu0
    %v5193 = vadd.f32 0.0, %v5192
    %v5194 = vpop.f32.mrb[0].mxu0
    %v5195 = vadd.f32 0.0, %v5194
    %v5196 = vpop.f32.mrb[0].mxu0
    %v5197 = vadd.f32 0.0, %v5196
    %5198 = vmatprep.mubr.bf16.mxu0 0
    %5199 = vmatmul.mubr.bf16.gmra.mrb[0].mxu0 %v2375
    %v5200 = vpop.f32.mrb[0].mxu0
    %v5201 = vadd.f32 0.0, %v5200
    %v5202 = vpop.f32.mrb[0].mxu0
    %v5203 = vadd.f32 0.0, %v5202
    %v5204 = vpop.f32.mrb[0].mxu0
    %v5205 = vadd.f32 0.0, %v5204
    %v5206 = vpop.f32.mrb[0].mxu0
    %v5207 = vadd.f32 0.0, %v5206
    %5208 = vmatprep.mubr.bf16.mxu0 0
    %5209 = vmatmul.mubr.bf16.gmra.mrb[0].mxu0 %v2376
    %v5210 = vpop.f32.mrb[0].mxu0
    %v5211 = vadd.f32 0.0, %v5210
    %v5212 = vpop.f32.mrb[0].mxu0
    %v5213 = vadd.f32 0.0, %v5212
    %v5214 = vpop.f32.mrb[0].mxu0
    %v5215 = vadd.f32 0.0, %v5214
    %v5216 = vpop.f32.mrb[0].mxu0
    %v5217 = vadd.f32 0.0, %v5216
    %5218 = vmatprep.mubr.bf16.mxu0 0
    %5219 = vmatmul.mubr.bf16.gmra.mrb[0].mxu0 %v2377
    %v5220 = vpop.f32.mrb[0].mxu0
    %v5221 = vadd.f32 0.0, %v5220
    %v5222 = vpop.f32.mrb[0].mxu0
    %v5223 = vadd.f32 0.0, %v5222
    %v5224 = vpop.f32.mrb[0].mxu0
    %v5225 = vadd.f32 0.0, %v5224
    %v5226 = vpop.f32.mrb[0].mxu0
    %v5227 = vadd.f32 0.0, %v5226
    %5228 = vmatprep.mubr.bf16.mxu0 0
    %5229 = vmatmul.mubr.bf16.gmra.mrb[0].mxu0 %v2378
    %v5230 = vpop.f32.mrb[0].mxu0
    %v5231 = vadd.f32 0.0, %v5230
    %v5232 = vpop.f32.mrb[0].mxu0
    %v5233 = vadd.f32 0.0, %v5232
    %v5234 = vpop.f32.mrb[0].mxu0
    %v5235 = vadd.f32 0.0, %v5234
    %v5236 = vpop.f32.mrb[0].mxu0
    %v5237 = vadd.f32 0.0, %v5236
    %5238 = vmatprep.mubr.bf16.mxu0 0
    %5239 = vmatmul.mubr.bf16.gmra.mrb[0].mxu0 %v2379
    %v5240 = vpop.f32.mrb[0].mxu0
    %v5241 = vadd.f32 0.0, %v5240
    %v5242 = vpop.f32.mrb[0].mxu0
    %v5243 = vadd.f32 0.0, %v5242
    %v5244 = vpop.f32.mrb[0].mxu0
    %v5245 = vadd.f32 0.0, %v5244
    %v5246 = vpop.f32.mrb[0].mxu0
    %v5247 = vadd.f32 0.0, %v5246
    %5248 = vmatprep.mubr.bf16.mxu0 0
    %5249 = vmatmul.mubr.bf16.gmra.mrb[0].mxu0 %v2380
    %v5250 = vpop.f32.mrb[0].mxu0
    %v5251 = vadd.f32 0.0, %v5250
    %v5252 = vpop.f32.mrb[0].mxu0
    %v5253 = vadd.f32 0.0, %v5252
    %v5254 = vpop.f32.mrb[0].mxu0
    %v5255 = vadd.f32 0.0, %v5254
    %v5256 = vpop.f32.mrb[0].mxu0
    %v5257 = vadd.f32 0.0, %v5256
    %5258 = vmatprep.mubr.bf16.mxu0 0
    %5259 = vmatmul.mubr.bf16.gmra.mrb[0].mxu0 %v2381
    %v5260 = vpop.f32.mrb[0].mxu0
    %v5261 = vadd.f32 0.0, %v5260
    %v5262 = vpop.f32.mrb[0].mxu0
    %v5263 = vadd.f32 0.0, %v5262
    %v5264 = vpop.f32.mrb[0].mxu0
    %v5265 = vadd.f32 0.0, %v5264
    %v5266 = vpop.f32.mrb[0].mxu0
    %v5267 = vadd.f32 0.0, %v5266
    %5268 = vmatprep.mubr.bf16.mxu0 0
    %5269 = vmatmul.mubr.bf16.gmra.mrb[0].mxu0 %v2382
    %v5270 = vpop.f32.mrb[0].mxu0
    %v5271 = vadd.f32 0.0, %v5270
    %v5272 = vpop.f32.mrb[0].mxu0
    %v5273 = vadd.f32 0.0, %v5272
    %v5274 = vpop.f32.mrb[0].mxu0
    %v5275 = vadd.f32 0.0, %v5274
    %v5276 = vpop.f32.mrb[0].mxu0
    %v5277 = vadd.f32 0.0, %v5276
    %5278 = vmatprep.mubr.bf16.mxu0 0
    %5279 = vmatmul.mubr.bf16.gmra.mrb[0].mxu0 %v2383
    %v5280 = vpop.f32.mrb[0].mxu0
    %v5281 = vadd.f32 0.0, %v5280
    %v5282 = vpop.f32.mrb[0].mxu0
    %v5283 = vadd.f32 0.0, %v5282
    %v5284 = vpop.f32.mrb[0].mxu0
    %v5285 = vadd.f32 0.0, %v5284
    %v5286 = vpop.f32.mrb[0].mxu0
    %v5287 = vadd.f32 0.0, %v5286
    %5288 = vmatprep.mubr.bf16.mxu0 0
    %5289 = vmatmul.mubr.bf16.gmra.mrb[0].mxu0 %v2384
    %v5290 = vpop.f32.mrb[0].mxu0
    %v5291 = vadd.f32 0.0, %v5290
    %v5292 = vpop.f32.mrb[0].mxu0
    %v5293 = vadd.f32 0.0, %v5292
    %v5294 = vpop.f32.mrb[0].mxu0
    %v5295 = vadd.f32 0.0, %v5294
    %v5296 = vpop.f32.mrb[0].mxu0
    %v5297 = vadd.f32 0.0, %v5296
    %5298 = vmatprep.mubr.bf16.mxu0 0
    %5299 = vmatmul.mubr.bf16.gmra.mrb[0].mxu0 %v2385
    %v5300 = vpop.f32.mrb[0].mxu0
    %v5301 = vadd.f32 0.0, %v5300
    %v5302 = vpop.f32.mrb[0].mxu0
    %v5303 = vadd.f32 0.0, %v5302
    %v5304 = vpop.f32.mrb[0].mxu0
    %v5305 = vadd.f32 0.0, %v5304
    %v5306 = vpop.f32.mrb[0].mxu0
    %v5307 = vadd.f32 0.0, %v5306
    %5308 = vmatprep.mubr.bf16.mxu0 0
    %5309 = vmatmul.mubr.bf16.gmra.mrb[0].mxu0 %v2386
    %v5310 = vpop.f32.mrb[0].mxu0
    %v5311 = vadd.f32 0.0, %v5310
    %v5312 = vpop.f32.mrb[0].mxu0
    %v5313 = vadd.f32 0.0, %v5312
    %v5314 = vpop.f32.mrb[0].mxu0
    %v5315 = vadd.f32 0.0, %v5314
    %v5316 = vpop.f32.mrb[0].mxu0
    %v5317 = vadd.f32 0.0, %v5316
    %5318 = vmatprep.mubr.bf16.mxu0 0
    %5319 = vmatmul.mubr.bf16.gmra.mrb[0].mxu0 %v2387
    %v5320 = vpop.f32.mrb[0].mxu0
    %v5321 = vadd.f32 0.0, %v5320
    %v5322 = vpop.f32.mrb[0].mxu0
    %v5323 = vadd.f32 0.0, %v5322
    %v5324 = vpop.f32.mrb[0].mxu0
    %v5325 = vadd.f32 0.0, %v5324
    %v5326 = vpop.f32.mrb[0].mxu0
    %v5327 = vadd.f32 0.0, %v5326
    %5328 = vmatprep.mubr.bf16.mxu0 0
    %5329 = vmatmul.mubr.bf16.gmra.mrb[0].mxu0 %v2388
    %v5330 = vpop.f32.mrb[0].mxu0
    %v5331 = vadd.f32 0.0, %v5330
    %v5332 = vpop.f32.mrb[0].mxu0
    %v5333 = vadd.f32 0.0, %v5332
    %v5334 = vpop.f32.mrb[0].mxu0
    %v5335 = vadd.f32 0.0, %v5334
    %v5336 = vpop.f32.mrb[0].mxu0
    %v5337 = vadd.f32 0.0, %v5336
    %5338 = vmatprep.mubr.bf16.mxu0 0
    %5339 = vmatmul.mubr.bf16.gmra.mrb[0].mxu0 %v2389
    %v5340 = vpop.f32.mrb[0].mxu0
    %v5341 = vadd.f32 0.0, %v5340
    %v5342 = vpop.f32.mrb[0].mxu0
    %v5343 = vadd.f32 0.0, %v5342
    %v5344 = vpop.f32.mrb[0].mxu0
    %v5345 = vadd.f32 0.0, %v5344
    %v5346 = vpop.f32.mrb[0].mxu0
    %v5347 = vadd.f32 0.0, %v5346
    %5348 = vmatprep.mubr.bf16.mxu0 0
    %5349 = vmatmul.mubr.bf16.gmra.mrb[0].mxu0 %v2390
    %v5350 = vpop.f32.mrb[0].mxu0
    %v5351 = vadd.f32 0.0, %v5350
    %v5352 = vpop.f32.mrb[0].mxu0
    %v5353 = vadd.f32 0.0, %v5352
    %v5354 = vpop.f32.mrb[0].mxu0
    %v5355 = vadd.f32 0.0, %v5354
    %v5356 = vpop.f32.mrb[0].mxu0
    %v5357 = vadd.f32 0.0, %v5356
    %5358 = vmatprep.mubr.bf16.mxu0 0
    %5359 = vmatmul.mubr.bf16.gmra.mrb[0].mxu0 %v2391
    %v5360 = vpop.f32.mrb[0].mxu0
    %v5361 = vadd.f32 0.0, %v5360
    %v5362 = vpop.f32.mrb[0].mxu0
    %v5363 = vadd.f32 0.0, %v5362
    %v5364 = vpop.f32.mrb[0].mxu0
    %v5365 = vadd.f32 0.0, %v5364
    %v5366 = vpop.f32.mrb[0].mxu0
    %v5367 = vadd.f32 0.0, %v5366
    %5368 = vmatprep.mubr.bf16.mxu0 0
    %5369 = vmatmul.mubr.bf16.gmra.mrb[0].mxu0 %v2392
    %v5370 = vpop.f32.mrb[0].mxu0
    %v5371 = vadd.f32 0.0, %v5370
    %v5372 = vpop.f32.mrb[0].mxu0
    %v5373 = vadd.f32 0.0, %v5372
    %v5374 = vpop.f32.mrb[0].mxu0
    %v5375 = vadd.f32 0.0, %v5374
    %v5376 = vpop.f32.mrb[0].mxu0
    %v5377 = vadd.f32 0.0, %v5376
    %5378 = vmatprep.mubr.bf16.mxu0 0
    %5379 = vmatmul.mubr.bf16.gmra.mrb[0].mxu0 %v2393
    %v5380 = vpop.f32.mrb[0].mxu0
    %v5381 = vadd.f32 0.0, %v5380
    %v5382 = vpop.f32.mrb[0].mxu0
    %v5383 = vadd.f32 0.0, %v5382
    %v5384 = vpop.f32.mrb[0].mxu0
    %v5385 = vadd.f32 0.0, %v5384
    %v5386 = vpop.f32.mrb[0].mxu0
    %v5387 = vadd.f32 0.0, %v5386
    %5388 = vmatprep.mubr.bf16.mxu0 0
    %5389 = vmatmul.mubr.bf16.gmra.mrb[0].mxu0 %v2394
    %v5390 = vpop.f32.mrb[0].mxu0
    %v5391 = vadd.f32 0.0, %v5390
    %v5392 = vpop.f32.mrb[0].mxu0
    %v5393 = vadd.f32 0.0, %v5392
    %v5394 = vpop.f32.mrb[0].mxu0
    %v5395 = vadd.f32 0.0, %v5394
    %v5396 = vpop.f32.mrb[0].mxu0
    %v5397 = vadd.f32 0.0, %v5396
    %5398 = vmatprep.mubr.bf16.mxu0 0
    %5399 = vmatmul.mubr.bf16.gmra.mrb[0].mxu0 %v2395
    %v5400 = vpop.f32.mrb[0].mxu0
    %v5401 = vadd.f32 0.0, %v5400
    %v5402 = vpop.f32.mrb[0].mxu0
    %v5403 = vadd.f32 0.0, %v5402
    %v5404 = vpop.f32.mrb[0].mxu0
    %v5405 = vadd.f32 0.0, %v5404
    %v5406 = vpop.f32.mrb[0].mxu0
    %v5407 = vadd.f32 0.0, %v5406
    %5408 = vmatprep.mubr.bf16.mxu0 0
    %5409 = vmatmul.mubr.bf16.gmra.mrb[0].mxu0 %v2396
    %v5410 = vpop.f32.mrb[0].mxu0
    %v5411 = vadd.f32 0.0, %v5410
    %v5412 = vpop.f32.mrb[0].mxu0
    %v5413 = vadd.f32 0.0, %v5412
    %v5414 = vpop.f32.mrb[0].mxu0
    %v5415 = vadd.f32 0.0, %v5414
    %v5416 = vpop.f32.mrb[0].mxu0
    %v5417 = vadd.f32 0.0, %v5416
    %5418 = vmatprep.mubr.bf16.mxu0 0
    %5419 = vmatmul.mubr.bf16.gmra.mrb[0].mxu0 %v2397
    %v5420 = vpop.f32.mrb[0].mxu0
    %v5421 = vadd.f32 0.0, %v5420
    %v5422 = vpop.f32.mrb[0].mxu0
    %v5423 = vadd.f32 0.0, %v5422
    %v5424 = vpop.f32.mrb[0].mxu0
    %v5425 = vadd.f32 0.0, %v5424
    %v5426 = vpop.f32.mrb[0].mxu0
    %v5427 = vadd.f32 0.0, %v5426
    %5428 = vmatprep.mubr.bf16.mxu0 0
    %5429 = vmatmul.mubr.bf16.gmra.mrb[0].mxu0 %v2398
    %v5430 = vpop.f32.mrb[0].mxu0
    %v5431 = vadd.f32 0.0, %v5430
    %v5432 = vpop.f32.mrb[0].mxu0
    %v5433 = vadd.f32 0.0, %v5432
    %v5434 = vpop.f32.mrb[0].mxu0
    %v5435 = vadd.f32 0.0, %v5434
    %v5436 = vpop.f32.mrb[0].mxu0
    %v5437 = vadd.f32 0.0, %v5436
    %5438 = vmatprep.mubr.bf16.mxu0 0
    %5439 = vmatmul.mubr.bf16.gmra.mrb[0].mxu0 %v2399
    %v5440 = vpop.f32.mrb[0].mxu0
    %v5441 = vadd.f32 0.0, %v5440
    %v5442 = vpop.f32.mrb[0].mxu0
    %v5443 = vadd.f32 0.0, %v5442
    %v5444 = vpop.f32.mrb[0].mxu0
    %v5445 = vadd.f32 0.0, %v5444
    %v5446 = vpop.f32.mrb[0].mxu0
    %v5447 = vadd.f32 0.0, %v5446
    %5448 = vmatprep.mubr.bf16.mxu0 0
    %5449 = vmatmul.mubr.bf16.gmra.mrb[0].mxu0 %v2400
    %v5450 = vpop.f32.mrb[0].mxu0
    %v5451 = vadd.f32 0.0, %v5450
    %v5452 = vpop.f32.mrb[0].mxu0
    %v5453 = vadd.f32 0.0, %v5452
    %v5454 = vpop.f32.mrb[0].mxu0
    %v5455 = vadd.f32 0.0, %v5454
    %v5456 = vpop.f32.mrb[0].mxu0
    %v5457 = vadd.f32 0.0, %v5456
    %5458 = vmatprep.mubr.bf16.mxu0 0
    %5459 = vmatmul.mubr.bf16.gmra.mrb[0].mxu0 %v2401
    %v5460 = vpop.f32.mrb[0].mxu0
    %v5461 = vadd.f32 0.0, %v5460
    %v5462 = vpop.f32.mrb[0].mxu0
    %v5463 = vadd.f32 0.0, %v5462
    %v5464 = vpop.f32.mrb[0].mxu0
    %v5465 = vadd.f32 0.0, %v5464
    %v5466 = vpop.f32.mrb[0].mxu0
    %v5467 = vadd.f32 0.0, %v5466
    %5468 = vmatprep.mubr.bf16.mxu0 0
    %5469 = vmatmul.mubr.bf16.gmra.mrb[0].mxu0 %v2402
    %v5470 = vpop.f32.mrb[0].mxu0
    %v5471 = vadd.f32 0.0, %v5470
    %v5472 = vpop.f32.mrb[0].mxu0
    %v5473 = vadd.f32 0.0, %v5472
    %v5474 = vpop.f32.mrb[0].mxu0
    %v5475 = vadd.f32 0.0, %v5474
    %v5476 = vpop.f32.mrb[0].mxu0
    %v5477 = vadd.f32 0.0, %v5476
    %5478 = vdwg.mxu0
    %v5479 = vmax.f32 %v2822, %v2826
    %v5480 = vmax.f32 %v5479, %v2832
    %v5481 = vmax.f32 %v5480, %v2836
    %v5482 = vmax.f32 %v5481, %v2842
    %v5483 = vmax.f32 %v5482, %v2846
    %v5484 = vmax.f32 %v5483, %v2852
    %v5485 = vmax.f32 %v5484, %v2856
    %v5486 = vmax.f32 %v5485, %v2862
    %v5487 = vmax.f32 %v5486, %v2866
    %v5488 = vmax.f32 %v5487, %v2872
    %v5489 = vmax.f32 %v5488, %v2876
    %v5490 = vmax.f32 %v5489, %v2882
    %v5491 = vmax.f32 %v5490, %v2886
    %v5492 = vmax.f32 %v5491, %v2892
    %v5493 = vmax.f32 %v5492, %v2896
    %v5494 = vrot.slane %v5493, 4
    %v5495 = vmax.f32 %v5493, %v5494
    %v5496 = vrot.slane %v5495, 2
    %v5497 = vmax.f32 %v5495, %v5496
    %v5498 = vrot.slane %v5497, 1
    %v5499 = vmax.f32 %v5497, %v5498
    %v5500 = vmax.f32 %v2824, %v2828
    %v5501 = vmax.f32 %v5500, %v2834
    %v5502 = vmax.f32 %v5501, %v2838
    %v5503 = vmax.f32 %v5502, %v2844
    %v5504 = vmax.f32 %v5503, %v2848
    %v5505 = vmax.f32 %v5504, %v2854
    %v5506 = vmax.f32 %v5505, %v2858
    %v5507 = vmax.f32 %v5506, %v2864
    %v5508 = vmax.f32 %v5507, %v2868
    %v5509 = vmax.f32 %v5508, %v2874
    %v5510 = vmax.f32 %v5509, %v2878
    %v5511 = vmax.f32 %v5510, %v2884
    %v5512 = vmax.f32 %v5511, %v2888
    %v5513 = vmax.f32 %v5512, %v2894
    %v5514 = vmax.f32 %v5513, %v2898
    %v5515 = vrot.slane %v5514, 4
    %v5516 = vmax.f32 %v5514, %v5515
    %v5517 = vrot.slane %v5516, 2
    %v5518 = vmax.f32 %v5516, %v5517
    %v5519 = vrot.slane %v5518, 1
    %v5520 = vmax.f32 %v5518, %v5519
    %v5521 = vmax.f32 %v3495, %v3499
    %v5522 = vmax.f32 %v5521, %v3505
    %v5523 = vmax.f32 %v5522, %v3509
    %v5524 = vmax.f32 %v5523, %v3515
    %v5525 = vmax.f32 %v5524, %v3519
    %v5526 = vmax.f32 %v5525, %v3525
    %v5527 = vmax.f32 %v5526, %v3529
    %v5528 = vmax.f32 %v5527, %v3535
    %v5529 = vmax.f32 %v5528, %v3539
    %v5530 = vmax.f32 %v5529, %v3545
    %v5531 = vmax.f32 %v5530, %v3549
    %v5532 = vmax.f32 %v5531, %v3555
    %v5533 = vmax.f32 %v5532, %v3559
    %v5534 = vmax.f32 %v5533, %v3565
    %v5535 = vmax.f32 %v5534, %v3569
    %v5536 = vrot.slane %v5535, 4
    %v5537 = vmax.f32 %v5535, %v5536
    %v5538 = vrot.slane %v5537, 2
    %v5539 = vmax.f32 %v5537, %v5538
    %v5540 = vrot.slane %v5539, 1
    %v5541 = vmax.f32 %v5539, %v5540
    %v5542 = vmax.f32 %v3497, %v3501
    %v5543 = vmax.f32 %v5542, %v3507
    %v5544 = vmax.f32 %v5543, %v3511
    %v5545 = vmax.f32 %v5544, %v3517
    %v5546 = vmax.f32 %v5545, %v3521
    %v5547 = vmax.f32 %v5546, %v3527
    %v5548 = vmax.f32 %v5547, %v3531
    %v5549 = vmax.f32 %v5548, %v3537
    %v5550 = vmax.f32 %v5549, %v3541
    %v5551 = vmax.f32 %v5550, %v3547
    %v5552 = vmax.f32 %v5551, %v3551
    %v5553 = vmax.f32 %v5552, %v3557
    %v5554 = vmax.f32 %v5553, %v3561
    %v5555 = vmax.f32 %v5554, %v3567
    %v5556 = vmax.f32 %v5555, %v3571
    %v5557 = vrot.slane %v5556, 4
    %v5558 = vmax.f32 %v5556, %v5557
    %v5559 = vrot.slane %v5558, 2
    %v5560 = vmax.f32 %v5558, %v5559
    %v5561 = vrot.slane %v5560, 1
    %v5562 = vmax.f32 %v5560, %v5561
    %v5563 = vmax.f32 %v4168, %v4172
    %v5564 = vmax.f32 %v5563, %v4178
    %v5565 = vmax.f32 %v5564, %v4182
    %v5566 = vmax.f32 %v5565, %v4188
    %v5567 = vmax.f32 %v5566, %v4192
    %v5568 = vmax.f32 %v5567, %v4198
    %v5569 = vmax.f32 %v5568, %v4202
    %v5570 = vmax.f32 %v5569, %v4208
    %v5571 = vmax.f32 %v5570, %v4212
    %v5572 = vmax.f32 %v5571, %v4218
    %v5573 = vmax.f32 %v5572, %v4222
    %v5574 = vmax.f32 %v5573, %v4228
    %v5575 = vmax.f32 %v5574, %v4232
    %v5576 = vmax.f32 %v5575, %v4238
    %v5577 = vmax.f32 %v5576, %v4242
    %v5578 = vrot.slane %v5577, 4
    %v5579 = vmax.f32 %v5577, %v5578
    %v5580 = vrot.slane %v5579, 2
    %v5581 = vmax.f32 %v5579, %v5580
    %v5582 = vrot.slane %v5581, 1
    %v5583 = vmax.f32 %v5581, %v5582
    %v5584 = vmax.f32 %v4170, %v4174
    %v5585 = vmax.f32 %v5584, %v4180
    %v5586 = vmax.f32 %v5585, %v4184
    %v5587 = vmax.f32 %v5586, %v4190
    %v5588 = vmax.f32 %v5587, %v4194
    %v5589 = vmax.f32 %v5588, %v4200
    %v5590 = vmax.f32 %v5589, %v4204
    %v5591 = vmax.f32 %v5590, %v4210
    %v5592 = vmax.f32 %v5591, %v4214
    %v5593 = vmax.f32 %v5592, %v4220
    %v5594 = vmax.f32 %v5593, %v4224
    %v5595 = vmax.f32 %v5594, %v4230
    %v5596 = vmax.f32 %v5595, %v4234
    %v5597 = vmax.f32 %v5596, %v4240
    %v5598 = vmax.f32 %v5597, %v4244
    %v5599 = vrot.slane %v5598, 4
    %v5600 = vmax.f32 %v5598, %v5599
    %v5601 = vrot.slane %v5600, 2
    %v5602 = vmax.f32 %v5600, %v5601
    %v5603 = vrot.slane %v5602, 1
    %v5604 = vmax.f32 %v5602, %v5603
    %v5605 = vmax.f32 %v4841, %v4845
    %v5606 = vmax.f32 %v5605, %v4851
    %v5607 = vmax.f32 %v5606, %v4855
    %v5608 = vmax.f32 %v5607, %v4861
    %v5609 = vmax.f32 %v5608, %v4865
    %v5610 = vmax.f32 %v5609, %v4871
    %v5611 = vmax.f32 %v5610, %v4875
    %v5612 = vmax.f32 %v5611, %v4881
    %v5613 = vmax.f32 %v5612, %v4885
    %v5614 = vmax.f32 %v5613, %v4891
    %v5615 = vmax.f32 %v5614, %v4895
    %v5616 = vmax.f32 %v5615, %v4901
    %v5617 = vmax.f32 %v5616, %v4905
    %v5618 = vmax.f32 %v5617, %v4911
    %v5619 = vmax.f32 %v5618, %v4915
    %v5620 = vrot.slane %v5619, 4
    %v5621 = vmax.f32 %v5619, %v5620
    %v5622 = vrot.slane %v5621, 2
    %v5623 = vmax.f32 %v5621, %v5622
    %v5624 = vrot.slane %v5623, 1
    %v5625 = vmax.f32 %v5623, %v5624
    %v5626 = vmax.f32 %v4843, %v4847
    %v5627 = vmax.f32 %v5626, %v4853
    %v5628 = vmax.f32 %v5627, %v4857
    %v5629 = vmax.f32 %v5628, %v4863
    %v5630 = vmax.f32 %v5629, %v4867
    %v5631 = vmax.f32 %v5630, %v4873
    %v5632 = vmax.f32 %v5631, %v4877
    %v5633 = vmax.f32 %v5632, %v4883
    %v5634 = vmax.f32 %v5633, %v4887
    %v5635 = vmax.f32 %v5634, %v4893
    %v5636 = vmax.f32 %v5635, %v4897
    %v5637 = vmax.f32 %v5636, %v4903
    %v5638 = vmax.f32 %v5637, %v4907
    %v5639 = vmax.f32 %v5638, %v4913
    %v5640 = vmax.f32 %v5639, %v4917
    %v5641 = vrot.slane %v5640, 4
    %v5642 = vmax.f32 %v5640, %v5641
    %v5643 = vrot.slane %v5642, 2
    %v5644 = vmax.f32 %v5642, %v5643
    %v5645 = vrot.slane %v5644, 1
    %v5646 = vmax.f32 %v5644, %v5645
    %v5647 = vmax.f32 %v2902, %v2906
    %v5648 = vmax.f32 %v5647, %v2912
    %v5649 = vmax.f32 %v5648, %v2916
    %v5650 = vmax.f32 %v5649, %v2922
    %v5651 = vmax.f32 %v5650, %v2926
    %v5652 = vmax.f32 %v5651, %v2932
    %v5653 = vmax.f32 %v5652, %v2936
    %v5654 = vmax.f32 %v5653, %v2942
    %v5655 = vmax.f32 %v5654, %v2946
    %v5656 = vmax.f32 %v5655, %v2952
    %v5657 = vmax.f32 %v5656, %v2956
    %v5658 = vmax.f32 %v5657, %v2962
    %v5659 = vmax.f32 %v5658, %v2966
    %v5660 = vmax.f32 %v5659, %v2972
    %v5661 = vmax.f32 %v5660, %v2976
    %v5662 = vrot.slane %v5661, 4
    %v5663 = vmax.f32 %v5661, %v5662
    %v5664 = vrot.slane %v5663, 2
    %v5665 = vmax.f32 %v5663, %v5664
    %v5666 = vrot.slane %v5665, 1
    %v5667 = vmax.f32 %v5665, %v5666
    %v5668 = vmax.f32 %v2904, %v2908
    %v5669 = vmax.f32 %v5668, %v2914
    %v5670 = vmax.f32 %v5669, %v2918
    %v5671 = vmax.f32 %v5670, %v2924
    %v5672 = vmax.f32 %v5671, %v2928
    %v5673 = vmax.f32 %v5672, %v2934
    %v5674 = vmax.f32 %v5673, %v2938
    %v5675 = vmax.f32 %v5674, %v2944
    %v5676 = vmax.f32 %v5675, %v2948
    %v5677 = vmax.f32 %v5676, %v2954
    %v5678 = vmax.f32 %v5677, %v2958
    %v5679 = vmax.f32 %v5678, %v2964
    %v5680 = vmax.f32 %v5679, %v2968
    %v5681 = vmax.f32 %v5680, %v2974
    %v5682 = vmax.f32 %v5681, %v2978
    %v5683 = vrot.slane %v5682, 4
    %v5684 = vmax.f32 %v5682, %v5683
    %v5685 = vrot.slane %v5684, 2
    %v5686 = vmax.f32 %v5684, %v5685
    %v5687 = vrot.slane %v5686, 1
    %v5688 = vmax.f32 %v5686, %v5687
    %v5689 = vmax.f32 %v3575, %v3579
    %v5690 = vmax.f32 %v5689, %v3585
    %v5691 = vmax.f32 %v5690, %v3589
    %v5692 = vmax.f32 %v5691, %v3595
    %v5693 = vmax.f32 %v5692, %v3599
    %v5694 = vmax.f32 %v5693, %v3605
    %v5695 = vmax.f32 %v5694, %v3609
    %v5696 = vmax.f32 %v5695, %v3615
    %v5697 = vmax.f32 %v5696, %v3619
    %v5698 = vmax.f32 %v5697, %v3625
    %v5699 = vmax.f32 %v5698, %v3629
    %v5700 = vmax.f32 %v5699, %v3635
    %v5701 = vmax.f32 %v5700, %v3639
    %v5702 = vmax.f32 %v5701, %v3645
    %v5703 = vmax.f32 %v5702, %v3649
    %v5704 = vrot.slane %v5703, 4
    %v5705 = vmax.f32 %v5703, %v5704
    %v5706 = vrot.slane %v5705, 2
    %v5707 = vmax.f32 %v5705, %v5706
    %v5708 = vrot.slane %v5707, 1
    %v5709 = vmax.f32 %v5707, %v5708
    %v5710 = vmax.f32 %v3577, %v3581
    %v5711 = vmax.f32 %v5710, %v3587
    %v5712 = vmax.f32 %v5711, %v3591
    %v5713 = vmax.f32 %v5712, %v3597
    %v5714 = vmax.f32 %v5713, %v3601
    %v5715 = vmax.f32 %v5714, %v3607
    %v5716 = vmax.f32 %v5715, %v3611
    %v5717 = vmax.f32 %v5716, %v3617
    %v5718 = vmax.f32 %v5717, %v3621
    %v5719 = vmax.f32 %v5718, %v3627
    %v5720 = vmax.f32 %v5719, %v3631
    %v5721 = vmax.f32 %v5720, %v3637
    %v5722 = vmax.f32 %v5721, %v3641
    %v5723 = vmax.f32 %v5722, %v3647
    %v5724 = vmax.f32 %v5723, %v3651
    %v5725 = vrot.slane %v5724, 4
    %v5726 = vmax.f32 %v5724, %v5725
    %v5727 = vrot.slane %v5726, 2
    %v5728 = vmax.f32 %v5726, %v5727
    %v5729 = vrot.slane %v5728, 1
    %v5730 = vmax.f32 %v5728, %v5729
    %v5731 = vmax.f32 %v4248, %v4252
    %v5732 = vmax.f32 %v5731, %v4258
    %v5733 = vmax.f32 %v5732, %v4262
    %v5734 = vmax.f32 %v5733, %v4268
    %v5735 = vmax.f32 %v5734, %v4272
    %v5736 = vmax.f32 %v5735, %v4278
    %v5737 = vmax.f32 %v5736, %v4282
    %v5738 = vmax.f32 %v5737, %v4288
    %v5739 = vmax.f32 %v5738, %v4292
    %v5740 = vmax.f32 %v5739, %v4298
    %v5741 = vmax.f32 %v5740, %v4302
    %v5742 = vmax.f32 %v5741, %v4308
    %v5743 = vmax.f32 %v5742, %v4312
    %v5744 = vmax.f32 %v5743, %v4318
    %v5745 = vmax.f32 %v5744, %v4322
    %v5746 = vrot.slane %v5745, 4
    %v5747 = vmax.f32 %v5745, %v5746
    %v5748 = vrot.slane %v5747, 2
    %v5749 = vmax.f32 %v5747, %v5748
    %v5750 = vrot.slane %v5749, 1
    %v5751 = vmax.f32 %v5749, %v5750
    %v5752 = vmax.f32 %v4250, %v4254
    %v5753 = vmax.f32 %v5752, %v4260
    %v5754 = vmax.f32 %v5753, %v4264
    %v5755 = vmax.f32 %v5754, %v4270
    %v5756 = vmax.f32 %v5755, %v4274
    %v5757 = vmax.f32 %v5756, %v4280
    %v5758 = vmax.f32 %v5757, %v4284
    %v5759 = vmax.f32 %v5758, %v4290
    %v5760 = vmax.f32 %v5759, %v4294
    %v5761 = vmax.f32 %v5760, %v4300
    %v5762 = vmax.f32 %v5761, %v4304
    %v5763 = vmax.f32 %v5762, %v4310
    %v5764 = vmax.f32 %v5763, %v4314
    %v5765 = vmax.f32 %v5764, %v4320
    %v5766 = vmax.f32 %v5765, %v4324
    %v5767 = vrot.slane %v5766, 4
    %v5768 = vmax.f32 %v5766, %v5767
    %v5769 = vrot.slane %v5768, 2
    %v5770 = vmax.f32 %v5768, %v5769
    %v5771 = vrot.slane %v5770, 1
    %v5772 = vmax.f32 %v5770, %v5771
    %v5773 = vmax.f32 %v4921, %v4925
    %v5774 = vmax.f32 %v5773, %v4931
    %v5775 = vmax.f32 %v5774, %v4935
    %v5776 = vmax.f32 %v5775, %v4941
    %v5777 = vmax.f32 %v5776, %v4945
    %v5778 = vmax.f32 %v5777, %v4951
    %v5779 = vmax.f32 %v5778, %v4955
    %v5780 = vmax.f32 %v5779, %v4961
    %v5781 = vmax.f32 %v5780, %v4965
    %v5782 = vmax.f32 %v5781, %v4971
    %v5783 = vmax.f32 %v5782, %v4975
    %v5784 = vmax.f32 %v5783, %v4981
    %v5785 = vmax.f32 %v5784, %v4985
    %v5786 = vmax.f32 %v5785, %v4991
    %v5787 = vmax.f32 %v5786, %v4995
    %v5788 = vrot.slane %v5787, 4
    %v5789 = vmax.f32 %v5787, %v5788
    %v5790 = vrot.slane %v5789, 2
    %v5791 = vmax.f32 %v5789, %v5790
    %v5792 = vrot.slane %v5791, 1
    %v5793 = vmax.f32 %v5791, %v5792
    %v5794 = vmax.f32 %v4923, %v4927
    %v5795 = vmax.f32 %v5794, %v4933
    %v5796 = vmax.f32 %v5795, %v4937
    %v5797 = vmax.f32 %v5796, %v4943
    %v5798 = vmax.f32 %v5797, %v4947
    %v5799 = vmax.f32 %v5798, %v4953
    %v5800 = vmax.f32 %v5799, %v4957
    %v5801 = vmax.f32 %v5800, %v4963
    %v5802 = vmax.f32 %v5801, %v4967
    %v5803 = vmax.f32 %v5802, %v4973
    %v5804 = vmax.f32 %v5803, %v4977
    %v5805 = vmax.f32 %v5804, %v4983
    %v5806 = vmax.f32 %v5805, %v4987
    %v5807 = vmax.f32 %v5806, %v4993
    %v5808 = vmax.f32 %v5807, %v4997
    %v5809 = vrot.slane %v5808, 4
    %v5810 = vmax.f32 %v5808, %v5809
    %v5811 = vrot.slane %v5810, 2
    %v5812 = vmax.f32 %v5810, %v5811
    %v5813 = vrot.slane %v5812, 1
    %v5814 = vmax.f32 %v5812, %v5813
    %v5815 = vmax.f32 %v2982, %v2986
    %v5816 = vmax.f32 %v5815, %v2992
    %v5817 = vmax.f32 %v5816, %v2996
    %v5818 = vmax.f32 %v5817, %v3002
    %v5819 = vmax.f32 %v5818, %v3006
    %v5820 = vmax.f32 %v5819, %v3012
    %v5821 = vmax.f32 %v5820, %v3016
    %v5822 = vmax.f32 %v5821, %v3022
    %v5823 = vmax.f32 %v5822, %v3026
    %v5824 = vmax.f32 %v5823, %v3032
    %v5825 = vmax.f32 %v5824, %v3036
    %v5826 = vmax.f32 %v5825, %v3042
    %v5827 = vmax.f32 %v5826, %v3046
    %v5828 = vmax.f32 %v5827, %v3052
    %v5829 = vmax.f32 %v5828, %v3056
    %v5830 = vrot.slane %v5829, 4
    %v5831 = vmax.f32 %v5829, %v5830
    %v5832 = vrot.slane %v5831, 2
    %v5833 = vmax.f32 %v5831, %v5832
    %v5834 = vrot.slane %v5833, 1
    %v5835 = vmax.f32 %v5833, %v5834
    %v5836 = vmax.f32 %v2984, %v2988
    %v5837 = vmax.f32 %v5836, %v2994
    %v5838 = vmax.f32 %v5837, %v2998
    %v5839 = vmax.f32 %v5838, %v3004
    %v5840 = vmax.f32 %v5839, %v3008
    %v5841 = vmax.f32 %v5840, %v3014
    %v5842 = vmax.f32 %v5841, %v3018
    %v5843 = vmax.f32 %v5842, %v3024
    %v5844 = vmax.f32 %v5843, %v3028
    %v5845 = vmax.f32 %v5844, %v3034
    %v5846 = vmax.f32 %v5845, %v3038
    %v5847 = vmax.f32 %v5846, %v3044
    %v5848 = vmax.f32 %v5847, %v3048
    %v5849 = vmax.f32 %v5848, %v3054
    %v5850 = vmax.f32 %v5849, %v3058
    %v5851 = vrot.slane %v5850, 4
    %v5852 = vmax.f32 %v5850, %v5851
    %v5853 = vrot.slane %v5852, 2
    %v5854 = vmax.f32 %v5852, %v5853
    %v5855 = vrot.slane %v5854, 1
    %v5856 = vmax.f32 %v5854, %v5855
    %v5857 = vmax.f32 %v3655, %v3659
    %v5858 = vmax.f32 %v5857, %v3665
    %v5859 = vmax.f32 %v5858, %v3669
    %v5860 = vmax.f32 %v5859, %v3675
    %v5861 = vmax.f32 %v5860, %v3679
    %v5862 = vmax.f32 %v5861, %v3685
    %v5863 = vmax.f32 %v5862, %v3689
    %v5864 = vmax.f32 %v5863, %v3695
    %v5865 = vmax.f32 %v5864, %v3699
    %v5866 = vmax.f32 %v5865, %v3705
    %v5867 = vmax.f32 %v5866, %v3709
    %v5868 = vmax.f32 %v5867, %v3715
    %v5869 = vmax.f32 %v5868, %v3719
    %v5870 = vmax.f32 %v5869, %v3725
    %v5871 = vmax.f32 %v5870, %v3729
    %v5872 = vrot.slane %v5871, 4
    %v5873 = vmax.f32 %v5871, %v5872
    %v5874 = vrot.slane %v5873, 2
    %v5875 = vmax.f32 %v5873, %v5874
    %v5876 = vrot.slane %v5875, 1
    %v5877 = vmax.f32 %v5875, %v5876
    %v5878 = vmax.f32 %v3657, %v3661
    %v5879 = vmax.f32 %v5878, %v3667
    %v5880 = vmax.f32 %v5879, %v3671
    %v5881 = vmax.f32 %v5880, %v3677
    %v5882 = vmax.f32 %v5881, %v3681
    %v5883 = vmax.f32 %v5882, %v3687
    %v5884 = vmax.f32 %v5883, %v3691
    %v5885 = vmax.f32 %v5884, %v3697
    %v5886 = vmax.f32 %v5885, %v3701
    %v5887 = vmax.f32 %v5886, %v3707
    %v5888 = vmax.f32 %v5887, %v3711
    %v5889 = vmax.f32 %v5888, %v3717
    %v5890 = vmax.f32 %v5889, %v3721
    %v5891 = vmax.f32 %v5890, %v3727
    %v5892 = vmax.f32 %v5891, %v3731
    %v5893 = vrot.slane %v5892, 4
    %v5894 = vmax.f32 %v5892, %v5893
    %v5895 = vrot.slane %v5894, 2
    %v5896 = vmax.f32 %v5894, %v5895
    %v5897 = vrot.slane %v5896, 1
    %v5898 = vmax.f32 %v5896, %v5897
    %v5899 = vmax.f32 %v4328, %v4332
    %v5900 = vmax.f32 %v5899, %v4338
    %v5901 = vmax.f32 %v5900, %v4342
    %v5902 = vmax.f32 %v5901, %v4348
    %v5903 = vmax.f32 %v5902, %v4352
    %v5904 = vmax.f32 %v5903, %v4358
    %v5905 = vmax.f32 %v5904, %v4362
    %v5906 = vmax.f32 %v5905, %v4368
    %v5907 = vmax.f32 %v5906, %v4372
    %v5908 = vmax.f32 %v5907, %v4378
    %v5909 = vmax.f32 %v5908, %v4382
    %v5910 = vmax.f32 %v5909, %v4388
    %v5911 = vmax.f32 %v5910, %v4392
    %v5912 = vmax.f32 %v5911, %v4398
    %v5913 = vmax.f32 %v5912, %v4402
    %v5914 = vrot.slane %v5913, 4
    %v5915 = vmax.f32 %v5913, %v5914
    %v5916 = vrot.slane %v5915, 2
    %v5917 = vmax.f32 %v5915, %v5916
    %v5918 = vrot.slane %v5917, 1
    %v5919 = vmax.f32 %v5917, %v5918
    %v5920 = vmax.f32 %v4330, %v4334
    %v5921 = vmax.f32 %v5920, %v4340
    %v5922 = vmax.f32 %v5921, %v4344
    %v5923 = vmax.f32 %v5922, %v4350
    %v5924 = vmax.f32 %v5923, %v4354
    %v5925 = vmax.f32 %v5924, %v4360
    %v5926 = vmax.f32 %v5925, %v4364
    %v5927 = vmax.f32 %v5926, %v4370
    %v5928 = vmax.f32 %v5927, %v4374
    %v5929 = vmax.f32 %v5928, %v4380
    %v5930 = vmax.f32 %v5929, %v4384
    %v5931 = vmax.f32 %v5930, %v4390
    %v5932 = vmax.f32 %v5931, %v4394
    %v5933 = vmax.f32 %v5932, %v4400
    %v5934 = vmax.f32 %v5933, %v4404
    %v5935 = vrot.slane %v5934, 4
    %v5936 = vmax.f32 %v5934, %v5935
    %v5937 = vrot.slane %v5936, 2
    %v5938 = vmax.f32 %v5936, %v5937
    %v5939 = vrot.slane %v5938, 1
    %v5940 = vmax.f32 %v5938, %v5939
    %v5941 = vmax.f32 %v5001, %v5005
    %v5942 = vmax.f32 %v5941, %v5011
    %v5943 = vmax.f32 %v5942, %v5015
    %v5944 = vmax.f32 %v5943, %v5021
    %v5945 = vmax.f32 %v5944, %v5025
    %v5946 = vmax.f32 %v5945, %v5031
    %v5947 = vmax.f32 %v5946, %v5035
    %v5948 = vmax.f32 %v5947, %v5041
    %v5949 = vmax.f32 %v5948, %v5045
    %v5950 = vmax.f32 %v5949, %v5051
    %v5951 = vmax.f32 %v5950, %v5055
    %v5952 = vmax.f32 %v5951, %v5061
    %v5953 = vmax.f32 %v5952, %v5065
    %v5954 = vmax.f32 %v5953, %v5071
    %v5955 = vmax.f32 %v5954, %v5075
    %v5956 = vrot.slane %v5955, 4
    %v5957 = vmax.f32 %v5955, %v5956
    %v5958 = vrot.slane %v5957, 2
    %v5959 = vmax.f32 %v5957, %v5958
    %v5960 = vrot.slane %v5959, 1
    %v5961 = vmax.f32 %v5959, %v5960
    %v5962 = vmax.f32 %v5003, %v5007
    %v5963 = vmax.f32 %v5962, %v5013
    %v5964 = vmax.f32 %v5963, %v5017
    %v5965 = vmax.f32 %v5964, %v5023
    %v5966 = vmax.f32 %v5965, %v5027
    %v5967 = vmax.f32 %v5966, %v5033
    %v5968 = vmax.f32 %v5967, %v5037
    %v5969 = vmax.f32 %v5968, %v5043
    %v5970 = vmax.f32 %v5969, %v5047
    %v5971 = vmax.f32 %v5970, %v5053
    %v5972 = vmax.f32 %v5971, %v5057
    %v5973 = vmax.f32 %v5972, %v5063
    %v5974 = vmax.f32 %v5973, %v5067
    %v5975 = vmax.f32 %v5974, %v5073
    %v5976 = vmax.f32 %v5975, %v5077
    %v5977 = vrot.slane %v5976, 4
    %v5978 = vmax.f32 %v5976, %v5977
    %v5979 = vrot.slane %v5978, 2
    %v5980 = vmax.f32 %v5978, %v5979
    %v5981 = vrot.slane %v5980, 1
    %v5982 = vmax.f32 %v5980, %v5981
    %v5983 = vmax.f32 %v3062, %v3066
    %v5984 = vmax.f32 %v5983, %v3072
    %v5985 = vmax.f32 %v5984, %v3076
    %v5986 = vmax.f32 %v5985, %v3082
    %v5987 = vmax.f32 %v5986, %v3086
    %v5988 = vmax.f32 %v5987, %v3092
    %v5989 = vmax.f32 %v5988, %v3096
    %v5990 = vmax.f32 %v5989, %v3102
    %v5991 = vmax.f32 %v5990, %v3106
    %v5992 = vmax.f32 %v5991, %v3112
    %v5993 = vmax.f32 %v5992, %v3116
    %v5994 = vmax.f32 %v5993, %v3122
    %v5995 = vmax.f32 %v5994, %v3126
    %v5996 = vmax.f32 %v5995, %v3132
    %v5997 = vmax.f32 %v5996, %v3136
    %v5998 = vrot.slane %v5997, 4
    %v5999 = vmax.f32 %v5997, %v5998
    %v6000 = vrot.slane %v5999, 2
    %v6001 = vmax.f32 %v5999, %v6000
    %v6002 = vrot.slane %v6001, 1
    %v6003 = vmax.f32 %v6001, %v6002
    %v6004 = vmax.f32 %v3064, %v3068
    %v6005 = vmax.f32 %v6004, %v3074
    %v6006 = vmax.f32 %v6005, %v3078
    %v6007 = vmax.f32 %v6006, %v3084
    %v6008 = vmax.f32 %v6007, %v3088
    %v6009 = vmax.f32 %v6008, %v3094
    %v6010 = vmax.f32 %v6009, %v3098
    %v6011 = vmax.f32 %v6010, %v3104
    %v6012 = vmax.f32 %v6011, %v3108
    %v6013 = vmax.f32 %v6012, %v3114
    %v6014 = vmax.f32 %v6013, %v3118
    %v6015 = vmax.f32 %v6014, %v3124
    %v6016 = vmax.f32 %v6015, %v3128
    %v6017 = vmax.f32 %v6016, %v3134
    %v6018 = vmax.f32 %v6017, %v3138
    %v6019 = vrot.slane %v6018, 4
    %v6020 = vmax.f32 %v6018, %v6019
    %v6021 = vrot.slane %v6020, 2
    %v6022 = vmax.f32 %v6020, %v6021
    %v6023 = vrot.slane %v6022, 1
    %v6024 = vmax.f32 %v6022, %v6023
    %v6025 = vmax.f32 %v3735, %v3739
    %v6026 = vmax.f32 %v6025, %v3745
    %v6027 = vmax.f32 %v6026, %v3749
    %v6028 = vmax.f32 %v6027, %v3755
    %v6029 = vmax.f32 %v6028, %v3759
    %v6030 = vmax.f32 %v6029, %v3765
    %v6031 = vmax.f32 %v6030, %v3769
    %v6032 = vmax.f32 %v6031, %v3775
    %v6033 = vmax.f32 %v6032, %v3779
    %v6034 = vmax.f32 %v6033, %v3785
    %v6035 = vmax.f32 %v6034, %v3789
    %v6036 = vmax.f32 %v6035, %v3795
    %v6037 = vmax.f32 %v6036, %v3799
    %v6038 = vmax.f32 %v6037, %v3805
    %v6039 = vmax.f32 %v6038, %v3809
    %v6040 = vrot.slane %v6039, 4
    %v6041 = vmax.f32 %v6039, %v6040
    %v6042 = vrot.slane %v6041, 2
    %v6043 = vmax.f32 %v6041, %v6042
    %v6044 = vrot.slane %v6043, 1
    %v6045 = vmax.f32 %v6043, %v6044
    %v6046 = vmax.f32 %v3737, %v3741
    %v6047 = vmax.f32 %v6046, %v3747
    %v6048 = vmax.f32 %v6047, %v3751
    %v6049 = vmax.f32 %v6048, %v3757
    %v6050 = vmax.f32 %v6049, %v3761
    %v6051 = vmax.f32 %v6050, %v3767
    %v6052 = vmax.f32 %v6051, %v3771
    %v6053 = vmax.f32 %v6052, %v3777
    %v6054 = vmax.f32 %v6053, %v3781
    %v6055 = vmax.f32 %v6054, %v3787
    %v6056 = vmax.f32 %v6055, %v3791
    %v6057 = vmax.f32 %v6056, %v3797
    %v6058 = vmax.f32 %v6057, %v3801
    %v6059 = vmax.f32 %v6058, %v3807
    %v6060 = vmax.f32 %v6059, %v3811
    %v6061 = vrot.slane %v6060, 4
    %v6062 = vmax.f32 %v6060, %v6061
    %v6063 = vrot.slane %v6062, 2
    %v6064 = vmax.f32 %v6062, %v6063
    %v6065 = vrot.slane %v6064, 1
    %v6066 = vmax.f32 %v6064, %v6065
    %v6067 = vmax.f32 %v4408, %v4412
    %v6068 = vmax.f32 %v6067, %v4418
    %v6069 = vmax.f32 %v6068, %v4422
    %v6070 = vmax.f32 %v6069, %v4428
    %v6071 = vmax.f32 %v6070, %v4432
    %v6072 = vmax.f32 %v6071, %v4438
    %v6073 = vmax.f32 %v6072, %v4442
    %v6074 = vmax.f32 %v6073, %v4448
    %v6075 = vmax.f32 %v6074, %v4452
    %v6076 = vmax.f32 %v6075, %v4458
    %v6077 = vmax.f32 %v6076, %v4462
    %v6078 = vmax.f32 %v6077, %v4468
    %v6079 = vmax.f32 %v6078, %v4472
    %v6080 = vmax.f32 %v6079, %v4478
    %v6081 = vmax.f32 %v6080, %v4482
    %v6082 = vrot.slane %v6081, 4
    %v6083 = vmax.f32 %v6081, %v6082
    %v6084 = vrot.slane %v6083, 2
    %v6085 = vmax.f32 %v6083, %v6084
    %v6086 = vrot.slane %v6085, 1
    %v6087 = vmax.f32 %v6085, %v6086
    %v6088 = vmax.f32 %v4410, %v4414
    %v6089 = vmax.f32 %v6088, %v4420
    %v6090 = vmax.f32 %v6089, %v4424
    %v6091 = vmax.f32 %v6090, %v4430
    %v6092 = vmax.f32 %v6091, %v4434
    %v6093 = vmax.f32 %v6092, %v4440
    %v6094 = vmax.f32 %v6093, %v4444
    %v6095 = vmax.f32 %v6094, %v4450
    %v6096 = vmax.f32 %v6095, %v4454
    %v6097 = vmax.f32 %v6096, %v4460
    %v6098 = vmax.f32 %v6097, %v4464
    %v6099 = vmax.f32 %v6098, %v4470
    %v6100 = vmax.f32 %v6099, %v4474
    %v6101 = vmax.f32 %v6100, %v4480
    %v6102 = vmax.f32 %v6101, %v4484
    %v6103 = vrot.slane %v6102, 4
    %v6104 = vmax.f32 %v6102, %v6103
    %v6105 = vrot.slane %v6104, 2
    %v6106 = vmax.f32 %v6104, %v6105
    %v6107 = vrot.slane %v6106, 1
    %v6108 = vmax.f32 %v6106, %v6107
    %v6109 = vmax.f32 %v5081, %v5085
    %v6110 = vmax.f32 %v6109, %v5091
    %v6111 = vmax.f32 %v6110, %v5095
    %v6112 = vmax.f32 %v6111, %v5101
    %v6113 = vmax.f32 %v6112, %v5105
    %v6114 = vmax.f32 %v6113, %v5111
    %v6115 = vmax.f32 %v6114, %v5115
    %v6116 = vmax.f32 %v6115, %v5121
    %v6117 = vmax.f32 %v6116, %v5125
    %v6118 = vmax.f32 %v6117, %v5131
    %v6119 = vmax.f32 %v6118, %v5135
    %v6120 = vmax.f32 %v6119, %v5141
    %v6121 = vmax.f32 %v6120, %v5145
    %v6122 = vmax.f32 %v6121, %v5151
    %v6123 = vmax.f32 %v6122, %v5155
    %v6124 = vrot.slane %v6123, 4
    %v6125 = vmax.f32 %v6123, %v6124
    %v6126 = vrot.slane %v6125, 2
    %v6127 = vmax.f32 %v6125, %v6126
    %v6128 = vrot.slane %v6127, 1
    %v6129 = vmax.f32 %v6127, %v6128
    %v6130 = vmax.f32 %v5083, %v5087
    %v6131 = vmax.f32 %v6130, %v5093
    %v6132 = vmax.f32 %v6131, %v5097
    %v6133 = vmax.f32 %v6132, %v5103
    %v6134 = vmax.f32 %v6133, %v5107
    %v6135 = vmax.f32 %v6134, %v5113
    %v6136 = vmax.f32 %v6135, %v5117
    %v6137 = vmax.f32 %v6136, %v5123
    %v6138 = vmax.f32 %v6137, %v5127
    %v6139 = vmax.f32 %v6138, %v5133
    %v6140 = vmax.f32 %v6139, %v5137
    %v6141 = vmax.f32 %v6140, %v5143
    %v6142 = vmax.f32 %v6141, %v5147
    %v6143 = vmax.f32 %v6142, %v5153
    %v6144 = vmax.f32 %v6143, %v5157
    %v6145 = vrot.slane %v6144, 4
    %v6146 = vmax.f32 %v6144, %v6145
    %v6147 = vrot.slane %v6146, 2
    %v6148 = vmax.f32 %v6146, %v6147
    %v6149 = vrot.slane %v6148, 1
    %v6150 = vmax.f32 %v6148, %v6149
    %v6151 = vmax.f32 %v3142, %v3146
    %v6152 = vmax.f32 %v6151, %v3152
    %v6153 = vmax.f32 %v6152, %v3156
    %v6154 = vmax.f32 %v6153, %v3162
    %v6155 = vmax.f32 %v6154, %v3166
    %v6156 = vmax.f32 %v6155, %v3172
    %v6157 = vmax.f32 %v6156, %v3176
    %v6158 = vmax.f32 %v6157, %v3182
    %v6159 = vmax.f32 %v6158, %v3186
    %v6160 = vmax.f32 %v6159, %v3192
    %v6161 = vmax.f32 %v6160, %v3196
    %v6162 = vmax.f32 %v6161, %v3202
    %v6163 = vmax.f32 %v6162, %v3206
    %v6164 = vmax.f32 %v6163, %v3212
    %v6165 = vmax.f32 %v6164, %v3216
    %v6166 = vrot.slane %v6165, 4
    %v6167 = vmax.f32 %v6165, %v6166
    %v6168 = vrot.slane %v6167, 2
    %v6169 = vmax.f32 %v6167, %v6168
    %v6170 = vrot.slane %v6169, 1
    %v6171 = vmax.f32 %v6169, %v6170
    %v6172 = vmax.f32 %v3144, %v3148
    %v6173 = vmax.f32 %v6172, %v3154
    %v6174 = vmax.f32 %v6173, %v3158
    %v6175 = vmax.f32 %v6174, %v3164
    %v6176 = vmax.f32 %v6175, %v3168
    %v6177 = vmax.f32 %v6176, %v3174
    %v6178 = vmax.f32 %v6177, %v3178
    %v6179 = vmax.f32 %v6178, %v3184
    %v6180 = vmax.f32 %v6179, %v3188
    %v6181 = vmax.f32 %v6180, %v3194
    %v6182 = vmax.f32 %v6181, %v3198
    %v6183 = vmax.f32 %v6182, %v3204
    %v6184 = vmax.f32 %v6183, %v3208
    %v6185 = vmax.f32 %v6184, %v3214
    %v6186 = vmax.f32 %v6185, %v3218
    %v6187 = vrot.slane %v6186, 4
    %v6188 = vmax.f32 %v6186, %v6187
    %v6189 = vrot.slane %v6188, 2
    %v6190 = vmax.f32 %v6188, %v6189
    %v6191 = vrot.slane %v6190, 1
    %v6192 = vmax.f32 %v6190, %v6191
    %v6193 = vmax.f32 %v3815, %v3819
    %v6194 = vmax.f32 %v6193, %v3825
    %v6195 = vmax.f32 %v6194, %v3829
    %v6196 = vmax.f32 %v6195, %v3835
    %v6197 = vmax.f32 %v6196, %v3839
    %v6198 = vmax.f32 %v6197, %v3845
    %v6199 = vmax.f32 %v6198, %v3849
    %v6200 = vmax.f32 %v6199, %v3855
    %v6201 = vmax.f32 %v6200, %v3859
    %v6202 = vmax.f32 %v6201, %v3865
    %v6203 = vmax.f32 %v6202, %v3869
    %v6204 = vmax.f32 %v6203, %v3875
    %v6205 = vmax.f32 %v6204, %v3879
    %v6206 = vmax.f32 %v6205, %v3885
    %v6207 = vmax.f32 %v6206, %v3889
    %v6208 = vrot.slane %v6207, 4
    %v6209 = vmax.f32 %v6207, %v6208
    %v6210 = vrot.slane %v6209, 2
    %v6211 = vmax.f32 %v6209, %v6210
    %v6212 = vrot.slane %v6211, 1
    %v6213 = vmax.f32 %v6211, %v6212
    %v6214 = vmax.f32 %v3817, %v3821
    %v6215 = vmax.f32 %v6214, %v3827
    %v6216 = vmax.f32 %v6215, %v3831
    %v6217 = vmax.f32 %v6216, %v3837
    %v6218 = vmax.f32 %v6217, %v3841
    %v6219 = vmax.f32 %v6218, %v3847
    %v6220 = vmax.f32 %v6219, %v3851
    %v6221 = vmax.f32 %v6220, %v3857
    %v6222 = vmax.f32 %v6221, %v3861
    %v6223 = vmax.f32 %v6222, %v3867
    %v6224 = vmax.f32 %v6223, %v3871
    %v6225 = vmax.f32 %v6224, %v3877
    %v6226 = vmax.f32 %v6225, %v3881
    %v6227 = vmax.f32 %v6226, %v3887
    %v6228 = vmax.f32 %v6227, %v3891
    %v6229 = vrot.slane %v6228, 4
    %v6230 = vmax.f32 %v6228, %v6229
    %v6231 = vrot.slane %v6230, 2
    %v6232 = vmax.f32 %v6230, %v6231
    %v6233 = vrot.slane %v6232, 1
    %v6234 = vmax.f32 %v6232, %v6233
    %v6235 = vmax.f32 %v4488, %v4492
    %v6236 = vmax.f32 %v6235, %v4498
    %v6237 = vmax.f32 %v6236, %v4502
    %v6238 = vmax.f32 %v6237, %v4508
    %v6239 = vmax.f32 %v6238, %v4512
    %v6240 = vmax.f32 %v6239, %v4518
    %v6241 = vmax.f32 %v6240, %v4522
    %v6242 = vmax.f32 %v6241, %v4528
    %v6243 = vmax.f32 %v6242, %v4532
    %v6244 = vmax.f32 %v6243, %v4538
    %v6245 = vmax.f32 %v6244, %v4542
    %v6246 = vmax.f32 %v6245, %v4548
    %v6247 = vmax.f32 %v6246, %v4552
    %v6248 = vmax.f32 %v6247, %v4558
    %v6249 = vmax.f32 %v6248, %v4562
    %v6250 = vrot.slane %v6249, 4
    %v6251 = vmax.f32 %v6249, %v6250
    %v6252 = vrot.slane %v6251, 2
    %v6253 = vmax.f32 %v6251, %v6252
    %v6254 = vrot.slane %v6253, 1
    %v6255 = vmax.f32 %v6253, %v6254
    %v6256 = vmax.f32 %v4490, %v4494
    %v6257 = vmax.f32 %v6256, %v4500
    %v6258 = vmax.f32 %v6257, %v4504
    %v6259 = vmax.f32 %v6258, %v4510
    %v6260 = vmax.f32 %v6259, %v4514
    %v6261 = vmax.f32 %v6260, %v4520
    %v6262 = vmax.f32 %v6261, %v4524
    %v6263 = vmax.f32 %v6262, %v4530
    %v6264 = vmax.f32 %v6263, %v4534
    %v6265 = vmax.f32 %v6264, %v4540
    %v6266 = vmax.f32 %v6265, %v4544
    %v6267 = vmax.f32 %v6266, %v4550
    %v6268 = vmax.f32 %v6267, %v4554
    %v6269 = vmax.f32 %v6268, %v4560
    %v6270 = vmax.f32 %v6269, %v4564
    %v6271 = vrot.slane %v6270, 4
    %v6272 = vmax.f32 %v6270, %v6271
    %v6273 = vrot.slane %v6272, 2
    %v6274 = vmax.f32 %v6272, %v6273
    %v6275 = vrot.slane %v6274, 1
    %v6276 = vmax.f32 %v6274, %v6275
    %v6277 = vmax.f32 %v5161, %v5165
    %v6278 = vmax.f32 %v6277, %v5171
    %v6279 = vmax.f32 %v6278, %v5175
    %v6280 = vmax.f32 %v6279, %v5181
    %v6281 = vmax.f32 %v6280, %v5185
    %v6282 = vmax.f32 %v6281, %v5191
    %v6283 = vmax.f32 %v6282, %v5195
    %v6284 = vmax.f32 %v6283, %v5201
    %v6285 = vmax.f32 %v6284, %v5205
    %v6286 = vmax.f32 %v6285, %v5211
    %v6287 = vmax.f32 %v6286, %v5215
    %v6288 = vmax.f32 %v6287, %v5221
    %v6289 = vmax.f32 %v6288, %v5225
    %v6290 = vmax.f32 %v6289, %v5231
    %v6291 = vmax.f32 %v6290, %v5235
    %v6292 = vrot.slane %v6291, 4
    %v6293 = vmax.f32 %v6291, %v6292
    %v6294 = vrot.slane %v6293, 2
    %v6295 = vmax.f32 %v6293, %v6294
    %v6296 = vrot.slane %v6295, 1
    %v6297 = vmax.f32 %v6295, %v6296
    %v6298 = vmax.f32 %v5163, %v5167
    %v6299 = vmax.f32 %v6298, %v5173
    %v6300 = vmax.f32 %v6299, %v5177
    %v6301 = vmax.f32 %v6300, %v5183
    %v6302 = vmax.f32 %v6301, %v5187
    %v6303 = vmax.f32 %v6302, %v5193
    %v6304 = vmax.f32 %v6303, %v5197
    %v6305 = vmax.f32 %v6304, %v5203
    %v6306 = vmax.f32 %v6305, %v5207
    %v6307 = vmax.f32 %v6306, %v5213
    %v6308 = vmax.f32 %v6307, %v5217
    %v6309 = vmax.f32 %v6308, %v5223
    %v6310 = vmax.f32 %v6309, %v5227
    %v6311 = vmax.f32 %v6310, %v5233
    %v6312 = vmax.f32 %v6311, %v5237
    %v6313 = vrot.slane %v6312, 4
    %v6314 = vmax.f32 %v6312, %v6313
    %v6315 = vrot.slane %v6314, 2
    %v6316 = vmax.f32 %v6314, %v6315
    %v6317 = vrot.slane %v6316, 1
    %v6318 = vmax.f32 %v6316, %v6317
    %v6319 = vmax.f32 %v3222, %v3226
    %v6320 = vmax.f32 %v6319, %v3232
    %v6321 = vmax.f32 %v6320, %v3236
    %v6322 = vmax.f32 %v6321, %v3242
    %v6323 = vmax.f32 %v6322, %v3246
    %v6324 = vmax.f32 %v6323, %v3252
    %v6325 = vmax.f32 %v6324, %v3256
    %v6326 = vmax.f32 %v6325, %v3262
    %v6327 = vmax.f32 %v6326, %v3266
    %v6328 = vmax.f32 %v6327, %v3272
    %v6329 = vmax.f32 %v6328, %v3276
    %v6330 = vmax.f32 %v6329, %v3282
    %v6331 = vmax.f32 %v6330, %v3286
    %v6332 = vmax.f32 %v6331, %v3292
    %v6333 = vmax.f32 %v6332, %v3296
    %v6334 = vrot.slane %v6333, 4
    %v6335 = vmax.f32 %v6333, %v6334
    %v6336 = vrot.slane %v6335, 2
    %v6337 = vmax.f32 %v6335, %v6336
    %v6338 = vrot.slane %v6337, 1
    %v6339 = vmax.f32 %v6337, %v6338
    %v6340 = vmax.f32 %v3224, %v3228
    %v6341 = vmax.f32 %v6340, %v3234
    %v6342 = vmax.f32 %v6341, %v3238
    %v6343 = vmax.f32 %v6342, %v3244
    %v6344 = vmax.f32 %v6343, %v3248
    %v6345 = vmax.f32 %v6344, %v3254
    %v6346 = vmax.f32 %v6345, %v3258
    %v6347 = vmax.f32 %v6346, %v3264
    %v6348 = vmax.f32 %v6347, %v3268
    %v6349 = vmax.f32 %v6348, %v3274
    %v6350 = vmax.f32 %v6349, %v3278
    %v6351 = vmax.f32 %v6350, %v3284
    %v6352 = vmax.f32 %v6351, %v3288
    %v6353 = vmax.f32 %v6352, %v3294
    %v6354 = vmax.f32 %v6353, %v3298
    %v6355 = vrot.slane %v6354, 4
    %v6356 = vmax.f32 %v6354, %v6355
    %v6357 = vrot.slane %v6356, 2
    %v6358 = vmax.f32 %v6356, %v6357
    %v6359 = vrot.slane %v6358, 1
    %v6360 = vmax.f32 %v6358, %v6359
    %v6361 = vmax.f32 %v3895, %v3899
    %v6362 = vmax.f32 %v6361, %v3905
    %v6363 = vmax.f32 %v6362, %v3909
    %v6364 = vmax.f32 %v6363, %v3915
    %v6365 = vmax.f32 %v6364, %v3919
    %v6366 = vmax.f32 %v6365, %v3925
    %v6367 = vmax.f32 %v6366, %v3929
    %v6368 = vmax.f32 %v6367, %v3935
    %v6369 = vmax.f32 %v6368, %v3939
    %v6370 = vmax.f32 %v6369, %v3945
    %v6371 = vmax.f32 %v6370, %v3949
    %v6372 = vmax.f32 %v6371, %v3955
    %v6373 = vmax.f32 %v6372, %v3959
    %v6374 = vmax.f32 %v6373, %v3965
    %v6375 = vmax.f32 %v6374, %v3969
    %v6376 = vrot.slane %v6375, 4
    %v6377 = vmax.f32 %v6375, %v6376
    %v6378 = vrot.slane %v6377, 2
    %v6379 = vmax.f32 %v6377, %v6378
    %v6380 = vrot.slane %v6379, 1
    %v6381 = vmax.f32 %v6379, %v6380
    %v6382 = vmax.f32 %v3897, %v3901
    %v6383 = vmax.f32 %v6382, %v3907
    %v6384 = vmax.f32 %v6383, %v3911
    %v6385 = vmax.f32 %v6384, %v3917
    %v6386 = vmax.f32 %v6385, %v3921
    %v6387 = vmax.f32 %v6386, %v3927
    %v6388 = vmax.f32 %v6387, %v3931
    %v6389 = vmax.f32 %v6388, %v3937
    %v6390 = vmax.f32 %v6389, %v3941
    %v6391 = vmax.f32 %v6390, %v3947
    %v6392 = vmax.f32 %v6391, %v3951
    %v6393 = vmax.f32 %v6392, %v3957
    %v6394 = vmax.f32 %v6393, %v3961
    %v6395 = vmax.f32 %v6394, %v3967
    %v6396 = vmax.f32 %v6395, %v3971
    %v6397 = vrot.slane %v6396, 4
    %v6398 = vmax.f32 %v6396, %v6397
    %v6399 = vrot.slane %v6398, 2
    %v6400 = vmax.f32 %v6398, %v6399
    %v6401 = vrot.slane %v6400, 1
    %v6402 = vmax.f32 %v6400, %v6401
    %v6403 = vmax.f32 %v4568, %v4572
    %v6404 = vmax.f32 %v6403, %v4578
    %v6405 = vmax.f32 %v6404, %v4582
    %v6406 = vmax.f32 %v6405, %v4588
    %v6407 = vmax.f32 %v6406, %v4592
    %v6408 = vmax.f32 %v6407, %v4598
    %v6409 = vmax.f32 %v6408, %v4602
    %v6410 = vmax.f32 %v6409, %v4608
    %v6411 = vmax.f32 %v6410, %v4612
    %v6412 = vmax.f32 %v6411, %v4618
    %v6413 = vmax.f32 %v6412, %v4622
    %v6414 = vmax.f32 %v6413, %v4628
    %v6415 = vmax.f32 %v6414, %v4632
    %v6416 = vmax.f32 %v6415, %v4638
    %v6417 = vmax.f32 %v6416, %v4642
    %v6418 = vrot.slane %v6417, 4
    %v6419 = vmax.f32 %v6417, %v6418
    %v6420 = vrot.slane %v6419, 2
    %v6421 = vmax.f32 %v6419, %v6420
    %v6422 = vrot.slane %v6421, 1
    %v6423 = vmax.f32 %v6421, %v6422
    %v6424 = vmax.f32 %v4570, %v4574
    %v6425 = vmax.f32 %v6424, %v4580
    %v6426 = vmax.f32 %v6425, %v4584
    %v6427 = vmax.f32 %v6426, %v4590
    %v6428 = vmax.f32 %v6427, %v4594
    %v6429 = vmax.f32 %v6428, %v4600
    %v6430 = vmax.f32 %v6429, %v4604
    %v6431 = vmax.f32 %v6430, %v4610
    %v6432 = vmax.f32 %v6431, %v4614
    %v6433 = vmax.f32 %v6432, %v4620
    %v6434 = vmax.f32 %v6433, %v4624
    %v6435 = vmax.f32 %v6434, %v4630
    %v6436 = vmax.f32 %v6435, %v4634
    %v6437 = vmax.f32 %v6436, %v4640
    %v6438 = vmax.f32 %v6437, %v4644
    %v6439 = vrot.slane %v6438, 4
    %v6440 = vmax.f32 %v6438, %v6439
    %v6441 = vrot.slane %v6440, 2
    %v6442 = vmax.f32 %v6440, %v6441
    %v6443 = vrot.slane %v6442, 1
    %v6444 = vmax.f32 %v6442, %v6443
    %v6445 = vmax.f32 %v5241, %v5245
    %v6446 = vmax.f32 %v6445, %v5251
    %v6447 = vmax.f32 %v6446, %v5255
    %v6448 = vmax.f32 %v6447, %v5261
    %v6449 = vmax.f32 %v6448, %v5265
    %v6450 = vmax.f32 %v6449, %v5271
    %v6451 = vmax.f32 %v6450, %v5275
    %v6452 = vmax.f32 %v6451, %v5281
    %v6453 = vmax.f32 %v6452, %v5285
    %v6454 = vmax.f32 %v6453, %v5291
    %v6455 = vmax.f32 %v6454, %v5295
    %v6456 = vmax.f32 %v6455, %v5301
    %v6457 = vmax.f32 %v6456, %v5305
    %v6458 = vmax.f32 %v6457, %v5311
    %v6459 = vmax.f32 %v6458, %v5315
    %v6460 = vrot.slane %v6459, 4
    %v6461 = vmax.f32 %v6459, %v6460
    %v6462 = vrot.slane %v6461, 2
    %v6463 = vmax.f32 %v6461, %v6462
    %v6464 = vrot.slane %v6463, 1
    %v6465 = vmax.f32 %v6463, %v6464
    %v6466 = vmax.f32 %v5243, %v5247
    %v6467 = vmax.f32 %v6466, %v5253
    %v6468 = vmax.f32 %v6467, %v5257
    %v6469 = vmax.f32 %v6468, %v5263
    %v6470 = vmax.f32 %v6469, %v5267
    %v6471 = vmax.f32 %v6470, %v5273
    %v6472 = vmax.f32 %v6471, %v5277
    %v6473 = vmax.f32 %v6472, %v5283
    %v6474 = vmax.f32 %v6473, %v5287
    %v6475 = vmax.f32 %v6474, %v5293
    %v6476 = vmax.f32 %v6475, %v5297
    %v6477 = vmax.f32 %v6476, %v5303
    %v6478 = vmax.f32 %v6477, %v5307
    %v6479 = vmax.f32 %v6478, %v5313
    %v6480 = vmax.f32 %v6479, %v5317
    %v6481 = vrot.slane %v6480, 4
    %v6482 = vmax.f32 %v6480, %v6481
    %v6483 = vrot.slane %v6482, 2
    %v6484 = vmax.f32 %v6482, %v6483
    %v6485 = vrot.slane %v6484, 1
    %v6486 = vmax.f32 %v6484, %v6485
    %v6487 = vmax.f32 %v3302, %v3306
    %v6488 = vmax.f32 %v6487, %v3312
    %v6489 = vmax.f32 %v6488, %v3316
    %v6490 = vmax.f32 %v6489, %v3322
    %v6491 = vmax.f32 %v6490, %v3326
    %v6492 = vmax.f32 %v6491, %v3332
    %v6493 = vmax.f32 %v6492, %v3336
    %v6494 = vmax.f32 %v6493, %v3342
    %v6495 = vmax.f32 %v6494, %v3346
    %v6496 = vmax.f32 %v6495, %v3352
    %v6497 = vmax.f32 %v6496, %v3356
    %v6498 = vmax.f32 %v6497, %v3362
    %v6499 = vmax.f32 %v6498, %v3366
    %v6500 = vmax.f32 %v6499, %v3372
    %v6501 = vmax.f32 %v6500, %v3376
    %v6502 = vrot.slane %v6501, 4
    %v6503 = vmax.f32 %v6501, %v6502
    %v6504 = vrot.slane %v6503, 2
    %v6505 = vmax.f32 %v6503, %v6504
    %v6506 = vrot.slane %v6505, 1
    %v6507 = vmax.f32 %v6505, %v6506
    %v6508 = vmax.f32 %v3304, %v3308
    %v6509 = vmax.f32 %v6508, %v3314
    %v6510 = vmax.f32 %v6509, %v3318
    %v6511 = vmax.f32 %v6510, %v3324
    %v6512 = vmax.f32 %v6511, %v3328
    %v6513 = vmax.f32 %v6512, %v3334
    %v6514 = vmax.f32 %v6513, %v3338
    %v6515 = vmax.f32 %v6514, %v3344
    %v6516 = vmax.f32 %v6515, %v3348
    %v6517 = vmax.f32 %v6516, %v3354
    %v6518 = vmax.f32 %v6517, %v3358
    %v6519 = vmax.f32 %v6518, %v3364
    %v6520 = vmax.f32 %v6519, %v3368
    %v6521 = vmax.f32 %v6520, %v3374
    %v6522 = vmax.f32 %v6521, %v3378
    %v6523 = vrot.slane %v6522, 4
    %v6524 = vmax.f32 %v6522, %v6523
    %v6525 = vrot.slane %v6524, 2
    %v6526 = vmax.f32 %v6524, %v6525
    %v6527 = vrot.slane %v6526, 1
    %v6528 = vmax.f32 %v6526, %v6527
    %v6529 = vmax.f32 %v3975, %v3979
    %v6530 = vmax.f32 %v6529, %v3985
    %v6531 = vmax.f32 %v6530, %v3989
    %v6532 = vmax.f32 %v6531, %v3995
    %v6533 = vmax.f32 %v6532, %v3999
    %v6534 = vmax.f32 %v6533, %v4005
    %v6535 = vmax.f32 %v6534, %v4009
    %v6536 = vmax.f32 %v6535, %v4015
    %v6537 = vmax.f32 %v6536, %v4019
    %v6538 = vmax.f32 %v6537, %v4025
    %v6539 = vmax.f32 %v6538, %v4029
    %v6540 = vmax.f32 %v6539, %v4035
    %v6541 = vmax.f32 %v6540, %v4039
    %v6542 = vmax.f32 %v6541, %v4045
    %v6543 = vmax.f32 %v6542, %v4049
    %v6544 = vrot.slane %v6543, 4
    %v6545 = vmax.f32 %v6543, %v6544
    %v6546 = vrot.slane %v6545, 2
    %v6547 = vmax.f32 %v6545, %v6546
    %v6548 = vrot.slane %v6547, 1
    %v6549 = vmax.f32 %v6547, %v6548
    %v6550 = vmax.f32 %v3977, %v3981
    %v6551 = vmax.f32 %v6550, %v3987
    %v6552 = vmax.f32 %v6551, %v3991
    %v6553 = vmax.f32 %v6552, %v3997
    %v6554 = vmax.f32 %v6553, %v4001
    %v6555 = vmax.f32 %v6554, %v4007
    %v6556 = vmax.f32 %v6555, %v4011
    %v6557 = vmax.f32 %v6556, %v4017
    %v6558 = vmax.f32 %v6557, %v4021
    %v6559 = vmax.f32 %v6558, %v4027
    %v6560 = vmax.f32 %v6559, %v4031
    %v6561 = vmax.f32 %v6560, %v4037
    %v6562 = vmax.f32 %v6561, %v4041
    %v6563 = vmax.f32 %v6562, %v4047
    %v6564 = vmax.f32 %v6563, %v4051
    %v6565 = vrot.slane %v6564, 4
    %v6566 = vmax.f32 %v6564, %v6565
    %v6567 = vrot.slane %v6566, 2
    %v6568 = vmax.f32 %v6566, %v6567
    %v6569 = vrot.slane %v6568, 1
    %v6570 = vmax.f32 %v6568, %v6569
    %v6571 = vmax.f32 %v4648, %v4652
    %v6572 = vmax.f32 %v6571, %v4658
    %v6573 = vmax.f32 %v6572, %v4662
    %v6574 = vmax.f32 %v6573, %v4668
    %v6575 = vmax.f32 %v6574, %v4672
    %v6576 = vmax.f32 %v6575, %v4678
    %v6577 = vmax.f32 %v6576, %v4682
    %v6578 = vmax.f32 %v6577, %v4688
    %v6579 = vmax.f32 %v6578, %v4692
    %v6580 = vmax.f32 %v6579, %v4698
    %v6581 = vmax.f32 %v6580, %v4702
    %v6582 = vmax.f32 %v6581, %v4708
    %v6583 = vmax.f32 %v6582, %v4712
    %v6584 = vmax.f32 %v6583, %v4718
    %v6585 = vmax.f32 %v6584, %v4722
    %v6586 = vrot.slane %v6585, 4
    %v6587 = vmax.f32 %v6585, %v6586
    %v6588 = vrot.slane %v6587, 2
    %v6589 = vmax.f32 %v6587, %v6588
    %v6590 = vrot.slane %v6589, 1
    %v6591 = vmax.f32 %v6589, %v6590
    %v6592 = vmax.f32 %v4650, %v4654
    %v6593 = vmax.f32 %v6592, %v4660
    %v6594 = vmax.f32 %v6593, %v4664
    %v6595 = vmax.f32 %v6594, %v4670
    %v6596 = vmax.f32 %v6595, %v4674
    %v6597 = vmax.f32 %v6596, %v4680
    %v6598 = vmax.f32 %v6597, %v4684
    %v6599 = vmax.f32 %v6598, %v4690
    %v6600 = vmax.f32 %v6599, %v4694
    %v6601 = vmax.f32 %v6600, %v4700
    %v6602 = vmax.f32 %v6601, %v4704
    %v6603 = vmax.f32 %v6602, %v4710
    %v6604 = vmax.f32 %v6603, %v4714
    %v6605 = vmax.f32 %v6604, %v4720
    %v6606 = vmax.f32 %v6605, %v4724
    %v6607 = vrot.slane %v6606, 4
    %v6608 = vmax.f32 %v6606, %v6607
    %v6609 = vrot.slane %v6608, 2
    %v6610 = vmax.f32 %v6608, %v6609
    %v6611 = vrot.slane %v6610, 1
    %v6612 = vmax.f32 %v6610, %v6611
    %v6613 = vmax.f32 %v5321, %v5325
    %v6614 = vmax.f32 %v6613, %v5331
    %v6615 = vmax.f32 %v6614, %v5335
    %v6616 = vmax.f32 %v6615, %v5341
    %v6617 = vmax.f32 %v6616, %v5345
    %v6618 = vmax.f32 %v6617, %v5351
    %v6619 = vmax.f32 %v6618, %v5355
    %v6620 = vmax.f32 %v6619, %v5361
    %v6621 = vmax.f32 %v6620, %v5365
    %v6622 = vmax.f32 %v6621, %v5371
    %v6623 = vmax.f32 %v6622, %v5375
    %v6624 = vmax.f32 %v6623, %v5381
    %v6625 = vmax.f32 %v6624, %v5385
    %v6626 = vmax.f32 %v6625, %v5391
    %v6627 = vmax.f32 %v6626, %v5395
    %v6628 = vrot.slane %v6627, 4
    %v6629 = vmax.f32 %v6627, %v6628
    %v6630 = vrot.slane %v6629, 2
    %v6631 = vmax.f32 %v6629, %v6630
    %v6632 = vrot.slane %v6631, 1
    %v6633 = vmax.f32 %v6631, %v6632
    %v6634 = vmax.f32 %v5323, %v5327
    %v6635 = vmax.f32 %v6634, %v5333
    %v6636 = vmax.f32 %v6635, %v5337
    %v6637 = vmax.f32 %v6636, %v5343
    %v6638 = vmax.f32 %v6637, %v5347
    %v6639 = vmax.f32 %v6638, %v5353
    %v6640 = vmax.f32 %v6639, %v5357
    %v6641 = vmax.f32 %v6640, %v5363
    %v6642 = vmax.f32 %v6641, %v5367
    %v6643 = vmax.f32 %v6642, %v5373
    %v6644 = vmax.f32 %v6643, %v5377
    %v6645 = vmax.f32 %v6644, %v5383
    %v6646 = vmax.f32 %v6645, %v5387
    %v6647 = vmax.f32 %v6646, %v5393
    %v6648 = vmax.f32 %v6647, %v5397
    %v6649 = vrot.slane %v6648, 4
    %v6650 = vmax.f32 %v6648, %v6649
    %v6651 = vrot.slane %v6650, 2
    %v6652 = vmax.f32 %v6650, %v6651
    %v6653 = vrot.slane %v6652, 1
    %v6654 = vmax.f32 %v6652, %v6653
    %v6655 = vmax.f32 %v3382, %v3386
    %v6656 = vmax.f32 %v6655, %v3392
    %v6657 = vmax.f32 %v6656, %v3396
    %v6658 = vmax.f32 %v6657, %v3402
    %v6659 = vmax.f32 %v6658, %v3406
    %v6660 = vmax.f32 %v6659, %v3412
    %v6661 = vmax.f32 %v6660, %v3416
    %v6662 = vmax.f32 %v6661, %v3422
    %v6663 = vmax.f32 %v6662, %v3426
    %v6664 = vmax.f32 %v6663, %v3432
    %v6665 = vmax.f32 %v6664, %v3436
    %v6666 = vmax.f32 %v6665, %v3442
    %v6667 = vmax.f32 %v6666, %v3446
    %v6668 = vmax.f32 %v6667, %v3452
    %v6669 = vmax.f32 %v6668, %v3456
    %v6670 = vrot.slane %v6669, 4
    %v6671 = vmax.f32 %v6669, %v6670
    %v6672 = vrot.slane %v6671, 2
    %v6673 = vmax.f32 %v6671, %v6672
    %v6674 = vrot.slane %v6673, 1
    %v6675 = vmax.f32 %v6673, %v6674
    %v6676 = vmax.f32 %v3384, %v3388
    %v6677 = vmax.f32 %v6676, %v3394
    %v6678 = vmax.f32 %v6677, %v3398
    %v6679 = vmax.f32 %v6678, %v3404
    %v6680 = vmax.f32 %v6679, %v3408
    %v6681 = vmax.f32 %v6680, %v3414
    %v6682 = vmax.f32 %v6681, %v3418
    %v6683 = vmax.f32 %v6682, %v3424
    %v6684 = vmax.f32 %v6683, %v3428
    %v6685 = vmax.f32 %v6684, %v3434
    %v6686 = vmax.f32 %v6685, %v3438
    %v6687 = vmax.f32 %v6686, %v3444
    %v6688 = vmax.f32 %v6687, %v3448
    %v6689 = vmax.f32 %v6688, %v3454
    %v6690 = vmax.f32 %v6689, %v3458
    %v6691 = vrot.slane %v6690, 4
    %v6692 = vmax.f32 %v6690, %v6691
    %v6693 = vrot.slane %v6692, 2
    %v6694 = vmax.f32 %v6692, %v6693
    %v6695 = vrot.slane %v6694, 1
    %v6696 = vmax.f32 %v6694, %v6695
    %v6697 = vmax.f32 %v4055, %v4059
    %v6698 = vmax.f32 %v6697, %v4065
    %v6699 = vmax.f32 %v6698, %v4069
    %v6700 = vmax.f32 %v6699, %v4075
    %v6701 = vmax.f32 %v6700, %v4079
    %v6702 = vmax.f32 %v6701, %v4085
    %v6703 = vmax.f32 %v6702, %v4089
    %v6704 = vmax.f32 %v6703, %v4095
    %v6705 = vmax.f32 %v6704, %v4099
    %v6706 = vmax.f32 %v6705, %v4105
    %v6707 = vmax.f32 %v6706, %v4109
    %v6708 = vmax.f32 %v6707, %v4115
    %v6709 = vmax.f32 %v6708, %v4119
    %v6710 = vmax.f32 %v6709, %v4125
    %v6711 = vmax.f32 %v6710, %v4129
    %v6712 = vrot.slane %v6711, 4
    %v6713 = vmax.f32 %v6711, %v6712
    %v6714 = vrot.slane %v6713, 2
    %v6715 = vmax.f32 %v6713, %v6714
    %v6716 = vrot.slane %v6715, 1
    %v6717 = vmax.f32 %v6715, %v6716
    %v6718 = vmax.f32 %v4057, %v4061
    %v6719 = vmax.f32 %v6718, %v4067
    %v6720 = vmax.f32 %v6719, %v4071
    %v6721 = vmax.f32 %v6720, %v4077
    %v6722 = vmax.f32 %v6721, %v4081
    %v6723 = vmax.f32 %v6722, %v4087
    %v6724 = vmax.f32 %v6723, %v4091
    %v6725 = vmax.f32 %v6724, %v4097
    %v6726 = vmax.f32 %v6725, %v4101
    %v6727 = vmax.f32 %v6726, %v4107
    %v6728 = vmax.f32 %v6727, %v4111
    %v6729 = vmax.f32 %v6728, %v4117
    %v6730 = vmax.f32 %v6729, %v4121
    %v6731 = vmax.f32 %v6730, %v4127
    %v6732 = vmax.f32 %v6731, %v4131
    %v6733 = vrot.slane %v6732, 4
    %v6734 = vmax.f32 %v6732, %v6733
    %v6735 = vrot.slane %v6734, 2
    %v6736 = vmax.f32 %v6734, %v6735
    %v6737 = vrot.slane %v6736, 1
    %v6738 = vmax.f32 %v6736, %v6737
    %v6739 = vmax.f32 %v4728, %v4732
    %v6740 = vmax.f32 %v6739, %v4738
    %v6741 = vmax.f32 %v6740, %v4742
    %v6742 = vmax.f32 %v6741, %v4748
    %v6743 = vmax.f32 %v6742, %v4752
    %v6744 = vmax.f32 %v6743, %v4758
    %v6745 = vmax.f32 %v6744, %v4762
    %v6746 = vmax.f32 %v6745, %v4768
    %v6747 = vmax.f32 %v6746, %v4772
    %v6748 = vmax.f32 %v6747, %v4778
    %v6749 = vmax.f32 %v6748, %v4782
    %v6750 = vmax.f32 %v6749, %v4788
    %v6751 = vmax.f32 %v6750, %v4792
    %v6752 = vmax.f32 %v6751, %v4798
    %v6753 = vmax.f32 %v6752, %v4802
    %v6754 = vrot.slane %v6753, 4
    %v6755 = vmax.f32 %v6753, %v6754
    %v6756 = vrot.slane %v6755, 2
    %v6757 = vmax.f32 %v6755, %v6756
    %v6758 = vrot.slane %v6757, 1
    %v6759 = vmax.f32 %v6757, %v6758
    %v6760 = vmax.f32 %v4730, %v4734
    %v6761 = vmax.f32 %v6760, %v4740
    %v6762 = vmax.f32 %v6761, %v4744
    %v6763 = vmax.f32 %v6762, %v4750
    %v6764 = vmax.f32 %v6763, %v4754
    %v6765 = vmax.f32 %v6764, %v4760
    %v6766 = vmax.f32 %v6765, %v4764
    %v6767 = vmax.f32 %v6766, %v4770
    %v6768 = vmax.f32 %v6767, %v4774
    %v6769 = vmax.f32 %v6768, %v4780
    %v6770 = vmax.f32 %v6769, %v4784
    %v6771 = vmax.f32 %v6770, %v4790
    %v6772 = vmax.f32 %v6771, %v4794
    %v6773 = vmax.f32 %v6772, %v4800
    %v6774 = vmax.f32 %v6773, %v4804
    %v6775 = vrot.slane %v6774, 4
    %v6776 = vmax.f32 %v6774, %v6775
    %v6777 = vrot.slane %v6776, 2
    %v6778 = vmax.f32 %v6776, %v6777
    %v6779 = vrot.slane %v6778, 1
    %v6780 = vmax.f32 %v6778, %v6779
    %v6781 = vmax.f32 %v5401, %v5405
    %v6782 = vmax.f32 %v6781, %v5411
    %v6783 = vmax.f32 %v6782, %v5415
    %v6784 = vmax.f32 %v6783, %v5421
    %v6785 = vmax.f32 %v6784, %v5425
    %v6786 = vmax.f32 %v6785, %v5431
    %v6787 = vmax.f32 %v6786, %v5435
    %v6788 = vmax.f32 %v6787, %v5441
    %v6789 = vmax.f32 %v6788, %v5445
    %v6790 = vmax.f32 %v6789, %v5451
    %v6791 = vmax.f32 %v6790, %v5455
    %v6792 = vmax.f32 %v6791, %v5461
    %v6793 = vmax.f32 %v6792, %v5465
    %v6794 = vmax.f32 %v6793, %v5471
    %v6795 = vmax.f32 %v6794, %v5475
    %v6796 = vrot.slane %v6795, 4
    %v6797 = vmax.f32 %v6795, %v6796
    %v6798 = vrot.slane %v6797, 2
    %v6799 = vmax.f32 %v6797, %v6798
    %v6800 = vrot.slane %v6799, 1
    %v6801 = vmax.f32 %v6799, %v6800
    %v6802 = vmax.f32 %v5403, %v5407
    %v6803 = vmax.f32 %v6802, %v5413
    %v6804 = vmax.f32 %v6803, %v5417
    %v6805 = vmax.f32 %v6804, %v5423
    %v6806 = vmax.f32 %v6805, %v5427
    %v6807 = vmax.f32 %v6806, %v5433
    %v6808 = vmax.f32 %v6807, %v5437
    %v6809 = vmax.f32 %v6808, %v5443
    %v6810 = vmax.f32 %v6809, %v5447
    %v6811 = vmax.f32 %v6810, %v5453
    %v6812 = vmax.f32 %v6811, %v5457
    %v6813 = vmax.f32 %v6812, %v5463
    %v6814 = vmax.f32 %v6813, %v5467
    %v6815 = vmax.f32 %v6814, %v5473
    %v6816 = vmax.f32 %v6815, %v5477
    %v6817 = vrot.slane %v6816, 4
    %v6818 = vmax.f32 %v6816, %v6817
    %v6819 = vrot.slane %v6818, 2
    %v6820 = vmax.f32 %v6818, %v6819
    %v6821 = vrot.slane %v6820, 1
    %v6822 = vmax.f32 %v6820, %v6821
    %v6823 = vld [vmem:[%s6] sm:$0xff]
    %v6825 = vlaneseq
    %v6826 = vshrl.u32 %v6825, 7
    %v6827 = vsub.s32 0, %v6826
    %v6828 = vrot.slane %v6823, %v6827
    %v6829 = vlaneseq
    %v6830 = vshrl.u32 %v6829, 7
    %v6831 = vsub.s32 1, %v6830
    %v6832 = vrot.slane %v6823, %v6831
    %v6833 = vlaneseq
    %v6834 = vshrl.u32 %v6833, 7
    %v6835 = vsub.s32 2, %v6834
    %v6836 = vrot.slane %v6823, %v6835
    %v6837 = vlaneseq
    %v6838 = vshrl.u32 %v6837, 7
    %v6839 = vsub.s32 3, %v6838
    %v6840 = vrot.slane %v6823, %v6839
    %v6841 = vlaneseq
    %v6842 = vshrl.u32 %v6841, 7
    %v6843 = vsub.s32 4, %v6842
    %v6844 = vrot.slane %v6823, %v6843
    %v6845 = vlaneseq
    %v6846 = vshrl.u32 %v6845, 7
    %v6847 = vsub.s32 5, %v6846
    %v6848 = vrot.slane %v6823, %v6847
    %v6849 = vlaneseq
    %v6850 = vshrl.u32 %v6849, 7
    %v6851 = vsub.s32 6, %v6850
    %v6852 = vrot.slane %v6823, %v6851
    %v6853 = vlaneseq
    %v6854 = vshrl.u32 %v6853, 7
    %v6855 = vsub.s32 7, %v6854
    %v6856 = vrot.slane %v6823, %v6855
    %v6865 = vadd.f32 %v5499, %v6828
    %v6866 = vadd.f32 %v5520, %v6832
    %v6867 = vadd.f32 %v5541, %v6836
    %v6868 = vadd.f32 %v5562, %v6840
    %v6869 = vadd.f32 %v5583, %v6844
    %v6870 = vadd.f32 %v5604, %v6848
    %v6871 = vadd.f32 %v5625, %v6852
    %v6872 = vadd.f32 %v5646, %v6856
    %v6873 = vadd.f32 %v5667, %v6828
    %v6874 = vadd.f32 %v5688, %v6832
    %v6875 = vadd.f32 %v5709, %v6836
    %v6876 = vadd.f32 %v5730, %v6840
    %v6877 = vadd.f32 %v5751, %v6844
    %v6878 = vadd.f32 %v5772, %v6848
    %v6879 = vadd.f32 %v5793, %v6852
    %v6880 = vadd.f32 %v5814, %v6856
    %v6881 = vadd.f32 %v5835, %v6828
    %v6882 = vadd.f32 %v5856, %v6832
    %v6883 = vadd.f32 %v5877, %v6836
    %v6884 = vadd.f32 %v5898, %v6840
    %v6885 = vadd.f32 %v5919, %v6844
    %v6886 = vadd.f32 %v5940, %v6848
    %v6887 = vadd.f32 %v5961, %v6852
    %v6888 = vadd.f32 %v5982, %v6856
    %v6889 = vadd.f32 %v6003, %v6828
    %v6890 = vadd.f32 %v6024, %v6832
    %v6891 = vadd.f32 %v6045, %v6836
    %v6892 = vadd.f32 %v6066, %v6840
    %v6893 = vadd.f32 %v6087, %v6844
    %v6894 = vadd.f32 %v6108, %v6848
    %v6895 = vadd.f32 %v6129, %v6852
    %v6896 = vadd.f32 %v6150, %v6856
    %v6897 = vadd.f32 %v6171, %v6828
    %v6898 = vadd.f32 %v6192, %v6832
    %v6899 = vadd.f32 %v6213, %v6836
    %v6900 = vadd.f32 %v6234, %v6840
    %v6901 = vadd.f32 %v6255, %v6844
    %v6902 = vadd.f32 %v6276, %v6848
    %v6903 = vadd.f32 %v6297, %v6852
    %v6904 = vadd.f32 %v6318, %v6856
    %v6905 = vadd.f32 %v6339, %v6828
    %v6906 = vadd.f32 %v6360, %v6832
    %v6907 = vadd.f32 %v6381, %v6836
    %v6908 = vadd.f32 %v6402, %v6840
    %v6909 = vadd.f32 %v6423, %v6844
    %v6910 = vadd.f32 %v6444, %v6848
    %v6911 = vadd.f32 %v6465, %v6852
    %v6912 = vadd.f32 %v6486, %v6856
    %v6913 = vadd.f32 %v6507, %v6828
    %v6914 = vadd.f32 %v6528, %v6832
    %v6915 = vadd.f32 %v6549, %v6836
    %v6916 = vadd.f32 %v6570, %v6840
    %v6917 = vadd.f32 %v6591, %v6844
    %v6918 = vadd.f32 %v6612, %v6848
    %v6919 = vadd.f32 %v6633, %v6852
    %v6920 = vadd.f32 %v6654, %v6856
    %v6921 = vadd.f32 %v6675, %v6828
    %v6922 = vadd.f32 %v6696, %v6832
    %v6923 = vadd.f32 %v6717, %v6836
    %v6924 = vadd.f32 %v6738, %v6840
    %v6925 = vadd.f32 %v6759, %v6844
    %v6926 = vadd.f32 %v6780, %v6848
    %v6927 = vadd.f32 %v6801, %v6852
    %v6928 = vadd.f32 %v6822, %v6856
    %v6929 = vmax.f32 %v6865, 0.0
    %v6930 = vmax.f32 %v6866, 0.0
    %v6931 = vmax.f32 %v6867, 0.0
    %v6932 = vmax.f32 %v6868, 0.0
    %v6933 = vmax.f32 %v6869, 0.0
    %v6934 = vmax.f32 %v6870, 0.0
    %v6935 = vmax.f32 %v6871, 0.0
    %v6936 = vmax.f32 %v6872, 0.0
    %v6937 = vmax.f32 %v6873, 0.0
    %v6938 = vmax.f32 %v6874, 0.0
    %v6939 = vmax.f32 %v6875, 0.0
    %v6940 = vmax.f32 %v6876, 0.0
    %v6941 = vmax.f32 %v6877, 0.0
    %v6942 = vmax.f32 %v6878, 0.0
    %v6943 = vmax.f32 %v6879, 0.0
    %v6944 = vmax.f32 %v6880, 0.0
    %v6945 = vmax.f32 %v6881, 0.0
    %v6946 = vmax.f32 %v6882, 0.0
    %v6947 = vmax.f32 %v6883, 0.0
    %v6948 = vmax.f32 %v6884, 0.0
    %v6949 = vmax.f32 %v6885, 0.0
    %v6950 = vmax.f32 %v6886, 0.0
    %v6951 = vmax.f32 %v6887, 0.0
    %v6952 = vmax.f32 %v6888, 0.0
    %v6953 = vmax.f32 %v6889, 0.0
    %v6954 = vmax.f32 %v6890, 0.0
    %v6955 = vmax.f32 %v6891, 0.0
    %v6956 = vmax.f32 %v6892, 0.0
    %v6957 = vmax.f32 %v6893, 0.0
    %v6958 = vmax.f32 %v6894, 0.0
    %v6959 = vmax.f32 %v6895, 0.0
    %v6960 = vmax.f32 %v6896, 0.0
    %v6961 = vmax.f32 %v6897, 0.0
    %v6962 = vmax.f32 %v6898, 0.0
    %v6963 = vmax.f32 %v6899, 0.0
    %v6964 = vmax.f32 %v6900, 0.0
    %v6965 = vmax.f32 %v6901, 0.0
    %v6966 = vmax.f32 %v6902, 0.0
    %v6967 = vmax.f32 %v6903, 0.0
    %v6968 = vmax.f32 %v6904, 0.0
    %v6969 = vmax.f32 %v6905, 0.0
    %v6970 = vmax.f32 %v6906, 0.0
    %v6971 = vmax.f32 %v6907, 0.0
    %v6972 = vmax.f32 %v6908, 0.0
    %v6973 = vmax.f32 %v6909, 0.0
    %v6974 = vmax.f32 %v6910, 0.0
    %v6975 = vmax.f32 %v6911, 0.0
    %v6976 = vmax.f32 %v6912, 0.0
    %v6977 = vmax.f32 %v6913, 0.0
    %v6978 = vmax.f32 %v6914, 0.0
    %v6979 = vmax.f32 %v6915, 0.0
    %v6980 = vmax.f32 %v6916, 0.0
    %v6981 = vmax.f32 %v6917, 0.0
    %v6982 = vmax.f32 %v6918, 0.0
    %v6983 = vmax.f32 %v6919, 0.0
    %v6984 = vmax.f32 %v6920, 0.0
    %v6985 = vmax.f32 %v6921, 0.0
    %v6986 = vmax.f32 %v6922, 0.0
    %v6987 = vmax.f32 %v6923, 0.0
    %v6988 = vmax.f32 %v6924, 0.0
    %v6989 = vmax.f32 %v6925, 0.0
    %v6990 = vmax.f32 %v6926, 0.0
    %v6991 = vmax.f32 %v6927, 0.0
    %v6992 = vmax.f32 %v6928, 0.0
    %v6993 = vpack.c.bf16 %v6929, %v6929
    %v6994 = vpack.c.bf16 %v6930, %v6930
    %v6995 = vpack.c.bf16 %v6931, %v6931
    %v6996 = vpack.c.bf16 %v6932, %v6932
    %v6997 = vpack.c.bf16 %v6933, %v6933
    %v6998 = vpack.c.bf16 %v6934, %v6934
    %v6999 = vpack.c.bf16 %v6935, %v6935
    %v7000 = vpack.c.bf16 %v6936, %v6936
    %v7001 = vpack.c.bf16 %v6937, %v6937
    %v7002 = vpack.c.bf16 %v6938, %v6938
    %v7003 = vpack.c.bf16 %v6939, %v6939
    %v7004 = vpack.c.bf16 %v6940, %v6940
    %v7005 = vpack.c.bf16 %v6941, %v6941
    %v7006 = vpack.c.bf16 %v6942, %v6942
    %v7007 = vpack.c.bf16 %v6943, %v6943
    %v7008 = vpack.c.bf16 %v6944, %v6944
    %v7009 = vpack.c.bf16 %v6945, %v6945
    %v7010 = vpack.c.bf16 %v6946, %v6946
    %v7011 = vpack.c.bf16 %v6947, %v6947
    %v7012 = vpack.c.bf16 %v6948, %v6948
    %v7013 = vpack.c.bf16 %v6949, %v6949
    %v7014 = vpack.c.bf16 %v6950, %v6950
    %v7015 = vpack.c.bf16 %v6951, %v6951
    %v7016 = vpack.c.bf16 %v6952, %v6952
    %v7017 = vpack.c.bf16 %v6953, %v6953
    %v7018 = vpack.c.bf16 %v6954, %v6954
    %v7019 = vpack.c.bf16 %v6955, %v6955
    %v7020 = vpack.c.bf16 %v6956, %v6956
    %v7021 = vpack.c.bf16 %v6957, %v6957
    %v7022 = vpack.c.bf16 %v6958, %v6958
    %v7023 = vpack.c.bf16 %v6959, %v6959
    %v7024 = vpack.c.bf16 %v6960, %v6960
    %v7025 = vpack.c.bf16 %v6961, %v6961
    %v7026 = vpack.c.bf16 %v6962, %v6962
    %v7027 = vpack.c.bf16 %v6963, %v6963
    %v7028 = vpack.c.bf16 %v6964, %v6964
    %v7029 = vpack.c.bf16 %v6965, %v6965
    %v7030 = vpack.c.bf16 %v6966, %v6966
    %v7031 = vpack.c.bf16 %v6967, %v6967
    %v7032 = vpack.c.bf16 %v6968, %v6968
    %v7033 = vpack.c.bf16 %v6969, %v6969
    %v7034 = vpack.c.bf16 %v6970, %v6970
    %v7035 = vpack.c.bf16 %v6971, %v6971
    %v7036 = vpack.c.bf16 %v6972, %v6972
    %v7037 = vpack.c.bf16 %v6973, %v6973
    %v7038 = vpack.c.bf16 %v6974, %v6974
    %v7039 = vpack.c.bf16 %v6975, %v6975
    %v7040 = vpack.c.bf16 %v6976, %v6976
    %v7041 = vpack.c.bf16 %v6977, %v6977
    %v7042 = vpack.c.bf16 %v6978, %v6978
    %v7043 = vpack.c.bf16 %v6979, %v6979
    %v7044 = vpack.c.bf16 %v6980, %v6980
    %v7045 = vpack.c.bf16 %v6981, %v6981
    %v7046 = vpack.c.bf16 %v6982, %v6982
    %v7047 = vpack.c.bf16 %v6983, %v6983
    %v7048 = vpack.c.bf16 %v6984, %v6984
    %v7049 = vpack.c.bf16 %v6985, %v6985
    %v7050 = vpack.c.bf16 %v6986, %v6986
    %v7051 = vpack.c.bf16 %v6987, %v6987
    %v7052 = vpack.c.bf16 %v6988, %v6988
    %v7053 = vpack.c.bf16 %v6989, %v6989
    %v7054 = vpack.c.bf16 %v6990, %v6990
    %v7055 = vpack.c.bf16 %v6991, %v6991
    %v7056 = vpack.c.bf16 %v6992, %v6992
    %v7057 = vld [vmem:[#allocation11] sm:$0xff]
    %v7058 = vld [vmem:[#allocation11 + $0x8] sm:$0xff]
    %v7059 = vld [vmem:[#allocation11 + $0x10] sm:$0xff]
    %v7060 = vld [vmem:[#allocation11 + $0x18] sm:$0xff]
    %v7061 = vld [vmem:[#allocation11 + $0x20] sm:$0xff]
    %v7062 = vld [vmem:[#allocation11 + $0x28] sm:$0xff]
    %v7063 = vld [vmem:[#allocation11 + $0x30] sm:$0xff]
    %v7064 = vld [vmem:[#allocation11 + $0x38] sm:$0xff]
    %v7065 = vld [vmem:[#allocation11 + $0x40] sm:$0xff]
    %v7066 = vld [vmem:[#allocation11 + $0x48] sm:$0xff]
    %v7067 = vld [vmem:[#allocation11 + $0x50] sm:$0xff]
    %v7068 = vld [vmem:[#allocation11 + $0x58] sm:$0xff]
    %v7069 = vld [vmem:[#allocation11 + $0x60] sm:$0xff]
    %v7070 = vld [vmem:[#allocation11 + $0x68] sm:$0xff]
    %v7071 = vld [vmem:[#allocation11 + $0x70] sm:$0xff]
    %v7072 = vld [vmem:[#allocation11 + $0x78] sm:$0xff]
    %v7073 = vld [vmem:[#allocation11 + $0x80] sm:$0xff]
    %v7074 = vld [vmem:[#allocation11 + $0x88] sm:$0xff]
    %v7075 = vld [vmem:[#allocation11 + $0x90] sm:$0xff]
    %v7076 = vld [vmem:[#allocation11 + $0x98] sm:$0xff]
    %v7077 = vld [vmem:[#allocation11 + $0xa0] sm:$0xff]
    %v7078 = vld [vmem:[#allocation11 + $0xa8] sm:$0xff]
    %v7079 = vld [vmem:[#allocation11 + $0xb0] sm:$0xff]
    %v7080 = vld [vmem:[#allocation11 + $0xb8] sm:$0xff]
    %v7081 = vld [vmem:[#allocation11 + $0xc0] sm:$0xff]
    %v7082 = vld [vmem:[#allocation11 + $0xc8] sm:$0xff]
    %v7083 = vld [vmem:[#allocation11 + $0xd0] sm:$0xff]
    %v7084 = vld [vmem:[#allocation11 + $0xd8] sm:$0xff]
    %v7085 = vld [vmem:[#allocation11 + $0xe0] sm:$0xff]
    %v7086 = vld [vmem:[#allocation11 + $0xe8] sm:$0xff]
    %v7087 = vld [vmem:[#allocation11 + $0xf0] sm:$0xff]
    %v7088 = vld [vmem:[#allocation11 + $0xf8] sm:$0xff]
    %v7089 = vld [vmem:[#allocation11 + $0x100] sm:$0xff]
    %v7090 = vld [vmem:[#allocation11 + $0x108] sm:$0xff]
    %v7091 = vld [vmem:[#allocation11 + $0x110] sm:$0xff]
    %v7092 = vld [vmem:[#allocation11 + $0x118] sm:$0xff]
    %v7093 = vld [vmem:[#allocation11 + $0x120] sm:$0xff]
    %v7094 = vld [vmem:[#allocation11 + $0x128] sm:$0xff]
    %v7095 = vld [vmem:[#allocation11 + $0x130] sm:$0xff]
    %v7096 = vld [vmem:[#allocation11 + $0x138] sm:$0xff]
    %v7097 = vld [vmem:[#allocation11 + $0x140] sm:$0xff]
    %v7098 = vld [vmem:[#allocation11 + $0x148] sm:$0xff]
    %v7099 = vld [vmem:[#allocation11 + $0x150] sm:$0xff]
    %v7100 = vld [vmem:[#allocation11 + $0x158] sm:$0xff]
    %v7101 = vld [vmem:[#allocation11 + $0x160] sm:$0xff]
    %v7102 = vld [vmem:[#allocation11 + $0x168] sm:$0xff]
    %v7103 = vld [vmem:[#allocation11 + $0x170] sm:$0xff]
    %v7104 = vld [vmem:[#allocation11 + $0x178] sm:$0xff]
    %v7105 = vld [vmem:[#allocation11 + $0x180] sm:$0xff]
    %v7106 = vld [vmem:[#allocation11 + $0x188] sm:$0xff]
    %v7107 = vld [vmem:[#allocation11 + $0x190] sm:$0xff]
    %v7108 = vld [vmem:[#allocation11 + $0x198] sm:$0xff]
    %v7109 = vld [vmem:[#allocation11 + $0x1a0] sm:$0xff]
    %v7110 = vld [vmem:[#allocation11 + $0x1a8] sm:$0xff]
    %v7111 = vld [vmem:[#allocation11 + $0x1b0] sm:$0xff]
    %v7112 = vld [vmem:[#allocation11 + $0x1b8] sm:$0xff]
    %v7113 = vld [vmem:[#allocation11 + $0x1c0] sm:$0xff]
    %v7114 = vld [vmem:[#allocation11 + $0x1c8] sm:$0xff]
    %v7115 = vld [vmem:[#allocation11 + $0x1d0] sm:$0xff]
    %v7116 = vld [vmem:[#allocation11 + $0x1d8] sm:$0xff]
    %v7117 = vld [vmem:[#allocation11 + $0x1e0] sm:$0xff]
    %v7118 = vld [vmem:[#allocation11 + $0x1e8] sm:$0xff]
    %v7119 = vld [vmem:[#allocation11 + $0x1f0] sm:$0xff]
    %v7120 = vld [vmem:[#allocation11 + $0x1f8] sm:$0xff]
    %v7121 = vld [vmem:[#allocation11 + $0x200] sm:$0xff]
    %v7122 = vld [vmem:[#allocation11 + $0x208] sm:$0xff]
    %v7123 = vld [vmem:[#allocation11 + $0x210] sm:$0xff]
    %v7124 = vld [vmem:[#allocation11 + $0x218] sm:$0xff]
    %v7125 = vld [vmem:[#allocation11 + $0x220] sm:$0xff]
    %v7126 = vld [vmem:[#allocation11 + $0x228] sm:$0xff]
    %v7127 = vld [vmem:[#allocation11 + $0x230] sm:$0xff]
    %v7128 = vld [vmem:[#allocation11 + $0x238] sm:$0xff]
    %v7129 = vld [vmem:[#allocation11 + $0x240] sm:$0xff]
    %v7130 = vld [vmem:[#allocation11 + $0x248] sm:$0xff]
    %v7131 = vld [vmem:[#allocation11 + $0x250] sm:$0xff]
    %v7132 = vld [vmem:[#allocation11 + $0x258] sm:$0xff]
    %v7133 = vld [vmem:[#allocation11 + $0x260] sm:$0xff]
    %v7134 = vld [vmem:[#allocation11 + $0x268] sm:$0xff]
    %v7135 = vld [vmem:[#allocation11 + $0x270] sm:$0xff]
    %v7136 = vld [vmem:[#allocation11 + $0x278] sm:$0xff]
    %v7137 = vld [vmem:[#allocation11 + $0x280] sm:$0xff]
    %v7138 = vld [vmem:[#allocation11 + $0x288] sm:$0xff]
    %v7139 = vld [vmem:[#allocation11 + $0x290] sm:$0xff]
    %v7140 = vld [vmem:[#allocation11 + $0x298] sm:$0xff]
    %v7141 = vld [vmem:[#allocation11 + $0x2a0] sm:$0xff]
    %v7142 = vld [vmem:[#allocation11 + $0x2a8] sm:$0xff]
    %v7143 = vld [vmem:[#allocation11 + $0x2b0] sm:$0xff]
    %v7144 = vld [vmem:[#allocation11 + $0x2b8] sm:$0xff]
    %v7145 = vld [vmem:[#allocation11 + $0x2c0] sm:$0xff]
    %v7146 = vld [vmem:[#allocation11 + $0x2c8] sm:$0xff]
    %v7147 = vld [vmem:[#allocation11 + $0x2d0] sm:$0xff]
    %v7148 = vld [vmem:[#allocation11 + $0x2d8] sm:$0xff]
    %v7149 = vld [vmem:[#allocation11 + $0x2e0] sm:$0xff]
    %v7150 = vld [vmem:[#allocation11 + $0x2e8] sm:$0xff]
    %v7151 = vld [vmem:[#allocation11 + $0x2f0] sm:$0xff]
    %v7152 = vld [vmem:[#allocation11 + $0x2f8] sm:$0xff]
    %v7153 = vld [vmem:[#allocation11 + $0x300] sm:$0xff]
    %v7154 = vld [vmem:[#allocation11 + $0x308] sm:$0xff]
    %v7155 = vld [vmem:[#allocation11 + $0x310] sm:$0xff]
    %v7156 = vld [vmem:[#allocation11 + $0x318] sm:$0xff]
    %v7157 = vld [vmem:[#allocation11 + $0x320] sm:$0xff]
    %v7158 = vld [vmem:[#allocation11 + $0x328] sm:$0xff]
    %v7159 = vld [vmem:[#allocation11 + $0x330] sm:$0xff]
    %v7160 = vld [vmem:[#allocation11 + $0x338] sm:$0xff]
    %v7161 = vld [vmem:[#allocation11 + $0x340] sm:$0xff]
    %v7162 = vld [vmem:[#allocation11 + $0x348] sm:$0xff]
    %v7163 = vld [vmem:[#allocation11 + $0x350] sm:$0xff]
    %v7164 = vld [vmem:[#allocation11 + $0x358] sm:$0xff]
    %v7165 = vld [vmem:[#allocation11 + $0x360] sm:$0xff]
    %v7166 = vld [vmem:[#allocation11 + $0x368] sm:$0xff]
    %v7167 = vld [vmem:[#allocation11 + $0x370] sm:$0xff]
    %v7168 = vld [vmem:[#allocation11 + $0x378] sm:$0xff]
    %v7169 = vld [vmem:[#allocation11 + $0x380] sm:$0xff]
    %v7170 = vld [vmem:[#allocation11 + $0x388] sm:$0xff]
    %v7171 = vld [vmem:[#allocation11 + $0x390] sm:$0xff]
    %v7172 = vld [vmem:[#allocation11 + $0x398] sm:$0xff]
    %v7173 = vld [vmem:[#allocation11 + $0x3a0] sm:$0xff]
    %v7174 = vld [vmem:[#allocation11 + $0x3a8] sm:$0xff]
    %v7175 = vld [vmem:[#allocation11 + $0x3b0] sm:$0xff]
    %v7176 = vld [vmem:[#allocation11 + $0x3b8] sm:$0xff]
    %v7177 = vld [vmem:[#allocation11 + $0x3c0] sm:$0xff]
    %v7178 = vld [vmem:[#allocation11 + $0x3c8] sm:$0xff]
    %v7179 = vld [vmem:[#allocation11 + $0x3d0] sm:$0xff]
    %v7180 = vld [vmem:[#allocation11 + $0x3d8] sm:$0xff]
    %v7181 = vld [vmem:[#allocation11 + $0x3e0] sm:$0xff]
    %v7182 = vld [vmem:[#allocation11 + $0x3e8] sm:$0xff]
    %v7183 = vld [vmem:[#allocation11 + $0x3f0] sm:$0xff]
    %v7184 = vld [vmem:[#allocation11 + $0x3f8] sm:$0xff]
    %v7185 = vld [vmem:[#allocation11 + $0x400] sm:$0xff]
    %v7186 = vld [vmem:[#allocation11 + $0x408] sm:$0xff]
    %v7187 = vld [vmem:[#allocation11 + $0x410] sm:$0xff]
    %v7188 = vld [vmem:[#allocation11 + $0x418] sm:$0xff]
    %v7189 = vld [vmem:[#allocation11 + $0x420] sm:$0xff]
    %v7190 = vld [vmem:[#allocation11 + $0x428] sm:$0xff]
    %v7191 = vld [vmem:[#allocation11 + $0x430] sm:$0xff]
    %v7192 = vld [vmem:[#allocation11 + $0x438] sm:$0xff]
    %v7193 = vld [vmem:[#allocation11 + $0x440] sm:$0xff]
    %v7194 = vld [vmem:[#allocation11 + $0x448] sm:$0xff]
    %v7195 = vld [vmem:[#allocation11 + $0x450] sm:$0xff]
    %v7196 = vld [vmem:[#allocation11 + $0x458] sm:$0xff]
    %v7197 = vld [vmem:[#allocation11 + $0x460] sm:$0xff]
    %v7198 = vld [vmem:[#allocation11 + $0x468] sm:$0xff]
    %v7199 = vld [vmem:[#allocation11 + $0x470] sm:$0xff]
    %v7200 = vld [vmem:[#allocation11 + $0x478] sm:$0xff]
    %v7201 = vld [vmem:[#allocation11 + $0x480] sm:$0xff]
    %v7202 = vld [vmem:[#allocation11 + $0x488] sm:$0xff]
    %v7203 = vld [vmem:[#allocation11 + $0x490] sm:$0xff]
    %v7204 = vld [vmem:[#allocation11 + $0x498] sm:$0xff]
    %v7205 = vld [vmem:[#allocation11 + $0x4a0] sm:$0xff]
    %v7206 = vld [vmem:[#allocation11 + $0x4a8] sm:$0xff]
    %v7207 = vld [vmem:[#allocation11 + $0x4b0] sm:$0xff]
    %v7208 = vld [vmem:[#allocation11 + $0x4b8] sm:$0xff]
    %v7209 = vld [vmem:[#allocation11 + $0x4c0] sm:$0xff]
    %v7210 = vld [vmem:[#allocation11 + $0x4c8] sm:$0xff]
    %v7211 = vld [vmem:[#allocation11 + $0x4d0] sm:$0xff]
    %v7212 = vld [vmem:[#allocation11 + $0x4d8] sm:$0xff]
    %v7213 = vld [vmem:[#allocation11 + $0x4e0] sm:$0xff]
    %v7214 = vld [vmem:[#allocation11 + $0x4e8] sm:$0xff]
    %v7215 = vld [vmem:[#allocation11 + $0x4f0] sm:$0xff]
    %v7216 = vld [vmem:[#allocation11 + $0x4f8] sm:$0xff]
    %v7217 = vld [vmem:[#allocation11 + $0x500] sm:$0xff]
    %v7218 = vld [vmem:[#allocation11 + $0x508] sm:$0xff]
    %v7219 = vld [vmem:[#allocation11 + $0x510] sm:$0xff]
    %v7220 = vld [vmem:[#allocation11 + $0x518] sm:$0xff]
    %v7221 = vld [vmem:[#allocation11 + $0x520] sm:$0xff]
    %v7222 = vld [vmem:[#allocation11 + $0x528] sm:$0xff]
    %v7223 = vld [vmem:[#allocation11 + $0x530] sm:$0xff]
    %v7224 = vld [vmem:[#allocation11 + $0x538] sm:$0xff]
    %v7225 = vld [vmem:[#allocation11 + $0x540] sm:$0xff]
    %v7226 = vld [vmem:[#allocation11 + $0x548] sm:$0xff]
    %v7227 = vld [vmem:[#allocation11 + $0x550] sm:$0xff]
    %v7228 = vld [vmem:[#allocation11 + $0x558] sm:$0xff]
    %v7229 = vld [vmem:[#allocation11 + $0x560] sm:$0xff]
    %v7230 = vld [vmem:[#allocation11 + $0x568] sm:$0xff]
    %v7231 = vld [vmem:[#allocation11 + $0x570] sm:$0xff]
    %v7232 = vld [vmem:[#allocation11 + $0x578] sm:$0xff]
    %v7233 = vld [vmem:[#allocation11 + $0x580] sm:$0xff]
    %v7234 = vld [vmem:[#allocation11 + $0x588] sm:$0xff]
    %v7235 = vld [vmem:[#allocation11 + $0x590] sm:$0xff]
    %v7236 = vld [vmem:[#allocation11 + $0x598] sm:$0xff]
    %v7237 = vld [vmem:[#allocation11 + $0x5a0] sm:$0xff]
    %v7238 = vld [vmem:[#allocation11 + $0x5a8] sm:$0xff]
    %v7239 = vld [vmem:[#allocation11 + $0x5b0] sm:$0xff]
    %v7240 = vld [vmem:[#allocation11 + $0x5b8] sm:$0xff]
    %v7241 = vld [vmem:[#allocation11 + $0x5c0] sm:$0xff]
    %v7242 = vld [vmem:[#allocation11 + $0x5c8] sm:$0xff]
    %v7243 = vld [vmem:[#allocation11 + $0x5d0] sm:$0xff]
    %v7244 = vld [vmem:[#allocation11 + $0x5d8] sm:$0xff]
    %v7245 = vld [vmem:[#allocation11 + $0x5e0] sm:$0xff]
    %v7246 = vld [vmem:[#allocation11 + $0x5e8] sm:$0xff]
    %v7247 = vld [vmem:[#allocation11 + $0x5f0] sm:$0xff]
    %v7248 = vld [vmem:[#allocation11 + $0x5f8] sm:$0xff]
    %v7249 = vld [vmem:[#allocation11 + $0x600] sm:$0xff]
    %v7250 = vld [vmem:[#allocation11 + $0x608] sm:$0xff]
    %v7251 = vld [vmem:[#allocation11 + $0x610] sm:$0xff]
    %v7252 = vld [vmem:[#allocation11 + $0x618] sm:$0xff]
    %v7253 = vld [vmem:[#allocation11 + $0x620] sm:$0xff]
    %v7254 = vld [vmem:[#allocation11 + $0x628] sm:$0xff]
    %v7255 = vld [vmem:[#allocation11 + $0x630] sm:$0xff]
    %v7256 = vld [vmem:[#allocation11 + $0x638] sm:$0xff]
    %v7257 = vld [vmem:[#allocation11 + $0x640] sm:$0xff]
    %v7258 = vld [vmem:[#allocation11 + $0x648] sm:$0xff]
    %v7259 = vld [vmem:[#allocation11 + $0x650] sm:$0xff]
    %v7260 = vld [vmem:[#allocation11 + $0x658] sm:$0xff]
    %v7261 = vld [vmem:[#allocation11 + $0x660] sm:$0xff]
    %v7262 = vld [vmem:[#allocation11 + $0x668] sm:$0xff]
    %v7263 = vld [vmem:[#allocation11 + $0x670] sm:$0xff]
    %v7264 = vld [vmem:[#allocation11 + $0x678] sm:$0xff]
    %v7265 = vld [vmem:[#allocation11 + $0x680] sm:$0xff]
    %v7266 = vld [vmem:[#allocation11 + $0x688] sm:$0xff]
    %v7267 = vld [vmem:[#allocation11 + $0x690] sm:$0xff]
    %v7268 = vld [vmem:[#allocation11 + $0x698] sm:$0xff]
    %v7269 = vld [vmem:[#allocation11 + $0x6a0] sm:$0xff]
    %v7270 = vld [vmem:[#allocation11 + $0x6a8] sm:$0xff]
    %v7271 = vld [vmem:[#allocation11 + $0x6b0] sm:$0xff]
    %v7272 = vld [vmem:[#allocation11 + $0x6b8] sm:$0xff]
    %v7273 = vld [vmem:[#allocation11 + $0x6c0] sm:$0xff]
    %v7274 = vld [vmem:[#allocation11 + $0x6c8] sm:$0xff]
    %v7275 = vld [vmem:[#allocation11 + $0x6d0] sm:$0xff]
    %v7276 = vld [vmem:[#allocation11 + $0x6d8] sm:$0xff]
    %v7277 = vld [vmem:[#allocation11 + $0x6e0] sm:$0xff]
    %v7278 = vld [vmem:[#allocation11 + $0x6e8] sm:$0xff]
    %v7279 = vld [vmem:[#allocation11 + $0x6f0] sm:$0xff]
    %v7280 = vld [vmem:[#allocation11 + $0x6f8] sm:$0xff]
    %v7281 = vld [vmem:[#allocation11 + $0x700] sm:$0xff]
    %v7282 = vld [vmem:[#allocation11 + $0x708] sm:$0xff]
    %v7283 = vld [vmem:[#allocation11 + $0x710] sm:$0xff]
    %v7284 = vld [vmem:[#allocation11 + $0x718] sm:$0xff]
    %v7285 = vld [vmem:[#allocation11 + $0x720] sm:$0xff]
    %v7286 = vld [vmem:[#allocation11 + $0x728] sm:$0xff]
    %v7287 = vld [vmem:[#allocation11 + $0x730] sm:$0xff]
    %v7288 = vld [vmem:[#allocation11 + $0x738] sm:$0xff]
    %v7289 = vld [vmem:[#allocation11 + $0x740] sm:$0xff]
    %v7290 = vld [vmem:[#allocation11 + $0x748] sm:$0xff]
    %v7291 = vld [vmem:[#allocation11 + $0x750] sm:$0xff]
    %v7292 = vld [vmem:[#allocation11 + $0x758] sm:$0xff]
    %v7293 = vld [vmem:[#allocation11 + $0x760] sm:$0xff]
    %v7294 = vld [vmem:[#allocation11 + $0x768] sm:$0xff]
    %v7295 = vld [vmem:[#allocation11 + $0x770] sm:$0xff]
    %v7296 = vld [vmem:[#allocation11 + $0x778] sm:$0xff]
    %v7297 = vld [vmem:[#allocation11 + $0x780] sm:$0xff]
    %v7298 = vld [vmem:[#allocation11 + $0x788] sm:$0xff]
    %v7299 = vld [vmem:[#allocation11 + $0x790] sm:$0xff]
    %v7300 = vld [vmem:[#allocation11 + $0x798] sm:$0xff]
    %v7301 = vld [vmem:[#allocation11 + $0x7a0] sm:$0xff]
    %v7302 = vld [vmem:[#allocation11 + $0x7a8] sm:$0xff]
    %v7303 = vld [vmem:[#allocation11 + $0x7b0] sm:$0xff]
    %v7304 = vld [vmem:[#allocation11 + $0x7b8] sm:$0xff]
    %v7305 = vld [vmem:[#allocation11 + $0x7c0] sm:$0xff]
    %v7306 = vld [vmem:[#allocation11 + $0x7c8] sm:$0xff]
    %v7307 = vld [vmem:[#allocation11 + $0x7d0] sm:$0xff]
    %v7308 = vld [vmem:[#allocation11 + $0x7d8] sm:$0xff]
    %v7309 = vld [vmem:[#allocation11 + $0x7e0] sm:$0xff]
    %v7310 = vld [vmem:[#allocation11 + $0x7e8] sm:$0xff]
    %v7311 = vld [vmem:[#allocation11 + $0x7f0] sm:$0xff]
    %v7312 = vld [vmem:[#allocation11 + $0x7f8] sm:$0xff]
    %v7313 = vld [vmem:[%s8] sm:$0xf]
    %v7315 = vlaneseq
    %v7316 = vshrl.u32 %v7315, 7
    %v7317 = vsub.s32 0, %v7316
    %v7318 = vrot.slane %v7313, %v7317
    %v7319 = vlaneseq
    %v7320 = vshrl.u32 %v7319, 7
    %v7321 = vsub.s32 1, %v7320
    %v7322 = vrot.slane %v7313, %v7321
    %v7323 = vlaneseq
    %v7324 = vshrl.u32 %v7323, 7
    %v7325 = vsub.s32 2, %v7324
    %v7326 = vrot.slane %v7313, %v7325
    %v7327 = vlaneseq
    %v7328 = vshrl.u32 %v7327, 7
    %v7329 = vsub.s32 3, %v7328
    %v7330 = vrot.slane %v7313, %v7329
    %v7399 = vunpack.c.l.b16 %v6993
    %v7400 = vunpack.c.l.b16 %v6994
    %v7401 = vunpack.c.l.b16 %v6995
    %v7402 = vunpack.c.l.b16 %v6996
    %v7403 = vunpack.c.l.b16 %v6997
    %v7404 = vunpack.c.l.b16 %v6998
    %v7405 = vunpack.c.l.b16 %v6999
    %v7406 = vunpack.c.l.b16 %v7000
    %v7407 = vunpack.c.l.b16 %v7001
    %v7408 = vunpack.c.l.b16 %v7002
    %v7409 = vunpack.c.l.b16 %v7003
    %v7410 = vunpack.c.l.b16 %v7004
    %v7411 = vunpack.c.l.b16 %v7005
    %v7412 = vunpack.c.l.b16 %v7006
    %v7413 = vunpack.c.l.b16 %v7007
    %v7414 = vunpack.c.l.b16 %v7008
    %v7415 = vunpack.c.l.b16 %v7009
    %v7416 = vunpack.c.l.b16 %v7010
    %v7417 = vunpack.c.l.b16 %v7011
    %v7418 = vunpack.c.l.b16 %v7012
    %v7419 = vunpack.c.l.b16 %v7013
    %v7420 = vunpack.c.l.b16 %v7014
    %v7421 = vunpack.c.l.b16 %v7015
    %v7422 = vunpack.c.l.b16 %v7016
    %v7423 = vunpack.c.l.b16 %v7017
    %v7424 = vunpack.c.l.b16 %v7018
    %v7425 = vunpack.c.l.b16 %v7019
    %v7426 = vunpack.c.l.b16 %v7020
    %v7427 = vunpack.c.l.b16 %v7021
    %v7428 = vunpack.c.l.b16 %v7022
    %v7429 = vunpack.c.l.b16 %v7023
    %v7430 = vunpack.c.l.b16 %v7024
    %v7431 = vunpack.c.l.b16 %v7025
    %v7432 = vunpack.c.l.b16 %v7026
    %v7433 = vunpack.c.l.b16 %v7027
    %v7434 = vunpack.c.l.b16 %v7028
    %v7435 = vunpack.c.l.b16 %v7029
    %v7436 = vunpack.c.l.b16 %v7030
    %v7437 = vunpack.c.l.b16 %v7031
    %v7438 = vunpack.c.l.b16 %v7032
    %v7439 = vunpack.c.l.b16 %v7033
    %v7440 = vunpack.c.l.b16 %v7034
    %v7441 = vunpack.c.l.b16 %v7035
    %v7442 = vunpack.c.l.b16 %v7036
    %v7443 = vunpack.c.l.b16 %v7037
    %v7444 = vunpack.c.l.b16 %v7038
    %v7445 = vunpack.c.l.b16 %v7039
    %v7446 = vunpack.c.l.b16 %v7040
    %v7447 = vunpack.c.l.b16 %v7041
    %v7448 = vunpack.c.l.b16 %v7042
    %v7449 = vunpack.c.l.b16 %v7043
    %v7450 = vunpack.c.l.b16 %v7044
    %v7451 = vunpack.c.l.b16 %v7045
    %v7452 = vunpack.c.l.b16 %v7046
    %v7453 = vunpack.c.l.b16 %v7047
    %v7454 = vunpack.c.l.b16 %v7048
    %v7455 = vunpack.c.l.b16 %v7049
    %v7456 = vunpack.c.l.b16 %v7050
    %v7457 = vunpack.c.l.b16 %v7051
    %v7458 = vunpack.c.l.b16 %v7052
    %v7459 = vunpack.c.l.b16 %v7053
    %v7460 = vunpack.c.l.b16 %v7054
    %v7461 = vunpack.c.l.b16 %v7055
    %v7462 = vunpack.c.l.b16 %v7056
    %v7463 = vrot.slane %v7407, 7
    %vm7464 = vcmask 1041409
    %v7465 = vsel %vm7464, %v7463, %v7399
    %v7466 = vrot.slane %v7415, 6
    %vm7467 = vcmask 1042434
    %v7468 = vsel %vm7467, %v7466, %v7465
    %v7469 = vrot.slane %v7423, 5
    %vm7470 = vcmask 1043459
    %v7471 = vsel %vm7470, %v7469, %v7468
    %v7472 = vrot.slane %v7431, 4
    %vm7473 = vcmask 1044484
    %v7474 = vsel %vm7473, %v7472, %v7471
    %v7475 = vrot.slane %v7439, 3
    %vm7476 = vcmask 1045509
    %v7477 = vsel %vm7476, %v7475, %v7474
    %v7478 = vrot.slane %v7447, 2
    %vm7479 = vcmask 1046534
    %v7480 = vsel %vm7479, %v7478, %v7477
    %v7481 = vrot.slane %v7455, 1
    %vm7482 = vcmask 1047559
    %v7483 = vsel %vm7482, %v7481, %v7480
    %v7484 = vrot.slane %v7408, 7
    %v7485 = vsel %vm7464, %v7484, %v7400
    %v7486 = vrot.slane %v7416, 6
    %v7487 = vsel %vm7467, %v7486, %v7485
    %v7488 = vrot.slane %v7424, 5
    %v7489 = vsel %vm7470, %v7488, %v7487
    %v7490 = vrot.slane %v7432, 4
    %v7491 = vsel %vm7473, %v7490, %v7489
    %v7492 = vrot.slane %v7440, 3
    %v7493 = vsel %vm7476, %v7492, %v7491
    %v7494 = vrot.slane %v7448, 2
    %v7495 = vsel %vm7479, %v7494, %v7493
    %v7496 = vrot.slane %v7456, 1
    %v7497 = vsel %vm7482, %v7496, %v7495
    %v7498 = vrot.slane %v7409, 7
    %v7499 = vsel %vm7464, %v7498, %v7401
    %v7500 = vrot.slane %v7417, 6
    %v7501 = vsel %vm7467, %v7500, %v7499
    %v7502 = vrot.slane %v7425, 5
    %v7503 = vsel %vm7470, %v7502, %v7501
    %v7504 = vrot.slane %v7433, 4
    %v7505 = vsel %vm7473, %v7504, %v7503
    %v7506 = vrot.slane %v7441, 3
    %v7507 = vsel %vm7476, %v7506, %v7505
    %v7508 = vrot.slane %v7449, 2
    %v7509 = vsel %vm7479, %v7508, %v7507
    %v7510 = vrot.slane %v7457, 1
    %v7511 = vsel %vm7482, %v7510, %v7509
    %v7512 = vrot.slane %v7410, 7
    %v7513 = vsel %vm7464, %v7512, %v7402
    %v7514 = vrot.slane %v7418, 6
    %v7515 = vsel %vm7467, %v7514, %v7513
    %v7516 = vrot.slane %v7426, 5
    %v7517 = vsel %vm7470, %v7516, %v7515
    %v7518 = vrot.slane %v7434, 4
    %v7519 = vsel %vm7473, %v7518, %v7517
    %v7520 = vrot.slane %v7442, 3
    %v7521 = vsel %vm7476, %v7520, %v7519
    %v7522 = vrot.slane %v7450, 2
    %v7523 = vsel %vm7479, %v7522, %v7521
    %v7524 = vrot.slane %v7458, 1
    %v7525 = vsel %vm7482, %v7524, %v7523
    %v7526 = vrot.slane %v7411, 7
    %v7527 = vsel %vm7464, %v7526, %v7403
    %v7528 = vrot.slane %v7419, 6
    %v7529 = vsel %vm7467, %v7528, %v7527
    %v7530 = vrot.slane %v7427, 5
    %v7531 = vsel %vm7470, %v7530, %v7529
    %v7532 = vrot.slane %v7435, 4
    %v7533 = vsel %vm7473, %v7532, %v7531
    %v7534 = vrot.slane %v7443, 3
    %v7535 = vsel %vm7476, %v7534, %v7533
    %v7536 = vrot.slane %v7451, 2
    %v7537 = vsel %vm7479, %v7536, %v7535
    %v7538 = vrot.slane %v7459, 1
    %v7539 = vsel %vm7482, %v7538, %v7537
    %v7540 = vrot.slane %v7412, 7
    %v7541 = vsel %vm7464, %v7540, %v7404
    %v7542 = vrot.slane %v7420, 6
    %v7543 = vsel %vm7467, %v7542, %v7541
    %v7544 = vrot.slane %v7428, 5
    %v7545 = vsel %vm7470, %v7544, %v7543
    %v7546 = vrot.slane %v7436, 4
    %v7547 = vsel %vm7473, %v7546, %v7545
    %v7548 = vrot.slane %v7444, 3
    %v7549 = vsel %vm7476, %v7548, %v7547
    %v7550 = vrot.slane %v7452, 2
    %v7551 = vsel %vm7479, %v7550, %v7549
    %v7552 = vrot.slane %v7460, 1
    %v7553 = vsel %vm7482, %v7552, %v7551
    %v7554 = vrot.slane %v7413, 7
    %v7555 = vsel %vm7464, %v7554, %v7405
    %v7556 = vrot.slane %v7421, 6
    %v7557 = vsel %vm7467, %v7556, %v7555
    %v7558 = vrot.slane %v7429, 5
    %v7559 = vsel %vm7470, %v7558, %v7557
    %v7560 = vrot.slane %v7437, 4
    %v7561 = vsel %vm7473, %v7560, %v7559
    %v7562 = vrot.slane %v7445, 3
    %v7563 = vsel %vm7476, %v7562, %v7561
    %v7564 = vrot.slane %v7453, 2
    %v7565 = vsel %vm7479, %v7564, %v7563
    %v7566 = vrot.slane %v7461, 1
    %v7567 = vsel %vm7482, %v7566, %v7565
    %v7568 = vrot.slane %v7414, 7
    %v7569 = vsel %vm7464, %v7568, %v7406
    %v7570 = vrot.slane %v7422, 6
    %v7571 = vsel %vm7467, %v7570, %v7569
    %v7572 = vrot.slane %v7430, 5
    %v7573 = vsel %vm7470, %v7572, %v7571
    %v7574 = vrot.slane %v7438, 4
    %v7575 = vsel %vm7473, %v7574, %v7573
    %v7576 = vrot.slane %v7446, 3
    %v7577 = vsel %vm7476, %v7576, %v7575
    %v7578 = vrot.slane %v7454, 2
    %v7579 = vsel %vm7479, %v7578, %v7577
    %v7580 = vrot.slane %v7462, 1
    %v7581 = vsel %vm7482, %v7580, %v7579
    %v7582 = vpack.c.b16 %v7483, %v7483
    %v7583 = vpack.c.b16 %v7497, %v7497
    %v7584 = vpack.c.b16 %v7511, %v7511
    %v7585 = vpack.c.b16 %v7525, %v7525
    %v7586 = vpack.c.b16 %v7539, %v7539
    %v7587 = vpack.c.b16 %v7553, %v7553
    %v7588 = vpack.c.b16 %v7567, %v7567
    %v7589 = vpack.c.b16 %v7581, %v7581
    %v7854 = vunpack.c.l.b16 %v7057
    %v7855 = vunpack.c.h.b16 %v7057
    %v7856 = vunpack.c.l.b16 %v7058
    %v7857 = vunpack.c.h.b16 %v7058
    %v7858 = vunpack.c.l.b16 %v7059
    %v7859 = vunpack.c.h.b16 %v7059
    %v7860 = vunpack.c.l.b16 %v7060
    %v7861 = vunpack.c.h.b16 %v7060
    %v7862 = vunpack.c.l.b16 %v7061
    %v7863 = vunpack.c.h.b16 %v7061
    %v7864 = vunpack.c.l.b16 %v7062
    %v7865 = vunpack.c.h.b16 %v7062
    %v7866 = vunpack.c.l.b16 %v7063
    %v7867 = vunpack.c.h.b16 %v7063
    %v7868 = vunpack.c.l.b16 %v7064
    %v7869 = vunpack.c.h.b16 %v7064
    %v7870 = vunpack.c.l.b16 %v7065
    %v7871 = vunpack.c.h.b16 %v7065
    %v7872 = vunpack.c.l.b16 %v7066
    %v7873 = vunpack.c.h.b16 %v7066
    %v7874 = vunpack.c.l.b16 %v7067
    %v7875 = vunpack.c.h.b16 %v7067
    %v7876 = vunpack.c.l.b16 %v7068
    %v7877 = vunpack.c.h.b16 %v7068
    %v7878 = vunpack.c.l.b16 %v7069
    %v7879 = vunpack.c.h.b16 %v7069
    %v7880 = vunpack.c.l.b16 %v7070
    %v7881 = vunpack.c.h.b16 %v7070
    %v7882 = vunpack.c.l.b16 %v7071
    %v7883 = vunpack.c.h.b16 %v7071
    %v7884 = vunpack.c.l.b16 %v7072
    %v7885 = vunpack.c.h.b16 %v7072
    %v7886 = vunpack.c.l.b16 %v7073
    %v7887 = vunpack.c.h.b16 %v7073
    %v7888 = vunpack.c.l.b16 %v7074
    %v7889 = vunpack.c.h.b16 %v7074
    %v7890 = vunpack.c.l.b16 %v7075
    %v7891 = vunpack.c.h.b16 %v7075
    %v7892 = vunpack.c.l.b16 %v7076
    %v7893 = vunpack.c.h.b16 %v7076
    %v7894 = vunpack.c.l.b16 %v7077
    %v7895 = vunpack.c.h.b16 %v7077
    %v7896 = vunpack.c.l.b16 %v7078
    %v7897 = vunpack.c.h.b16 %v7078
    %v7898 = vunpack.c.l.b16 %v7079
    %v7899 = vunpack.c.h.b16 %v7079
    %v7900 = vunpack.c.l.b16 %v7080
    %v7901 = vunpack.c.h.b16 %v7080
    %v7902 = vunpack.c.l.b16 %v7081
    %v7903 = vunpack.c.h.b16 %v7081
    %v7904 = vunpack.c.l.b16 %v7082
    %v7905 = vunpack.c.h.b16 %v7082
    %v7906 = vunpack.c.l.b16 %v7083
    %v7907 = vunpack.c.h.b16 %v7083
    %v7908 = vunpack.c.l.b16 %v7084
    %v7909 = vunpack.c.h.b16 %v7084
    %v7910 = vunpack.c.l.b16 %v7085
    %v7911 = vunpack.c.h.b16 %v7085
    %v7912 = vunpack.c.l.b16 %v7086
    %v7913 = vunpack.c.h.b16 %v7086
    %v7914 = vunpack.c.l.b16 %v7087
    %v7915 = vunpack.c.h.b16 %v7087
    %v7916 = vunpack.c.l.b16 %v7088
    %v7917 = vunpack.c.h.b16 %v7088
    %v7918 = vunpack.c.l.b16 %v7089
    %v7919 = vunpack.c.h.b16 %v7089
    %v7920 = vunpack.c.l.b16 %v7090
    %v7921 = vunpack.c.h.b16 %v7090
    %v7922 = vunpack.c.l.b16 %v7091
    %v7923 = vunpack.c.h.b16 %v7091
    %v7924 = vunpack.c.l.b16 %v7092
    %v7925 = vunpack.c.h.b16 %v7092
    %v7926 = vunpack.c.l.b16 %v7093
    %v7927 = vunpack.c.h.b16 %v7093
    %v7928 = vunpack.c.l.b16 %v7094
    %v7929 = vunpack.c.h.b16 %v7094
    %v7930 = vunpack.c.l.b16 %v7095
    %v7931 = vunpack.c.h.b16 %v7095
    %v7932 = vunpack.c.l.b16 %v7096
    %v7933 = vunpack.c.h.b16 %v7096
    %v7934 = vunpack.c.l.b16 %v7097
    %v7935 = vunpack.c.h.b16 %v7097
    %v7936 = vunpack.c.l.b16 %v7098
    %v7937 = vunpack.c.h.b16 %v7098
    %v7938 = vunpack.c.l.b16 %v7099
    %v7939 = vunpack.c.h.b16 %v7099
    %v7940 = vunpack.c.l.b16 %v7100
    %v7941 = vunpack.c.h.b16 %v7100
    %v7942 = vunpack.c.l.b16 %v7101
    %v7943 = vunpack.c.h.b16 %v7101
    %v7944 = vunpack.c.l.b16 %v7102
    %v7945 = vunpack.c.h.b16 %v7102
    %v7946 = vunpack.c.l.b16 %v7103
    %v7947 = vunpack.c.h.b16 %v7103
    %v7948 = vunpack.c.l.b16 %v7104
    %v7949 = vunpack.c.h.b16 %v7104
    %v7950 = vunpack.c.l.b16 %v7105
    %v7951 = vunpack.c.h.b16 %v7105
    %v7952 = vunpack.c.l.b16 %v7106
    %v7953 = vunpack.c.h.b16 %v7106
    %v7954 = vunpack.c.l.b16 %v7107
    %v7955 = vunpack.c.h.b16 %v7107
    %v7956 = vunpack.c.l.b16 %v7108
    %v7957 = vunpack.c.h.b16 %v7108
    %v7958 = vunpack.c.l.b16 %v7109
    %v7959 = vunpack.c.h.b16 %v7109
    %v7960 = vunpack.c.l.b16 %v7110
    %v7961 = vunpack.c.h.b16 %v7110
    %v7962 = vunpack.c.l.b16 %v7111
    %v7963 = vunpack.c.h.b16 %v7111
    %v7964 = vunpack.c.l.b16 %v7112
    %v7965 = vunpack.c.h.b16 %v7112
    %v7966 = vunpack.c.l.b16 %v7113
    %v7967 = vunpack.c.h.b16 %v7113
    %v7968 = vunpack.c.l.b16 %v7114
    %v7969 = vunpack.c.h.b16 %v7114
    %v7970 = vunpack.c.l.b16 %v7115
    %v7971 = vunpack.c.h.b16 %v7115
    %v7972 = vunpack.c.l.b16 %v7116
    %v7973 = vunpack.c.h.b16 %v7116
    %v7974 = vunpack.c.l.b16 %v7117
    %v7975 = vunpack.c.h.b16 %v7117
    %v7976 = vunpack.c.l.b16 %v7118
    %v7977 = vunpack.c.h.b16 %v7118
    %v7978 = vunpack.c.l.b16 %v7119
    %v7979 = vunpack.c.h.b16 %v7119
    %v7980 = vunpack.c.l.b16 %v7120
    %v7981 = vunpack.c.h.b16 %v7120
    %v7982 = vunpack.c.l.b16 %v7121
    %v7983 = vunpack.c.h.b16 %v7121
    %v7984 = vunpack.c.l.b16 %v7122
    %v7985 = vunpack.c.h.b16 %v7122
    %v7986 = vunpack.c.l.b16 %v7123
    %v7987 = vunpack.c.h.b16 %v7123
    %v7988 = vunpack.c.l.b16 %v7124
    %v7989 = vunpack.c.h.b16 %v7124
    %v7990 = vunpack.c.l.b16 %v7125
    %v7991 = vunpack.c.h.b16 %v7125
    %v7992 = vunpack.c.l.b16 %v7126
    %v7993 = vunpack.c.h.b16 %v7126
    %v7994 = vunpack.c.l.b16 %v7127
    %v7995 = vunpack.c.h.b16 %v7127
    %v7996 = vunpack.c.l.b16 %v7128
    %v7997 = vunpack.c.h.b16 %v7128
    %v7998 = vunpack.c.l.b16 %v7129
    %v7999 = vunpack.c.h.b16 %v7129
    %v8000 = vunpack.c.l.b16 %v7130
    %v8001 = vunpack.c.h.b16 %v7130
    %v8002 = vunpack.c.l.b16 %v7131
    %v8003 = vunpack.c.h.b16 %v7131
    %v8004 = vunpack.c.l.b16 %v7132
    %v8005 = vunpack.c.h.b16 %v7132
    %v8006 = vunpack.c.l.b16 %v7133
    %v8007 = vunpack.c.h.b16 %v7133
    %v8008 = vunpack.c.l.b16 %v7134
    %v8009 = vunpack.c.h.b16 %v7134
    %v8010 = vunpack.c.l.b16 %v7135
    %v8011 = vunpack.c.h.b16 %v7135
    %v8012 = vunpack.c.l.b16 %v7136
    %v8013 = vunpack.c.h.b16 %v7136
    %v8014 = vunpack.c.l.b16 %v7137
    %v8015 = vunpack.c.h.b16 %v7137
    %v8016 = vunpack.c.l.b16 %v7138
    %v8017 = vunpack.c.h.b16 %v7138
    %v8018 = vunpack.c.l.b16 %v7139
    %v8019 = vunpack.c.h.b16 %v7139
    %v8020 = vunpack.c.l.b16 %v7140
    %v8021 = vunpack.c.h.b16 %v7140
    %v8022 = vunpack.c.l.b16 %v7141
    %v8023 = vunpack.c.h.b16 %v7141
    %v8024 = vunpack.c.l.b16 %v7142
    %v8025 = vunpack.c.h.b16 %v7142
    %v8026 = vunpack.c.l.b16 %v7143
    %v8027 = vunpack.c.h.b16 %v7143
    %v8028 = vunpack.c.l.b16 %v7144
    %v8029 = vunpack.c.h.b16 %v7144
    %v8030 = vunpack.c.l.b16 %v7145
    %v8031 = vunpack.c.h.b16 %v7145
    %v8032 = vunpack.c.l.b16 %v7146
    %v8033 = vunpack.c.h.b16 %v7146
    %v8034 = vunpack.c.l.b16 %v7147
    %v8035 = vunpack.c.h.b16 %v7147
    %v8036 = vunpack.c.l.b16 %v7148
    %v8037 = vunpack.c.h.b16 %v7148
    %v8038 = vunpack.c.l.b16 %v7149
    %v8039 = vunpack.c.h.b16 %v7149
    %v8040 = vunpack.c.l.b16 %v7150
    %v8041 = vunpack.c.h.b16 %v7150
    %v8042 = vunpack.c.l.b16 %v7151
    %v8043 = vunpack.c.h.b16 %v7151
    %v8044 = vunpack.c.l.b16 %v7152
    %v8045 = vunpack.c.h.b16 %v7152
    %v8046 = vunpack.c.l.b16 %v7153
    %v8047 = vunpack.c.h.b16 %v7153
    %v8048 = vunpack.c.l.b16 %v7154
    %v8049 = vunpack.c.h.b16 %v7154
    %v8050 = vunpack.c.l.b16 %v7155
    %v8051 = vunpack.c.h.b16 %v7155
    %v8052 = vunpack.c.l.b16 %v7156
    %v8053 = vunpack.c.h.b16 %v7156
    %v8054 = vunpack.c.l.b16 %v7157
    %v8055 = vunpack.c.h.b16 %v7157
    %v8056 = vunpack.c.l.b16 %v7158
    %v8057 = vunpack.c.h.b16 %v7158
    %v8058 = vunpack.c.l.b16 %v7159
    %v8059 = vunpack.c.h.b16 %v7159
    %v8060 = vunpack.c.l.b16 %v7160
    %v8061 = vunpack.c.h.b16 %v7160
    %v8062 = vunpack.c.l.b16 %v7161
    %v8063 = vunpack.c.h.b16 %v7161
    %v8064 = vunpack.c.l.b16 %v7162
    %v8065 = vunpack.c.h.b16 %v7162
    %v8066 = vunpack.c.l.b16 %v7163
    %v8067 = vunpack.c.h.b16 %v7163
    %v8068 = vunpack.c.l.b16 %v7164
    %v8069 = vunpack.c.h.b16 %v7164
    %v8070 = vunpack.c.l.b16 %v7165
    %v8071 = vunpack.c.h.b16 %v7165
    %v8072 = vunpack.c.l.b16 %v7166
    %v8073 = vunpack.c.h.b16 %v7166
    %v8074 = vunpack.c.l.b16 %v7167
    %v8075 = vunpack.c.h.b16 %v7167
    %v8076 = vunpack.c.l.b16 %v7168
    %v8077 = vunpack.c.h.b16 %v7168
    %v8078 = vunpack.c.l.b16 %v7169
    %v8079 = vunpack.c.h.b16 %v7169
    %v8080 = vunpack.c.l.b16 %v7170
    %v8081 = vunpack.c.h.b16 %v7170
    %v8082 = vunpack.c.l.b16 %v7171
    %v8083 = vunpack.c.h.b16 %v7171
    %v8084 = vunpack.c.l.b16 %v7172
    %v8085 = vunpack.c.h.b16 %v7172
    %v8086 = vunpack.c.l.b16 %v7173
    %v8087 = vunpack.c.h.b16 %v7173
    %v8088 = vunpack.c.l.b16 %v7174
    %v8089 = vunpack.c.h.b16 %v7174
    %v8090 = vunpack.c.l.b16 %v7175
    %v8091 = vunpack.c.h.b16 %v7175
    %v8092 = vunpack.c.l.b16 %v7176
    %v8093 = vunpack.c.h.b16 %v7176
    %v8094 = vunpack.c.l.b16 %v7177
    %v8095 = vunpack.c.h.b16 %v7177
    %v8096 = vunpack.c.l.b16 %v7178
    %v8097 = vunpack.c.h.b16 %v7178
    %v8098 = vunpack.c.l.b16 %v7179
    %v8099 = vunpack.c.h.b16 %v7179
    %v8100 = vunpack.c.l.b16 %v7180
    %v8101 = vunpack.c.h.b16 %v7180
    %v8102 = vunpack.c.l.b16 %v7181
    %v8103 = vunpack.c.h.b16 %v7181
    %v8104 = vunpack.c.l.b16 %v7182
    %v8105 = vunpack.c.h.b16 %v7182
    %v8106 = vunpack.c.l.b16 %v7183
    %v8107 = vunpack.c.h.b16 %v7183
    %v8108 = vunpack.c.l.b16 %v7184
    %v8109 = vunpack.c.h.b16 %v7184
    %v8110 = vunpack.c.l.b16 %v7185
    %v8111 = vunpack.c.h.b16 %v7185
    %v8112 = vunpack.c.l.b16 %v7186
    %v8113 = vunpack.c.h.b16 %v7186
    %v8114 = vunpack.c.l.b16 %v7187
    %v8115 = vunpack.c.h.b16 %v7187
    %v8116 = vunpack.c.l.b16 %v7188
    %v8117 = vunpack.c.h.b16 %v7188
    %v8118 = vunpack.c.l.b16 %v7189
    %v8119 = vunpack.c.h.b16 %v7189
    %v8120 = vunpack.c.l.b16 %v7190
    %v8121 = vunpack.c.h.b16 %v7190
    %v8122 = vunpack.c.l.b16 %v7191
    %v8123 = vunpack.c.h.b16 %v7191
    %v8124 = vunpack.c.l.b16 %v7192
    %v8125 = vunpack.c.h.b16 %v7192
    %v8126 = vunpack.c.l.b16 %v7193
    %v8127 = vunpack.c.h.b16 %v7193
    %v8128 = vunpack.c.l.b16 %v7194
    %v8129 = vunpack.c.h.b16 %v7194
    %v8130 = vunpack.c.l.b16 %v7195
    %v8131 = vunpack.c.h.b16 %v7195
    %v8132 = vunpack.c.l.b16 %v7196
    %v8133 = vunpack.c.h.b16 %v7196
    %v8134 = vunpack.c.l.b16 %v7197
    %v8135 = vunpack.c.h.b16 %v7197
    %v8136 = vunpack.c.l.b16 %v7198
    %v8137 = vunpack.c.h.b16 %v7198
    %v8138 = vunpack.c.l.b16 %v7199
    %v8139 = vunpack.c.h.b16 %v7199
    %v8140 = vunpack.c.l.b16 %v7200
    %v8141 = vunpack.c.h.b16 %v7200
    %v8142 = vunpack.c.l.b16 %v7201
    %v8143 = vunpack.c.h.b16 %v7201
    %v8144 = vunpack.c.l.b16 %v7202
    %v8145 = vunpack.c.h.b16 %v7202
    %v8146 = vunpack.c.l.b16 %v7203
    %v8147 = vunpack.c.h.b16 %v7203
    %v8148 = vunpack.c.l.b16 %v7204
    %v8149 = vunpack.c.h.b16 %v7204
    %v8150 = vunpack.c.l.b16 %v7205
    %v8151 = vunpack.c.h.b16 %v7205
    %v8152 = vunpack.c.l.b16 %v7206
    %v8153 = vunpack.c.h.b16 %v7206
    %v8154 = vunpack.c.l.b16 %v7207
    %v8155 = vunpack.c.h.b16 %v7207
    %v8156 = vunpack.c.l.b16 %v7208
    %v8157 = vunpack.c.h.b16 %v7208
    %v8158 = vunpack.c.l.b16 %v7209
    %v8159 = vunpack.c.h.b16 %v7209
    %v8160 = vunpack.c.l.b16 %v7210
    %v8161 = vunpack.c.h.b16 %v7210
    %v8162 = vunpack.c.l.b16 %v7211
    %v8163 = vunpack.c.h.b16 %v7211
    %v8164 = vunpack.c.l.b16 %v7212
    %v8165 = vunpack.c.h.b16 %v7212
    %v8166 = vunpack.c.l.b16 %v7213
    %v8167 = vunpack.c.h.b16 %v7213
    %v8168 = vunpack.c.l.b16 %v7214
    %v8169 = vunpack.c.h.b16 %v7214
    %v8170 = vunpack.c.l.b16 %v7215
    %v8171 = vunpack.c.h.b16 %v7215
    %v8172 = vunpack.c.l.b16 %v7216
    %v8173 = vunpack.c.h.b16 %v7216
    %v8174 = vunpack.c.l.b16 %v7217
    %v8175 = vunpack.c.h.b16 %v7217
    %v8176 = vunpack.c.l.b16 %v7218
    %v8177 = vunpack.c.h.b16 %v7218
    %v8178 = vunpack.c.l.b16 %v7219
    %v8179 = vunpack.c.h.b16 %v7219
    %v8180 = vunpack.c.l.b16 %v7220
    %v8181 = vunpack.c.h.b16 %v7220
    %v8182 = vunpack.c.l.b16 %v7221
    %v8183 = vunpack.c.h.b16 %v7221
    %v8184 = vunpack.c.l.b16 %v7222
    %v8185 = vunpack.c.h.b16 %v7222
    %v8186 = vunpack.c.l.b16 %v7223
    %v8187 = vunpack.c.h.b16 %v7223
    %v8188 = vunpack.c.l.b16 %v7224
    %v8189 = vunpack.c.h.b16 %v7224
    %v8190 = vunpack.c.l.b16 %v7225
    %v8191 = vunpack.c.h.b16 %v7225
    %v8192 = vunpack.c.l.b16 %v7226
    %v8193 = vunpack.c.h.b16 %v7226
    %v8194 = vunpack.c.l.b16 %v7227
    %v8195 = vunpack.c.h.b16 %v7227
    %v8196 = vunpack.c.l.b16 %v7228
    %v8197 = vunpack.c.h.b16 %v7228
    %v8198 = vunpack.c.l.b16 %v7229
    %v8199 = vunpack.c.h.b16 %v7229
    %v8200 = vunpack.c.l.b16 %v7230
    %v8201 = vunpack.c.h.b16 %v7230
    %v8202 = vunpack.c.l.b16 %v7231
    %v8203 = vunpack.c.h.b16 %v7231
    %v8204 = vunpack.c.l.b16 %v7232
    %v8205 = vunpack.c.h.b16 %v7232
    %v8206 = vunpack.c.l.b16 %v7233
    %v8207 = vunpack.c.h.b16 %v7233
    %v8208 = vunpack.c.l.b16 %v7234
    %v8209 = vunpack.c.h.b16 %v7234
    %v8210 = vunpack.c.l.b16 %v7235
    %v8211 = vunpack.c.h.b16 %v7235
    %v8212 = vunpack.c.l.b16 %v7236
    %v8213 = vunpack.c.h.b16 %v7236
    %v8214 = vunpack.c.l.b16 %v7237
    %v8215 = vunpack.c.h.b16 %v7237
    %v8216 = vunpack.c.l.b16 %v7238
    %v8217 = vunpack.c.h.b16 %v7238
    %v8218 = vunpack.c.l.b16 %v7239
    %v8219 = vunpack.c.h.b16 %v7239
    %v8220 = vunpack.c.l.b16 %v7240
    %v8221 = vunpack.c.h.b16 %v7240
    %v8222 = vunpack.c.l.b16 %v7241
    %v8223 = vunpack.c.h.b16 %v7241
    %v8224 = vunpack.c.l.b16 %v7242
    %v8225 = vunpack.c.h.b16 %v7242
    %v8226 = vunpack.c.l.b16 %v7243
    %v8227 = vunpack.c.h.b16 %v7243
    %v8228 = vunpack.c.l.b16 %v7244
    %v8229 = vunpack.c.h.b16 %v7244
    %v8230 = vunpack.c.l.b16 %v7245
    %v8231 = vunpack.c.h.b16 %v7245
    %v8232 = vunpack.c.l.b16 %v7246
    %v8233 = vunpack.c.h.b16 %v7246
    %v8234 = vunpack.c.l.b16 %v7247
    %v8235 = vunpack.c.h.b16 %v7247
    %v8236 = vunpack.c.l.b16 %v7248
    %v8237 = vunpack.c.h.b16 %v7248
    %v8238 = vunpack.c.l.b16 %v7249
    %v8239 = vunpack.c.h.b16 %v7249
    %v8240 = vunpack.c.l.b16 %v7250
    %v8241 = vunpack.c.h.b16 %v7250
    %v8242 = vunpack.c.l.b16 %v7251
    %v8243 = vunpack.c.h.b16 %v7251
    %v8244 = vunpack.c.l.b16 %v7252
    %v8245 = vunpack.c.h.b16 %v7252
    %v8246 = vunpack.c.l.b16 %v7253
    %v8247 = vunpack.c.h.b16 %v7253
    %v8248 = vunpack.c.l.b16 %v7254
    %v8249 = vunpack.c.h.b16 %v7254
    %v8250 = vunpack.c.l.b16 %v7255
    %v8251 = vunpack.c.h.b16 %v7255
    %v8252 = vunpack.c.l.b16 %v7256
    %v8253 = vunpack.c.h.b16 %v7256
    %v8254 = vunpack.c.l.b16 %v7257
    %v8255 = vunpack.c.h.b16 %v7257
    %v8256 = vunpack.c.l.b16 %v7258
    %v8257 = vunpack.c.h.b16 %v7258
    %v8258 = vunpack.c.l.b16 %v7259
    %v8259 = vunpack.c.h.b16 %v7259
    %v8260 = vunpack.c.l.b16 %v7260
    %v8261 = vunpack.c.h.b16 %v7260
    %v8262 = vunpack.c.l.b16 %v7261
    %v8263 = vunpack.c.h.b16 %v7261
    %v8264 = vunpack.c.l.b16 %v7262
    %v8265 = vunpack.c.h.b16 %v7262
    %v8266 = vunpack.c.l.b16 %v7263
    %v8267 = vunpack.c.h.b16 %v7263
    %v8268 = vunpack.c.l.b16 %v7264
    %v8269 = vunpack.c.h.b16 %v7264
    %v8270 = vunpack.c.l.b16 %v7265
    %v8271 = vunpack.c.h.b16 %v7265
    %v8272 = vunpack.c.l.b16 %v7266
    %v8273 = vunpack.c.h.b16 %v7266
    %v8274 = vunpack.c.l.b16 %v7267
    %v8275 = vunpack.c.h.b16 %v7267
    %v8276 = vunpack.c.l.b16 %v7268
    %v8277 = vunpack.c.h.b16 %v7268
    %v8278 = vunpack.c.l.b16 %v7269
    %v8279 = vunpack.c.h.b16 %v7269
    %v8280 = vunpack.c.l.b16 %v7270
    %v8281 = vunpack.c.h.b16 %v7270
    %v8282 = vunpack.c.l.b16 %v7271
    %v8283 = vunpack.c.h.b16 %v7271
    %v8284 = vunpack.c.l.b16 %v7272
    %v8285 = vunpack.c.h.b16 %v7272
    %v8286 = vunpack.c.l.b16 %v7273
    %v8287 = vunpack.c.h.b16 %v7273
    %v8288 = vunpack.c.l.b16 %v7274
    %v8289 = vunpack.c.h.b16 %v7274
    %v8290 = vunpack.c.l.b16 %v7275
    %v8291 = vunpack.c.h.b16 %v7275
    %v8292 = vunpack.c.l.b16 %v7276
    %v8293 = vunpack.c.h.b16 %v7276
    %v8294 = vunpack.c.l.b16 %v7277
    %v8295 = vunpack.c.h.b16 %v7277
    %v8296 = vunpack.c.l.b16 %v7278
    %v8297 = vunpack.c.h.b16 %v7278
    %v8298 = vunpack.c.l.b16 %v7279
    %v8299 = vunpack.c.h.b16 %v7279
    %v8300 = vunpack.c.l.b16 %v7280
    %v8301 = vunpack.c.h.b16 %v7280
    %v8302 = vunpack.c.l.b16 %v7281
    %v8303 = vunpack.c.h.b16 %v7281
    %v8304 = vunpack.c.l.b16 %v7282
    %v8305 = vunpack.c.h.b16 %v7282
    %v8306 = vunpack.c.l.b16 %v7283
    %v8307 = vunpack.c.h.b16 %v7283
    %v8308 = vunpack.c.l.b16 %v7284
    %v8309 = vunpack.c.h.b16 %v7284
    %v8310 = vunpack.c.l.b16 %v7285
    %v8311 = vunpack.c.h.b16 %v7285
    %v8312 = vunpack.c.l.b16 %v7286
    %v8313 = vunpack.c.h.b16 %v7286
    %v8314 = vunpack.c.l.b16 %v7287
    %v8315 = vunpack.c.h.b16 %v7287
    %v8316 = vunpack.c.l.b16 %v7288
    %v8317 = vunpack.c.h.b16 %v7288
    %v8318 = vunpack.c.l.b16 %v7289
    %v8319 = vunpack.c.h.b16 %v7289
    %v8320 = vunpack.c.l.b16 %v7290
    %v8321 = vunpack.c.h.b16 %v7290
    %v8322 = vunpack.c.l.b16 %v7291
    %v8323 = vunpack.c.h.b16 %v7291
    %v8324 = vunpack.c.l.b16 %v7292
    %v8325 = vunpack.c.h.b16 %v7292
    %v8326 = vunpack.c.l.b16 %v7293
    %v8327 = vunpack.c.h.b16 %v7293
    %v8328 = vunpack.c.l.b16 %v7294
    %v8329 = vunpack.c.h.b16 %v7294
    %v8330 = vunpack.c.l.b16 %v7295
    %v8331 = vunpack.c.h.b16 %v7295
    %v8332 = vunpack.c.l.b16 %v7296
    %v8333 = vunpack.c.h.b16 %v7296
    %v8334 = vunpack.c.l.b16 %v7297
    %v8335 = vunpack.c.h.b16 %v7297
    %v8336 = vunpack.c.l.b16 %v7298
    %v8337 = vunpack.c.h.b16 %v7298
    %v8338 = vunpack.c.l.b16 %v7299
    %v8339 = vunpack.c.h.b16 %v7299
    %v8340 = vunpack.c.l.b16 %v7300
    %v8341 = vunpack.c.h.b16 %v7300
    %v8342 = vunpack.c.l.b16 %v7301
    %v8343 = vunpack.c.h.b16 %v7301
    %v8344 = vunpack.c.l.b16 %v7302
    %v8345 = vunpack.c.h.b16 %v7302
    %v8346 = vunpack.c.l.b16 %v7303
    %v8347 = vunpack.c.h.b16 %v7303
    %v8348 = vunpack.c.l.b16 %v7304
    %v8349 = vunpack.c.h.b16 %v7304
    %v8350 = vunpack.c.l.b16 %v7305
    %v8351 = vunpack.c.h.b16 %v7305
    %v8352 = vunpack.c.l.b16 %v7306
    %v8353 = vunpack.c.h.b16 %v7306
    %v8354 = vunpack.c.l.b16 %v7307
    %v8355 = vunpack.c.h.b16 %v7307
    %v8356 = vunpack.c.l.b16 %v7308
    %v8357 = vunpack.c.h.b16 %v7308
    %v8358 = vunpack.c.l.b16 %v7309
    %v8359 = vunpack.c.h.b16 %v7309
    %v8360 = vunpack.c.l.b16 %v7310
    %v8361 = vunpack.c.h.b16 %v7310
    %v8362 = vunpack.c.l.b16 %v7311
    %v8363 = vunpack.c.h.b16 %v7311
    %v8364 = vunpack.c.l.b16 %v7312
    %v8365 = vunpack.c.h.b16 %v7312
    %v8366 = vpack.c.b16 %v7858, %v7854
    %v8367 = vpack.c.b16 %v7859, %v7855
    %v8368 = vpack.c.b16 %v7860, %v7856
    %v8369 = vpack.c.b16 %v7861, %v7857
    %v8370 = vpack.c.b16 %v7866, %v7862
    %v8371 = vpack.c.b16 %v7867, %v7863
    %v8372 = vpack.c.b16 %v7868, %v7864
    %v8373 = vpack.c.b16 %v7869, %v7865
    %v8374 = vpack.c.b16 %v7874, %v7870
    %v8375 = vpack.c.b16 %v7875, %v7871
    %v8376 = vpack.c.b16 %v7876, %v7872
    %v8377 = vpack.c.b16 %v7877, %v7873
    %v8378 = vpack.c.b16 %v7882, %v7878
    %v8379 = vpack.c.b16 %v7883, %v7879
    %v8380 = vpack.c.b16 %v7884, %v7880
    %v8381 = vpack.c.b16 %v7885, %v7881
    %v8382 = vpack.c.b16 %v7890, %v7886
    %v8383 = vpack.c.b16 %v7891, %v7887
    %v8384 = vpack.c.b16 %v7892, %v7888
    %v8385 = vpack.c.b16 %v7893, %v7889
    %v8386 = vpack.c.b16 %v7898, %v7894
    %v8387 = vpack.c.b16 %v7899, %v7895
    %v8388 = vpack.c.b16 %v7900, %v7896
    %v8389 = vpack.c.b16 %v7901, %v7897
    %v8390 = vpack.c.b16 %v7906, %v7902
    %v8391 = vpack.c.b16 %v7907, %v7903
    %v8392 = vpack.c.b16 %v7908, %v7904
    %v8393 = vpack.c.b16 %v7909, %v7905
    %v8394 = vpack.c.b16 %v7914, %v7910
    %v8395 = vpack.c.b16 %v7915, %v7911
    %v8396 = vpack.c.b16 %v7916, %v7912
    %v8397 = vpack.c.b16 %v7917, %v7913
    %v8398 = vpack.c.b16 %v7922, %v7918
    %v8399 = vpack.c.b16 %v7923, %v7919
    %v8400 = vpack.c.b16 %v7924, %v7920
    %v8401 = vpack.c.b16 %v7925, %v7921
    %v8402 = vpack.c.b16 %v7930, %v7926
    %v8403 = vpack.c.b16 %v7931, %v7927
    %v8404 = vpack.c.b16 %v7932, %v7928
    %v8405 = vpack.c.b16 %v7933, %v7929
    %v8406 = vpack.c.b16 %v7938, %v7934
    %v8407 = vpack.c.b16 %v7939, %v7935
    %v8408 = vpack.c.b16 %v7940, %v7936
    %v8409 = vpack.c.b16 %v7941, %v7937
    %v8410 = vpack.c.b16 %v7946, %v7942
    %v8411 = vpack.c.b16 %v7947, %v7943
    %v8412 = vpack.c.b16 %v7948, %v7944
    %v8413 = vpack.c.b16 %v7949, %v7945
    %v8414 = vpack.c.b16 %v7954, %v7950
    %v8415 = vpack.c.b16 %v7955, %v7951
    %v8416 = vpack.c.b16 %v7956, %v7952
    %v8417 = vpack.c.b16 %v7957, %v7953
    %v8418 = vpack.c.b16 %v7962, %v7958
    %v8419 = vpack.c.b16 %v7963, %v7959
    %v8420 = vpack.c.b16 %v7964, %v7960
    %v8421 = vpack.c.b16 %v7965, %v7961
    %v8422 = vpack.c.b16 %v7970, %v7966
    %v8423 = vpack.c.b16 %v7971, %v7967
    %v8424 = vpack.c.b16 %v7972, %v7968
    %v8425 = vpack.c.b16 %v7973, %v7969
    %v8426 = vpack.c.b16 %v7978, %v7974
    %v8427 = vpack.c.b16 %v7979, %v7975
    %v8428 = vpack.c.b16 %v7980, %v7976
    %v8429 = vpack.c.b16 %v7981, %v7977
    %v8430 = vpack.c.b16 %v7986, %v7982
    %v8431 = vpack.c.b16 %v7987, %v7983
    %v8432 = vpack.c.b16 %v7988, %v7984
    %v8433 = vpack.c.b16 %v7989, %v7985
    %v8434 = vpack.c.b16 %v7994, %v7990
    %v8435 = vpack.c.b16 %v7995, %v7991
    %v8436 = vpack.c.b16 %v7996, %v7992
    %v8437 = vpack.c.b16 %v7997, %v7993
    %v8438 = vpack.c.b16 %v8002, %v7998
    %v8439 = vpack.c.b16 %v8003, %v7999
    %v8440 = vpack.c.b16 %v8004, %v8000
    %v8441 = vpack.c.b16 %v8005, %v8001
    %v8442 = vpack.c.b16 %v8010, %v8006
    %v8443 = vpack.c.b16 %v8011, %v8007
    %v8444 = vpack.c.b16 %v8012, %v8008
    %v8445 = vpack.c.b16 %v8013, %v8009
    %v8446 = vpack.c.b16 %v8018, %v8014
    %v8447 = vpack.c.b16 %v8019, %v8015
    %v8448 = vpack.c.b16 %v8020, %v8016
    %v8449 = vpack.c.b16 %v8021, %v8017
    %v8450 = vpack.c.b16 %v8026, %v8022
    %v8451 = vpack.c.b16 %v8027, %v8023
    %v8452 = vpack.c.b16 %v8028, %v8024
    %v8453 = vpack.c.b16 %v8029, %v8025
    %v8454 = vpack.c.b16 %v8034, %v8030
    %v8455 = vpack.c.b16 %v8035, %v8031
    %v8456 = vpack.c.b16 %v8036, %v8032
    %v8457 = vpack.c.b16 %v8037, %v8033
    %v8458 = vpack.c.b16 %v8042, %v8038
    %v8459 = vpack.c.b16 %v8043, %v8039
    %v8460 = vpack.c.b16 %v8044, %v8040
    %v8461 = vpack.c.b16 %v8045, %v8041
    %v8462 = vpack.c.b16 %v8050, %v8046
    %v8463 = vpack.c.b16 %v8051, %v8047
    %v8464 = vpack.c.b16 %v8052, %v8048
    %v8465 = vpack.c.b16 %v8053, %v8049
    %v8466 = vpack.c.b16 %v8058, %v8054
    %v8467 = vpack.c.b16 %v8059, %v8055
    %v8468 = vpack.c.b16 %v8060, %v8056
    %v8469 = vpack.c.b16 %v8061, %v8057
    %v8470 = vpack.c.b16 %v8066, %v8062
    %v8471 = vpack.c.b16 %v8067, %v8063
    %v8472 = vpack.c.b16 %v8068, %v8064
    %v8473 = vpack.c.b16 %v8069, %v8065
    %v8474 = vpack.c.b16 %v8074, %v8070
    %v8475 = vpack.c.b16 %v8075, %v8071
    %v8476 = vpack.c.b16 %v8076, %v8072
    %v8477 = vpack.c.b16 %v8077, %v8073
    %v8478 = vpack.c.b16 %v8082, %v8078
    %v8479 = vpack.c.b16 %v8083, %v8079
    %v8480 = vpack.c.b16 %v8084, %v8080
    %v8481 = vpack.c.b16 %v8085, %v8081
    %v8482 = vpack.c.b16 %v8090, %v8086
    %v8483 = vpack.c.b16 %v8091, %v8087
    %v8484 = vpack.c.b16 %v8092, %v8088
    %v8485 = vpack.c.b16 %v8093, %v8089
    %v8486 = vpack.c.b16 %v8098, %v8094
    %v8487 = vpack.c.b16 %v8099, %v8095
    %v8488 = vpack.c.b16 %v8100, %v8096
    %v8489 = vpack.c.b16 %v8101, %v8097
    %v8490 = vpack.c.b16 %v8106, %v8102
    %v8491 = vpack.c.b16 %v8107, %v8103
    %v8492 = vpack.c.b16 %v8108, %v8104
    %v8493 = vpack.c.b16 %v8109, %v8105
    %v8494 = vpack.c.b16 %v8114, %v8110
    %v8495 = vpack.c.b16 %v8115, %v8111
    %v8496 = vpack.c.b16 %v8116, %v8112
    %v8497 = vpack.c.b16 %v8117, %v8113
    %v8498 = vpack.c.b16 %v8122, %v8118
    %v8499 = vpack.c.b16 %v8123, %v8119
    %v8500 = vpack.c.b16 %v8124, %v8120
    %v8501 = vpack.c.b16 %v8125, %v8121
    %v8502 = vpack.c.b16 %v8130, %v8126
    %v8503 = vpack.c.b16 %v8131, %v8127
    %v8504 = vpack.c.b16 %v8132, %v8128
    %v8505 = vpack.c.b16 %v8133, %v8129
    %v8506 = vpack.c.b16 %v8138, %v8134
    %v8507 = vpack.c.b16 %v8139, %v8135
    %v8508 = vpack.c.b16 %v8140, %v8136
    %v8509 = vpack.c.b16 %v8141, %v8137
    %v8510 = vpack.c.b16 %v8146, %v8142
    %v8511 = vpack.c.b16 %v8147, %v8143
    %v8512 = vpack.c.b16 %v8148, %v8144
    %v8513 = vpack.c.b16 %v8149, %v8145
    %v8514 = vpack.c.b16 %v8154, %v8150
    %v8515 = vpack.c.b16 %v8155, %v8151
    %v8516 = vpack.c.b16 %v8156, %v8152
    %v8517 = vpack.c.b16 %v8157, %v8153
    %v8518 = vpack.c.b16 %v8162, %v8158
    %v8519 = vpack.c.b16 %v8163, %v8159
    %v8520 = vpack.c.b16 %v8164, %v8160
    %v8521 = vpack.c.b16 %v8165, %v8161
    %v8522 = vpack.c.b16 %v8170, %v8166
    %v8523 = vpack.c.b16 %v8171, %v8167
    %v8524 = vpack.c.b16 %v8172, %v8168
    %v8525 = vpack.c.b16 %v8173, %v8169
    %v8526 = vpack.c.b16 %v8178, %v8174
    %v8527 = vpack.c.b16 %v8179, %v8175
    %v8528 = vpack.c.b16 %v8180, %v8176
    %v8529 = vpack.c.b16 %v8181, %v8177
    %v8530 = vpack.c.b16 %v8186, %v8182
    %v8531 = vpack.c.b16 %v8187, %v8183
    %v8532 = vpack.c.b16 %v8188, %v8184
    %v8533 = vpack.c.b16 %v8189, %v8185
    %v8534 = vpack.c.b16 %v8194, %v8190
    %v8535 = vpack.c.b16 %v8195, %v8191
    %v8536 = vpack.c.b16 %v8196, %v8192
    %v8537 = vpack.c.b16 %v8197, %v8193
    %v8538 = vpack.c.b16 %v8202, %v8198
    %v8539 = vpack.c.b16 %v8203, %v8199
    %v8540 = vpack.c.b16 %v8204, %v8200
    %v8541 = vpack.c.b16 %v8205, %v8201
    %v8542 = vpack.c.b16 %v8210, %v8206
    %v8543 = vpack.c.b16 %v8211, %v8207
    %v8544 = vpack.c.b16 %v8212, %v8208
    %v8545 = vpack.c.b16 %v8213, %v8209
    %v8546 = vpack.c.b16 %v8218, %v8214
    %v8547 = vpack.c.b16 %v8219, %v8215
    %v8548 = vpack.c.b16 %v8220, %v8216
    %v8549 = vpack.c.b16 %v8221, %v8217
    %v8550 = vpack.c.b16 %v8226, %v8222
    %v8551 = vpack.c.b16 %v8227, %v8223
    %v8552 = vpack.c.b16 %v8228, %v8224
    %v8553 = vpack.c.b16 %v8229, %v8225
    %v8554 = vpack.c.b16 %v8234, %v8230
    %v8555 = vpack.c.b16 %v8235, %v8231
    %v8556 = vpack.c.b16 %v8236, %v8232
    %v8557 = vpack.c.b16 %v8237, %v8233
    %v8558 = vpack.c.b16 %v8242, %v8238
    %v8559 = vpack.c.b16 %v8243, %v8239
    %v8560 = vpack.c.b16 %v8244, %v8240
    %v8561 = vpack.c.b16 %v8245, %v8241
    %v8562 = vpack.c.b16 %v8250, %v8246
    %v8563 = vpack.c.b16 %v8251, %v8247
    %v8564 = vpack.c.b16 %v8252, %v8248
    %v8565 = vpack.c.b16 %v8253, %v8249
    %v8566 = vpack.c.b16 %v8258, %v8254
    %v8567 = vpack.c.b16 %v8259, %v8255
    %v8568 = vpack.c.b16 %v8260, %v8256
    %v8569 = vpack.c.b16 %v8261, %v8257
    %v8570 = vpack.c.b16 %v8266, %v8262
    %v8571 = vpack.c.b16 %v8267, %v8263
    %v8572 = vpack.c.b16 %v8268, %v8264
    %v8573 = vpack.c.b16 %v8269, %v8265
    %v8574 = vpack.c.b16 %v8274, %v8270
    %v8575 = vpack.c.b16 %v8275, %v8271
    %v8576 = vpack.c.b16 %v8276, %v8272
    %v8577 = vpack.c.b16 %v8277, %v8273
    %v8578 = vpack.c.b16 %v8282, %v8278
    %v8579 = vpack.c.b16 %v8283, %v8279
    %v8580 = vpack.c.b16 %v8284, %v8280
    %v8581 = vpack.c.b16 %v8285, %v8281
    %v8582 = vpack.c.b16 %v8290, %v8286
    %v8583 = vpack.c.b16 %v8291, %v8287
    %v8584 = vpack.c.b16 %v8292, %v8288
    %v8585 = vpack.c.b16 %v8293, %v8289
    %v8586 = vpack.c.b16 %v8298, %v8294
    %v8587 = vpack.c.b16 %v8299, %v8295
    %v8588 = vpack.c.b16 %v8300, %v8296
    %v8589 = vpack.c.b16 %v8301, %v8297
    %v8590 = vpack.c.b16 %v8306, %v8302
    %v8591 = vpack.c.b16 %v8307, %v8303
    %v8592 = vpack.c.b16 %v8308, %v8304
    %v8593 = vpack.c.b16 %v8309, %v8305
    %v8594 = vpack.c.b16 %v8314, %v8310
    %v8595 = vpack.c.b16 %v8315, %v8311
    %v8596 = vpack.c.b16 %v8316, %v8312
    %v8597 = vpack.c.b16 %v8317, %v8313
    %v8598 = vpack.c.b16 %v8322, %v8318
    %v8599 = vpack.c.b16 %v8323, %v8319
    %v8600 = vpack.c.b16 %v8324, %v8320
    %v8601 = vpack.c.b16 %v8325, %v8321
    %v8602 = vpack.c.b16 %v8330, %v8326
    %v8603 = vpack.c.b16 %v8331, %v8327
    %v8604 = vpack.c.b16 %v8332, %v8328
    %v8605 = vpack.c.b16 %v8333, %v8329
    %v8606 = vpack.c.b16 %v8338, %v8334
    %v8607 = vpack.c.b16 %v8339, %v8335
    %v8608 = vpack.c.b16 %v8340, %v8336
    %v8609 = vpack.c.b16 %v8341, %v8337
    %v8610 = vpack.c.b16 %v8346, %v8342
    %v8611 = vpack.c.b16 %v8347, %v8343
    %v8612 = vpack.c.b16 %v8348, %v8344
    %v8613 = vpack.c.b16 %v8349, %v8345
    %v8614 = vpack.c.b16 %v8354, %v8350
    %v8615 = vpack.c.b16 %v8355, %v8351
    %v8616 = vpack.c.b16 %v8356, %v8352
    %v8617 = vpack.c.b16 %v8357, %v8353
    %v8618 = vpack.c.b16 %v8362, %v8358
    %v8619 = vpack.c.b16 %v8363, %v8359
    %v8620 = vpack.c.b16 %v8364, %v8360
    %v8621 = vpack.c.b16 %v8365, %v8361
    %8878 = vmatprep.subr.bf16.mxu0 %v8367
    %8879 = vmatpush1.bf16.msra.mxu0 %v8366
    %8880 = vmatprep.subr.bf16.mxu0 %v8371
    %8881 = vmatpush1.bf16.msra.mxu0 %v8370
    %8882 = vmatprep.subr.bf16.mxu0 %v8375
    %8883 = vmatpush1.bf16.msra.mxu0 %v8374
    %8884 = vmatprep.subr.bf16.mxu0 %v8379
    %8885 = vmatpush1.bf16.msra.mxu0 %v8378
    %8886 = vmatprep.subr.bf16.mxu0 %v8383
    %8887 = vmatpush1.bf16.msra.mxu0 %v8382
    %8888 = vmatprep.subr.bf16.mxu0 %v8387
    %8889 = vmatpush1.bf16.msra.mxu0 %v8386
    %8890 = vmatprep.subr.bf16.mxu0 %v8391
    %8891 = vmatpush1.bf16.msra.mxu0 %v8390
    %8892 = vmatprep.subr.bf16.mxu0 %v8395
    %8893 = vmatpush1.bf16.msra.mxu0 %v8394
    %8894 = vmatprep.subr.bf16.mxu0 %v8399
    %8895 = vmatpush1.bf16.msra.mxu0 %v8398
    %8896 = vmatprep.subr.bf16.mxu0 %v8403
    %8897 = vmatpush1.bf16.msra.mxu0 %v8402
    %8898 = vmatprep.subr.bf16.mxu0 %v8407
    %8899 = vmatpush1.bf16.msra.mxu0 %v8406
    %8900 = vmatprep.subr.bf16.mxu0 %v8411
    %8901 = vmatpush1.bf16.msra.mxu0 %v8410
    %8902 = vmatprep.subr.bf16.mxu0 %v8415
    %8903 = vmatpush1.bf16.msra.mxu0 %v8414
    %8904 = vmatprep.subr.bf16.mxu0 %v8419
    %8905 = vmatpush1.bf16.msra.mxu0 %v8418
    %8906 = vmatprep.subr.bf16.mxu0 %v8423
    %8907 = vmatpush1.bf16.msra.mxu0 %v8422
    %8908 = vmatprep.subr.bf16.mxu0 %v8427
    %8909 = vmatpush1.bf16.msra.mxu0 %v8426
    %8910 = vmatprep.mubr.bf16.mxu0 %v7583
    %8911 = vmatmul.mubr.bf16.gmra.mrb[0].mxu0 %v7582
    %v8912 = vpop.f32.mrb[0].mxu0
    %v8913 = vadd.f32 %v7318, %v8912
    %v8914 = vpop.f32.mrb[0].mxu0
    %v8915 = vadd.f32 %v7322, %v8914
    %v8916 = vpop.f32.mrb[0].mxu0
    %v8917 = vpop.f32.mrb[0].mxu0
    %8918 = vdwg.mxu0
    %8919 = vmatprep.subr.bf16.mxu0 %v8431
    %8920 = vmatpush1.bf16.msra.mxu0 %v8430
    %8921 = vmatprep.subr.bf16.mxu0 %v8435
    %8922 = vmatpush1.bf16.msra.mxu0 %v8434
    %8923 = vmatprep.subr.bf16.mxu0 %v8439
    %8924 = vmatpush1.bf16.msra.mxu0 %v8438
    %8925 = vmatprep.subr.bf16.mxu0 %v8443
    %8926 = vmatpush1.bf16.msra.mxu0 %v8442
    %8927 = vmatprep.subr.bf16.mxu0 %v8447
    %8928 = vmatpush1.bf16.msra.mxu0 %v8446
    %8929 = vmatprep.subr.bf16.mxu0 %v8451
    %8930 = vmatpush1.bf16.msra.mxu0 %v8450
    %8931 = vmatprep.subr.bf16.mxu0 %v8455
    %8932 = vmatpush1.bf16.msra.mxu0 %v8454
    %8933 = vmatprep.subr.bf16.mxu0 %v8459
    %8934 = vmatpush1.bf16.msra.mxu0 %v8458
    %8935 = vmatprep.subr.bf16.mxu0 %v8463
    %8936 = vmatpush1.bf16.msra.mxu0 %v8462
    %8937 = vmatprep.subr.bf16.mxu0 %v8467
    %8938 = vmatpush1.bf16.msra.mxu0 %v8466
    %8939 = vmatprep.subr.bf16.mxu0 %v8471
    %8940 = vmatpush1.bf16.msra.mxu0 %v8470
    %8941 = vmatprep.subr.bf16.mxu0 %v8475
    %8942 = vmatpush1.bf16.msra.mxu0 %v8474
    %8943 = vmatprep.subr.bf16.mxu0 %v8479
    %8944 = vmatpush1.bf16.msra.mxu0 %v8478
    %8945 = vmatprep.subr.bf16.mxu0 %v8483
    %8946 = vmatpush1.bf16.msra.mxu0 %v8482
    %8947 = vmatprep.subr.bf16.mxu0 %v8487
    %8948 = vmatpush1.bf16.msra.mxu0 %v8486
    %8949 = vmatprep.subr.bf16.mxu0 %v8491
    %8950 = vmatpush1.bf16.msra.mxu0 %v8490
    %8951 = vmatprep.mubr.bf16.mxu0 %v7585
    %8952 = vmatmul.mubr.bf16.gmra.mrb[0].mxu0 %v7584
    %v8953 = vpop.f32.mrb[0].mxu0
    %v8954 = vadd.f32 %v8913, %v8953
    %v8955 = vpop.f32.mrb[0].mxu0
    %v8956 = vadd.f32 %v8915, %v8955
    %v8957 = vpop.f32.mrb[0].mxu0
    %v8958 = vpop.f32.mrb[0].mxu0
    %8959 = vdwg.mxu0
    %8960 = vmatprep.subr.bf16.mxu0 %v8495
    %8961 = vmatpush1.bf16.msra.mxu0 %v8494
    %8962 = vmatprep.subr.bf16.mxu0 %v8499
    %8963 = vmatpush1.bf16.msra.mxu0 %v8498
    %8964 = vmatprep.subr.bf16.mxu0 %v8503
    %8965 = vmatpush1.bf16.msra.mxu0 %v8502
    %8966 = vmatprep.subr.bf16.mxu0 %v8507
    %8967 = vmatpush1.bf16.msra.mxu0 %v8506
    %8968 = vmatprep.subr.bf16.mxu0 %v8511
    %8969 = vmatpush1.bf16.msra.mxu0 %v8510
    %8970 = vmatprep.subr.bf16.mxu0 %v8515
    %8971 = vmatpush1.bf16.msra.mxu0 %v8514
    %8972 = vmatprep.subr.bf16.mxu0 %v8519
    %8973 = vmatpush1.bf16.msra.mxu0 %v8518
    %8974 = vmatprep.subr.bf16.mxu0 %v8523
    %8975 = vmatpush1.bf16.msra.mxu0 %v8522
    %8976 = vmatprep.subr.bf16.mxu0 %v8527
    %8977 = vmatpush1.bf16.msra.mxu0 %v8526
    %8978 = vmatprep.subr.bf16.mxu0 %v8531
    %8979 = vmatpush1.bf16.msra.mxu0 %v8530
    %8980 = vmatprep.subr.bf16.mxu0 %v8535
    %8981 = vmatpush1.bf16.msra.mxu0 %v8534
    %8982 = vmatprep.subr.bf16.mxu0 %v8539
    %8983 = vmatpush1.bf16.msra.mxu0 %v8538
    %8984 = vmatprep.subr.bf16.mxu0 %v8543
    %8985 = vmatpush1.bf16.msra.mxu0 %v8542
    %8986 = vmatprep.subr.bf16.mxu0 %v8547
    %8987 = vmatpush1.bf16.msra.mxu0 %v8546
    %8988 = vmatprep.subr.bf16.mxu0 %v8551
    %8989 = vmatpush1.bf16.msra.mxu0 %v8550
    %8990 = vmatprep.subr.bf16.mxu0 %v8555
    %8991 = vmatpush1.bf16.msra.mxu0 %v8554
    %8992 = vmatprep.mubr.bf16.mxu0 %v7587
    %8993 = vmatmul.mubr.bf16.gmra.mrb[0].mxu0 %v7586
    %v8994 = vpop.f32.mrb[0].mxu0
    %v8995 = vadd.f32 %v8954, %v8994
    %v8996 = vpop.f32.mrb[0].mxu0
    %v8997 = vadd.f32 %v8956, %v8996
    %v8998 = vpop.f32.mrb[0].mxu0
    %v8999 = vpop.f32.mrb[0].mxu0
    %9000 = vdwg.mxu0
    %9001 = vmatprep.subr.bf16.mxu0 %v8559
    %9002 = vmatpush1.bf16.msra.mxu0 %v8558
    %9003 = vmatprep.subr.bf16.mxu0 %v8563
    %9004 = vmatpush1.bf16.msra.mxu0 %v8562
    %9005 = vmatprep.subr.bf16.mxu0 %v8567
    %9006 = vmatpush1.bf16.msra.mxu0 %v8566
    %9007 = vmatprep.subr.bf16.mxu0 %v8571
    %9008 = vmatpush1.bf16.msra.mxu0 %v8570
    %9009 = vmatprep.subr.bf16.mxu0 %v8575
    %9010 = vmatpush1.bf16.msra.mxu0 %v8574
    %9011 = vmatprep.subr.bf16.mxu0 %v8579
    %9012 = vmatpush1.bf16.msra.mxu0 %v8578
    %9013 = vmatprep.subr.bf16.mxu0 %v8583
    %9014 = vmatpush1.bf16.msra.mxu0 %v8582
    %9015 = vmatprep.subr.bf16.mxu0 %v8587
    %9016 = vmatpush1.bf16.msra.mxu0 %v8586
    %9017 = vmatprep.subr.bf16.mxu0 %v8591
    %9018 = vmatpush1.bf16.msra.mxu0 %v8590
    %9019 = vmatprep.subr.bf16.mxu0 %v8595
    %9020 = vmatpush1.bf16.msra.mxu0 %v8594
    %9021 = vmatprep.subr.bf16.mxu0 %v8599
    %9022 = vmatpush1.bf16.msra.mxu0 %v8598
    %9023 = vmatprep.subr.bf16.mxu0 %v8603
    %9024 = vmatpush1.bf16.msra.mxu0 %v8602
    %9025 = vmatprep.subr.bf16.mxu0 %v8607
    %9026 = vmatpush1.bf16.msra.mxu0 %v8606
    %9027 = vmatprep.subr.bf16.mxu0 %v8611
    %9028 = vmatpush1.bf16.msra.mxu0 %v8610
    %9029 = vmatprep.subr.bf16.mxu0 %v8615
    %9030 = vmatpush1.bf16.msra.mxu0 %v8614
    %9031 = vmatprep.subr.bf16.mxu0 %v8619
    %9032 = vmatpush1.bf16.msra.mxu0 %v8618
    %9033 = vmatprep.mubr.bf16.mxu0 %v7589
    %9034 = vmatmul.mubr.bf16.gmra.mrb[0].mxu0 %v7588
    %v9035 = vpop.f32.mrb[0].mxu0
    %v9036 = vadd.f32 %v8995, %v9035
    %v9037 = vpop.f32.mrb[0].mxu0
    %v9038 = vadd.f32 %v8997, %v9037
    %v9039 = vpop.f32.mrb[0].mxu0
    %v9040 = vpop.f32.mrb[0].mxu0
    %9041 = vdwg.mxu0
    %9042 = vmatprep.subr.bf16.mxu0 %v8369
    %9043 = vmatpush1.bf16.msra.mxu0 %v8368
    %9044 = vmatprep.subr.bf16.mxu0 %v8373
    %9045 = vmatpush1.bf16.msra.mxu0 %v8372
    %9046 = vmatprep.subr.bf16.mxu0 %v8377
    %9047 = vmatpush1.bf16.msra.mxu0 %v8376
    %9048 = vmatprep.subr.bf16.mxu0 %v8381
    %9049 = vmatpush1.bf16.msra.mxu0 %v8380
    %9050 = vmatprep.subr.bf16.mxu0 %v8385
    %9051 = vmatpush1.bf16.msra.mxu0 %v8384
    %9052 = vmatprep.subr.bf16.mxu0 %v8389
    %9053 = vmatpush1.bf16.msra.mxu0 %v8388
    %9054 = vmatprep.subr.bf16.mxu0 %v8393
    %9055 = vmatpush1.bf16.msra.mxu0 %v8392
    %9056 = vmatprep.subr.bf16.mxu0 %v8397
    %9057 = vmatpush1.bf16.msra.mxu0 %v8396
    %9058 = vmatprep.subr.bf16.mxu0 %v8401
    %9059 = vmatpush1.bf16.msra.mxu0 %v8400
    %9060 = vmatprep.subr.bf16.mxu0 %v8405
    %9061 = vmatpush1.bf16.msra.mxu0 %v8404
    %9062 = vmatprep.subr.bf16.mxu0 %v8409
    %9063 = vmatpush1.bf16.msra.mxu0 %v8408
    %9064 = vmatprep.subr.bf16.mxu0 %v8413
    %9065 = vmatpush1.bf16.msra.mxu0 %v8412
    %9066 = vmatprep.subr.bf16.mxu0 %v8417
    %9067 = vmatpush1.bf16.msra.mxu0 %v8416
    %9068 = vmatprep.subr.bf16.mxu0 %v8421
    %9069 = vmatpush1.bf16.msra.mxu0 %v8420
    %9070 = vmatprep.subr.bf16.mxu0 %v8425
    %9071 = vmatpush1.bf16.msra.mxu0 %v8424
    %9072 = vmatprep.subr.bf16.mxu0 %v8429
    %9073 = vmatpush1.bf16.msra.mxu0 %v8428
    %9074 = vmatprep.mubr.bf16.mxu0 %v7583
    %9075 = vmatmul.mubr.bf16.gmra.mrb[0].mxu0 %v7582
    %v9076 = vpop.f32.mrb[0].mxu0
    %v9077 = vadd.f32 %v7326, %v9076
    %v9078 = vpop.f32.mrb[0].mxu0
    %v9079 = vadd.f32 %v7330, %v9078
    %v9080 = vpop.f32.mrb[0].mxu0
    %v9081 = vpop.f32.mrb[0].mxu0
    %9082 = vdwg.mxu0
    %9083 = vmatprep.subr.bf16.mxu0 %v8433
    %9084 = vmatpush1.bf16.msra.mxu0 %v8432
    %9085 = vmatprep.subr.bf16.mxu0 %v8437
    %9086 = vmatpush1.bf16.msra.mxu0 %v8436
    %9087 = vmatprep.subr.bf16.mxu0 %v8441
    %9088 = vmatpush1.bf16.msra.mxu0 %v8440
    %9089 = vmatprep.subr.bf16.mxu0 %v8445
    %9090 = vmatpush1.bf16.msra.mxu0 %v8444
    %9091 = vmatprep.subr.bf16.mxu0 %v8449
    %9092 = vmatpush1.bf16.msra.mxu0 %v8448
    %9093 = vmatprep.subr.bf16.mxu0 %v8453
    %9094 = vmatpush1.bf16.msra.mxu0 %v8452
    %9095 = vmatprep.subr.bf16.mxu0 %v8457
    %9096 = vmatpush1.bf16.msra.mxu0 %v8456
    %9097 = vmatprep.subr.bf16.mxu0 %v8461
    %9098 = vmatpush1.bf16.msra.mxu0 %v8460
    %9099 = vmatprep.subr.bf16.mxu0 %v8465
    %9100 = vmatpush1.bf16.msra.mxu0 %v8464
    %9101 = vmatprep.subr.bf16.mxu0 %v8469
    %9102 = vmatpush1.bf16.msra.mxu0 %v8468
    %9103 = vmatprep.subr.bf16.mxu0 %v8473
    %9104 = vmatpush1.bf16.msra.mxu0 %v8472
    %9105 = vmatprep.subr.bf16.mxu0 %v8477
    %9106 = vmatpush1.bf16.msra.mxu0 %v8476
    %9107 = vmatprep.subr.bf16.mxu0 %v8481
    %9108 = vmatpush1.bf16.msra.mxu0 %v8480
    %9109 = vmatprep.subr.bf16.mxu0 %v8485
    %9110 = vmatpush1.bf16.msra.mxu0 %v8484
    %9111 = vmatprep.subr.bf16.mxu0 %v8489
    %9112 = vmatpush1.bf16.msra.mxu0 %v8488
    %9113 = vmatprep.subr.bf16.mxu0 %v8493
    %9114 = vmatpush1.bf16.msra.mxu0 %v8492
    %9115 = vmatprep.mubr.bf16.mxu0 %v7585
    %9116 = vmatmul.mubr.bf16.gmra.mrb[0].mxu0 %v7584
    %v9117 = vpop.f32.mrb[0].mxu0
    %v9118 = vadd.f32 %v9077, %v9117
    %v9119 = vpop.f32.mrb[0].mxu0
    %v9120 = vadd.f32 %v9079, %v9119
    %v9121 = vpop.f32.mrb[0].mxu0
    %v9122 = vpop.f32.mrb[0].mxu0
    %9123 = vdwg.mxu0
    %9124 = vmatprep.subr.bf16.mxu0 %v8497
    %9125 = vmatpush1.bf16.msra.mxu0 %v8496
    %9126 = vmatprep.subr.bf16.mxu0 %v8501
    %9127 = vmatpush1.bf16.msra.mxu0 %v8500
    %9128 = vmatprep.subr.bf16.mxu0 %v8505
    %9129 = vmatpush1.bf16.msra.mxu0 %v8504
    %9130 = vmatprep.subr.bf16.mxu0 %v8509
    %9131 = vmatpush1.bf16.msra.mxu0 %v8508
    %9132 = vmatprep.subr.bf16.mxu0 %v8513
    %9133 = vmatpush1.bf16.msra.mxu0 %v8512
    %9134 = vmatprep.subr.bf16.mxu0 %v8517
    %9135 = vmatpush1.bf16.msra.mxu0 %v8516
    %9136 = vmatprep.subr.bf16.mxu0 %v8521
    %9137 = vmatpush1.bf16.msra.mxu0 %v8520
    %9138 = vmatprep.subr.bf16.mxu0 %v8525
    %9139 = vmatpush1.bf16.msra.mxu0 %v8524
    %9140 = vmatprep.subr.bf16.mxu0 %v8529
    %9141 = vmatpush1.bf16.msra.mxu0 %v8528
    %9142 = vmatprep.subr.bf16.mxu0 %v8533
    %9143 = vmatpush1.bf16.msra.mxu0 %v8532
    %9144 = vmatprep.subr.bf16.mxu0 %v8537
    %9145 = vmatpush1.bf16.msra.mxu0 %v8536
    %9146 = vmatprep.subr.bf16.mxu0 %v8541
    %9147 = vmatpush1.bf16.msra.mxu0 %v8540
    %9148 = vmatprep.subr.bf16.mxu0 %v8545
    %9149 = vmatpush1.bf16.msra.mxu0 %v8544
    %9150 = vmatprep.subr.bf16.mxu0 %v8549
    %9151 = vmatpush1.bf16.msra.mxu0 %v8548
    %9152 = vmatprep.subr.bf16.mxu0 %v8553
    %9153 = vmatpush1.bf16.msra.mxu0 %v8552
    %9154 = vmatprep.subr.bf16.mxu0 %v8557
    %9155 = vmatpush1.bf16.msra.mxu0 %v8556
    %9156 = vmatprep.mubr.bf16.mxu0 %v7587
    %9157 = vmatmul.mubr.bf16.gmra.mrb[0].mxu0 %v7586
    %v9158 = vpop.f32.mrb[0].mxu0
    %v9159 = vadd.f32 %v9118, %v9158
    %v9160 = vpop.f32.mrb[0].mxu0
    %v9161 = vadd.f32 %v9120, %v9160
    %v9162 = vpop.f32.mrb[0].mxu0
    %v9163 = vpop.f32.mrb[0].mxu0
    %9164 = vdwg.mxu0
    %9165 = vmatprep.subr.bf16.mxu0 %v8561
    %9166 = vmatpush1.bf16.msra.mxu0 %v8560
    %9167 = vmatprep.subr.bf16.mxu0 %v8565
    %9168 = vmatpush1.bf16.msra.mxu0 %v8564
    %9169 = vmatprep.subr.bf16.mxu0 %v8569
    %9170 = vmatpush1.bf16.msra.mxu0 %v8568
    %9171 = vmatprep.subr.bf16.mxu0 %v8573
    %9172 = vmatpush1.bf16.msra.mxu0 %v8572
    %9173 = vmatprep.subr.bf16.mxu0 %v8577
    %9174 = vmatpush1.bf16.msra.mxu0 %v8576
    %9175 = vmatprep.subr.bf16.mxu0 %v8581
    %9176 = vmatpush1.bf16.msra.mxu0 %v8580
    %9177 = vmatprep.subr.bf16.mxu0 %v8585
    %9178 = vmatpush1.bf16.msra.mxu0 %v8584
    %9179 = vmatprep.subr.bf16.mxu0 %v8589
    %9180 = vmatpush1.bf16.msra.mxu0 %v8588
    %9181 = vmatprep.subr.bf16.mxu0 %v8593
    %9182 = vmatpush1.bf16.msra.mxu0 %v8592
    %9183 = vmatprep.subr.bf16.mxu0 %v8597
    %9184 = vmatpush1.bf16.msra.mxu0 %v8596
    %9185 = vmatprep.subr.bf16.mxu0 %v8601
    %9186 = vmatpush1.bf16.msra.mxu0 %v8600
    %9187 = vmatprep.subr.bf16.mxu0 %v8605
    %9188 = vmatpush1.bf16.msra.mxu0 %v8604
    %9189 = vmatprep.subr.bf16.mxu0 %v8609
    %9190 = vmatpush1.bf16.msra.mxu0 %v8608
    %9191 = vmatprep.subr.bf16.mxu0 %v8613
    %9192 = vmatpush1.bf16.msra.mxu0 %v8612
    %9193 = vmatprep.subr.bf16.mxu0 %v8617
    %9194 = vmatpush1.bf16.msra.mxu0 %v8616
    %9195 = vmatprep.subr.bf16.mxu0 %v8621
    %9196 = vmatpush1.bf16.msra.mxu0 %v8620
    %9197 = vmatprep.mubr.bf16.mxu0 %v7589
    %9198 = vmatmul.mubr.bf16.gmra.mrb[0].mxu0 %v7588
    %v9199 = vpop.f32.mrb[0].mxu0
    %v9200 = vadd.f32 %v9159, %v9199
    %v9201 = vpop.f32.mrb[0].mxu0
    %v9202 = vadd.f32 %v9161, %v9201
    %v9203 = vpop.f32.mrb[0].mxu0
    %v9204 = vpop.f32.mrb[0].mxu0
    %9205 = vdwg.mxu0
    %v9206 = vmax.f32 %v9036, 0.0
    %v9207 = vmax.f32 %v9038, 0.0
    %v9208 = vmax.f32 %v9200, 0.0
    %v9209 = vmax.f32 %v9202, 0.0
    %v9210 = vpack.c.bf16 %v9206, %v9206
    %v9211 = vpack.c.bf16 %v9207, %v9207
    %v9212 = vpack.c.bf16 %v9208, %v9208
    %v9213 = vpack.c.bf16 %v9209, %v9209
    %v9214 = vld [vmem:[#allocation13] sm:$0xff]
    %v9215 = vld [vmem:[#allocation13 + $0x8] sm:$0xff]
    %v9216 = vld [vmem:[#allocation13 + $0x10] sm:$0xff]
    %v9217 = vld [vmem:[#allocation13 + $0x18] sm:$0xff]
    %v9218 = vld [vmem:[#allocation13 + $0x20] sm:$0xff]
    %v9219 = vld [vmem:[#allocation13 + $0x28] sm:$0xff]
    %v9220 = vld [vmem:[#allocation13 + $0x30] sm:$0xff]
    %v9221 = vld [vmem:[#allocation13 + $0x38] sm:$0xff]
    %v9222 = vld [vmem:[#allocation13 + $0x40] sm:$0xff]
    %v9223 = vld [vmem:[#allocation13 + $0x48] sm:$0xff]
    %v9224 = vld [vmem:[#allocation13 + $0x50] sm:$0xff]
    %v9225 = vld [vmem:[#allocation13 + $0x58] sm:$0xff]
    %v9226 = vld [vmem:[#allocation13 + $0x60] sm:$0xff]
    %v9227 = vld [vmem:[#allocation13 + $0x68] sm:$0xff]
    %v9228 = vld [vmem:[#allocation13 + $0x70] sm:$0xff]
    %v9229 = vld [vmem:[#allocation13 + $0x78] sm:$0xff]
    %v9230 = vld [vmem:[#allocation13 + $0x80] sm:$0xff]
    %v9231 = vld [vmem:[#allocation13 + $0x88] sm:$0xff]
    %v9232 = vld [vmem:[#allocation13 + $0x90] sm:$0xff]
    %v9233 = vld [vmem:[#allocation13 + $0x98] sm:$0xff]
    %v9234 = vld [vmem:[#allocation13 + $0xa0] sm:$0xff]
    %v9235 = vld [vmem:[#allocation13 + $0xa8] sm:$0xff]
    %v9236 = vld [vmem:[#allocation13 + $0xb0] sm:$0xff]
    %v9237 = vld [vmem:[#allocation13 + $0xb8] sm:$0xff]
    %v9238 = vld [vmem:[#allocation13 + $0xc0] sm:$0xff]
    %v9239 = vld [vmem:[#allocation13 + $0xc8] sm:$0xff]
    %v9240 = vld [vmem:[#allocation13 + $0xd0] sm:$0xff]
    %v9241 = vld [vmem:[#allocation13 + $0xd8] sm:$0xff]
    %v9242 = vld [vmem:[#allocation13 + $0xe0] sm:$0xff]
    %v9243 = vld [vmem:[#allocation13 + $0xe8] sm:$0xff]
    %v9244 = vld [vmem:[#allocation13 + $0xf0] sm:$0xff]
    %v9245 = vld [vmem:[#allocation13 + $0xf8] sm:$0xff]
    %v9246 = vld [vmem:[#allocation13 + $0x100] sm:$0xff]
    %v9247 = vld [vmem:[#allocation13 + $0x108] sm:$0xff]
    %v9248 = vld [vmem:[#allocation13 + $0x110] sm:$0xff]
    %v9249 = vld [vmem:[#allocation13 + $0x118] sm:$0xff]
    %v9250 = vld [vmem:[#allocation13 + $0x120] sm:$0xff]
    %v9251 = vld [vmem:[#allocation13 + $0x128] sm:$0xff]
    %v9252 = vld [vmem:[#allocation13 + $0x130] sm:$0xff]
    %v9253 = vld [vmem:[#allocation13 + $0x138] sm:$0xff]
    %v9254 = vld [vmem:[#allocation13 + $0x140] sm:$0xff]
    %v9255 = vld [vmem:[#allocation13 + $0x148] sm:$0xff]
    %v9256 = vld [vmem:[#allocation13 + $0x150] sm:$0xff]
    %v9257 = vld [vmem:[#allocation13 + $0x158] sm:$0xff]
    %v9258 = vld [vmem:[#allocation13 + $0x160] sm:$0xff]
    %v9259 = vld [vmem:[#allocation13 + $0x168] sm:$0xff]
    %v9260 = vld [vmem:[#allocation13 + $0x170] sm:$0xff]
    %v9261 = vld [vmem:[#allocation13 + $0x178] sm:$0xff]
    %v9262 = vld [vmem:[#allocation13 + $0x180] sm:$0xff]
    %v9263 = vld [vmem:[#allocation13 + $0x188] sm:$0xff]
    %v9264 = vld [vmem:[#allocation13 + $0x190] sm:$0xff]
    %v9265 = vld [vmem:[#allocation13 + $0x198] sm:$0xff]
    %v9266 = vld [vmem:[#allocation13 + $0x1a0] sm:$0xff]
    %v9267 = vld [vmem:[#allocation13 + $0x1a8] sm:$0xff]
    %v9268 = vld [vmem:[#allocation13 + $0x1b0] sm:$0xff]
    %v9269 = vld [vmem:[#allocation13 + $0x1b8] sm:$0xff]
    %v9270 = vld [vmem:[#allocation13 + $0x1c0] sm:$0xff]
    %v9271 = vld [vmem:[#allocation13 + $0x1c8] sm:$0xff]
    %v9272 = vld [vmem:[#allocation13 + $0x1d0] sm:$0xff]
    %v9273 = vld [vmem:[#allocation13 + $0x1d8] sm:$0xff]
    %v9274 = vld [vmem:[#allocation13 + $0x1e0] sm:$0xff]
    %v9275 = vld [vmem:[#allocation13 + $0x1e8] sm:$0xff]
    %v9276 = vld [vmem:[#allocation13 + $0x1f0] sm:$0xff]
    %v9277 = vld [vmem:[#allocation13 + $0x1f8] sm:$0xff]
    %v9278 = vld [vmem:[%s10] sm:$0x3]
    %v9280 = vlaneseq
    %v9281 = vshrl.u32 %v9280, 7
    %v9282 = vsub.s32 0, %v9281
    %v9283 = vrot.slane %v9278, %v9282
    %v9284 = vlaneseq
    %v9285 = vshrl.u32 %v9284, 7
    %v9286 = vsub.s32 1, %v9285
    %v9287 = vrot.slane %v9278, %v9286
    %v9354 = vunpack.c.l.b16 %v9214
    %v9355 = vunpack.c.h.b16 %v9214
    %v9356 = vunpack.c.l.b16 %v9215
    %v9357 = vunpack.c.h.b16 %v9215
    %v9358 = vunpack.c.l.b16 %v9216
    %v9359 = vunpack.c.h.b16 %v9216
    %v9360 = vunpack.c.l.b16 %v9217
    %v9361 = vunpack.c.h.b16 %v9217
    %v9362 = vunpack.c.l.b16 %v9218
    %v9363 = vunpack.c.h.b16 %v9218
    %v9364 = vunpack.c.l.b16 %v9219
    %v9365 = vunpack.c.h.b16 %v9219
    %v9366 = vunpack.c.l.b16 %v9220
    %v9367 = vunpack.c.h.b16 %v9220
    %v9368 = vunpack.c.l.b16 %v9221
    %v9369 = vunpack.c.h.b16 %v9221
    %v9370 = vunpack.c.l.b16 %v9222
    %v9371 = vunpack.c.h.b16 %v9222
    %v9372 = vunpack.c.l.b16 %v9223
    %v9373 = vunpack.c.h.b16 %v9223
    %v9374 = vunpack.c.l.b16 %v9224
    %v9375 = vunpack.c.h.b16 %v9224
    %v9376 = vunpack.c.l.b16 %v9225
    %v9377 = vunpack.c.h.b16 %v9225
    %v9378 = vunpack.c.l.b16 %v9226
    %v9379 = vunpack.c.h.b16 %v9226
    %v9380 = vunpack.c.l.b16 %v9227
    %v9381 = vunpack.c.h.b16 %v9227
    %v9382 = vunpack.c.l.b16 %v9228
    %v9383 = vunpack.c.h.b16 %v9228
    %v9384 = vunpack.c.l.b16 %v9229
    %v9385 = vunpack.c.h.b16 %v9229
    %v9386 = vunpack.c.l.b16 %v9230
    %v9387 = vunpack.c.h.b16 %v9230
    %v9388 = vunpack.c.l.b16 %v9231
    %v9389 = vunpack.c.h.b16 %v9231
    %v9390 = vunpack.c.l.b16 %v9232
    %v9391 = vunpack.c.h.b16 %v9232
    %v9392 = vunpack.c.l.b16 %v9233
    %v9393 = vunpack.c.h.b16 %v9233
    %v9394 = vunpack.c.l.b16 %v9234
    %v9395 = vunpack.c.h.b16 %v9234
    %v9396 = vunpack.c.l.b16 %v9235
    %v9397 = vunpack.c.h.b16 %v9235
    %v9398 = vunpack.c.l.b16 %v9236
    %v9399 = vunpack.c.h.b16 %v9236
    %v9400 = vunpack.c.l.b16 %v9237
    %v9401 = vunpack.c.h.b16 %v9237
    %v9402 = vunpack.c.l.b16 %v9238
    %v9403 = vunpack.c.h.b16 %v9238
    %v9404 = vunpack.c.l.b16 %v9239
    %v9405 = vunpack.c.h.b16 %v9239
    %v9406 = vunpack.c.l.b16 %v9240
    %v9407 = vunpack.c.h.b16 %v9240
    %v9408 = vunpack.c.l.b16 %v9241
    %v9409 = vunpack.c.h.b16 %v9241
    %v9410 = vunpack.c.l.b16 %v9242
    %v9411 = vunpack.c.h.b16 %v9242
    %v9412 = vunpack.c.l.b16 %v9243
    %v9413 = vunpack.c.h.b16 %v9243
    %v9414 = vunpack.c.l.b16 %v9244
    %v9415 = vunpack.c.h.b16 %v9244
    %v9416 = vunpack.c.l.b16 %v9245
    %v9417 = vunpack.c.h.b16 %v9245
    %v9418 = vunpack.c.l.b16 %v9246
    %v9419 = vunpack.c.h.b16 %v9246
    %v9420 = vunpack.c.l.b16 %v9247
    %v9421 = vunpack.c.h.b16 %v9247
    %v9422 = vunpack.c.l.b16 %v9248
    %v9423 = vunpack.c.h.b16 %v9248
    %v9424 = vunpack.c.l.b16 %v9249
    %v9425 = vunpack.c.h.b16 %v9249
    %v9426 = vunpack.c.l.b16 %v9250
    %v9427 = vunpack.c.h.b16 %v9250
    %v9428 = vunpack.c.l.b16 %v9251
    %v9429 = vunpack.c.h.b16 %v9251
    %v9430 = vunpack.c.l.b16 %v9252
    %v9431 = vunpack.c.h.b16 %v9252
    %v9432 = vunpack.c.l.b16 %v9253
    %v9433 = vunpack.c.h.b16 %v9253
    %v9434 = vunpack.c.l.b16 %v9254
    %v9435 = vunpack.c.h.b16 %v9254
    %v9436 = vunpack.c.l.b16 %v9255
    %v9437 = vunpack.c.h.b16 %v9255
    %v9438 = vunpack.c.l.b16 %v9256
    %v9439 = vunpack.c.h.b16 %v9256
    %v9440 = vunpack.c.l.b16 %v9257
    %v9441 = vunpack.c.h.b16 %v9257
    %v9442 = vunpack.c.l.b16 %v9258
    %v9443 = vunpack.c.h.b16 %v9258
    %v9444 = vunpack.c.l.b16 %v9259
    %v9445 = vunpack.c.h.b16 %v9259
    %v9446 = vunpack.c.l.b16 %v9260
    %v9447 = vunpack.c.h.b16 %v9260
    %v9448 = vunpack.c.l.b16 %v9261
    %v9449 = vunpack.c.h.b16 %v9261
    %v9450 = vunpack.c.l.b16 %v9262
    %v9451 = vunpack.c.h.b16 %v9262
    %v9452 = vunpack.c.l.b16 %v9263
    %v9453 = vunpack.c.h.b16 %v9263
    %v9454 = vunpack.c.l.b16 %v9264
    %v9455 = vunpack.c.h.b16 %v9264
    %v9456 = vunpack.c.l.b16 %v9265
    %v9457 = vunpack.c.h.b16 %v9265
    %v9458 = vunpack.c.l.b16 %v9266
    %v9459 = vunpack.c.h.b16 %v9266
    %v9460 = vunpack.c.l.b16 %v9267
    %v9461 = vunpack.c.h.b16 %v9267
    %v9462 = vunpack.c.l.b16 %v9268
    %v9463 = vunpack.c.h.b16 %v9268
    %v9464 = vunpack.c.l.b16 %v9269
    %v9465 = vunpack.c.h.b16 %v9269
    %v9466 = vunpack.c.l.b16 %v9270
    %v9467 = vunpack.c.h.b16 %v9270
    %v9468 = vunpack.c.l.b16 %v9271
    %v9469 = vunpack.c.h.b16 %v9271
    %v9470 = vunpack.c.l.b16 %v9272
    %v9471 = vunpack.c.h.b16 %v9272
    %v9472 = vunpack.c.l.b16 %v9273
    %v9473 = vunpack.c.h.b16 %v9273
    %v9474 = vunpack.c.l.b16 %v9274
    %v9475 = vunpack.c.h.b16 %v9274
    %v9476 = vunpack.c.l.b16 %v9275
    %v9477 = vunpack.c.h.b16 %v9275
    %v9478 = vunpack.c.l.b16 %v9276
    %v9479 = vunpack.c.h.b16 %v9276
    %v9480 = vunpack.c.l.b16 %v9277
    %v9481 = vunpack.c.h.b16 %v9277
    %v9482 = vpack.c.b16 %v9356, %v9354
    %v9483 = vpack.c.b16 %v9357, %v9355
    %v9484 = vpack.c.b16 %v9360, %v9358
    %v9485 = vpack.c.b16 %v9361, %v9359
    %v9486 = vpack.c.b16 %v9364, %v9362
    %v9487 = vpack.c.b16 %v9365, %v9363
    %v9488 = vpack.c.b16 %v9368, %v9366
    %v9489 = vpack.c.b16 %v9369, %v9367
    %v9490 = vpack.c.b16 %v9372, %v9370
    %v9491 = vpack.c.b16 %v9373, %v9371
    %v9492 = vpack.c.b16 %v9376, %v9374
    %v9493 = vpack.c.b16 %v9377, %v9375
    %v9494 = vpack.c.b16 %v9380, %v9378
    %v9495 = vpack.c.b16 %v9381, %v9379
    %v9496 = vpack.c.b16 %v9384, %v9382
    %v9497 = vpack.c.b16 %v9385, %v9383
    %v9498 = vpack.c.b16 %v9388, %v9386
    %v9499 = vpack.c.b16 %v9389, %v9387
    %v9500 = vpack.c.b16 %v9392, %v9390
    %v9501 = vpack.c.b16 %v9393, %v9391
    %v9502 = vpack.c.b16 %v9396, %v9394
    %v9503 = vpack.c.b16 %v9397, %v9395
    %v9504 = vpack.c.b16 %v9400, %v9398
    %v9505 = vpack.c.b16 %v9401, %v9399
    %v9506 = vpack.c.b16 %v9404, %v9402
    %v9507 = vpack.c.b16 %v9405, %v9403
    %v9508 = vpack.c.b16 %v9408, %v9406
    %v9509 = vpack.c.b16 %v9409, %v9407
    %v9510 = vpack.c.b16 %v9412, %v9410
    %v9511 = vpack.c.b16 %v9413, %v9411
    %v9512 = vpack.c.b16 %v9416, %v9414
    %v9513 = vpack.c.b16 %v9417, %v9415
    %v9514 = vpack.c.b16 %v9420, %v9418
    %v9515 = vpack.c.b16 %v9421, %v9419
    %v9516 = vpack.c.b16 %v9424, %v9422
    %v9517 = vpack.c.b16 %v9425, %v9423
    %v9518 = vpack.c.b16 %v9428, %v9426
    %v9519 = vpack.c.b16 %v9429, %v9427
    %v9520 = vpack.c.b16 %v9432, %v9430
    %v9521 = vpack.c.b16 %v9433, %v9431
    %v9522 = vpack.c.b16 %v9436, %v9434
    %v9523 = vpack.c.b16 %v9437, %v9435
    %v9524 = vpack.c.b16 %v9440, %v9438
    %v9525 = vpack.c.b16 %v9441, %v9439
    %v9526 = vpack.c.b16 %v9444, %v9442
    %v9527 = vpack.c.b16 %v9445, %v9443
    %v9528 = vpack.c.b16 %v9448, %v9446
    %v9529 = vpack.c.b16 %v9449, %v9447
    %v9530 = vpack.c.b16 %v9452, %v9450
    %v9531 = vpack.c.b16 %v9453, %v9451
    %v9532 = vpack.c.b16 %v9456, %v9454
    %v9533 = vpack.c.b16 %v9457, %v9455
    %v9534 = vpack.c.b16 %v9460, %v9458
    %v9535 = vpack.c.b16 %v9461, %v9459
    %v9536 = vpack.c.b16 %v9464, %v9462
    %v9537 = vpack.c.b16 %v9465, %v9463
    %v9538 = vpack.c.b16 %v9468, %v9466
    %v9539 = vpack.c.b16 %v9469, %v9467
    %v9540 = vpack.c.b16 %v9472, %v9470
    %v9541 = vpack.c.b16 %v9473, %v9471
    %v9542 = vpack.c.b16 %v9476, %v9474
    %v9543 = vpack.c.b16 %v9477, %v9475
    %v9544 = vpack.c.b16 %v9480, %v9478
    %v9545 = vpack.c.b16 %v9481, %v9479
    %9610 = vmatprep.subr.bf16.mxu0 %v9483
    %9611 = vmatpush1.bf16.msra.mxu0 %v9482
    %9612 = vmatprep.subr.bf16.mxu0 %v9485
    %9613 = vmatpush1.bf16.msra.mxu0 %v9484
    %9614 = vmatprep.subr.bf16.mxu0 %v9487
    %9615 = vmatpush1.bf16.msra.mxu0 %v9486
    %9616 = vmatprep.subr.bf16.mxu0 %v9489
    %9617 = vmatpush1.bf16.msra.mxu0 %v9488
    %9618 = vmatprep.subr.bf16.mxu0 %v9491
    %9619 = vmatpush1.bf16.msra.mxu0 %v9490
    %9620 = vmatprep.subr.bf16.mxu0 %v9493
    %9621 = vmatpush1.bf16.msra.mxu0 %v9492
    %9622 = vmatprep.subr.bf16.mxu0 %v9495
    %9623 = vmatpush1.bf16.msra.mxu0 %v9494
    %9624 = vmatprep.subr.bf16.mxu0 %v9497
    %9625 = vmatpush1.bf16.msra.mxu0 %v9496
    %9626 = vmatprep.subr.bf16.mxu0 %v9499
    %9627 = vmatpush1.bf16.msra.mxu0 %v9498
    %9628 = vmatprep.subr.bf16.mxu0 %v9501
    %9629 = vmatpush1.bf16.msra.mxu0 %v9500
    %9630 = vmatprep.subr.bf16.mxu0 %v9503
    %9631 = vmatpush1.bf16.msra.mxu0 %v9502
    %9632 = vmatprep.subr.bf16.mxu0 %v9505
    %9633 = vmatpush1.bf16.msra.mxu0 %v9504
    %9634 = vmatprep.subr.bf16.mxu0 %v9507
    %9635 = vmatpush1.bf16.msra.mxu0 %v9506
    %9636 = vmatprep.subr.bf16.mxu0 %v9509
    %9637 = vmatpush1.bf16.msra.mxu0 %v9508
    %9638 = vmatprep.subr.bf16.mxu0 %v9511
    %9639 = vmatpush1.bf16.msra.mxu0 %v9510
    %9640 = vmatprep.subr.bf16.mxu0 %v9513
    %9641 = vmatpush1.bf16.msra.mxu0 %v9512
    %9642 = vmatprep.mubr.bf16.mxu0 %v9211
    %9643 = vmatmul.mubr.bf16.gmra.mrb[0].mxu0 %v9210
    %v9644 = vpop.f32.mrb[0].mxu0
    %v9645 = vadd.f32 %v9283, %v9644
    %v9646 = vpop.f32.mrb[0].mxu0
    %v9647 = vadd.f32 %v9287, %v9646
    %v9648 = vpop.f32.mrb[0].mxu0
    %v9649 = vpop.f32.mrb[0].mxu0
    %9650 = vdwg.mxu0
    %9651 = vmatprep.subr.bf16.mxu0 %v9515
    %9652 = vmatpush1.bf16.msra.mxu0 %v9514
    %9653 = vmatprep.subr.bf16.mxu0 %v9517
    %9654 = vmatpush1.bf16.msra.mxu0 %v9516
    %9655 = vmatprep.subr.bf16.mxu0 %v9519
    %9656 = vmatpush1.bf16.msra.mxu0 %v9518
    %9657 = vmatprep.subr.bf16.mxu0 %v9521
    %9658 = vmatpush1.bf16.msra.mxu0 %v9520
    %9659 = vmatprep.subr.bf16.mxu0 %v9523
    %9660 = vmatpush1.bf16.msra.mxu0 %v9522
    %9661 = vmatprep.subr.bf16.mxu0 %v9525
    %9662 = vmatpush1.bf16.msra.mxu0 %v9524
    %9663 = vmatprep.subr.bf16.mxu0 %v9527
    %9664 = vmatpush1.bf16.msra.mxu0 %v9526
    %9665 = vmatprep.subr.bf16.mxu0 %v9529
    %9666 = vmatpush1.bf16.msra.mxu0 %v9528
    %9667 = vmatprep.subr.bf16.mxu0 %v9531
    %9668 = vmatpush1.bf16.msra.mxu0 %v9530
    %9669 = vmatprep.subr.bf16.mxu0 %v9533
    %9670 = vmatpush1.bf16.msra.mxu0 %v9532
    %9671 = vmatprep.subr.bf16.mxu0 %v9535
    %9672 = vmatpush1.bf16.msra.mxu0 %v9534
    %9673 = vmatprep.subr.bf16.mxu0 %v9537
    %9674 = vmatpush1.bf16.msra.mxu0 %v9536
    %9675 = vmatprep.subr.bf16.mxu0 %v9539
    %9676 = vmatpush1.bf16.msra.mxu0 %v9538
    %9677 = vmatprep.subr.bf16.mxu0 %v9541
    %9678 = vmatpush1.bf16.msra.mxu0 %v9540
    %9679 = vmatprep.subr.bf16.mxu0 %v9543
    %9680 = vmatpush1.bf16.msra.mxu0 %v9542
    %9681 = vmatprep.subr.bf16.mxu0 %v9545
    %9682 = vmatpush1.bf16.msra.mxu0 %v9544
    %9683 = vmatprep.mubr.bf16.mxu0 %v9213
    %9684 = vmatmul.mubr.bf16.gmra.mrb[0].mxu0 %v9212
    %v9685 = vpop.f32.mrb[0].mxu0
    %v9686 = vadd.f32 %v9645, %v9685
    %v9687 = vpop.f32.mrb[0].mxu0
    %v9688 = vadd.f32 %v9647, %v9687
    %v9689 = vpop.f32.mrb[0].mxu0
    %v9690 = vpop.f32.mrb[0].mxu0
    %9691 = vdwg.mxu0
    %v9692 = vmax.f32 %v9686, 0.0
    %v9693 = vmax.f32 %v9688, 0.0
    %v9694 = vpack.c.bf16 %v9692, %v9692
    %v9695 = vpack.c.bf16 %v9693, %v9693
    %v9696 = vld [vmem:[#allocation14] sm:$0xff]
    %v9697 = vld [vmem:[#allocation14 + $0x8] sm:$0xff]
    %v9698 = vld [vmem:[#allocation14 + $0x10] sm:$0xff]
    %v9699 = vld [vmem:[#allocation14 + $0x18] sm:$0xff]
    %v9700 = vld [vmem:[#allocation14 + $0x20] sm:$0xff]
    %v9701 = vld [vmem:[#allocation14 + $0x28] sm:$0xff]
    %v9702 = vld [vmem:[#allocation14 + $0x30] sm:$0xff]
    %v9703 = vld [vmem:[#allocation14 + $0x38] sm:$0xff]
    %v9704 = vld [vmem:[#allocation14 + $0x40] sm:$0xff]
    %v9705 = vld [vmem:[#allocation14 + $0x48] sm:$0xff]
    %v9706 = vld [vmem:[#allocation14 + $0x50] sm:$0xff]
    %v9707 = vld [vmem:[#allocation14 + $0x58] sm:$0xff]
    %v9708 = vld [vmem:[#allocation14 + $0x60] sm:$0xff]
    %v9709 = vld [vmem:[#allocation14 + $0x68] sm:$0xff]
    %v9710 = vld [vmem:[#allocation14 + $0x70] sm:$0xff]
    %v9711 = vld [vmem:[#allocation14 + $0x78] sm:$0xff]
    %v9712 = vld [vmem:[#allocation14 + $0x80] sm:$0xff]
    %v9713 = vld [vmem:[#allocation14 + $0x88] sm:$0xff]
    %v9714 = vld [vmem:[#allocation14 + $0x90] sm:$0xff]
    %v9715 = vld [vmem:[#allocation14 + $0x98] sm:$0xff]
    %v9716 = vld [vmem:[#allocation14 + $0xa0] sm:$0xff]
    %v9717 = vld [vmem:[#allocation14 + $0xa8] sm:$0xff]
    %v9718 = vld [vmem:[#allocation14 + $0xb0] sm:$0xff]
    %v9719 = vld [vmem:[#allocation14 + $0xb8] sm:$0xff]
    %v9720 = vld [vmem:[#allocation14 + $0xc0] sm:$0xff]
    %v9721 = vld [vmem:[#allocation14 + $0xc8] sm:$0xff]
    %v9722 = vld [vmem:[#allocation14 + $0xd0] sm:$0xff]
    %v9723 = vld [vmem:[#allocation14 + $0xd8] sm:$0xff]
    %v9724 = vld [vmem:[#allocation14 + $0xe0] sm:$0xff]
    %v9725 = vld [vmem:[#allocation14 + $0xe8] sm:$0xff]
    %v9726 = vld [vmem:[#allocation14 + $0xf0] sm:$0xff]
    %v9727 = vld [vmem:[#allocation14 + $0xf8] sm:$0xff]
    %v9728 = vld [vmem:[%s12] sm:$0x3]
    %v9730 = vlaneseq
    %v9731 = vshrl.u32 %v9730, 7
    %v9732 = vsub.s32 0, %v9731
    %v9733 = vrot.slane %v9728, %v9732
    %v9734 = vlaneseq
    %v9735 = vshrl.u32 %v9734, 7
    %v9736 = vsub.s32 1, %v9735
    %v9737 = vrot.slane %v9728, %v9736
    %v9772 = vunpack.c.l.b16 %v9696
    %v9773 = vunpack.c.h.b16 %v9696
    %v9774 = vunpack.c.l.b16 %v9697
    %v9775 = vunpack.c.h.b16 %v9697
    %v9776 = vunpack.c.l.b16 %v9698
    %v9777 = vunpack.c.h.b16 %v9698
    %v9778 = vunpack.c.l.b16 %v9699
    %v9779 = vunpack.c.h.b16 %v9699
    %v9780 = vunpack.c.l.b16 %v9700
    %v9781 = vunpack.c.h.b16 %v9700
    %v9782 = vunpack.c.l.b16 %v9701
    %v9783 = vunpack.c.h.b16 %v9701
    %v9784 = vunpack.c.l.b16 %v9702
    %v9785 = vunpack.c.h.b16 %v9702
    %v9786 = vunpack.c.l.b16 %v9703
    %v9787 = vunpack.c.h.b16 %v9703
    %v9788 = vunpack.c.l.b16 %v9704
    %v9789 = vunpack.c.h.b16 %v9704
    %v9790 = vunpack.c.l.b16 %v9705
    %v9791 = vunpack.c.h.b16 %v9705
    %v9792 = vunpack.c.l.b16 %v9706
    %v9793 = vunpack.c.h.b16 %v9706
    %v9794 = vunpack.c.l.b16 %v9707
    %v9795 = vunpack.c.h.b16 %v9707
    %v9796 = vunpack.c.l.b16 %v9708
    %v9797 = vunpack.c.h.b16 %v9708
    %v9798 = vunpack.c.l.b16 %v9709
    %v9799 = vunpack.c.h.b16 %v9709
    %v9800 = vunpack.c.l.b16 %v9710
    %v9801 = vunpack.c.h.b16 %v9710
    %v9802 = vunpack.c.l.b16 %v9711
    %v9803 = vunpack.c.h.b16 %v9711
    %v9804 = vunpack.c.l.b16 %v9712
    %v9805 = vunpack.c.h.b16 %v9712
    %v9806 = vunpack.c.l.b16 %v9713
    %v9807 = vunpack.c.h.b16 %v9713
    %v9808 = vunpack.c.l.b16 %v9714
    %v9809 = vunpack.c.h.b16 %v9714
    %v9810 = vunpack.c.l.b16 %v9715
    %v9811 = vunpack.c.h.b16 %v9715
    %v9812 = vunpack.c.l.b16 %v9716
    %v9813 = vunpack.c.h.b16 %v9716
    %v9814 = vunpack.c.l.b16 %v9717
    %v9815 = vunpack.c.h.b16 %v9717
    %v9816 = vunpack.c.l.b16 %v9718
    %v9817 = vunpack.c.h.b16 %v9718
    %v9818 = vunpack.c.l.b16 %v9719
    %v9819 = vunpack.c.h.b16 %v9719
    %v9820 = vunpack.c.l.b16 %v9720
    %v9821 = vunpack.c.h.b16 %v9720
    %v9822 = vunpack.c.l.b16 %v9721
    %v9823 = vunpack.c.h.b16 %v9721
    %v9824 = vunpack.c.l.b16 %v9722
    %v9825 = vunpack.c.h.b16 %v9722
    %v9826 = vunpack.c.l.b16 %v9723
    %v9827 = vunpack.c.h.b16 %v9723
    %v9828 = vunpack.c.l.b16 %v9724
    %v9829 = vunpack.c.h.b16 %v9724
    %v9830 = vunpack.c.l.b16 %v9725
    %v9831 = vunpack.c.h.b16 %v9725
    %v9832 = vunpack.c.l.b16 %v9726
    %v9833 = vunpack.c.h.b16 %v9726
    %v9834 = vunpack.c.l.b16 %v9727
    %v9835 = vunpack.c.h.b16 %v9727
    %v9836 = vpack.c.b16 %v9774, %v9772
    %v9837 = vpack.c.b16 %v9775, %v9773
    %v9838 = vpack.c.b16 %v9778, %v9776
    %v9839 = vpack.c.b16 %v9779, %v9777
    %v9840 = vpack.c.b16 %v9782, %v9780
    %v9841 = vpack.c.b16 %v9783, %v9781
    %v9842 = vpack.c.b16 %v9786, %v9784
    %v9843 = vpack.c.b16 %v9787, %v9785
    %v9844 = vpack.c.b16 %v9790, %v9788
    %v9845 = vpack.c.b16 %v9791, %v9789
    %v9846 = vpack.c.b16 %v9794, %v9792
    %v9847 = vpack.c.b16 %v9795, %v9793
    %v9848 = vpack.c.b16 %v9798, %v9796
    %v9849 = vpack.c.b16 %v9799, %v9797
    %v9850 = vpack.c.b16 %v9802, %v9800
    %v9851 = vpack.c.b16 %v9803, %v9801
    %v9852 = vpack.c.b16 %v9806, %v9804
    %v9853 = vpack.c.b16 %v9807, %v9805
    %v9854 = vpack.c.b16 %v9810, %v9808
    %v9855 = vpack.c.b16 %v9811, %v9809
    %v9856 = vpack.c.b16 %v9814, %v9812
    %v9857 = vpack.c.b16 %v9815, %v9813
    %v9858 = vpack.c.b16 %v9818, %v9816
    %v9859 = vpack.c.b16 %v9819, %v9817
    %v9860 = vpack.c.b16 %v9822, %v9820
    %v9861 = vpack.c.b16 %v9823, %v9821
    %v9862 = vpack.c.b16 %v9826, %v9824
    %v9863 = vpack.c.b16 %v9827, %v9825
    %v9864 = vpack.c.b16 %v9830, %v9828
    %v9865 = vpack.c.b16 %v9831, %v9829
    %v9866 = vpack.c.b16 %v9834, %v9832
    %v9867 = vpack.c.b16 %v9835, %v9833
    %9900 = vmatprep.subr.bf16.mxu0 %v9837
    %9901 = vmatpush1.bf16.msra.mxu0 %v9836
    %9902 = vmatprep.subr.bf16.mxu0 %v9839
    %9903 = vmatpush1.bf16.msra.mxu0 %v9838
    %9904 = vmatprep.subr.bf16.mxu0 %v9841
    %9905 = vmatpush1.bf16.msra.mxu0 %v9840
    %9906 = vmatprep.subr.bf16.mxu0 %v9843
    %9907 = vmatpush1.bf16.msra.mxu0 %v9842
    %9908 = vmatprep.subr.bf16.mxu0 %v9845
    %9909 = vmatpush1.bf16.msra.mxu0 %v9844
    %9910 = vmatprep.subr.bf16.mxu0 %v9847
    %9911 = vmatpush1.bf16.msra.mxu0 %v9846
    %9912 = vmatprep.subr.bf16.mxu0 %v9849
    %9913 = vmatpush1.bf16.msra.mxu0 %v9848
    %9914 = vmatprep.subr.bf16.mxu0 %v9851
    %9915 = vmatpush1.bf16.msra.mxu0 %v9850
    %9916 = vmatprep.subr.bf16.mxu0 %v9853
    %9917 = vmatpush1.bf16.msra.mxu0 %v9852
    %9918 = vmatprep.subr.bf16.mxu0 %v9855
    %9919 = vmatpush1.bf16.msra.mxu0 %v9854
    %9920 = vmatprep.subr.bf16.mxu0 %v9857
    %9921 = vmatpush1.bf16.msra.mxu0 %v9856
    %9922 = vmatprep.subr.bf16.mxu0 %v9859
    %9923 = vmatpush1.bf16.msra.mxu0 %v9858
    %9924 = vmatprep.subr.bf16.mxu0 %v9861
    %9925 = vmatpush1.bf16.msra.mxu0 %v9860
    %9926 = vmatprep.subr.bf16.mxu0 %v9863
    %9927 = vmatpush1.bf16.msra.mxu0 %v9862
    %9928 = vmatprep.subr.bf16.mxu0 %v9865
    %9929 = vmatpush1.bf16.msra.mxu0 %v9864
    %9930 = vmatprep.subr.bf16.mxu0 %v9867
    %9931 = vmatpush1.bf16.msra.mxu0 %v9866
    %9932 = vmatprep.mubr.bf16.mxu0 %v9695
    %9933 = vmatmul.mubr.bf16.gmra.mrb[0].mxu0 %v9694
    %v9934 = vpop.f32.mrb[0].mxu0
    %v9935 = vadd.f32 %v9733, %v9934
    %v9936 = vpop.f32.mrb[0].mxu0
    %v9937 = vadd.f32 %v9737, %v9936
    %v9938 = vpop.f32.mrb[0].mxu0
    %v9939 = vpop.f32.mrb[0].mxu0
    %9940 = vdwg.mxu0
    %9941 = vst [vmem:[#allocation16] sm:$0xff] %v9935
    %9942 = vst [vmem:[#allocation16 + $0x8] sm:$0xff] %v9937
    // Predicated region
    $region86: #{tpu_custom_call.1} parent=1 // pred_check
      _
    $region87: #{tpu_custom_call.1} parent=1 // pred_check_branch
      %9944 = sbr.rel (0) target = $region89
    $region88: #{tpu_custom_call.1} parent=1 // pred_region
      %s9946 = ssub.s32 256, 256
      %9947 = vsyncadd [#allocation4], %s9946
      %s9949 = sshll.u32 [#allocation16], 4
      %s9950 = int_to_ptr.vmem [resolvable:$true] %s9949
      %9952 = dma.vmem_to_hbm [thread:$0]  %s9950, 256, %s13, [#allocation4]
    $region89: #{tpu_custom_call.1} parent=1 // pred_fallthru
      _
    // Predicated region
    $region90: #{tpu_custom_call.1} parent=1 // pred_check
      _
    $region91: #{tpu_custom_call.1} parent=1 // pred_check_branch
      %9954 = sbr.rel (0) target = $region93
    $region92: #{tpu_custom_call.1} parent=1 // pred_region
      %9955 = dma.done [#allocation4], 256
    $region93: #{tpu_custom_call.1} parent=1 // pred_fallthru
      _
    %9956 = vsyncpa [#allocation3], 1
    %9957 = vsyncpa [#allocation6], 1
    %9958 = vsyncpa [#allocation9], 1
    %9959 = vsyncpa [#allocation12], 1
    %9960 = vsyncpa [#allocation15], 1
    %9961 = vsyncpa [#allocation4], 1

</llo_original>
